<compile_context>
chip_gen: v6e
topology: v6e:2x2x1
jax: 0.10.0
libtpu: 0.0.40
codegen_flags: <defaults>
</compile_context>

<pallas_src>
import functools

import jax
import jax.numpy as jnp
import numpy as np
from jax.experimental import pallas as pl
from jax.experimental.pallas import tpu as pltpu


def aspp_kernel(xpad_ref,
                w1_ref, s1_ref, b1_ref,
                wc_ref, s2345_ref, b2345_ref,
                wb3_ref, wb4_ref, wb5_ref,
                wbr_ref, wb0_ref, sb_ref, bb_ref,
                out_ref,
                *, H, W, Cin, Cout, pad, dilations):
    # Cin / Cout here are the lane-padded channel counts.
    f32 = jnp.float32
    bf16 = jnp.bfloat16
    M = H * W

    xp = xpad_ref[0]                                 # (H+2p, W+2p, Cin) bf16
    x3 = xp[pad:pad + H, pad:pad + W, :]             # interior (H, W, Cin)
    x2 = x3.reshape(M, Cin)

    # --- branch 1: AdaptiveAvgPool2d((1, None)) -> 1x1 conv -> BN -> ReLU ----
    # The bilinear (align_corners=True) upsample from (1, W) to (H, W) is an
    # exact broadcast along H; it is added after the bottleneck matmul below.
    xm = jnp.mean(x3.astype(f32), axis=0).astype(bf16)           # (W, Cin)
    f1 = jnp.maximum(jnp.dot(xm, w1_ref[...], preferred_element_type=f32)
                     * s1_ref[0] + b1_ref[0], 0.0)               # (W, Cout) f32
    f1c = jnp.dot(f1.astype(bf16), wb0_ref[...],
                  preferred_element_type=f32)                    # (W, Cout) f32

    # --- fused centre matmul: branch2's 1x1 conv + the centre taps of the
    # three dilated 3x3 convs (all consume the same interior pixels) ----------
    center = jnp.dot(x2, wc_ref[...], preferred_element_type=f32)  # (M, 4*Cout)

    # --- dilated 3x3 convs as 3 band matmuls each (top / mid / bottom row) ---
    def band(oy, ox_list):
        parts = [xp[oy:oy + H, ox:ox + W, :] for ox in ox_list]
        cat = parts[0] if len(parts) == 1 else jnp.concatenate(parts, axis=-1)
        return cat.reshape(M, len(parts) * Cin)                  # bf16

    def dilated(wband_ref, d, pre0):
        wband = wband_ref[...]                                   # (8*Cin, Cout)
        acc = pre0
        acc = acc + jnp.dot(band(pad - d, (pad - d, pad, pad + d)),
                            wband[0:3 * Cin], preferred_element_type=f32)
        acc = acc + jnp.dot(band(pad, (pad - d, pad + d)),
                            wband[3 * Cin:5 * Cin], preferred_element_type=f32)
        acc = acc + jnp.dot(band(pad + d, (pad - d, pad, pad + d)),
                            wband[5 * Cin:8 * Cin], preferred_element_type=f32)
        return acc

    pre2 = center[:, 0 * Cout:1 * Cout]
    pre3 = dilated(wb3_ref, dilations[0], center[:, 1 * Cout:2 * Cout])
    pre4 = dilated(wb4_ref, dilations[1], center[:, 2 * Cout:3 * Cout])
    pre5 = dilated(wb5_ref, dilations[2], center[:, 3 * Cout:4 * Cout])

    # --- BN + ReLU for branches 2..5 as one fused affine, then the bottleneck
    # 1x1 conv over their channel-concat as a single K=4*Cout matmul ----------
    pre_all = jnp.concatenate([pre2, pre3, pre4, pre5], axis=-1)  # (M, 4*Cout)
    f_all = jnp.maximum(pre_all * s2345_ref[0] + b2345_ref[0], 0.0).astype(bf16)
    pre_out = jnp.dot(f_all, wbr_ref[...],
                      preferred_element_type=f32)                 # (M, Cout)

    pre_out = pre_out.reshape(H, W, Cout) + f1c[None, :, :]
    out = jnp.maximum(pre_out * sb_ref[0] + bb_ref[0], 0.0)
    out_ref[0] = out.astype(out_ref.dtype)


def _round_up(x, m):
    return (x + m - 1) // m * m


def aspp_forward(x, params, dilations=(4, 8, 12)):
    """x: (N, H, W, Cin) float32 -> (N, H, W, Cout) float32 (NHWC)."""
    N, H, W, Cin = x.shape
    Cout = params["w1"].shape[1]
    pad = max(dilations)
    bf16 = jnp.bfloat16

    # Lane-pad channels so all matmuls / concats / stores are 128-lane dense.
    Cin_p = _round_up(Cin, 128)
    Cout_p = _round_up(Cout, 128)
    Hp, Wp = H + 2 * pad, W + 2 * pad

    def pad2(a, r, c):
        return jnp.pad(a, ((0, r - a.shape[0]), (0, c - a.shape[1])))

    def pad_io(w):                       # conv tap (Cin, Cout) -> (Cin_p, Cout_p)
        return pad2(w, Cin_p, Cout_p)

    def pad_sb(a):                       # BN scale/bias (1, Cout) -> (1, Cout_p)
        return jnp.pad(a, ((0, 0), (0, Cout_p - a.shape[1])))

    # Single padded bf16 input (spatial zero-pad for the dilated convs plus
    # channel pad to lane width).  This is the only activation DMA.
    xpad = jnp.pad(x, ((0, 0), (pad, pad), (pad, pad), (0, Cin_p - Cin)))
    xpad = xpad.astype(bf16)

    w3, w4, w5 = params["w3"], params["w4"], params["w5"]

    # branch-1 1x1 conv and its bottleneck block.
    w1p = pad_io(params["w1"]).astype(bf16)                       # (Cin_p, Cout_p)
    wb0p = pad2(params["wb"][0], Cout_p, Cout_p).astype(bf16)     # (Cout_p, Cout_p)

    # fused centre weight: [w2 | w3[1,1] | w4[1,1] | w5[1,1]].
    wc = jnp.concatenate([pad_io(params["w2"]), pad_io(w3[1, 1]),
                          pad_io(w4[1, 1]), pad_io(w5[1, 1])],
                         axis=1).astype(bf16)                     # (Cin_p, 4*Cout_p)

    # per-branch band weights, row blocks ordered to match the kernel's
    # [(0,0),(0,1),(0,2),(1,0),(1,2),(2,0),(2,1),(2,2)] tap order.
    def band_w(w):
        taps = [w[0, 0], w[0, 1], w[0, 2], w[1, 0], w[1, 2],
                w[2, 0], w[2, 1], w[2, 2]]
        return jnp.concatenate([pad_io(t) for t in taps], axis=0).astype(bf16)

    wband3, wband4, wband5 = band_w(w3), band_w(w4), band_w(w5)

    # bottleneck weight for the concat of branches 2..5 (one K=4*Cout matmul).
    wbr = jnp.concatenate([pad2(params["wb"][k], Cout_p, Cout_p)
                           for k in (1, 2, 3, 4)], axis=0).astype(bf16)

    s1, b1 = pad_sb(params["s1"]), pad_sb(params["b1"])
    s2345 = jnp.concatenate([pad_sb(params["s2"]), pad_sb(params["s3"]),
                             pad_sb(params["s4"]), pad_sb(params["s5"])], axis=1)
    b2345 = jnp.concatenate([pad_sb(params["b2"]), pad_sb(params["b3"]),
                             pad_sb(params["b4"]), pad_sb(params["b5"])], axis=1)
    sb, bb = pad_sb(params["sb"]), pad_sb(params["bb"])

    weights = [w1p, s1, b1, wc, s2345, b2345, wband3, wband4, wband5,
               wbr, wb0p, sb, bb]

    kern = functools.partial(aspp_kernel, H=H, W=W, Cin=Cin_p, Cout=Cout_p,
                             pad=pad, dilations=tuple(dilations))

    def full_spec(arr):
        nd = arr.ndim
        return pl.BlockSpec(arr.shape, lambda n, _nd=nd: (0,) * _nd)

    in_specs = ([pl.BlockSpec((1, Hp, Wp, Cin_p), lambda n: (n, 0, 0, 0))]
                + [full_spec(w) for w in weights])
    out_spec = pl.BlockSpec((1, H, W, Cout_p), lambda n: (n, 0, 0, 0))

    # Explicit scoped-VMEM budget from the actual block footprint plus headroom
    # for f32 intermediates, clamped comfortably below v7x's 64 MiB physical.
    w_bytes = sum(int(w.size) * w.dtype.itemsize for w in weights)
    block_bytes = Hp * Wp * Cin_p * 2 + H * W * Cout_p * 4 + w_bytes
    interm_bytes = 16 * H * W * Cout_p * 4 + 12 * H * W * Cin_p * 2
    vmem_limit = int(min(max(2 * block_bytes + interm_bytes, 32 << 20), 56 << 20))

    out = pl.pallas_call(
        kern,
        out_shape=jax.ShapeDtypeStruct((N, H, W, Cout_p), jnp.float32),
        grid_spec=pltpu.PrefetchScalarGridSpec(
            num_scalar_prefetch=0,
            grid=(N,),
            in_specs=in_specs,
            out_specs=out_spec),
        compiler_params=pltpu.CompilerParams(
            dimension_semantics=("parallel",),
            vmem_limit_bytes=vmem_limit),
    )(xpad, *weights)
    return out[..., :Cout]


# ----------------------------- reference (plain JAX) -------------------------
def _conv_ref(x, w, pad, dil):
    return jax.lax.conv_general_dilated(
        x, w, window_strides=(1, 1), padding=[(pad, pad), (pad, pad)],
        rhs_dilation=(dil, dil),
        dimension_numbers=("NHWC", "HWIO", "NHWC"),
        precision=jax.lax.Precision.HIGHEST)


def aspp_reference(x, params, dilations=(4, 8, 12)):
    # bf16-aware reference: mirrors the kernel's bf16 activations/weights and
    # the bf16 cast of the concatenated features, so the tolerance can be tight.
    N, H, W, Cin = x.shape
    q = lambda a: a.astype(jnp.bfloat16).astype(jnp.float32)
    xq = q(x)

    def cba(y, w, s, b, pad=0, dil=1):
        y = _conv_ref(y, q(w), pad, dil)
        return jnp.maximum(y * s[0] + b[0], 0.0)

    pooled = q(jnp.mean(xq, axis=1, keepdims=True))                 # (N,1,W,Cin)
    f1 = cba(pooled, params["w1"].reshape(1, 1, Cin, -1), params["s1"], params["b1"])
    f1 = jnp.broadcast_to(f1, (N, H, W, f1.shape[-1]))  # bilinear from (1,W), align_corners
    f2 = cba(xq, params["w2"].reshape(1, 1, Cin, -1), params["s2"], params["b2"])
    f3 = cba(xq, params["w3"], params["s3"], params["b3"], dilations[0], dilations[0])
    f4 = cba(xq, params["w4"], params["s4"], params["b4"], dilations[1], dilations[1])
    f5 = cba(xq, params["w5"], params["s5"], params["b5"], dilations[2], dilations[2])
    cat = q(jnp.concatenate([f1, f2, f3, f4, f5], axis=-1))
    C = params["wb"].shape[-1]
    wb = params["wb"].reshape(5 * C, C).reshape(1, 1, 5 * C, C)
    return cba(cat, wb, params["sb"], params["bb"])


# --------------------------------- main ---------------------------------------
if __name__ == "__main__":
    key = jax.random.PRNGKey(0)
    N, H, W = 2, 16, 16
    Cin, Cout = 4, 8
    dilations = (4, 8, 12)

    keys = jax.random.split(key, 14)

    def init_w(k, shape):
        return 0.1 * jax.random.normal(k, shape, jnp.float32)

    def init_bn(k, C, eps=1e-5):
        k1, k2, k3, k4 = jax.random.split(k, 4)
        gamma = 1.0 + 0.1 * jax.random.normal(k1, (C,), jnp.float32)
        beta = 0.1 * jax.random.normal(k2, (C,), jnp.float32)
        mean = 0.1 * jax.random.normal(k3, (C,), jnp.float32)
        var = jnp.abs(jax.random.normal(k4, (C,), jnp.float32)) + 0.5
        scale = gamma * jax.lax.rsqrt(var + eps)
        bias = beta - mean * scale
        return scale.reshape(1, C), bias.reshape(1, C)

    params = {}
    params["w1"] = init_w(keys[0], (Cin, Cout))                # 1x1 conv (pool branch)
    params["s1"], params["b1"] = init_bn(keys[1], Cout)
    params["w2"] = init_w(keys[2], (Cin, Cout))                # 1x1 conv
    params["s2"], params["b2"] = init_bn(keys[3], Cout)
    params["w3"] = init_w(keys[4], (3, 3, Cin, Cout))          # dilated 3x3 convs
    params["s3"], params["b3"] = init_bn(keys[5], Cout)
    params["w4"] = init_w(keys[6], (3, 3, Cin, Cout))
    params["s4"], params["b4"] = init_bn(keys[7], Cout)
    params["w5"] = init_w(keys[8], (3, 3, Cin, Cout))
    params["s5"], params["b5"] = init_bn(keys[9], Cout)
    params["wb"] = init_w(keys[10], (5, Cout, Cout))           # bottleneck 1x1 (per branch)
    params["sb"], params["bb"] = init_bn(keys[11], Cout)

    x = jax.random.normal(keys[12], (N, H, W, Cin), jnp.float32)

    out = jax.block_until_ready(aspp_forward(x, params, dilations))
    assert out.shape == (N, H, W, Cout) and out.dtype == jnp.float32

    ref = jax.block_until_ready(aspp_reference(x, params, dilations))
    np.testing.assert_allclose(np.asarray(out), np.asarray(ref),
                               rtol=2e-3, atol=2e-3)

    print("KERNEL_OK")
</pallas_src>

<mosaic_0001>
module attributes {stable_mosaic.version = 11 : i64} {
  func.func @aspp_kernel(%arg0: i32, %arg1: memref<1x40x40x128xbf16, #tpu.memory_space<vmem>>, %arg2: memref<128x128xbf16, #tpu.memory_space<vmem>>, %arg3: memref<1x128xf32, #tpu.memory_space<vmem>>, %arg4: memref<1x128xf32, #tpu.memory_space<vmem>>, %arg5: memref<128x512xbf16, #tpu.memory_space<vmem>>, %arg6: memref<1x512xf32, #tpu.memory_space<vmem>>, %arg7: memref<1x512xf32, #tpu.memory_space<vmem>>, %arg8: memref<1024x128xbf16, #tpu.memory_space<vmem>>, %arg9: memref<1024x128xbf16, #tpu.memory_space<vmem>>, %arg10: memref<1024x128xbf16, #tpu.memory_space<vmem>>, %arg11: memref<512x128xbf16, #tpu.memory_space<vmem>>, %arg12: memref<128x128xbf16, #tpu.memory_space<vmem>>, %arg13: memref<1x128xf32, #tpu.memory_space<vmem>>, %arg14: memref<1x128xf32, #tpu.memory_space<vmem>>, %arg15: memref<1x16x16x128xf32, #tpu.memory_space<vmem>>) attributes {dimension_semantics = [#tpu.dimension_semantics<parallel>], iteration_bounds = array<i64: 2>, scalar_prefetch = 0 : i64, scratch_operands = 0 : i64, tpu.core_type = #tpu.core_type<tc>, window_params = [{transform_indices = @transform_0, window_bounds = array<i64: 1, 40, 40, 128>}, {pipeline_mode = #tpu.pipeline_mode<synchronous>, transform_indices = @transform_1, window_bounds = array<i64: 128, 128>}, {pipeline_mode = #tpu.pipeline_mode<synchronous>, transform_indices = @transform_2, window_bounds = array<i64: 1, 128>}, {pipeline_mode = #tpu.pipeline_mode<synchronous>, transform_indices = @transform_3, window_bounds = array<i64: 1, 128>}, {pipeline_mode = #tpu.pipeline_mode<synchronous>, transform_indices = @transform_4, window_bounds = array<i64: 128, 512>}, {pipeline_mode = #tpu.pipeline_mode<synchronous>, transform_indices = @transform_5, window_bounds = array<i64: 1, 512>}, {pipeline_mode = #tpu.pipeline_mode<synchronous>, transform_indices = @transform_6, window_bounds = array<i64: 1, 512>}, {pipeline_mode = #tpu.pipeline_mode<synchronous>, transform_indices = @transform_7, window_bounds = array<i64: 1024, 128>}, {pipeline_mode = #tpu.pipeline_mode<synchronous>, transform_indices = @transform_8, window_bounds = array<i64: 1024, 128>}, {pipeline_mode = #tpu.pipeline_mode<synchronous>, transform_indices = @transform_9, window_bounds = array<i64: 1024, 128>}, {pipeline_mode = #tpu.pipeline_mode<synchronous>, transform_indices = @transform_10, window_bounds = array<i64: 512, 128>}, {pipeline_mode = #tpu.pipeline_mode<synchronous>, transform_indices = @transform_11, window_bounds = array<i64: 128, 128>}, {pipeline_mode = #tpu.pipeline_mode<synchronous>, transform_indices = @transform_12, window_bounds = array<i64: 1, 128>}, {pipeline_mode = #tpu.pipeline_mode<synchronous>, transform_indices = @transform_13, window_bounds = array<i64: 1, 128>}, {transform_indices = @transform_14, window_bounds = array<i64: 1, 16, 16, 128>}]} {
    %c0 = arith.constant 0 : index
    %c0_0 = arith.constant 0 : index
    %c0_1 = arith.constant 0 : index
    %c0_2 = arith.constant 0 : index
    %0 = vector.load %arg1[%c0, %c0_0, %c0_1, %c0_2] : memref<1x40x40x128xbf16, #tpu.memory_space<vmem>>, vector<1x40x40x128xbf16>
    %1 = vector.shape_cast %0 : vector<1x40x40x128xbf16> to vector<40x40x128xbf16>
    %2 = vector.extract_strided_slice %1 {offsets = [12, 12, 0], sizes = [16, 16, 128], strides = [1, 1, 1]} : vector<40x40x128xbf16> to vector<16x16x128xbf16>
    %3 = vector.shape_cast %2 : vector<16x16x128xbf16> to vector<256x128xbf16>
    %4 = arith.extf %2 : vector<16x16x128xbf16> to vector<16x16x128xf32>
    %cst = arith.constant dense<0.000000e+00> : vector<16x128xf32>
    %5 = vector.multi_reduction <add>, %4, %cst [0] : vector<16x16x128xf32> to vector<16x128xf32>
    %cst_3 = arith.constant 1.600000e+01 : f32
    %6 = vector.broadcast %cst_3 : f32 to vector<16x128xf32>
    %7 = arith.divf %5, %6 : vector<16x128xf32>
    %8 = arith.truncf %7 : vector<16x128xf32> to vector<16x128xbf16>
    %c0_4 = arith.constant 0 : index
    %c0_5 = arith.constant 0 : index
    %9 = vector.load %arg2[%c0_4, %c0_5] : memref<128x128xbf16, #tpu.memory_space<vmem>>, vector<128x128xbf16>
    %cst_6 = arith.constant dense<0.000000e+00> : vector<16x128xf32>
    %10 = tpu.matmul %8, %9, %cst_6 {dimension_numbers = #tpu.dot_dimension_numbers<[1], [0], [0], [1], [0, 0, 1, 1], [], []>} : vector<16x128xbf16>, vector<128x128xbf16>, vector<16x128xf32> -> vector<16x128xf32>
    %c0_7 = arith.constant 0 : index
    %c0_8 = arith.constant 0 : index
    %11 = vector.load %arg3[%c0_7, %c0_8] : memref<1x128xf32, #tpu.memory_space<vmem>>, vector<1x128xf32>
    %12 = vector.shape_cast %11 : vector<1x128xf32> to vector<128xf32>
    %13 = vector.shape_cast %12 : vector<128xf32> to vector<1x128xf32>
    %14 = vector.broadcast %13 : vector<1x128xf32> to vector<16x128xf32>
    %15 = arith.mulf %10, %14 : vector<16x128xf32>
    %c0_9 = arith.constant 0 : index
    %c0_10 = arith.constant 0 : index
    %16 = vector.load %arg4[%c0_9, %c0_10] : memref<1x128xf32, #tpu.memory_space<vmem>>, vector<1x128xf32>
    %17 = vector.shape_cast %16 : vector<1x128xf32> to vector<128xf32>
    %18 = vector.shape_cast %17 : vector<128xf32> to vector<1x128xf32>
    %19 = vector.broadcast %18 : vector<1x128xf32> to vector<16x128xf32>
    %20 = arith.addf %15, %19 : vector<16x128xf32>
    %cst_11 = arith.constant 0.000000e+00 : f32
    %21 = vector.broadcast %cst_11 : f32 to vector<16x128xf32>
    %22 = arith.maximumf %20, %21 : vector<16x128xf32>
    %23 = arith.truncf %22 : vector<16x128xf32> to vector<16x128xbf16>
    %c0_12 = arith.constant 0 : index
    %c0_13 = arith.constant 0 : index
    %24 = vector.load %arg12[%c0_12, %c0_13] : memref<128x128xbf16, #tpu.memory_space<vmem>>, vector<128x128xbf16>
    %cst_14 = arith.constant dense<0.000000e+00> : vector<16x128xf32>
    %25 = tpu.matmul %23, %24, %cst_14 {dimension_numbers = #tpu.dot_dimension_numbers<[1], [0], [0], [1], [0, 0, 1, 1], [], []>} : vector<16x128xbf16>, vector<128x128xbf16>, vector<16x128xf32> -> vector<16x128xf32>
    %c0_15 = arith.constant 0 : index
    %c0_16 = arith.constant 0 : index
    %26 = vector.load %arg5[%c0_15, %c0_16] : memref<128x512xbf16, #tpu.memory_space<vmem>>, vector<128x512xbf16>
    %cst_17 = arith.constant dense<0.000000e+00> : vector<256x512xf32>
    %27 = tpu.matmul %3, %26, %cst_17 {dimension_numbers = #tpu.dot_dimension_numbers<[1], [0], [0], [1], [0, 0, 1, 1], [], []>} : vector<256x128xbf16>, vector<128x512xbf16>, vector<256x512xf32> -> vector<256x512xf32>
    %28 = vector.extract_strided_slice %27 {offsets = [0, 0], sizes = [256, 128], strides = [1, 1]} : vector<256x512xf32> to vector<256x128xf32>
    %29 = vector.extract_strided_slice %27 {offsets = [0, 128], sizes = [256, 128], strides = [1, 1]} : vector<256x512xf32> to vector<256x128xf32>
    %c0_18 = arith.constant 0 : index
    %c0_19 = arith.constant 0 : index
    %30 = vector.load %arg8[%c0_18, %c0_19] : memref<1024x128xbf16, #tpu.memory_space<vmem>>, vector<1024x128xbf16>
    %31 = vector.extract_strided_slice %1 {offsets = [8, 8, 0], sizes = [16, 16, 128], strides = [1, 1, 1]} : vector<40x40x128xbf16> to vector<16x16x128xbf16>
    %32 = vector.extract_strided_slice %1 {offsets = [8, 12, 0], sizes = [16, 16, 128], strides = [1, 1, 1]} : vector<40x40x128xbf16> to vector<16x16x128xbf16>
    %33 = vector.extract_strided_slice %1 {offsets = [8, 16, 0], sizes = [16, 16, 128], strides = [1, 1, 1]} : vector<40x40x128xbf16> to vector<16x16x128xbf16>
    %34 = tpu.concatenate %31, %32, %33 in 2 : vector<16x16x128xbf16>, vector<16x16x128xbf16>, vector<16x16x128xbf16> -> vector<16x16x384xbf16>
    %35 = vector.shape_cast %34 : vector<16x16x384xbf16> to vector<256x384xbf16>
    %36 = vector.extract_strided_slice %30 {offsets = [0, 0], sizes = [384, 128], strides = [1, 1]} : vector<1024x128xbf16> to vector<384x128xbf16>
    %cst_20 = arith.constant dense<0.000000e+00> : vector<256x128xf32>
    %37 = tpu.matmul %35, %36, %cst_20 {dimension_numbers = #tpu.dot_dimension_numbers<[1], [0], [0], [1], [0, 0, 1, 1], [], []>} : vector<256x384xbf16>, vector<384x128xbf16>, vector<256x128xf32> -> vector<256x128xf32>
    %38 = arith.addf %29, %37 : vector<256x128xf32>
    %39 = vector.extract_strided_slice %1 {offsets = [12, 8, 0], sizes = [16, 16, 128], strides = [1, 1, 1]} : vector<40x40x128xbf16> to vector<16x16x128xbf16>
    %40 = vector.extract_strided_slice %1 {offsets = [12, 16, 0], sizes = [16, 16, 128], strides = [1, 1, 1]} : vector<40x40x128xbf16> to vector<16x16x128xbf16>
    %41 = tpu.concatenate %39, %40 in 2 : vector<16x16x128xbf16>, vector<16x16x128xbf16> -> vector<16x16x256xbf16>
    %42 = vector.shape_cast %41 : vector<16x16x256xbf16> to vector<256x256xbf16>
    %43 = vector.extract_strided_slice %30 {offsets = [384, 0], sizes = [256, 128], strides = [1, 1]} : vector<1024x128xbf16> to vector<256x128xbf16>
    %cst_21 = arith.constant dense<0.000000e+00> : vector<256x128xf32>
    %44 = tpu.matmul %42, %43, %cst_21 {dimension_numbers = #tpu.dot_dimension_numbers<[1], [0], [0], [1], [0, 0, 1, 1], [], []>} : vector<256x256xbf16>, vector<256x128xbf16>, vector<256x128xf32> -> vector<256x128xf32>
    %45 = arith.addf %38, %44 : vector<256x128xf32>
    %46 = vector.extract_strided_slice %1 {offsets = [16, 8, 0], sizes = [16, 16, 128], strides = [1, 1, 1]} : vector<40x40x128xbf16> to vector<16x16x128xbf16>
    %47 = vector.extract_strided_slice %1 {offsets = [16, 12, 0], sizes = [16, 16, 128], strides = [1, 1, 1]} : vector<40x40x128xbf16> to vector<16x16x128xbf16>
    %48 = vector.extract_strided_slice %1 {offsets = [16, 16, 0], sizes = [16, 16, 128], strides = [1, 1, 1]} : vector<40x40x128xbf16> to vector<16x16x128xbf16>
    %49 = tpu.concatenate %46, %47, %48 in 2 : vector<16x16x128xbf16>, vector<16x16x128xbf16>, vector<16x16x128xbf16> -> vector<16x16x384xbf16>
    %50 = vector.shape_cast %49 : vector<16x16x384xbf16> to vector<256x384xbf16>
    %51 = vector.extract_strided_slice %30 {offsets = [640, 0], sizes = [384, 128], strides = [1, 1]} : vector<1024x128xbf16> to vector<384x128xbf16>
    %cst_22 = arith.constant dense<0.000000e+00> : vector<256x128xf32>
    %52 = tpu.matmul %50, %51, %cst_22 {dimension_numbers = #tpu.dot_dimension_numbers<[1], [0], [0], [1], [0, 0, 1, 1], [], []>} : vector<256x384xbf16>, vector<384x128xbf16>, vector<256x128xf32> -> vector<256x128xf32>
    %53 = arith.addf %45, %52 : vector<256x128xf32>
    %54 = vector.extract_strided_slice %27 {offsets = [0, 256], sizes = [256, 128], strides = [1, 1]} : vector<256x512xf32> to vector<256x128xf32>
    %c0_23 = arith.constant 0 : index
    %c0_24 = arith.constant 0 : index
    %55 = vector.load %arg9[%c0_23, %c0_24] : memref<1024x128xbf16, #tpu.memory_space<vmem>>, vector<1024x128xbf16>
    %56 = vector.extract_strided_slice %1 {offsets = [4, 4, 0], sizes = [16, 16, 128], strides = [1, 1, 1]} : vector<40x40x128xbf16> to vector<16x16x128xbf16>
    %57 = vector.extract_strided_slice %1 {offsets = [4, 12, 0], sizes = [16, 16, 128], strides = [1, 1, 1]} : vector<40x40x128xbf16> to vector<16x16x128xbf16>
    %58 = vector.extract_strided_slice %1 {offsets = [4, 20, 0], sizes = [16, 16, 128], strides = [1, 1, 1]} : vector<40x40x128xbf16> to vector<16x16x128xbf16>
    %59 = tpu.concatenate %56, %57, %58 in 2 : vector<16x16x128xbf16>, vector<16x16x128xbf16>, vector<16x16x128xbf16> -> vector<16x16x384xbf16>
    %60 = vector.shape_cast %59 : vector<16x16x384xbf16> to vector<256x384xbf16>
    %61 = vector.extract_strided_slice %55 {offsets = [0, 0], sizes = [384, 128], strides = [1, 1]} : vector<1024x128xbf16> to vector<384x128xbf16>
    %cst_25 = arith.constant dense<0.000000e+00> : vector<256x128xf32>
    %62 = tpu.matmul %60, %61, %cst_25 {dimension_numbers = #tpu.dot_dimension_numbers<[1], [0], [0], [1], [0, 0, 1, 1], [], []>} : vector<256x384xbf16>, vector<384x128xbf16>, vector<256x128xf32> -> vector<256x128xf32>
    %63 = arith.addf %54, %62 : vector<256x128xf32>
    %64 = vector.extract_strided_slice %1 {offsets = [12, 4, 0], sizes = [16, 16, 128], strides = [1, 1, 1]} : vector<40x40x128xbf16> to vector<16x16x128xbf16>
    %65 = vector.extract_strided_slice %1 {offsets = [12, 20, 0], sizes = [16, 16, 128], strides = [1, 1, 1]} : vector<40x40x128xbf16> to vector<16x16x128xbf16>
    %66 = tpu.concatenate %64, %65 in 2 : vector<16x16x128xbf16>, vector<16x16x128xbf16> -> vector<16x16x256xbf16>
    %67 = vector.shape_cast %66 : vector<16x16x256xbf16> to vector<256x256xbf16>
    %68 = vector.extract_strided_slice %55 {offsets = [384, 0], sizes = [256, 128], strides = [1, 1]} : vector<1024x128xbf16> to vector<256x128xbf16>
    %cst_26 = arith.constant dense<0.000000e+00> : vector<256x128xf32>
    %69 = tpu.matmul %67, %68, %cst_26 {dimension_numbers = #tpu.dot_dimension_numbers<[1], [0], [0], [1], [0, 0, 1, 1], [], []>} : vector<256x256xbf16>, vector<256x128xbf16>, vector<256x128xf32> -> vector<256x128xf32>
    %70 = arith.addf %63, %69 : vector<256x128xf32>
    %71 = vector.extract_strided_slice %1 {offsets = [20, 4, 0], sizes = [16, 16, 128], strides = [1, 1, 1]} : vector<40x40x128xbf16> to vector<16x16x128xbf16>
    %72 = vector.extract_strided_slice %1 {offsets = [20, 12, 0], sizes = [16, 16, 128], strides = [1, 1, 1]} : vector<40x40x128xbf16> to vector<16x16x128xbf16>
    %73 = vector.extract_strided_slice %1 {offsets = [20, 20, 0], sizes = [16, 16, 128], strides = [1, 1, 1]} : vector<40x40x128xbf16> to vector<16x16x128xbf16>
    %74 = tpu.concatenate %71, %72, %73 in 2 : vector<16x16x128xbf16>, vector<16x16x128xbf16>, vector<16x16x128xbf16> -> vector<16x16x384xbf16>
    %75 = vector.shape_cast %74 : vector<16x16x384xbf16> to vector<256x384xbf16>
    %76 = vector.extract_strided_slice %55 {offsets = [640, 0], sizes = [384, 128], strides = [1, 1]} : vector<1024x128xbf16> to vector<384x128xbf16>
    %cst_27 = arith.constant dense<0.000000e+00> : vector<256x128xf32>
    %77 = tpu.matmul %75, %76, %cst_27 {dimension_numbers = #tpu.dot_dimension_numbers<[1], [0], [0], [1], [0, 0, 1, 1], [], []>} : vector<256x384xbf16>, vector<384x128xbf16>, vector<256x128xf32> -> vector<256x128xf32>
    %78 = arith.addf %70, %77 : vector<256x128xf32>
    %79 = vector.extract_strided_slice %27 {offsets = [0, 384], sizes = [256, 128], strides = [1, 1]} : vector<256x512xf32> to vector<256x128xf32>
    %c0_28 = arith.constant 0 : index
    %c0_29 = arith.constant 0 : index
    %80 = vector.load %arg10[%c0_28, %c0_29] : memref<1024x128xbf16, #tpu.memory_space<vmem>>, vector<1024x128xbf16>
    %81 = vector.extract_strided_slice %1 {offsets = [0, 0, 0], sizes = [16, 16, 128], strides = [1, 1, 1]} : vector<40x40x128xbf16> to vector<16x16x128xbf16>
    %82 = vector.extract_strided_slice %1 {offsets = [0, 12, 0], sizes = [16, 16, 128], strides = [1, 1, 1]} : vector<40x40x128xbf16> to vector<16x16x128xbf16>
    %83 = vector.extract_strided_slice %1 {offsets = [0, 24, 0], sizes = [16, 16, 128], strides = [1, 1, 1]} : vector<40x40x128xbf16> to vector<16x16x128xbf16>
    %84 = tpu.concatenate %81, %82, %83 in 2 : vector<16x16x128xbf16>, vector<16x16x128xbf16>, vector<16x16x128xbf16> -> vector<16x16x384xbf16>
    %85 = vector.shape_cast %84 : vector<16x16x384xbf16> to vector<256x384xbf16>
    %86 = vector.extract_strided_slice %80 {offsets = [0, 0], sizes = [384, 128], strides = [1, 1]} : vector<1024x128xbf16> to vector<384x128xbf16>
    %cst_30 = arith.constant dense<0.000000e+00> : vector<256x128xf32>
    %87 = tpu.matmul %85, %86, %cst_30 {dimension_numbers = #tpu.dot_dimension_numbers<[1], [0], [0], [1], [0, 0, 1, 1], [], []>} : vector<256x384xbf16>, vector<384x128xbf16>, vector<256x128xf32> -> vector<256x128xf32>
    %88 = arith.addf %79, %87 : vector<256x128xf32>
    %89 = vector.extract_strided_slice %1 {offsets = [12, 0, 0], sizes = [16, 16, 128], strides = [1, 1, 1]} : vector<40x40x128xbf16> to vector<16x16x128xbf16>
    %90 = vector.extract_strided_slice %1 {offsets = [12, 24, 0], sizes = [16, 16, 128], strides = [1, 1, 1]} : vector<40x40x128xbf16> to vector<16x16x128xbf16>
    %91 = tpu.concatenate %89, %90 in 2 : vector<16x16x128xbf16>, vector<16x16x128xbf16> -> vector<16x16x256xbf16>
    %92 = vector.shape_cast %91 : vector<16x16x256xbf16> to vector<256x256xbf16>
    %93 = vector.extract_strided_slice %80 {offsets = [384, 0], sizes = [256, 128], strides = [1, 1]} : vector<1024x128xbf16> to vector<256x128xbf16>
    %cst_31 = arith.constant dense<0.000000e+00> : vector<256x128xf32>
    %94 = tpu.matmul %92, %93, %cst_31 {dimension_numbers = #tpu.dot_dimension_numbers<[1], [0], [0], [1], [0, 0, 1, 1], [], []>} : vector<256x256xbf16>, vector<256x128xbf16>, vector<256x128xf32> -> vector<256x128xf32>
    %95 = arith.addf %88, %94 : vector<256x128xf32>
    %96 = vector.extract_strided_slice %1 {offsets = [24, 0, 0], sizes = [16, 16, 128], strides = [1, 1, 1]} : vector<40x40x128xbf16> to vector<16x16x128xbf16>
    %97 = vector.extract_strided_slice %1 {offsets = [24, 12, 0], sizes = [16, 16, 128], strides = [1, 1, 1]} : vector<40x40x128xbf16> to vector<16x16x128xbf16>
    %98 = vector.extract_strided_slice %1 {offsets = [24, 24, 0], sizes = [16, 16, 128], strides = [1, 1, 1]} : vector<40x40x128xbf16> to vector<16x16x128xbf16>
    %99 = tpu.concatenate %96, %97, %98 in 2 : vector<16x16x128xbf16>, vector<16x16x128xbf16>, vector<16x16x128xbf16> -> vector<16x16x384xbf16>
    %100 = vector.shape_cast %99 : vector<16x16x384xbf16> to vector<256x384xbf16>
    %101 = vector.extract_strided_slice %80 {offsets = [640, 0], sizes = [384, 128], strides = [1, 1]} : vector<1024x128xbf16> to vector<384x128xbf16>
    %cst_32 = arith.constant dense<0.000000e+00> : vector<256x128xf32>
    %102 = tpu.matmul %100, %101, %cst_32 {dimension_numbers = #tpu.dot_dimension_numbers<[1], [0], [0], [1], [0, 0, 1, 1], [], []>} : vector<256x384xbf16>, vector<384x128xbf16>, vector<256x128xf32> -> vector<256x128xf32>
    %103 = arith.addf %95, %102 : vector<256x128xf32>
    %104 = tpu.concatenate %28, %53, %78, %103 in 1 : vector<256x128xf32>, vector<256x128xf32>, vector<256x128xf32>, vector<256x128xf32> -> vector<256x512xf32>
    %c0_33 = arith.constant 0 : index
    %c0_34 = arith.constant 0 : index
    %105 = vector.load %arg6[%c0_33, %c0_34] : memref<1x512xf32, #tpu.memory_space<vmem>>, vector<1x512xf32>
    %106 = vector.shape_cast %105 : vector<1x512xf32> to vector<512xf32>
    %107 = vector.shape_cast %106 : vector<512xf32> to vector<1x512xf32>
    %108 = vector.broadcast %107 : vector<1x512xf32> to vector<256x512xf32>
    %109 = arith.mulf %104, %108 : vector<256x512xf32>
    %c0_35 = arith.constant 0 : index
    %c0_36 = arith.constant 0 : index
    %110 = vector.load %arg7[%c0_35, %c0_36] : memref<1x512xf32, #tpu.memory_space<vmem>>, vector<1x512xf32>
    %111 = vector.shape_cast %110 : vector<1x512xf32> to vector<512xf32>
    %112 = vector.shape_cast %111 : vector<512xf32> to vector<1x512xf32>
    %113 = vector.broadcast %112 : vector<1x512xf32> to vector<256x512xf32>
    %114 = arith.addf %109, %113 : vector<256x512xf32>
    %cst_37 = arith.constant 0.000000e+00 : f32
    %115 = vector.broadcast %cst_37 : f32 to vector<256x512xf32>
    %116 = arith.maximumf %114, %115 : vector<256x512xf32>
    %117 = arith.truncf %116 : vector<256x512xf32> to vector<256x512xbf16>
    %c0_38 = arith.constant 0 : index
    %c0_39 = arith.constant 0 : index
    %118 = vector.load %arg11[%c0_38, %c0_39] : memref<512x128xbf16, #tpu.memory_space<vmem>>, vector<512x128xbf16>
    %cst_40 = arith.constant dense<0.000000e+00> : vector<256x128xf32>
    %119 = tpu.matmul %117, %118, %cst_40 {dimension_numbers = #tpu.dot_dimension_numbers<[1], [0], [0], [1], [0, 0, 1, 1], [], []>} : vector<256x512xbf16>, vector<512x128xbf16>, vector<256x128xf32> -> vector<256x128xf32>
    %120 = vector.shape_cast %119 : vector<256x128xf32> to vector<16x16x128xf32>
    %121 = vector.shape_cast %25 : vector<16x128xf32> to vector<1x16x128xf32>
    %122 = vector.broadcast %121 : vector<1x16x128xf32> to vector<16x16x128xf32>
    %123 = arith.addf %120, %122 : vector<16x16x128xf32>
    %c0_41 = arith.constant 0 : index
    %c0_42 = arith.constant 0 : index
    %124 = vector.load %arg13[%c0_41, %c0_42] : memref<1x128xf32, #tpu.memory_space<vmem>>, vector<1x128xf32>
    %125 = vector.shape_cast %124 : vector<1x128xf32> to vector<128xf32>
    %126 = vector.shape_cast %125 : vector<128xf32> to vector<1x1x128xf32>
    %127 = vector.broadcast %126 : vector<1x1x128xf32> to vector<16x16x128xf32>
    %128 = arith.mulf %123, %127 : vector<16x16x128xf32>
    %c0_43 = arith.constant 0 : index
    %c0_44 = arith.constant 0 : index
    %129 = vector.load %arg14[%c0_43, %c0_44] : memref<1x128xf32, #tpu.memory_space<vmem>>, vector<1x128xf32>
    %130 = vector.shape_cast %129 : vector<1x128xf32> to vector<128xf32>
    %131 = vector.shape_cast %130 : vector<128xf32> to vector<1x1x128xf32>
    %132 = vector.broadcast %131 : vector<1x1x128xf32> to vector<16x16x128xf32>
    %133 = arith.addf %128, %132 : vector<16x16x128xf32>
    %cst_45 = arith.constant 0.000000e+00 : f32
    %134 = vector.broadcast %cst_45 : f32 to vector<16x16x128xf32>
    %135 = arith.maximumf %133, %134 : vector<16x16x128xf32>
    %c0_46 = arith.constant 0 : index
    %c0_47 = arith.constant 0 : index
    %c0_48 = arith.constant 0 : index
    %c0_49 = arith.constant 0 : index
    %136 = vector.load %arg15[%c0_46, %c0_47, %c0_48, %c0_49] : memref<1x16x16x128xf32, #tpu.memory_space<vmem>>, vector<1x16x16x128xf32>
    %137 = vector.shape_cast %136 : vector<1x16x16x128xf32> to vector<16x16x128xf32>
    %138 = vector.shape_cast %135 : vector<16x16x128xf32> to vector<1x16x16x128xf32>
    tpu.vector_store %arg15[%c0_46, %c0_47, %c0_48, %c0_49], %138 {strides = array<i32>} : memref<1x16x16x128xf32, #tpu.memory_space<vmem>>, vector<1x16x16x128xf32>,
    return
  }
  func.func @transform_0(%arg0: i32) -> (i32, i32, i32, i32) {
    %c0_i32 = arith.constant 0 : i32
    %c0_i32_0 = arith.constant 0 : i32
    %c0_i32_1 = arith.constant 0 : i32
    %c0_i32_2 = arith.constant 0 : i32
    return %arg0, %c0_i32, %c0_i32_0, %c0_i32_1 : i32, i32, i32, i32
  }
  func.func @transform_1(%arg0: i32) -> (i32, i32) {
    %c0_i32 = arith.constant 0 : i32
    %c0_i32_0 = arith.constant 0 : i32
    %c0_i32_1 = arith.constant 0 : i32
    return %c0_i32, %c0_i32_0 : i32, i32
  }
  func.func @transform_2(%arg0: i32) -> (i32, i32) {
    %c0_i32 = arith.constant 0 : i32
    %c0_i32_0 = arith.constant 0 : i32
    %c0_i32_1 = arith.constant 0 : i32
    return %c0_i32, %c0_i32_0 : i32, i32
  }
  func.func @transform_3(%arg0: i32) -> (i32, i32) {
    %c0_i32 = arith.constant 0 : i32
    %c0_i32_0 = arith.constant 0 : i32
    %c0_i32_1 = arith.constant 0 : i32
    return %c0_i32, %c0_i32_0 : i32, i32
  }
  func.func @transform_4(%arg0: i32) -> (i32, i32) {
    %c0_i32 = arith.constant 0 : i32
    %c0_i32_0 = arith.constant 0 : i32
    %c0_i32_1 = arith.constant 0 : i32
    return %c0_i32, %c0_i32_0 : i32, i32
  }
  func.func @transform_5(%arg0: i32) -> (i32, i32) {
    %c0_i32 = arith.constant 0 : i32
    %c0_i32_0 = arith.constant 0 : i32
    %c0_i32_1 = arith.constant 0 : i32
    return %c0_i32, %c0_i32_0 : i32, i32
  }
  func.func @transform_6(%arg0: i32) -> (i32, i32) {
    %c0_i32 = arith.constant 0 : i32
    %c0_i32_0 = arith.constant 0 : i32
    %c0_i32_1 = arith.constant 0 : i32
    return %c0_i32, %c0_i32_0 : i32, i32
  }
  func.func @transform_7(%arg0: i32) -> (i32, i32) {
    %c0_i32 = arith.constant 0 : i32
    %c0_i32_0 = arith.constant 0 : i32
    %c0_i32_1 = arith.constant 0 : i32
    return %c0_i32, %c0_i32_0 : i32, i32
  }
  func.func @transform_8(%arg0: i32) -> (i32, i32) {
    %c0_i32 = arith.constant 0 : i32
    %c0_i32_0 = arith.constant 0 : i32
    %c0_i32_1 = arith.constant 0 : i32
    return %c0_i32, %c0_i32_0 : i32, i32
  }
  func.func @transform_9(%arg0: i32) -> (i32, i32) {
    %c0_i32 = arith.constant 0 : i32
    %c0_i32_0 = arith.constant 0 : i32
    %c0_i32_1 = arith.constant 0 : i32
    return %c0_i32, %c0_i32_0 : i32, i32
  }
  func.func @transform_10(%arg0: i32) -> (i32, i32) {
    %c0_i32 = arith.constant 0 : i32
    %c0_i32_0 = arith.constant 0 : i32
    %c0_i32_1 = arith.constant 0 : i32
    return %c0_i32, %c0_i32_0 : i32, i32
  }
  func.func @transform_11(%arg0: i32) -> (i32, i32) {
    %c0_i32 = arith.constant 0 : i32
    %c0_i32_0 = arith.constant 0 : i32
    %c0_i32_1 = arith.constant 0 : i32
    return %c0_i32, %c0_i32_0 : i32, i32
  }
  func.func @transform_12(%arg0: i32) -> (i32, i32) {
    %c0_i32 = arith.constant 0 : i32
    %c0_i32_0 = arith.constant 0 : i32
    %c0_i32_1 = arith.constant 0 : i32
    return %c0_i32, %c0_i32_0 : i32, i32
  }
  func.func @transform_13(%arg0: i32) -> (i32, i32) {
    %c0_i32 = arith.constant 0 : i32
    %c0_i32_0 = arith.constant 0 : i32
    %c0_i32_1 = arith.constant 0 : i32
    return %c0_i32, %c0_i32_0 : i32, i32
  }
  func.func @transform_14(%arg0: i32) -> (i32, i32, i32, i32) {
    %c0_i32 = arith.constant 0 : i32
    %c0_i32_0 = arith.constant 0 : i32
    %c0_i32_1 = arith.constant 0 : i32
    %c0_i32_2 = arith.constant 0 : i32
    return %arg0, %c0_i32, %c0_i32_0, %c0_i32_1 : i32, i32, i32, i32
  }
}

</mosaic_0001>

<llo_original>
// kernel: tpu_custom_call.1
$region0: #{tpu_custom_call.1}
  #allocation0 [shape = 'u32[]', space=smem, size = 0x4, offset = 0x4, fixed_abs, tag = 'smem constant byte address 0x4 - core index']
  #allocation1 [shape = 'u32[144,128]{1,0:T(1,128)}', space=vmem, size = 0x12000, scoped, tag = 'internal scratch']
  %s0 = inlined_call_operand.hbm [shape: bf16[2,40,40,128], index: 0, kind: input, shape index: {}]
  %s1 = inlined_call_operand.hbm [shape: bf16[128,128], index: 1, kind: input, shape index: {}]
  %s2 = inlined_call_operand.vmem [shape: f32[1,128], index: 2, kind: input, shape index: {}]
  %s3 = inlined_call_operand.hbm [shape: f32[1,128], index: 3, kind: input, shape index: {}]
  %s4 = inlined_call_operand.hbm [shape: bf16[128,512], index: 4, kind: input, shape index: {}]
  %s5 = inlined_call_operand.vmem [shape: f32[1,512], index: 5, kind: input, shape index: {}]
  %s6 = inlined_call_operand.vmem [shape: f32[1,512], index: 6, kind: input, shape index: {}]
  %s7 = inlined_call_operand.hbm [shape: bf16[1024,128], index: 7, kind: input, shape index: {}]
  %s8 = inlined_call_operand.hbm [shape: bf16[1024,128], index: 8, kind: input, shape index: {}]
  %s9 = inlined_call_operand.hbm [shape: bf16[1024,128], index: 9, kind: input, shape index: {}]
  %s10 = inlined_call_operand.hbm [shape: bf16[512,128], index: 10, kind: input, shape index: {}]
  %s11 = inlined_call_operand.hbm [shape: bf16[128,128], index: 11, kind: input, shape index: {}]
  %s12 = inlined_call_operand.vmem [shape: f32[1,128], index: 12, kind: input, shape index: {}]
  %s13 = inlined_call_operand.vmem [shape: f32[1,128], index: 13, kind: input, shape index: {}]
  %s14 = inlined_call_operand.hbm [shape: f32[2,16,16,128], index: 14, kind: output, shape index: {}]
  %s15 = sld [smem:[#allocation0]]
  $region125: #{tpu_custom_call.1} parent=0
    _
  %s17 = ssub.s32 1, %s15
  %s18 = scalar_select 0, %s17, %s15
  $region1: #{tpu_custom_call.1} parent=0
    #allocation2 [shape = 'u8[819200]{0}', space=vmem, size = 0xc8000, scoped, tag = 'input window, operand 0']
    #allocation3 [shape = 's32[2]{0}', space=sflag, size = 0x8, scoped, tag = 'scoped memory for tpu_custom_call.1']
    #allocation4 [shape = 's32[2]{0}', space=sflag, size = 0x8, scoped, tag = 'scoped memory for tpu_custom_call.1']
    #allocation5 [shape = 'u8[32768]{0}', space=vmem, size = 0x8000, scoped, tag = 'input window, operand 1, single buffered']
    #allocation6 [shape = 's32[1]{0}', space=sflag, size = 0x4, scoped, tag = 'scoped memory for tpu_custom_call.1']
    #allocation7 [shape = 'u8[512]{0}', space=vmem, size = 0x400, scoped, tag = 'input window, operand 3, single buffered']
    #allocation8 [shape = 'u8[131072]{0}', space=vmem, size = 0x20000, scoped, tag = 'input window, operand 4, single buffered']
    #allocation9 [shape = 's32[1]{0}', space=sflag, size = 0x4, scoped, tag = 'scoped memory for tpu_custom_call.1']
    #allocation10 [shape = 'u8[262144]{0}', space=vmem, size = 0x40000, scoped, tag = 'input window, operand 7, single buffered']
    #allocation11 [shape = 'u8[262144]{0}', space=vmem, size = 0x40000, scoped, tag = 'input window, operand 8, single buffered']
    #allocation12 [shape = 's32[1]{0}', space=sflag, size = 0x4, scoped, tag = 'scoped memory for tpu_custom_call.1']
    #allocation13 [shape = 'u8[262144]{0}', space=vmem, size = 0x40000, scoped, tag = 'input window, operand 9, single buffered']
    #allocation14 [shape = 'u8[131072]{0}', space=vmem, size = 0x20000, scoped, tag = 'input window, operand 10, single buffered']
    #allocation15 [shape = 's32[1]{0}', space=sflag, size = 0x4, scoped, tag = 'scoped memory for tpu_custom_call.1']
    #allocation16 [shape = 'u8[32768]{0}', space=vmem, size = 0x8000, scoped, tag = 'input window, operand 11, single buffered']
    #allocation17 [shape = 'u8[262144]{0}', space=vmem, size = 0x40000, scoped, tag = 'output window, operand 0']
    %19 = vsyncpa [#allocation3], 0
    %s20 = scalar_lea.sflag [#allocation3], 1
    %21 = vsyncpa %s20, 0
    %22 = vsyncpa [#allocation6], 0
    %23 = vsyncpa [#allocation9], 0
    %24 = vsyncpa [#allocation12], 0
    %25 = vsyncpa [#allocation15], 0
    %26 = vsyncpa [#allocation4], 0
    %s27 = scalar_lea.sflag [#allocation4], 1
    %28 = vsyncpa %s27, 0
    loop: start=0, step=1, limit=4
    $region2: #{tpu_custom_call.1} parent=1 // loop_pre_header
      _
    $region3: #{tpu_custom_call.1} parent=1 // loop_header
      %s30 = sphi 0, %s34
      %p31 = scmp.ge.s32.totalorder %s30, 4
      %s40 = sphi 0, %s42
      %s43 = sphi 0, %s40
      %s44 = sphi 0, %s43
      %s60 = sphi 0, %s44
      %s64 = sphi 0, %s64
      %s66 = sphi 0, %s64
      %s67 = sphi 0, %s66
      %s81 = sphi 0, %s67
      %s85 = sphi 0, %s85
      %s87 = sphi 0, %s85
      %s88 = sphi 0, %s87
      %s102 = sphi 0, %s88
      %s106 = sphi 0, %s106
      %s108 = sphi 0, %s106
      %s109 = sphi 0, %s108
      %s123 = sphi 0, %s109
      %s127 = sphi 0, %s127
      %s129 = sphi 0, %s127
      %s130 = sphi 0, %s129
      %s144 = sphi 0, %s130
      %s148 = sphi 0, %s148
      %s150 = sphi 0, %s148
      %s151 = sphi 0, %s150
      %s165 = sphi 0, %s151
      %s169 = sphi 0, %s169
      %s171 = sphi 0, %s169
      %s172 = sphi 0, %s171
      %s186 = sphi 0, %s172
      %s190 = sphi 0, %s190
      %s192 = sphi 0, %s190
      %s193 = sphi 0, %s192
      %s207 = sphi 0, %s193
      %s211 = sphi 0, %s211
      %s213 = sphi 0, %s211
      %s214 = sphi 0, %s213
      %s228 = sphi 0, %s214
      %s232 = sphi 0, %s232
      %s234 = sphi 0, %s232
      %s235 = sphi 0, %s234
      %s249 = sphi 0, %s235
      %s253 = sphi 0, %s253
      %s255 = sphi 0, %s253
      %s256 = sphi 0, %s255
      %s270 = sphi 0, %s256
      %s274 = sphi 0, %s274
      %s276 = sphi 0, %s274
      %s277 = sphi 0, %s276
      %s291 = sphi 0, %s277
      %s295 = sphi 0, %s295
      %s297 = sphi 0, %s295
      %s298 = sphi 0, %s297
      %s312 = sphi 0, %s298
      %s316 = sphi 0, %s316
      %s318 = sphi 0, %s316
      %s319 = sphi 0, %s318
      %s333 = sphi 0, %s319
      %s339 = sphi 0, %s341
      %s342 = sphi 0, %s339
      %s343 = sphi 0, %s342
      %s359 = sphi 0, %s343
    $region4: #{tpu_custom_call.1} parent=1 // loop_header_branch
      %33 = sbr.rel (%p31) target = $region8
    $region5: #{tpu_custom_call.1} parent=1 // loop_body
      %s35 = ssub.s32 %s30, 1
      %s36 = ssub.s32 %s30, 2
      %s37 = sadd.s32 %s30, 1
      %s38 = ssub.s32 %s30, %s37
      %p39 = scmp.eq.s32.totalorder %s38, 0
      %s41 = sadd.s32 %s40, 1
      %s42 = scalar_select %p39, %s40, %s41
      %p45 = pneg %p39
      %p46 = scmp.eq.s32.totalorder %s30, 1
      %p47 = por %p45, %p46
      %p48 = scmp.ne.s32.totalorder %s40, %s43
      %p49 = scmp.eq.s32.totalorder %s30, 0
      %p50 = por %p48, %p49
      %p51 = scmp.ne.s32.totalorder %s40, %s43
      %p52 = scmp.eq.s32.totalorder %s35, 1
      %p53 = por %p51, %p52
      %p54 = scmp.ne.s32.totalorder %s43, %s44
      %p55 = scmp.eq.s32.totalorder %s35, 0
      %p56 = por %p54, %p55
      %p57 = scmp.ne.s32.totalorder %s43, %s44
      %p58 = scmp.eq.s32.totalorder %s36, 1
      %p59 = por %p57, %p58
      %p61 = scmp.ne.s32.totalorder %s44, %s60
      %p62 = scmp.eq.s32.totalorder %s36, 0
      %p63 = por %p61, %p62
      %s65 = sadd.s32 %s64, 1
      %p68 = scmp.eq.s32.totalorder %s30, 1
      %p69 = scmp.ne.s32.totalorder %s64, %s66
      %p70 = scmp.eq.s32.totalorder %s30, 0
      %p71 = por %p69, %p70
      %p72 = scmp.ne.s32.totalorder %s64, %s66
      %p73 = scmp.eq.s32.totalorder %s35, 1
      %p74 = por %p72, %p73
      %p75 = scmp.ne.s32.totalorder %s66, %s67
      %p76 = scmp.eq.s32.totalorder %s35, 0
      %p77 = por %p75, %p76
      %p78 = scmp.ne.s32.totalorder %s66, %s67
      %p79 = scmp.eq.s32.totalorder %s36, 1
      %p80 = por %p78, %p79
      %p82 = scmp.ne.s32.totalorder %s67, %s81
      %p83 = scmp.eq.s32.totalorder %s36, 0
      %p84 = por %p82, %p83
      %s86 = sadd.s32 %s85, 1
      %p89 = scmp.eq.s32.totalorder %s30, 1
      %p90 = scmp.ne.s32.totalorder %s85, %s87
      %p91 = scmp.eq.s32.totalorder %s30, 0
      %p92 = por %p90, %p91
      %p93 = scmp.ne.s32.totalorder %s85, %s87
      %p94 = scmp.eq.s32.totalorder %s35, 1
      %p95 = por %p93, %p94
      %p96 = scmp.ne.s32.totalorder %s87, %s88
      %p97 = scmp.eq.s32.totalorder %s35, 0
      %p98 = por %p96, %p97
      %p99 = scmp.ne.s32.totalorder %s87, %s88
      %p100 = scmp.eq.s32.totalorder %s36, 1
      %p101 = por %p99, %p100
      %p103 = scmp.ne.s32.totalorder %s88, %s102
      %p104 = scmp.eq.s32.totalorder %s36, 0
      %p105 = por %p103, %p104
      %s107 = sadd.s32 %s106, 1
      %p110 = scmp.eq.s32.totalorder %s30, 1
      %p111 = scmp.ne.s32.totalorder %s106, %s108
      %p112 = scmp.eq.s32.totalorder %s30, 0
      %p113 = por %p111, %p112
      %p114 = scmp.ne.s32.totalorder %s106, %s108
      %p115 = scmp.eq.s32.totalorder %s35, 1
      %p116 = por %p114, %p115
      %p117 = scmp.ne.s32.totalorder %s108, %s109
      %p118 = scmp.eq.s32.totalorder %s35, 0
      %p119 = por %p117, %p118
      %p120 = scmp.ne.s32.totalorder %s108, %s109
      %p121 = scmp.eq.s32.totalorder %s36, 1
      %p122 = por %p120, %p121
      %p124 = scmp.ne.s32.totalorder %s109, %s123
      %p125 = scmp.eq.s32.totalorder %s36, 0
      %p126 = por %p124, %p125
      %s128 = sadd.s32 %s127, 1
      %p131 = scmp.eq.s32.totalorder %s30, 1
      %p132 = scmp.ne.s32.totalorder %s127, %s129
      %p133 = scmp.eq.s32.totalorder %s30, 0
      %p134 = por %p132, %p133
      %p135 = scmp.ne.s32.totalorder %s127, %s129
      %p136 = scmp.eq.s32.totalorder %s35, 1
      %p137 = por %p135, %p136
      %p138 = scmp.ne.s32.totalorder %s129, %s130
      %p139 = scmp.eq.s32.totalorder %s35, 0
      %p140 = por %p138, %p139
      %p141 = scmp.ne.s32.totalorder %s129, %s130
      %p142 = scmp.eq.s32.totalorder %s36, 1
      %p143 = por %p141, %p142
      %p145 = scmp.ne.s32.totalorder %s130, %s144
      %p146 = scmp.eq.s32.totalorder %s36, 0
      %p147 = por %p145, %p146
      %s149 = sadd.s32 %s148, 1
      %p152 = scmp.eq.s32.totalorder %s30, 1
      %p153 = scmp.ne.s32.totalorder %s148, %s150
      %p154 = scmp.eq.s32.totalorder %s30, 0
      %p155 = por %p153, %p154
      %p156 = scmp.ne.s32.totalorder %s148, %s150
      %p157 = scmp.eq.s32.totalorder %s35, 1
      %p158 = por %p156, %p157
      %p159 = scmp.ne.s32.totalorder %s150, %s151
      %p160 = scmp.eq.s32.totalorder %s35, 0
      %p161 = por %p159, %p160
      %p162 = scmp.ne.s32.totalorder %s150, %s151
      %p163 = scmp.eq.s32.totalorder %s36, 1
      %p164 = por %p162, %p163
      %p166 = scmp.ne.s32.totalorder %s151, %s165
      %p167 = scmp.eq.s32.totalorder %s36, 0
      %p168 = por %p166, %p167
      %s170 = sadd.s32 %s169, 1
      %p173 = scmp.eq.s32.totalorder %s30, 1
      %p174 = scmp.ne.s32.totalorder %s169, %s171
      %p175 = scmp.eq.s32.totalorder %s30, 0
      %p176 = por %p174, %p175
      %p177 = scmp.ne.s32.totalorder %s169, %s171
      %p178 = scmp.eq.s32.totalorder %s35, 1
      %p179 = por %p177, %p178
      %p180 = scmp.ne.s32.totalorder %s171, %s172
      %p181 = scmp.eq.s32.totalorder %s35, 0
      %p182 = por %p180, %p181
      %p183 = scmp.ne.s32.totalorder %s171, %s172
      %p184 = scmp.eq.s32.totalorder %s36, 1
      %p185 = por %p183, %p184
      %p187 = scmp.ne.s32.totalorder %s172, %s186
      %p188 = scmp.eq.s32.totalorder %s36, 0
      %p189 = por %p187, %p188
      %s191 = sadd.s32 %s190, 1
      %p194 = scmp.eq.s32.totalorder %s30, 1
      %p195 = scmp.ne.s32.totalorder %s190, %s192
      %p196 = scmp.eq.s32.totalorder %s30, 0
      %p197 = por %p195, %p196
      %p198 = scmp.ne.s32.totalorder %s190, %s192
      %p199 = scmp.eq.s32.totalorder %s35, 1
      %p200 = por %p198, %p199
      %p201 = scmp.ne.s32.totalorder %s192, %s193
      %p202 = scmp.eq.s32.totalorder %s35, 0
      %p203 = por %p201, %p202
      %p204 = scmp.ne.s32.totalorder %s192, %s193
      %p205 = scmp.eq.s32.totalorder %s36, 1
      %p206 = por %p204, %p205
      %p208 = scmp.ne.s32.totalorder %s193, %s207
      %p209 = scmp.eq.s32.totalorder %s36, 0
      %p210 = por %p208, %p209
      %s212 = sadd.s32 %s211, 1
      %p215 = scmp.eq.s32.totalorder %s30, 1
      %p216 = scmp.ne.s32.totalorder %s211, %s213
      %p217 = scmp.eq.s32.totalorder %s30, 0
      %p218 = por %p216, %p217
      %p219 = scmp.ne.s32.totalorder %s211, %s213
      %p220 = scmp.eq.s32.totalorder %s35, 1
      %p221 = por %p219, %p220
      %p222 = scmp.ne.s32.totalorder %s213, %s214
      %p223 = scmp.eq.s32.totalorder %s35, 0
      %p224 = por %p222, %p223
      %p225 = scmp.ne.s32.totalorder %s213, %s214
      %p226 = scmp.eq.s32.totalorder %s36, 1
      %p227 = por %p225, %p226
      %p229 = scmp.ne.s32.totalorder %s214, %s228
      %p230 = scmp.eq.s32.totalorder %s36, 0
      %p231 = por %p229, %p230
      %s233 = sadd.s32 %s232, 1
      %p236 = scmp.eq.s32.totalorder %s30, 1
      %p237 = scmp.ne.s32.totalorder %s232, %s234
      %p238 = scmp.eq.s32.totalorder %s30, 0
      %p239 = por %p237, %p238
      %p240 = scmp.ne.s32.totalorder %s232, %s234
      %p241 = scmp.eq.s32.totalorder %s35, 1
      %p242 = por %p240, %p241
      %p243 = scmp.ne.s32.totalorder %s234, %s235
      %p244 = scmp.eq.s32.totalorder %s35, 0
      %p245 = por %p243, %p244
      %p246 = scmp.ne.s32.totalorder %s234, %s235
      %p247 = scmp.eq.s32.totalorder %s36, 1
      %p248 = por %p246, %p247
      %p250 = scmp.ne.s32.totalorder %s235, %s249
      %p251 = scmp.eq.s32.totalorder %s36, 0
      %p252 = por %p250, %p251
      %s254 = sadd.s32 %s253, 1
      %p257 = scmp.eq.s32.totalorder %s30, 1
      %p258 = scmp.ne.s32.totalorder %s253, %s255
      %p259 = scmp.eq.s32.totalorder %s30, 0
      %p260 = por %p258, %p259
      %p261 = scmp.ne.s32.totalorder %s253, %s255
      %p262 = scmp.eq.s32.totalorder %s35, 1
      %p263 = por %p261, %p262
      %p264 = scmp.ne.s32.totalorder %s255, %s256
      %p265 = scmp.eq.s32.totalorder %s35, 0
      %p266 = por %p264, %p265
      %p267 = scmp.ne.s32.totalorder %s255, %s256
      %p268 = scmp.eq.s32.totalorder %s36, 1
      %p269 = por %p267, %p268
      %p271 = scmp.ne.s32.totalorder %s256, %s270
      %p272 = scmp.eq.s32.totalorder %s36, 0
      %p273 = por %p271, %p272
      %s275 = sadd.s32 %s274, 1
      %p278 = scmp.eq.s32.totalorder %s30, 1
      %p279 = scmp.ne.s32.totalorder %s274, %s276
      %p280 = scmp.eq.s32.totalorder %s30, 0
      %p281 = por %p279, %p280
      %p282 = scmp.ne.s32.totalorder %s274, %s276
      %p283 = scmp.eq.s32.totalorder %s35, 1
      %p284 = por %p282, %p283
      %p285 = scmp.ne.s32.totalorder %s276, %s277
      %p286 = scmp.eq.s32.totalorder %s35, 0
      %p287 = por %p285, %p286
      %p288 = scmp.ne.s32.totalorder %s276, %s277
      %p289 = scmp.eq.s32.totalorder %s36, 1
      %p290 = por %p288, %p289
      %p292 = scmp.ne.s32.totalorder %s277, %s291
      %p293 = scmp.eq.s32.totalorder %s36, 0
      %p294 = por %p292, %p293
      %s296 = sadd.s32 %s295, 1
      %p299 = scmp.eq.s32.totalorder %s30, 1
      %p300 = scmp.ne.s32.totalorder %s295, %s297
      %p301 = scmp.eq.s32.totalorder %s30, 0
      %p302 = por %p300, %p301
      %p303 = scmp.ne.s32.totalorder %s295, %s297
      %p304 = scmp.eq.s32.totalorder %s35, 1
      %p305 = por %p303, %p304
      %p306 = scmp.ne.s32.totalorder %s297, %s298
      %p307 = scmp.eq.s32.totalorder %s35, 0
      %p308 = por %p306, %p307
      %p309 = scmp.ne.s32.totalorder %s297, %s298
      %p310 = scmp.eq.s32.totalorder %s36, 1
      %p311 = por %p309, %p310
      %p313 = scmp.ne.s32.totalorder %s298, %s312
      %p314 = scmp.eq.s32.totalorder %s36, 0
      %p315 = por %p313, %p314
      %s317 = sadd.s32 %s316, 1
      %p320 = scmp.eq.s32.totalorder %s30, 1
      %p321 = scmp.ne.s32.totalorder %s316, %s318
      %p322 = scmp.eq.s32.totalorder %s30, 0
      %p323 = por %p321, %p322
      %p324 = scmp.ne.s32.totalorder %s316, %s318
      %p325 = scmp.eq.s32.totalorder %s35, 1
      %p326 = por %p324, %p325
      %p327 = scmp.ne.s32.totalorder %s318, %s319
      %p328 = scmp.eq.s32.totalorder %s35, 0
      %p329 = por %p327, %p328
      %p330 = scmp.ne.s32.totalorder %s318, %s319
      %p331 = scmp.eq.s32.totalorder %s36, 1
      %p332 = por %p330, %p331
      %p334 = scmp.ne.s32.totalorder %s319, %s333
      %p335 = scmp.eq.s32.totalorder %s36, 0
      %p336 = por %p334, %p335
      %s337 = ssub.s32 %s30, %s37
      %p338 = scmp.eq.s32.totalorder %s337, 0
      %s340 = sadd.s32 %s339, 1
      %s341 = scalar_select %p338, %s339, %s340
      %p344 = pneg %p338
      %p345 = scmp.eq.s32.totalorder %s30, 1
      %p346 = por %p344, %p345
      %p347 = scmp.ne.s32.totalorder %s339, %s342
      %p348 = scmp.eq.s32.totalorder %s30, 0
      %p349 = por %p347, %p348
      %p350 = scmp.ne.s32.totalorder %s339, %s342
      %p351 = scmp.eq.s32.totalorder %s35, 1
      %p352 = por %p350, %p351
      %p353 = scmp.ne.s32.totalorder %s342, %s343
      %p354 = scmp.eq.s32.totalorder %s35, 0
      %p355 = por %p353, %p354
      %p356 = scmp.ne.s32.totalorder %s342, %s343
      %p357 = scmp.eq.s32.totalorder %s36, 1
      %p358 = por %p356, %p357
      %p360 = scmp.ne.s32.totalorder %s343, %s359
      %p361 = scmp.eq.s32.totalorder %s36, 0
      %p362 = por %p360, %p361
      %p363 = scmp.le.s32.totalorder 1, %s30
      %p364 = scmp.lt.s32.totalorder %s30, 3
      %p365 = pnand %p363, %p364
      %p366 = pneg %p365
      // Predicated region
      $region9: #{tpu_custom_call.1} parent=5 // pred_check
        _
      $region10: #{tpu_custom_call.1} parent=5 // pred_check_branch
        %368 = sbr.rel (%p365) target = $region12
      $region11: #{tpu_custom_call.1} parent=5 // pred_region
        %s369 = ssub.s32 %s30, 1
        // Predicated region
        $region13: #{tpu_custom_call.1} parent=11 // pred_check
          %p370 = pneg %p77
        $region14: #{tpu_custom_call.1} parent=11 // pred_check_branch
          %372 = sbr.rel (%p370) target = $region16
        $region15: #{tpu_custom_call.1} parent=11 // pred_region
          %s374 = ssub.s32 1024, 1024
          %375 = vsyncadd [#allocation6], %s374
          %s376 = sshll.u32 [#allocation5], 4
          %s377 = int_to_ptr.vmem [resolvable:$true] %s376
          %382 = dma.hbm_to_vmem [thread:$0]  %s1, 1024, %s377, [#allocation6], 64, 64, 4
        $region16: #{tpu_custom_call.1} parent=11 // pred_fallthru
          _
        // Predicated region
        $region17: #{tpu_custom_call.1} parent=11 // pred_check
          %p383 = pneg %p98
        $region18: #{tpu_custom_call.1} parent=11 // pred_check_branch
          %385 = sbr.rel (%p383) target = $region20
        $region19: #{tpu_custom_call.1} parent=11 // pred_region
          _
        $region20: #{tpu_custom_call.1} parent=11 // pred_fallthru
          _
        // Predicated region
        $region21: #{tpu_custom_call.1} parent=11 // pred_check
          %p386 = pneg %p119
        $region22: #{tpu_custom_call.1} parent=11 // pred_check_branch
          %388 = sbr.rel (%p386) target = $region24
        $region23: #{tpu_custom_call.1} parent=11 // pred_region
          %s390 = ssub.s32 16, 16
          %391 = vsyncadd [#allocation6], %s390
          %s393 = sshll.u32 [#allocation7], 4
          %s394 = int_to_ptr.vmem [resolvable:$true] %s393
          %396 = dma.hbm_to_vmem [thread:$0]  %s3, 16, %s394, [#allocation6]
        $region24: #{tpu_custom_call.1} parent=11 // pred_fallthru
          _
        // Predicated region
        $region25: #{tpu_custom_call.1} parent=11 // pred_check
          %p397 = pneg %p140
        $region26: #{tpu_custom_call.1} parent=11 // pred_check_branch
          %399 = sbr.rel (%p397) target = $region28
        $region27: #{tpu_custom_call.1} parent=11 // pred_region
          %s401 = ssub.s32 4096, 4096
          %402 = vsyncadd [#allocation9], %s401
          %s403 = sshll.u32 [#allocation8], 4
          %s404 = int_to_ptr.vmem [resolvable:$true] %s403
          %409 = dma.hbm_to_vmem [thread:$0]  %s4, 4096, %s404, [#allocation9], 256, 256, 16
        $region28: #{tpu_custom_call.1} parent=11 // pred_fallthru
          _
        // Predicated region
        $region29: #{tpu_custom_call.1} parent=11 // pred_check
          %p410 = pneg %p161
        $region30: #{tpu_custom_call.1} parent=11 // pred_check_branch
          %412 = sbr.rel (%p410) target = $region32
        $region31: #{tpu_custom_call.1} parent=11 // pred_region
          _
        $region32: #{tpu_custom_call.1} parent=11 // pred_fallthru
          _
        // Predicated region
        $region33: #{tpu_custom_call.1} parent=11 // pred_check
          %p413 = pneg %p182
        $region34: #{tpu_custom_call.1} parent=11 // pred_check_branch
          %415 = sbr.rel (%p413) target = $region36
        $region35: #{tpu_custom_call.1} parent=11 // pred_region
          _
        $region36: #{tpu_custom_call.1} parent=11 // pred_fallthru
          _
        // Predicated region
        $region37: #{tpu_custom_call.1} parent=11 // pred_check
          %p416 = pneg %p203
        $region38: #{tpu_custom_call.1} parent=11 // pred_check_branch
          %418 = sbr.rel (%p416) target = $region40
        $region39: #{tpu_custom_call.1} parent=11 // pred_region
          %s420 = ssub.s32 8192, 8192
          %421 = vsyncadd [#allocation9], %s420
          %s422 = sshll.u32 [#allocation10], 4
          %s423 = int_to_ptr.vmem [resolvable:$true] %s422
          %428 = dma.hbm_to_vmem [thread:$0]  %s7, 8192, %s423, [#allocation9], 64, 64, 4
        $region40: #{tpu_custom_call.1} parent=11 // pred_fallthru
          _
        // Predicated region
        $region41: #{tpu_custom_call.1} parent=11 // pred_check
          %p429 = pneg %p224
        $region42: #{tpu_custom_call.1} parent=11 // pred_check_branch
          %431 = sbr.rel (%p429) target = $region44
        $region43: #{tpu_custom_call.1} parent=11 // pred_region
          %s433 = ssub.s32 8192, 8192
          %434 = vsyncadd [#allocation12], %s433
          %s435 = sshll.u32 [#allocation11], 4
          %s436 = int_to_ptr.vmem [resolvable:$true] %s435
          %441 = dma.hbm_to_vmem [thread:$0]  %s8, 8192, %s436, [#allocation12], 64, 64, 4
        $region44: #{tpu_custom_call.1} parent=11 // pred_fallthru
          _
        // Predicated region
        $region45: #{tpu_custom_call.1} parent=11 // pred_check
          %p442 = pneg %p245
        $region46: #{tpu_custom_call.1} parent=11 // pred_check_branch
          %444 = sbr.rel (%p442) target = $region48
        $region47: #{tpu_custom_call.1} parent=11 // pred_region
          %s446 = ssub.s32 8192, 8192
          %447 = vsyncadd [#allocation12], %s446
          %s448 = sshll.u32 [#allocation13], 4
          %s449 = int_to_ptr.vmem [resolvable:$true] %s448
          %454 = dma.hbm_to_vmem [thread:$0]  %s9, 8192, %s449, [#allocation12], 64, 64, 4
        $region48: #{tpu_custom_call.1} parent=11 // pred_fallthru
          _
        // Predicated region
        $region49: #{tpu_custom_call.1} parent=11 // pred_check
          %p455 = pneg %p266
        $region50: #{tpu_custom_call.1} parent=11 // pred_check_branch
          %457 = sbr.rel (%p455) target = $region52
        $region51: #{tpu_custom_call.1} parent=11 // pred_region
          %s459 = ssub.s32 4096, 4096
          %460 = vsyncadd [#allocation15], %s459
          %s461 = sshll.u32 [#allocation14], 4
          %s462 = int_to_ptr.vmem [resolvable:$true] %s461
          %467 = dma.hbm_to_vmem [thread:$0]  %s10, 4096, %s462, [#allocation15], 64, 64, 4
        $region52: #{tpu_custom_call.1} parent=11 // pred_fallthru
          _
        // Predicated region
        $region53: #{tpu_custom_call.1} parent=11 // pred_check
          %p468 = pneg %p287
        $region54: #{tpu_custom_call.1} parent=11 // pred_check_branch
          %470 = sbr.rel (%p468) target = $region56
        $region55: #{tpu_custom_call.1} parent=11 // pred_region
          %s472 = ssub.s32 1024, 1024
          %473 = vsyncadd [#allocation15], %s472
          %s474 = sshll.u32 [#allocation16], 4
          %s475 = int_to_ptr.vmem [resolvable:$true] %s474
          %480 = dma.hbm_to_vmem [thread:$0]  %s11, 1024, %s475, [#allocation15], 64, 64, 4
        $region56: #{tpu_custom_call.1} parent=11 // pred_fallthru
          _
        // Predicated region
        $region57: #{tpu_custom_call.1} parent=11 // pred_check
          %p481 = pneg %p308
        $region58: #{tpu_custom_call.1} parent=11 // pred_check_branch
          %483 = sbr.rel (%p481) target = $region60
        $region59: #{tpu_custom_call.1} parent=11 // pred_region
          _
        $region60: #{tpu_custom_call.1} parent=11 // pred_fallthru
          _
        // Predicated region
        $region61: #{tpu_custom_call.1} parent=11 // pred_check
          %p484 = pneg %p329
        $region62: #{tpu_custom_call.1} parent=11 // pred_check_branch
          %486 = sbr.rel (%p484) target = $region64
        $region63: #{tpu_custom_call.1} parent=11 // pred_region
          _
        $region64: #{tpu_custom_call.1} parent=11 // pred_fallthru
          _
      $region12: #{tpu_custom_call.1} parent=5 // pred_fallthru
        _
      %p487 = scmp.lt.s32.totalorder %s30, 2
      // Predicated region
      $region65: #{tpu_custom_call.1} parent=5 // pred_check
        %p488 = pneg %p487
      $region66: #{tpu_custom_call.1} parent=5 // pred_check_branch
        %490 = sbr.rel (%p488) target = $region68
      $region67: #{tpu_custom_call.1} parent=5 // pred_region
        // Predicated region
        $region69: #{tpu_custom_call.1} parent=67 // pred_check
          %p491 = pneg %p50
        $region70: #{tpu_custom_call.1} parent=67 // pred_check_branch
          %493 = sbr.rel (%p491) target = $region72
        $region71: #{tpu_custom_call.1} parent=67 // pred_region
          %s494 = sand.u32 %s40, 1
          %s495 = scalar_lea.sflag [#allocation3], %s494
          %s496 = sand.u32 %s40, 1
          %s497 = smul.addr %s496, 800
          %s498 = scalar_lea.vmem [#allocation2], %s497
          %s500 = ssub.s32 12800, 12800
          %501 = vsyncadd %s495, %s500
          %s502 = smul.addr %s30, 200
          %s503 = smul.addr %s502, 64
          %s504 = scalar_lea.hbm %s0, %s503
          %s505 = sshll.u32 %s498, 4
          %s506 = int_to_ptr.vmem [resolvable:$true] %s505
          %511 = dma.hbm_to_vmem [thread:$0]  %s504, 12800, %s506, %s495, 64, 64, 4
        $region72: #{tpu_custom_call.1} parent=67 // pred_fallthru
          _
      $region68: #{tpu_custom_call.1} parent=5 // pred_fallthru
        _
      %p512 = scmp.le.s32.totalorder 1, %s30
      %p513 = scmp.lt.s32.totalorder %s30, 3
      %p514 = pnand %p512, %p513
      %p515 = pneg %p514
      // Predicated region
      $region73: #{tpu_custom_call.1} parent=5 // pred_check
        _
      $region74: #{tpu_custom_call.1} parent=5 // pred_check_branch
        %517 = sbr.rel (%p514) target = $region76
      $region75: #{tpu_custom_call.1} parent=5 // pred_region
        %s518 = ssub.s32 %s30, 1
        %s519 = sand.u32 %s43, 1
        %s520 = scalar_lea.sflag [#allocation3], %s519
        %s521 = sand.u32 %s43, 1
        %s522 = smul.addr %s521, 800
        %s523 = scalar_lea.vmem [#allocation2], %s522
        // Predicated region
        $region77: #{tpu_custom_call.1} parent=75 // pred_check
          %p524 = pneg %p56
        $region78: #{tpu_custom_call.1} parent=75 // pred_check_branch
          %526 = sbr.rel (%p524) target = $region80
        $region79: #{tpu_custom_call.1} parent=75 // pred_region
          %527 = dma.done %s520, 12800
        $region80: #{tpu_custom_call.1} parent=75 // pred_fallthru
          _
        // Predicated region
        $region81: #{tpu_custom_call.1} parent=75 // pred_check
          %p528 = pneg %p77
        $region82: #{tpu_custom_call.1} parent=75 // pred_check_branch
          %530 = sbr.rel (%p528) target = $region84
        $region83: #{tpu_custom_call.1} parent=75 // pred_region
          %531 = dma.done [#allocation6], 1024
        $region84: #{tpu_custom_call.1} parent=75 // pred_fallthru
          _
        // Predicated region
        $region85: #{tpu_custom_call.1} parent=75 // pred_check
          %p532 = pneg %p119
        $region86: #{tpu_custom_call.1} parent=75 // pred_check_branch
          %534 = sbr.rel (%p532) target = $region88
        $region87: #{tpu_custom_call.1} parent=75 // pred_region
          %535 = dma.done [#allocation6], 16
        $region88: #{tpu_custom_call.1} parent=75 // pred_fallthru
          _
        // Predicated region
        $region89: #{tpu_custom_call.1} parent=75 // pred_check
          %p536 = pneg %p140
        $region90: #{tpu_custom_call.1} parent=75 // pred_check_branch
          %538 = sbr.rel (%p536) target = $region92
        $region91: #{tpu_custom_call.1} parent=75 // pred_region
          %539 = dma.done [#allocation9], 4096
        $region92: #{tpu_custom_call.1} parent=75 // pred_fallthru
          _
        // Predicated region
        $region93: #{tpu_custom_call.1} parent=75 // pred_check
          %p540 = pneg %p203
        $region94: #{tpu_custom_call.1} parent=75 // pred_check_branch
          %542 = sbr.rel (%p540) target = $region96
        $region95: #{tpu_custom_call.1} parent=75 // pred_region
          %543 = dma.done [#allocation9], 8192
        $region96: #{tpu_custom_call.1} parent=75 // pred_fallthru
          _
        // Predicated region
        $region97: #{tpu_custom_call.1} parent=75 // pred_check
          %p544 = pneg %p224
        $region98: #{tpu_custom_call.1} parent=75 // pred_check_branch
          %546 = sbr.rel (%p544) target = $region100
        $region99: #{tpu_custom_call.1} parent=75 // pred_region
          %547 = dma.done [#allocation12], 8192
        $region100: #{tpu_custom_call.1} parent=75 // pred_fallthru
          _
        // Predicated region
        $region101: #{tpu_custom_call.1} parent=75 // pred_check
          %p548 = pneg %p245
        $region102: #{tpu_custom_call.1} parent=75 // pred_check_branch
          %550 = sbr.rel (%p548) target = $region104
        $region103: #{tpu_custom_call.1} parent=75 // pred_region
          %551 = dma.done [#allocation12], 8192
        $region104: #{tpu_custom_call.1} parent=75 // pred_fallthru
          _
        // Predicated region
        $region105: #{tpu_custom_call.1} parent=75 // pred_check
          %p552 = pneg %p266
        $region106: #{tpu_custom_call.1} parent=75 // pred_check_branch
          %554 = sbr.rel (%p552) target = $region108
        $region107: #{tpu_custom_call.1} parent=75 // pred_region
          %555 = dma.done [#allocation15], 4096
        $region108: #{tpu_custom_call.1} parent=75 // pred_fallthru
          _
        // Predicated region
        $region109: #{tpu_custom_call.1} parent=75 // pred_check
          %p556 = pneg %p287
        $region110: #{tpu_custom_call.1} parent=75 // pred_check_branch
          %558 = sbr.rel (%p556) target = $region112
        $region111: #{tpu_custom_call.1} parent=75 // pred_region
          %559 = dma.done [#allocation15], 1024
        $region112: #{tpu_custom_call.1} parent=75 // pred_fallthru
          _
        %s560 = sand.u32 %s43, 1
        %s561 = scalar_lea.sflag [#allocation3], %s560
        %s562 = sand.u32 %s43, 1
        %s563 = smul.addr %s562, 800
        %s564 = scalar_lea.vmem [#allocation2], %s563
        %p565 = pneg %p56
        %p566 = pneg %p53
        %p567 = pneg %p77
        %p568 = pneg %p74
        %p569 = pneg %p98
        %p570 = pneg %p95
        %p571 = pneg %p119
        %p572 = pneg %p116
        %p573 = pneg %p140
        %p574 = pneg %p137
        %p575 = pneg %p161
        %p576 = pneg %p158
        %p577 = pneg %p182
        %p578 = pneg %p179
        %p579 = pneg %p203
        %p580 = pneg %p200
        %p581 = pneg %p224
        %p582 = pneg %p221
        %p583 = pneg %p245
        %p584 = pneg %p242
        %p585 = pneg %p266
        %p586 = pneg %p263
        %p587 = pneg %p287
        %p588 = pneg %p284
        %p589 = pneg %p308
        %p590 = pneg %p305
        %p591 = pneg %p329
        %p592 = pneg %p326
        %p593 = pneg %p355
        %p594 = pneg %p352
        %s595 = sand.u32 %s342, 1
        %s596 = scalar_lea.sflag [#allocation4], %s595
        %s597 = sand.u32 %s342, 1
        %s598 = smul.addr %s597, 256
        %s599 = scalar_lea.vmem [#allocation17], %s598
        %v601 = vld [vmem:[%s523] sm:$0xf]
        %v602 = vld [vmem:[%s523 + $0x4] sm:$0xf]
        %v603 = vld [vmem:[%s523 + $0x8] sm:$0xf]
        %v604 = vld [vmem:[%s523 + $0xc] sm:$0xf]
        %v605 = vld [vmem:[%s523 + $0x10] sm:$0xf]
        %v606 = vld [vmem:[%s523 + $0x14] sm:$0xf]
        %v607 = vld [vmem:[%s523 + $0x18] sm:$0xf]
        %v608 = vld [vmem:[%s523 + $0x1c] sm:$0xf]
        %v609 = vld [vmem:[%s523 + $0x20] sm:$0xf]
        %v610 = vld [vmem:[%s523 + $0x24] sm:$0xf]
        %v611 = vld [vmem:[%s523 + $0x28] sm:$0xf]
        %v612 = vld [vmem:[%s523 + $0x2c] sm:$0xf]
        %v613 = vld [vmem:[%s523 + $0x30] sm:$0xf]
        %v614 = vld [vmem:[%s523 + $0x34] sm:$0xf]
        %v615 = vld [vmem:[%s523 + $0x38] sm:$0xf]
        %v616 = vld [vmem:[%s523 + $0x3c] sm:$0xf]
        %v617 = vld [vmem:[%s523 + $0x40] sm:$0xf]
        %v618 = vld [vmem:[%s523 + $0x44] sm:$0xf]
        %v619 = vld [vmem:[%s523 + $0x48] sm:$0xf]
        %v620 = vld [vmem:[%s523 + $0x4c] sm:$0xf]
        %v621 = vld [vmem:[%s523 + $0x50] sm:$0xf]
        %v622 = vld [vmem:[%s523 + $0x54] sm:$0xf]
        %v623 = vld [vmem:[%s523 + $0x58] sm:$0xf]
        %v624 = vld [vmem:[%s523 + $0x5c] sm:$0xf]
        %v625 = vld [vmem:[%s523 + $0x60] sm:$0xf]
        %v626 = vld [vmem:[%s523 + $0x64] sm:$0xf]
        %v627 = vld [vmem:[%s523 + $0x68] sm:$0xf]
        %v628 = vld [vmem:[%s523 + $0x6c] sm:$0xf]
        %v629 = vld [vmem:[%s523 + $0x70] sm:$0xf]
        %v630 = vld [vmem:[%s523 + $0x74] sm:$0xf]
        %v631 = vld [vmem:[%s523 + $0x78] sm:$0xf]
        %v632 = vld [vmem:[%s523 + $0x7c] sm:$0xf]
        %v633 = vld [vmem:[%s523 + $0x80] sm:$0xf]
        %v634 = vld [vmem:[%s523 + $0x84] sm:$0xf]
        %v635 = vld [vmem:[%s523 + $0x88] sm:$0xf]
        %v636 = vld [vmem:[%s523 + $0x8c] sm:$0xf]
        %v637 = vld [vmem:[%s523 + $0x90] sm:$0xf]
        %v638 = vld [vmem:[%s523 + $0x94] sm:$0xf]
        %v639 = vld [vmem:[%s523 + $0x98] sm:$0xf]
        %v640 = vld [vmem:[%s523 + $0x9c] sm:$0xf]
        %v641 = vld [vmem:[%s523 + $0xa0] sm:$0xf]
        %v642 = vld [vmem:[%s523 + $0xa4] sm:$0xf]
        %v643 = vld [vmem:[%s523 + $0xa8] sm:$0xf]
        %v644 = vld [vmem:[%s523 + $0xac] sm:$0xf]
        %v645 = vld [vmem:[%s523 + $0xb0] sm:$0xf]
        %v646 = vld [vmem:[%s523 + $0xb4] sm:$0xf]
        %v647 = vld [vmem:[%s523 + $0xb8] sm:$0xf]
        %v648 = vld [vmem:[%s523 + $0xbc] sm:$0xf]
        %v649 = vld [vmem:[%s523 + $0xc0] sm:$0xf]
        %v650 = vld [vmem:[%s523 + $0xc4] sm:$0xf]
        %v651 = vld [vmem:[%s523 + $0xc8] sm:$0xf]
        %v652 = vld [vmem:[%s523 + $0xcc] sm:$0xf]
        %v653 = vld [vmem:[%s523 + $0xd0] sm:$0xf]
        %v654 = vld [vmem:[%s523 + $0xd4] sm:$0xf]
        %v655 = vld [vmem:[%s523 + $0xd8] sm:$0xf]
        %v656 = vld [vmem:[%s523 + $0xdc] sm:$0xf]
        %v657 = vld [vmem:[%s523 + $0xe0] sm:$0xf]
        %v658 = vld [vmem:[%s523 + $0xe4] sm:$0xf]
        %v659 = vld [vmem:[%s523 + $0xe8] sm:$0xf]
        %v660 = vld [vmem:[%s523 + $0xec] sm:$0xf]
        %v661 = vld [vmem:[%s523 + $0xf0] sm:$0xf]
        %v662 = vld [vmem:[%s523 + $0xf4] sm:$0xf]
        %v663 = vld [vmem:[%s523 + $0xf8] sm:$0xf]
        %v664 = vld [vmem:[%s523 + $0xfc] sm:$0xf]
        %v665 = vld [vmem:[%s523 + $0x100] sm:$0xf]
        %v666 = vld [vmem:[%s523 + $0x104] sm:$0xf]
        %v667 = vld [vmem:[%s523 + $0x108] sm:$0xf]
        %v668 = vld [vmem:[%s523 + $0x10c] sm:$0xf]
        %v669 = vld [vmem:[%s523 + $0x110] sm:$0xf]
        %v670 = vld [vmem:[%s523 + $0x114] sm:$0xf]
        %v671 = vld [vmem:[%s523 + $0x118] sm:$0xf]
        %v672 = vld [vmem:[%s523 + $0x11c] sm:$0xf]
        %v673 = vld [vmem:[%s523 + $0x120] sm:$0xf]
        %v674 = vld [vmem:[%s523 + $0x124] sm:$0xf]
        %v675 = vld [vmem:[%s523 + $0x128] sm:$0xf]
        %v676 = vld [vmem:[%s523 + $0x12c] sm:$0xf]
        %v677 = vld [vmem:[%s523 + $0x130] sm:$0xf]
        %v678 = vld [vmem:[%s523 + $0x134] sm:$0xf]
        %v679 = vld [vmem:[%s523 + $0x138] sm:$0xf]
        %v680 = vld [vmem:[%s523 + $0x13c] sm:$0xf]
        %v681 = vld [vmem:[%s523 + $0x140] sm:$0xf]
        %v682 = vld [vmem:[%s523 + $0x144] sm:$0xf]
        %v683 = vld [vmem:[%s523 + $0x148] sm:$0xf]
        %v684 = vld [vmem:[%s523 + $0x14c] sm:$0xf]
        %v685 = vld [vmem:[%s523 + $0x150] sm:$0xf]
        %v686 = vld [vmem:[%s523 + $0x154] sm:$0xf]
        %v687 = vld [vmem:[%s523 + $0x158] sm:$0xf]
        %v688 = vld [vmem:[%s523 + $0x15c] sm:$0xf]
        %v689 = vld [vmem:[%s523 + $0x160] sm:$0xf]
        %v690 = vld [vmem:[%s523 + $0x164] sm:$0xf]
        %v691 = vld [vmem:[%s523 + $0x168] sm:$0xf]
        %v692 = vld [vmem:[%s523 + $0x16c] sm:$0xf]
        %v693 = vld [vmem:[%s523 + $0x170] sm:$0xf]
        %v694 = vld [vmem:[%s523 + $0x174] sm:$0xf]
        %v695 = vld [vmem:[%s523 + $0x178] sm:$0xf]
        %v696 = vld [vmem:[%s523 + $0x17c] sm:$0xf]
        %v697 = vld [vmem:[%s523 + $0x180] sm:$0xf]
        %v698 = vld [vmem:[%s523 + $0x184] sm:$0xf]
        %v699 = vld [vmem:[%s523 + $0x188] sm:$0xf]
        %v700 = vld [vmem:[%s523 + $0x18c] sm:$0xf]
        %v701 = vld [vmem:[%s523 + $0x190] sm:$0xf]
        %v702 = vld [vmem:[%s523 + $0x194] sm:$0xf]
        %v703 = vld [vmem:[%s523 + $0x198] sm:$0xf]
        %v704 = vld [vmem:[%s523 + $0x19c] sm:$0xf]
        %v705 = vld [vmem:[%s523 + $0x1a0] sm:$0xf]
        %v706 = vld [vmem:[%s523 + $0x1a4] sm:$0xf]
        %v707 = vld [vmem:[%s523 + $0x1a8] sm:$0xf]
        %v708 = vld [vmem:[%s523 + $0x1ac] sm:$0xf]
        %v709 = vld [vmem:[%s523 + $0x1b0] sm:$0xf]
        %v710 = vld [vmem:[%s523 + $0x1b4] sm:$0xf]
        %v711 = vld [vmem:[%s523 + $0x1b8] sm:$0xf]
        %v712 = vld [vmem:[%s523 + $0x1bc] sm:$0xf]
        %v713 = vld [vmem:[%s523 + $0x1c0] sm:$0xf]
        %v714 = vld [vmem:[%s523 + $0x1c4] sm:$0xf]
        %v715 = vld [vmem:[%s523 + $0x1c8] sm:$0xf]
        %v716 = vld [vmem:[%s523 + $0x1cc] sm:$0xf]
        %v717 = vld [vmem:[%s523 + $0x1d0] sm:$0xf]
        %v718 = vld [vmem:[%s523 + $0x1d4] sm:$0xf]
        %v719 = vld [vmem:[%s523 + $0x1d8] sm:$0xf]
        %v720 = vld [vmem:[%s523 + $0x1dc] sm:$0xf]
        %v721 = vld [vmem:[%s523 + $0x1e0] sm:$0xf]
        %v722 = vld [vmem:[%s523 + $0x1e4] sm:$0xf]
        %v723 = vld [vmem:[%s523 + $0x1e8] sm:$0xf]
        %v724 = vld [vmem:[%s523 + $0x1ec] sm:$0xf]
        %v725 = vld [vmem:[%s523 + $0x1f0] sm:$0xf]
        %v726 = vld [vmem:[%s523 + $0x1f4] sm:$0xf]
        %v727 = vld [vmem:[%s523 + $0x1f8] sm:$0xf]
        %v728 = vld [vmem:[%s523 + $0x1fc] sm:$0xf]
        %v729 = vld [vmem:[%s523 + $0x200] sm:$0xf]
        %v730 = vld [vmem:[%s523 + $0x204] sm:$0xf]
        %v731 = vld [vmem:[%s523 + $0x208] sm:$0xf]
        %v732 = vld [vmem:[%s523 + $0x20c] sm:$0xf]
        %v733 = vld [vmem:[%s523 + $0x210] sm:$0xf]
        %v734 = vld [vmem:[%s523 + $0x214] sm:$0xf]
        %v735 = vld [vmem:[%s523 + $0x218] sm:$0xf]
        %v736 = vld [vmem:[%s523 + $0x21c] sm:$0xf]
        %v737 = vld [vmem:[%s523 + $0x220] sm:$0xf]
        %v738 = vld [vmem:[%s523 + $0x224] sm:$0xf]
        %v739 = vld [vmem:[%s523 + $0x228] sm:$0xf]
        %v740 = vld [vmem:[%s523 + $0x22c] sm:$0xf]
        %v741 = vld [vmem:[%s523 + $0x230] sm:$0xf]
        %v742 = vld [vmem:[%s523 + $0x234] sm:$0xf]
        %v743 = vld [vmem:[%s523 + $0x238] sm:$0xf]
        %v744 = vld [vmem:[%s523 + $0x23c] sm:$0xf]
        %v745 = vld [vmem:[%s523 + $0x240] sm:$0xf]
        %v746 = vld [vmem:[%s523 + $0x244] sm:$0xf]
        %v747 = vld [vmem:[%s523 + $0x248] sm:$0xf]
        %v748 = vld [vmem:[%s523 + $0x24c] sm:$0xf]
        %v749 = vld [vmem:[%s523 + $0x250] sm:$0xf]
        %v750 = vld [vmem:[%s523 + $0x254] sm:$0xf]
        %v751 = vld [vmem:[%s523 + $0x258] sm:$0xf]
        %v752 = vld [vmem:[%s523 + $0x25c] sm:$0xf]
        %v753 = vld [vmem:[%s523 + $0x260] sm:$0xf]
        %v754 = vld [vmem:[%s523 + $0x264] sm:$0xf]
        %v755 = vld [vmem:[%s523 + $0x268] sm:$0xf]
        %v756 = vld [vmem:[%s523 + $0x26c] sm:$0xf]
        %v757 = vld [vmem:[%s523 + $0x270] sm:$0xf]
        %v758 = vld [vmem:[%s523 + $0x274] sm:$0xf]
        %v759 = vld [vmem:[%s523 + $0x278] sm:$0xf]
        %v760 = vld [vmem:[%s523 + $0x27c] sm:$0xf]
        %v761 = vld [vmem:[%s523 + $0x280] sm:$0xf]
        %v762 = vld [vmem:[%s523 + $0x284] sm:$0xf]
        %v763 = vld [vmem:[%s523 + $0x288] sm:$0xf]
        %v764 = vld [vmem:[%s523 + $0x28c] sm:$0xf]
        %v765 = vld [vmem:[%s523 + $0x290] sm:$0xf]
        %v766 = vld [vmem:[%s523 + $0x294] sm:$0xf]
        %v767 = vld [vmem:[%s523 + $0x298] sm:$0xf]
        %v768 = vld [vmem:[%s523 + $0x29c] sm:$0xf]
        %v769 = vld [vmem:[%s523 + $0x2a0] sm:$0xf]
        %v770 = vld [vmem:[%s523 + $0x2a4] sm:$0xf]
        %v771 = vld [vmem:[%s523 + $0x2a8] sm:$0xf]
        %v772 = vld [vmem:[%s523 + $0x2ac] sm:$0xf]
        %v773 = vld [vmem:[%s523 + $0x2b0] sm:$0xf]
        %v774 = vld [vmem:[%s523 + $0x2b4] sm:$0xf]
        %v775 = vld [vmem:[%s523 + $0x2b8] sm:$0xf]
        %v776 = vld [vmem:[%s523 + $0x2bc] sm:$0xf]
        %v777 = vld [vmem:[%s523 + $0x2c0] sm:$0xf]
        %v778 = vld [vmem:[%s523 + $0x2c4] sm:$0xf]
        %v779 = vld [vmem:[%s523 + $0x2c8] sm:$0xf]
        %v780 = vld [vmem:[%s523 + $0x2cc] sm:$0xf]
        %v781 = vld [vmem:[%s523 + $0x2d0] sm:$0xf]
        %v782 = vld [vmem:[%s523 + $0x2d4] sm:$0xf]
        %v783 = vld [vmem:[%s523 + $0x2d8] sm:$0xf]
        %v784 = vld [vmem:[%s523 + $0x2dc] sm:$0xf]
        %v785 = vld [vmem:[%s523 + $0x2e0] sm:$0xf]
        %v786 = vld [vmem:[%s523 + $0x2e4] sm:$0xf]
        %v787 = vld [vmem:[%s523 + $0x2e8] sm:$0xf]
        %v788 = vld [vmem:[%s523 + $0x2ec] sm:$0xf]
        %v789 = vld [vmem:[%s523 + $0x2f0] sm:$0xf]
        %v790 = vld [vmem:[%s523 + $0x2f4] sm:$0xf]
        %v791 = vld [vmem:[%s523 + $0x2f8] sm:$0xf]
        %v792 = vld [vmem:[%s523 + $0x2fc] sm:$0xf]
        %v793 = vld [vmem:[%s523 + $0x300] sm:$0xf]
        %v794 = vld [vmem:[%s523 + $0x304] sm:$0xf]
        %v795 = vld [vmem:[%s523 + $0x308] sm:$0xf]
        %v796 = vld [vmem:[%s523 + $0x30c] sm:$0xf]
        %v797 = vld [vmem:[%s523 + $0x310] sm:$0xf]
        %v798 = vld [vmem:[%s523 + $0x314] sm:$0xf]
        %v799 = vld [vmem:[%s523 + $0x318] sm:$0xf]
        %v800 = vld [vmem:[%s523 + $0x31c] sm:$0xf]
        %vm849 = vcmask 1041408
        %vm850 = vcmask 1045508
        %vm851 = vmor %vm849, %vm850
        %v852 = vrot.slane %v662, 6
        %v853 = vrot.slane %v852, 4
        %v854 = vrot.slane %v663, 6
        %v855 = vsel %vm851, %v853, %v854
        %v856 = vrot.slane %v854, 4
        %v857 = vrot.slane %v664, 6
        %v858 = vsel %vm851, %v856, %v857
        %v859 = vrot.slane %v667, 6
        %v860 = vrot.slane %v859, 4
        %v861 = vrot.slane %v668, 6
        %v862 = vsel %vm851, %v860, %v861
        %v863 = vrot.slane %v861, 4
        %v864 = vrot.slane %v669, 6
        %v865 = vsel %vm851, %v863, %v864
        %v866 = vrot.slane %v672, 6
        %v867 = vrot.slane %v866, 4
        %v868 = vrot.slane %v673, 6
        %v869 = vsel %vm851, %v867, %v868
        %v870 = vrot.slane %v868, 4
        %v871 = vrot.slane %v674, 6
        %v872 = vsel %vm851, %v870, %v871
        %v873 = vrot.slane %v677, 6
        %v874 = vrot.slane %v873, 4
        %v875 = vrot.slane %v678, 6
        %v876 = vsel %vm851, %v874, %v875
        %v877 = vrot.slane %v875, 4
        %v878 = vrot.slane %v679, 6
        %v879 = vsel %vm851, %v877, %v878
        %v880 = vrot.slane %v682, 6
        %v881 = vrot.slane %v880, 4
        %v882 = vrot.slane %v683, 6
        %v883 = vsel %vm851, %v881, %v882
        %v884 = vrot.slane %v882, 4
        %v885 = vrot.slane %v684, 6
        %v886 = vsel %vm851, %v884, %v885
        %v887 = vrot.slane %v687, 6
        %v888 = vrot.slane %v887, 4
        %v889 = vrot.slane %v688, 6
        %v890 = vsel %vm851, %v888, %v889
        %v891 = vrot.slane %v889, 4
        %v892 = vrot.slane %v689, 6
        %v893 = vsel %vm851, %v891, %v892
        %v894 = vrot.slane %v692, 6
        %v895 = vrot.slane %v894, 4
        %v896 = vrot.slane %v693, 6
        %v897 = vsel %vm851, %v895, %v896
        %v898 = vrot.slane %v896, 4
        %v899 = vrot.slane %v694, 6
        %v900 = vsel %vm851, %v898, %v899
        %v901 = vrot.slane %v697, 6
        %v902 = vrot.slane %v901, 4
        %v903 = vrot.slane %v698, 6
        %v904 = vsel %vm851, %v902, %v903
        %v905 = vrot.slane %v903, 4
        %v906 = vrot.slane %v699, 6
        %v907 = vsel %vm851, %v905, %v906
        %v908 = vrot.slane %v702, 6
        %v909 = vrot.slane %v908, 4
        %v910 = vrot.slane %v703, 6
        %v911 = vsel %vm851, %v909, %v910
        %v912 = vrot.slane %v910, 4
        %v913 = vrot.slane %v704, 6
        %v914 = vsel %vm851, %v912, %v913
        %v915 = vrot.slane %v707, 6
        %v916 = vrot.slane %v915, 4
        %v917 = vrot.slane %v708, 6
        %v918 = vsel %vm851, %v916, %v917
        %v919 = vrot.slane %v917, 4
        %v920 = vrot.slane %v709, 6
        %v921 = vsel %vm851, %v919, %v920
        %v922 = vrot.slane %v712, 6
        %v923 = vrot.slane %v922, 4
        %v924 = vrot.slane %v713, 6
        %v925 = vsel %vm851, %v923, %v924
        %v926 = vrot.slane %v924, 4
        %v927 = vrot.slane %v714, 6
        %v928 = vsel %vm851, %v926, %v927
        %v929 = vrot.slane %v717, 6
        %v930 = vrot.slane %v929, 4
        %v931 = vrot.slane %v718, 6
        %v932 = vsel %vm851, %v930, %v931
        %v933 = vrot.slane %v931, 4
        %v934 = vrot.slane %v719, 6
        %v935 = vsel %vm851, %v933, %v934
        %v936 = vrot.slane %v722, 6
        %v937 = vrot.slane %v936, 4
        %v938 = vrot.slane %v723, 6
        %v939 = vsel %vm851, %v937, %v938
        %v940 = vrot.slane %v938, 4
        %v941 = vrot.slane %v724, 6
        %v942 = vsel %vm851, %v940, %v941
        %v943 = vrot.slane %v727, 6
        %v944 = vrot.slane %v943, 4
        %v945 = vrot.slane %v728, 6
        %v946 = vsel %vm851, %v944, %v945
        %v947 = vrot.slane %v945, 4
        %v948 = vrot.slane %v729, 6
        %v949 = vsel %vm851, %v947, %v948
        %v950 = vrot.slane %v732, 6
        %v951 = vrot.slane %v950, 4
        %v952 = vrot.slane %v733, 6
        %v953 = vsel %vm851, %v951, %v952
        %v954 = vrot.slane %v952, 4
        %v955 = vrot.slane %v734, 6
        %v956 = vsel %vm851, %v954, %v955
        %v957 = vrot.slane %v737, 6
        %v958 = vrot.slane %v957, 4
        %v959 = vrot.slane %v738, 6
        %v960 = vsel %vm851, %v958, %v959
        %v961 = vrot.slane %v959, 4
        %v962 = vrot.slane %v739, 6
        %v963 = vsel %vm851, %v961, %v962
        %v964 = vunpack.c.l.bf16 %v662
        %v965 = vunpack.c.l.bf16 %v663
        %v966 = vunpack.c.l.bf16 %v664
        %v967 = vunpack.c.l.bf16 %v667
        %v968 = vunpack.c.l.bf16 %v668
        %v969 = vunpack.c.l.bf16 %v669
        %v970 = vunpack.c.l.bf16 %v672
        %v971 = vunpack.c.l.bf16 %v673
        %v972 = vunpack.c.l.bf16 %v674
        %v973 = vunpack.c.l.bf16 %v677
        %v974 = vunpack.c.l.bf16 %v678
        %v975 = vunpack.c.l.bf16 %v679
        %v976 = vunpack.c.l.bf16 %v682
        %v977 = vunpack.c.l.bf16 %v683
        %v978 = vunpack.c.l.bf16 %v684
        %v979 = vunpack.c.l.bf16 %v687
        %v980 = vunpack.c.l.bf16 %v688
        %v981 = vunpack.c.l.bf16 %v689
        %v982 = vunpack.c.l.bf16 %v692
        %v983 = vunpack.c.l.bf16 %v693
        %v984 = vunpack.c.l.bf16 %v694
        %v985 = vunpack.c.l.bf16 %v697
        %v986 = vunpack.c.l.bf16 %v698
        %v987 = vunpack.c.l.bf16 %v699
        %v988 = vunpack.c.l.bf16 %v702
        %v989 = vunpack.c.l.bf16 %v703
        %v990 = vunpack.c.l.bf16 %v704
        %v991 = vunpack.c.l.bf16 %v707
        %v992 = vunpack.c.l.bf16 %v708
        %v993 = vunpack.c.l.bf16 %v709
        %v994 = vunpack.c.l.bf16 %v712
        %v995 = vunpack.c.l.bf16 %v713
        %v996 = vunpack.c.l.bf16 %v714
        %v997 = vunpack.c.l.bf16 %v717
        %v998 = vunpack.c.l.bf16 %v718
        %v999 = vunpack.c.l.bf16 %v719
        %v1000 = vunpack.c.l.bf16 %v722
        %v1001 = vunpack.c.l.bf16 %v723
        %v1002 = vunpack.c.l.bf16 %v724
        %v1003 = vunpack.c.l.bf16 %v727
        %v1004 = vunpack.c.l.bf16 %v728
        %v1005 = vunpack.c.l.bf16 %v729
        %v1006 = vunpack.c.l.bf16 %v732
        %v1007 = vunpack.c.l.bf16 %v733
        %v1008 = vunpack.c.l.bf16 %v734
        %v1009 = vunpack.c.l.bf16 %v737
        %v1010 = vunpack.c.l.bf16 %v738
        %v1011 = vunpack.c.l.bf16 %v739
        %vm1012 = vcmask 1047556
        %v1013 = vsel %vm1012, %v964, 0.0
        %v1014 = vsel %vm1012, %v967, 0.0
        %v1015 = vadd.f32 %v1013, %v1014
        %v1016 = vsel %vm1012, %v970, 0.0
        %v1017 = vadd.f32 %v1015, %v1016
        %v1018 = vsel %vm1012, %v973, 0.0
        %v1019 = vadd.f32 %v1017, %v1018
        %v1020 = vsel %vm1012, %v976, 0.0
        %v1021 = vadd.f32 %v1019, %v1020
        %v1022 = vsel %vm1012, %v979, 0.0
        %v1023 = vadd.f32 %v1021, %v1022
        %v1024 = vsel %vm1012, %v982, 0.0
        %v1025 = vadd.f32 %v1023, %v1024
        %v1026 = vsel %vm1012, %v985, 0.0
        %v1027 = vadd.f32 %v1025, %v1026
        %v1028 = vsel %vm1012, %v988, 0.0
        %v1029 = vadd.f32 %v1027, %v1028
        %v1030 = vsel %vm1012, %v991, 0.0
        %v1031 = vadd.f32 %v1029, %v1030
        %v1032 = vsel %vm1012, %v994, 0.0
        %v1033 = vadd.f32 %v1031, %v1032
        %v1034 = vsel %vm1012, %v997, 0.0
        %v1035 = vadd.f32 %v1033, %v1034
        %v1036 = vsel %vm1012, %v1000, 0.0
        %v1037 = vadd.f32 %v1035, %v1036
        %v1038 = vsel %vm1012, %v1003, 0.0
        %v1039 = vadd.f32 %v1037, %v1038
        %v1040 = vsel %vm1012, %v1006, 0.0
        %v1041 = vadd.f32 %v1039, %v1040
        %v1042 = vsel %vm1012, %v1009, 0.0
        %v1043 = vadd.f32 %v1041, %v1042
        %v1044 = vadd.f32 %v965, %v968
        %v1045 = vadd.f32 %v1044, %v971
        %v1046 = vadd.f32 %v1045, %v974
        %v1047 = vadd.f32 %v1046, %v977
        %v1048 = vadd.f32 %v1047, %v980
        %v1049 = vadd.f32 %v1048, %v983
        %v1050 = vadd.f32 %v1049, %v986
        %v1051 = vadd.f32 %v1050, %v989
        %v1052 = vadd.f32 %v1051, %v992
        %v1053 = vadd.f32 %v1052, %v995
        %v1054 = vadd.f32 %v1053, %v998
        %v1055 = vadd.f32 %v1054, %v1001
        %v1056 = vadd.f32 %v1055, %v1004
        %v1057 = vadd.f32 %v1056, %v1007
        %v1058 = vadd.f32 %v1057, %v1010
        %vm1059 = vcmask 1043456
        %v1060 = vsel %vm1059, %v966, 0.0
        %v1061 = vsel %vm1059, %v969, 0.0
        %v1062 = vadd.f32 %v1060, %v1061
        %v1063 = vsel %vm1059, %v972, 0.0
        %v1064 = vadd.f32 %v1062, %v1063
        %v1065 = vsel %vm1059, %v975, 0.0
        %v1066 = vadd.f32 %v1064, %v1065
        %v1067 = vsel %vm1059, %v978, 0.0
        %v1068 = vadd.f32 %v1066, %v1067
        %v1069 = vsel %vm1059, %v981, 0.0
        %v1070 = vadd.f32 %v1068, %v1069
        %v1071 = vsel %vm1059, %v984, 0.0
        %v1072 = vadd.f32 %v1070, %v1071
        %v1073 = vsel %vm1059, %v987, 0.0
        %v1074 = vadd.f32 %v1072, %v1073
        %v1075 = vsel %vm1059, %v990, 0.0
        %v1076 = vadd.f32 %v1074, %v1075
        %v1077 = vsel %vm1059, %v993, 0.0
        %v1078 = vadd.f32 %v1076, %v1077
        %v1079 = vsel %vm1059, %v996, 0.0
        %v1080 = vadd.f32 %v1078, %v1079
        %v1081 = vsel %vm1059, %v999, 0.0
        %v1082 = vadd.f32 %v1080, %v1081
        %v1083 = vsel %vm1059, %v1002, 0.0
        %v1084 = vadd.f32 %v1082, %v1083
        %v1085 = vsel %vm1059, %v1005, 0.0
        %v1086 = vadd.f32 %v1084, %v1085
        %v1087 = vsel %vm1059, %v1008, 0.0
        %v1088 = vadd.f32 %v1086, %v1087
        %v1089 = vsel %vm1059, %v1011, 0.0
        %v1090 = vadd.f32 %v1088, %v1089
        %v1091 = vrcp.pop 16.0
        %v1092 = vmul.f32 %v1043, %v1091
        %v1093 = vmul.f32 %v1058, %v1091
        %v1094 = vmul.f32 %v1090, %v1091
        %v1095 = vpack.c.bf16 %v1093, %v1092
        %v1096 = vpack.c.bf16 %v1094, %v1094
        %v1097 = vld [vmem:[#allocation5] sm:$0xf]
        %v1098 = vld [vmem:[#allocation5 + $0x4] sm:$0xf]
        %v1099 = vld [vmem:[#allocation5 + $0x8] sm:$0xf]
        %v1100 = vld [vmem:[#allocation5 + $0xc] sm:$0xf]
        %v1101 = vld [vmem:[#allocation5 + $0x10] sm:$0xf]
        %v1102 = vld [vmem:[#allocation5 + $0x14] sm:$0xf]
        %v1103 = vld [vmem:[#allocation5 + $0x18] sm:$0xf]
        %v1104 = vld [vmem:[#allocation5 + $0x1c] sm:$0xf]
        %v1105 = vld [vmem:[#allocation5 + $0x20] sm:$0xf]
        %v1106 = vld [vmem:[#allocation5 + $0x24] sm:$0xf]
        %v1107 = vld [vmem:[#allocation5 + $0x28] sm:$0xf]
        %v1108 = vld [vmem:[#allocation5 + $0x2c] sm:$0xf]
        %v1109 = vld [vmem:[#allocation5 + $0x30] sm:$0xf]
        %v1110 = vld [vmem:[#allocation5 + $0x34] sm:$0xf]
        %v1111 = vld [vmem:[#allocation5 + $0x38] sm:$0xf]
        %v1112 = vld [vmem:[#allocation5 + $0x3c] sm:$0xf]
        %vm1115 = vcmask 1045504
        %v1116 = vrot.slane %v1095, 2
        %v1117 = vrot.slane %v1096, 2
        %v1118 = vsel %vm1115, %v1116, %v1117
        %v1136 = vunpack.c.l.b16 %v1097
        %v1137 = vunpack.c.l.b16 %v1098
        %v1138 = vunpack.c.l.b16 %v1099
        %v1139 = vunpack.c.l.b16 %v1100
        %v1140 = vunpack.c.l.b16 %v1101
        %v1141 = vunpack.c.l.b16 %v1102
        %v1142 = vunpack.c.l.b16 %v1103
        %v1143 = vunpack.c.l.b16 %v1104
        %v1144 = vunpack.c.l.b16 %v1105
        %v1145 = vunpack.c.l.b16 %v1106
        %v1146 = vunpack.c.l.b16 %v1107
        %v1147 = vunpack.c.l.b16 %v1108
        %v1148 = vunpack.c.l.b16 %v1109
        %v1149 = vunpack.c.l.b16 %v1110
        %v1150 = vunpack.c.l.b16 %v1111
        %v1151 = vunpack.c.l.b16 %v1112
        %v1152 = vpack.c.b16 %v1137, %v1136
        %v1153 = vpack.c.b16 %v1139, %v1138
        %v1154 = vpack.c.b16 %v1141, %v1140
        %v1155 = vpack.c.b16 %v1143, %v1142
        %v1156 = vpack.c.b16 %v1145, %v1144
        %v1157 = vpack.c.b16 %v1147, %v1146
        %v1158 = vpack.c.b16 %v1149, %v1148
        %v1159 = vpack.c.b16 %v1151, %v1150
        %1168 = vmatprep.subr.bf16.mxu0 0
        %1169 = vmatpush1.bf16.msra.mxu0 %v1159
        %1170 = vmatprep.subr.bf16.mxu0 0
        %1171 = vmatpush1.bf16.msra.mxu0 %v1158
        %1172 = vmatprep.subr.bf16.mxu0 0
        %1173 = vmatpush1.bf16.msra.mxu0 %v1157
        %1174 = vmatprep.subr.bf16.mxu0 0
        %1175 = vmatpush1.bf16.msra.mxu0 %v1156
        %1176 = vmatprep.subr.bf16.mxu0 0
        %1177 = vmatpush1.bf16.msra.mxu0 %v1155
        %1178 = vmatprep.subr.bf16.mxu0 0
        %1179 = vmatpush1.bf16.msra.mxu0 %v1154
        %1180 = vmatprep.subr.bf16.mxu0 0
        %1181 = vmatpush1.bf16.msra.mxu0 %v1153
        %1182 = vmatprep.subr.bf16.mxu0 0
        %1183 = vmatpush1.bf16.msra.mxu0 %v1152
        %1184 = vmatprep.subr.bf16.mxu0 0
        %1185 = vmatpush2.bf16.msra.mxu0 0
        %1186 = vmatprep.subr.bf16.mxu0 0
        %1187 = vmatpush2.bf16.msra.mxu0 0
        %1188 = vmatprep.subr.bf16.mxu0 0
        %1189 = vmatpush2.bf16.msra.mxu0 0
        %1190 = vmatprep.subr.bf16.mxu0 0
        %1191 = vmatpush2.bf16.msra.mxu0 0
        %1192 = vmatprep.subr.bf16.mxu0 0
        %1193 = vmatpush2.bf16.msra.mxu0 0
        %1194 = vmatprep.subr.bf16.mxu0 0
        %1195 = vmatpush2.bf16.msra.mxu0 0
        %1196 = vmatprep.subr.bf16.mxu0 0
        %1197 = vmatpush2.bf16.msra.mxu0 0
        %1198 = vmatprep.subr.bf16.mxu0 0
        %1199 = vmatpush2.bf16.msra.mxu0 0
        %1200 = vmatprep.mubr.bf16.mxu0 0
        %1201 = vmatmul.mubr.bf16.gmra.mxu0 %v1118
        %v1202 = vpop.f32.mrf.mxu0
        %v1203 = vadd.f32 0.0, %v1202
        %v1204 = vpop.f32.mrf.mxu0
        %v1205 = vpop.f32.mrf.mxu0
        %v1206 = vadd.f32 0.0, %v1205
        %v1207 = vpop.f32.mrf.mxu0
        %1208 = vdwg.mxu0
        %v1209 = vld [vmem:[%s2] sm:$0x1]
        %v1211 = vlaneseq
        %v1212 = vshrl.u32 %v1211, 7
        %v1213 = vsub.s32 0, %v1212
        %v1214 = vrot.slane %v1209, %v1213
        %v1216 = vmul.f32 %v1203, %v1214
        %v1217 = vmul.f32 %v1206, %v1214
        %v1218 = vld [vmem:[#allocation7] sm:$0x1]
        %v1220 = vlaneseq
        %v1221 = vshrl.u32 %v1220, 7
        %v1222 = vsub.s32 0, %v1221
        %v1223 = vrot.slane %v1218, %v1222
        %v1225 = vadd.f32 %v1216, %v1223
        %v1226 = vadd.f32 %v1217, %v1223
        %v1227 = vmax.f32 %v1225, 0.0
        %v1228 = vmax.f32 %v1226, 0.0
        %v1229 = vpack.c.bf16 %v1228, %v1227
        %v1230 = vld [vmem:[#allocation16] sm:$0xf]
        %v1231 = vld [vmem:[#allocation16 + $0x4] sm:$0xf]
        %v1232 = vld [vmem:[#allocation16 + $0x8] sm:$0xf]
        %v1233 = vld [vmem:[#allocation16 + $0xc] sm:$0xf]
        %v1234 = vld [vmem:[#allocation16 + $0x10] sm:$0xf]
        %v1235 = vld [vmem:[#allocation16 + $0x14] sm:$0xf]
        %v1236 = vld [vmem:[#allocation16 + $0x18] sm:$0xf]
        %v1237 = vld [vmem:[#allocation16 + $0x1c] sm:$0xf]
        %v1238 = vld [vmem:[#allocation16 + $0x20] sm:$0xf]
        %v1239 = vld [vmem:[#allocation16 + $0x24] sm:$0xf]
        %v1240 = vld [vmem:[#allocation16 + $0x28] sm:$0xf]
        %v1241 = vld [vmem:[#allocation16 + $0x2c] sm:$0xf]
        %v1242 = vld [vmem:[#allocation16 + $0x30] sm:$0xf]
        %v1243 = vld [vmem:[#allocation16 + $0x34] sm:$0xf]
        %v1244 = vld [vmem:[#allocation16 + $0x38] sm:$0xf]
        %v1245 = vld [vmem:[#allocation16 + $0x3c] sm:$0xf]
        %v1262 = vunpack.c.l.b16 %v1230
        %v1263 = vunpack.c.l.b16 %v1231
        %v1264 = vunpack.c.l.b16 %v1232
        %v1265 = vunpack.c.l.b16 %v1233
        %v1266 = vunpack.c.l.b16 %v1234
        %v1267 = vunpack.c.l.b16 %v1235
        %v1268 = vunpack.c.l.b16 %v1236
        %v1269 = vunpack.c.l.b16 %v1237
        %v1270 = vunpack.c.l.b16 %v1238
        %v1271 = vunpack.c.l.b16 %v1239
        %v1272 = vunpack.c.l.b16 %v1240
        %v1273 = vunpack.c.l.b16 %v1241
        %v1274 = vunpack.c.l.b16 %v1242
        %v1275 = vunpack.c.l.b16 %v1243
        %v1276 = vunpack.c.l.b16 %v1244
        %v1277 = vunpack.c.l.b16 %v1245
        %v1278 = vpack.c.b16 %v1263, %v1262
        %v1279 = vpack.c.b16 %v1265, %v1264
        %v1280 = vpack.c.b16 %v1267, %v1266
        %v1281 = vpack.c.b16 %v1269, %v1268
        %v1282 = vpack.c.b16 %v1271, %v1270
        %v1283 = vpack.c.b16 %v1273, %v1272
        %v1284 = vpack.c.b16 %v1275, %v1274
        %v1285 = vpack.c.b16 %v1277, %v1276
        %1294 = vmatprep.subr.bf16.mxu0 0
        %1295 = vmatpush1.bf16.msra.mxu0 %v1285
        %1296 = vmatprep.subr.bf16.mxu0 0
        %1297 = vmatpush1.bf16.msra.mxu0 %v1284
        %1298 = vmatprep.subr.bf16.mxu0 0
        %1299 = vmatpush1.bf16.msra.mxu0 %v1283
        %1300 = vmatprep.subr.bf16.mxu0 0
        %1301 = vmatpush1.bf16.msra.mxu0 %v1282
        %1302 = vmatprep.subr.bf16.mxu0 0
        %1303 = vmatpush1.bf16.msra.mxu0 %v1281
        %1304 = vmatprep.subr.bf16.mxu0 0
        %1305 = vmatpush1.bf16.msra.mxu0 %v1280
        %1306 = vmatprep.subr.bf16.mxu0 0
        %1307 = vmatpush1.bf16.msra.mxu0 %v1279
        %1308 = vmatprep.subr.bf16.mxu0 0
        %1309 = vmatpush1.bf16.msra.mxu0 %v1278
        %1310 = vmatprep.subr.bf16.mxu0 0
        %1311 = vmatpush2.bf16.msra.mxu0 0
        %1312 = vmatprep.subr.bf16.mxu0 0
        %1313 = vmatpush2.bf16.msra.mxu0 0
        %1314 = vmatprep.subr.bf16.mxu0 0
        %1315 = vmatpush2.bf16.msra.mxu0 0
        %1316 = vmatprep.subr.bf16.mxu0 0
        %1317 = vmatpush2.bf16.msra.mxu0 0
        %1318 = vmatprep.subr.bf16.mxu0 0
        %1319 = vmatpush2.bf16.msra.mxu0 0
        %1320 = vmatprep.subr.bf16.mxu0 0
        %1321 = vmatpush2.bf16.msra.mxu0 0
        %1322 = vmatprep.subr.bf16.mxu0 0
        %1323 = vmatpush2.bf16.msra.mxu0 0
        %1324 = vmatprep.subr.bf16.mxu0 0
        %1325 = vmatpush2.bf16.msra.mxu0 0
        %1326 = vmatprep.mubr.bf16.mxu0 0
        %1327 = vmatmul.mubr.bf16.gmra.mxu0 %v1229
        %v1328 = vpop.f32.mrf.mxu0
        %v1329 = vadd.f32 0.0, %v1328
        %v1330 = vpop.f32.mrf.mxu0
        %v1331 = vpop.f32.mrf.mxu0
        %v1332 = vadd.f32 0.0, %v1331
        %v1333 = vpop.f32.mrf.mxu0
        %1334 = vdwg.mxu0
        %v1335 = vld [vmem:[#allocation8] sm:$0xff]
        %v1336 = vld [vmem:[#allocation8 + $0x8] sm:$0xff]
        %v1337 = vld [vmem:[#allocation8 + $0x10] sm:$0xff]
        %v1338 = vld [vmem:[#allocation8 + $0x18] sm:$0xff]
        %v1339 = vld [vmem:[#allocation8 + $0x20] sm:$0xff]
        %v1340 = vld [vmem:[#allocation8 + $0x28] sm:$0xff]
        %v1341 = vld [vmem:[#allocation8 + $0x30] sm:$0xff]
        %v1342 = vld [vmem:[#allocation8 + $0x38] sm:$0xff]
        %v1343 = vld [vmem:[#allocation8 + $0x40] sm:$0xff]
        %v1344 = vld [vmem:[#allocation8 + $0x48] sm:$0xff]
        %v1345 = vld [vmem:[#allocation8 + $0x50] sm:$0xff]
        %v1346 = vld [vmem:[#allocation8 + $0x58] sm:$0xff]
        %v1347 = vld [vmem:[#allocation8 + $0x60] sm:$0xff]
        %v1348 = vld [vmem:[#allocation8 + $0x68] sm:$0xff]
        %v1349 = vld [vmem:[#allocation8 + $0x70] sm:$0xff]
        %v1350 = vld [vmem:[#allocation8 + $0x78] sm:$0xff]
        %v1351 = vld [vmem:[#allocation8 + $0x80] sm:$0xff]
        %v1352 = vld [vmem:[#allocation8 + $0x88] sm:$0xff]
        %v1353 = vld [vmem:[#allocation8 + $0x90] sm:$0xff]
        %v1354 = vld [vmem:[#allocation8 + $0x98] sm:$0xff]
        %v1355 = vld [vmem:[#allocation8 + $0xa0] sm:$0xff]
        %v1356 = vld [vmem:[#allocation8 + $0xa8] sm:$0xff]
        %v1357 = vld [vmem:[#allocation8 + $0xb0] sm:$0xff]
        %v1358 = vld [vmem:[#allocation8 + $0xb8] sm:$0xff]
        %v1359 = vld [vmem:[#allocation8 + $0xc0] sm:$0xff]
        %v1360 = vld [vmem:[#allocation8 + $0xc8] sm:$0xff]
        %v1361 = vld [vmem:[#allocation8 + $0xd0] sm:$0xff]
        %v1362 = vld [vmem:[#allocation8 + $0xd8] sm:$0xff]
        %v1363 = vld [vmem:[#allocation8 + $0xe0] sm:$0xff]
        %v1364 = vld [vmem:[#allocation8 + $0xe8] sm:$0xff]
        %v1365 = vld [vmem:[#allocation8 + $0xf0] sm:$0xff]
        %v1366 = vld [vmem:[#allocation8 + $0xf8] sm:$0xff]
        %v1367 = vunpack.c.l.b16 %v855
        %v1368 = vunpack.c.l.b16 %v858
        %v1369 = vunpack.c.l.b16 %v862
        %v1370 = vunpack.c.l.b16 %v865
        %v1371 = vunpack.c.l.b16 %v869
        %v1372 = vunpack.c.l.b16 %v872
        %v1373 = vunpack.c.l.b16 %v876
        %v1374 = vunpack.c.l.b16 %v879
        %v1375 = vunpack.c.l.b16 %v883
        %v1376 = vunpack.c.l.b16 %v886
        %v1377 = vunpack.c.l.b16 %v890
        %v1378 = vunpack.c.l.b16 %v893
        %v1379 = vunpack.c.l.b16 %v897
        %v1380 = vunpack.c.l.b16 %v900
        %v1381 = vunpack.c.l.b16 %v904
        %v1382 = vunpack.c.l.b16 %v907
        %v1383 = vunpack.c.l.b16 %v911
        %v1384 = vunpack.c.l.b16 %v914
        %v1385 = vunpack.c.l.b16 %v918
        %v1386 = vunpack.c.l.b16 %v921
        %v1387 = vunpack.c.l.b16 %v925
        %v1388 = vunpack.c.l.b16 %v928
        %v1389 = vunpack.c.l.b16 %v932
        %v1390 = vunpack.c.l.b16 %v935
        %v1391 = vunpack.c.l.b16 %v939
        %v1392 = vunpack.c.l.b16 %v942
        %v1393 = vunpack.c.l.b16 %v946
        %v1394 = vunpack.c.l.b16 %v949
        %v1395 = vunpack.c.l.b16 %v953
        %v1396 = vunpack.c.l.b16 %v956
        %v1397 = vunpack.c.l.b16 %v960
        %v1398 = vunpack.c.l.b16 %v963
        %v1399 = vpack.c.b16 %v1368, %v1367
        %v1400 = vpack.c.b16 %v1370, %v1369
        %v1401 = vpack.c.b16 %v1372, %v1371
        %v1402 = vpack.c.b16 %v1374, %v1373
        %v1403 = vpack.c.b16 %v1376, %v1375
        %v1404 = vpack.c.b16 %v1378, %v1377
        %v1405 = vpack.c.b16 %v1380, %v1379
        %v1406 = vpack.c.b16 %v1382, %v1381
        %v1407 = vpack.c.b16 %v1384, %v1383
        %v1408 = vpack.c.b16 %v1386, %v1385
        %v1409 = vpack.c.b16 %v1388, %v1387
        %v1410 = vpack.c.b16 %v1390, %v1389
        %v1411 = vpack.c.b16 %v1392, %v1391
        %v1412 = vpack.c.b16 %v1394, %v1393
        %v1413 = vpack.c.b16 %v1396, %v1395
        %v1414 = vpack.c.b16 %v1398, %v1397
        %v1463 = vunpack.c.l.b16 %v1335
        %v1464 = vunpack.c.h.b16 %v1335
        %v1465 = vunpack.c.l.b16 %v1336
        %v1466 = vunpack.c.h.b16 %v1336
        %v1467 = vunpack.c.l.b16 %v1337
        %v1468 = vunpack.c.h.b16 %v1337
        %v1469 = vunpack.c.l.b16 %v1338
        %v1470 = vunpack.c.h.b16 %v1338
        %v1471 = vunpack.c.l.b16 %v1339
        %v1472 = vunpack.c.h.b16 %v1339
        %v1473 = vunpack.c.l.b16 %v1340
        %v1474 = vunpack.c.h.b16 %v1340
        %v1475 = vunpack.c.l.b16 %v1341
        %v1476 = vunpack.c.h.b16 %v1341
        %v1477 = vunpack.c.l.b16 %v1342
        %v1478 = vunpack.c.h.b16 %v1342
        %v1479 = vunpack.c.l.b16 %v1343
        %v1480 = vunpack.c.h.b16 %v1343
        %v1481 = vunpack.c.l.b16 %v1344
        %v1482 = vunpack.c.h.b16 %v1344
        %v1483 = vunpack.c.l.b16 %v1345
        %v1484 = vunpack.c.h.b16 %v1345
        %v1485 = vunpack.c.l.b16 %v1346
        %v1486 = vunpack.c.h.b16 %v1346
        %v1487 = vunpack.c.l.b16 %v1347
        %v1488 = vunpack.c.h.b16 %v1347
        %v1489 = vunpack.c.l.b16 %v1348
        %v1490 = vunpack.c.h.b16 %v1348
        %v1491 = vunpack.c.l.b16 %v1349
        %v1492 = vunpack.c.h.b16 %v1349
        %v1493 = vunpack.c.l.b16 %v1350
        %v1494 = vunpack.c.h.b16 %v1350
        %v1495 = vunpack.c.l.b16 %v1351
        %v1496 = vunpack.c.h.b16 %v1351
        %v1497 = vunpack.c.l.b16 %v1352
        %v1498 = vunpack.c.h.b16 %v1352
        %v1499 = vunpack.c.l.b16 %v1353
        %v1500 = vunpack.c.h.b16 %v1353
        %v1501 = vunpack.c.l.b16 %v1354
        %v1502 = vunpack.c.h.b16 %v1354
        %v1503 = vunpack.c.l.b16 %v1355
        %v1504 = vunpack.c.h.b16 %v1355
        %v1505 = vunpack.c.l.b16 %v1356
        %v1506 = vunpack.c.h.b16 %v1356
        %v1507 = vunpack.c.l.b16 %v1357
        %v1508 = vunpack.c.h.b16 %v1357
        %v1509 = vunpack.c.l.b16 %v1358
        %v1510 = vunpack.c.h.b16 %v1358
        %v1511 = vunpack.c.l.b16 %v1359
        %v1512 = vunpack.c.h.b16 %v1359
        %v1513 = vunpack.c.l.b16 %v1360
        %v1514 = vunpack.c.h.b16 %v1360
        %v1515 = vunpack.c.l.b16 %v1361
        %v1516 = vunpack.c.h.b16 %v1361
        %v1517 = vunpack.c.l.b16 %v1362
        %v1518 = vunpack.c.h.b16 %v1362
        %v1519 = vunpack.c.l.b16 %v1363
        %v1520 = vunpack.c.h.b16 %v1363
        %v1521 = vunpack.c.l.b16 %v1364
        %v1522 = vunpack.c.h.b16 %v1364
        %v1523 = vunpack.c.l.b16 %v1365
        %v1524 = vunpack.c.h.b16 %v1365
        %v1525 = vunpack.c.l.b16 %v1366
        %v1526 = vunpack.c.h.b16 %v1366
        %v1527 = vpack.c.b16 %v1467, %v1463
        %v1528 = vpack.c.b16 %v1468, %v1464
        %v1529 = vpack.c.b16 %v1469, %v1465
        %v1530 = vpack.c.b16 %v1470, %v1466
        %v1531 = vpack.c.b16 %v1475, %v1471
        %v1532 = vpack.c.b16 %v1476, %v1472
        %v1533 = vpack.c.b16 %v1477, %v1473
        %v1534 = vpack.c.b16 %v1478, %v1474
        %v1535 = vpack.c.b16 %v1483, %v1479
        %v1536 = vpack.c.b16 %v1484, %v1480
        %v1537 = vpack.c.b16 %v1485, %v1481
        %v1538 = vpack.c.b16 %v1486, %v1482
        %v1539 = vpack.c.b16 %v1491, %v1487
        %v1540 = vpack.c.b16 %v1492, %v1488
        %v1541 = vpack.c.b16 %v1493, %v1489
        %v1542 = vpack.c.b16 %v1494, %v1490
        %v1543 = vpack.c.b16 %v1499, %v1495
        %v1544 = vpack.c.b16 %v1500, %v1496
        %v1545 = vpack.c.b16 %v1501, %v1497
        %v1546 = vpack.c.b16 %v1502, %v1498
        %v1547 = vpack.c.b16 %v1507, %v1503
        %v1548 = vpack.c.b16 %v1508, %v1504
        %v1549 = vpack.c.b16 %v1509, %v1505
        %v1550 = vpack.c.b16 %v1510, %v1506
        %v1551 = vpack.c.b16 %v1515, %v1511
        %v1552 = vpack.c.b16 %v1516, %v1512
        %v1553 = vpack.c.b16 %v1517, %v1513
        %v1554 = vpack.c.b16 %v1518, %v1514
        %v1555 = vpack.c.b16 %v1523, %v1519
        %v1556 = vpack.c.b16 %v1524, %v1520
        %v1557 = vpack.c.b16 %v1525, %v1521
        %v1558 = vpack.c.b16 %v1526, %v1522
        %1591 = vmatprep.subr.bf16.mxu0 %v1556
        %1592 = vmatpush1.bf16.msra.mxu0 %v1555
        %1593 = vmatprep.subr.bf16.mxu0 %v1552
        %1594 = vmatpush1.bf16.msra.mxu0 %v1551
        %1595 = vmatprep.subr.bf16.mxu0 %v1548
        %1596 = vmatpush1.bf16.msra.mxu0 %v1547
        %1597 = vmatprep.subr.bf16.mxu0 %v1544
        %1598 = vmatpush1.bf16.msra.mxu0 %v1543
        %1599 = vmatprep.subr.bf16.mxu0 %v1540
        %1600 = vmatpush1.bf16.msra.mxu0 %v1539
        %1601 = vmatprep.subr.bf16.mxu0 %v1536
        %1602 = vmatpush1.bf16.msra.mxu0 %v1535
        %1603 = vmatprep.subr.bf16.mxu0 %v1532
        %1604 = vmatpush1.bf16.msra.mxu0 %v1531
        %1605 = vmatprep.subr.bf16.mxu0 %v1528
        %1606 = vmatpush1.bf16.msra.mxu0 %v1527
        %1607 = vmatprep.subr.bf16.mxu0 0
        %1608 = vmatpush2.bf16.msra.mxu0 0
        %1609 = vmatprep.subr.bf16.mxu0 0
        %1610 = vmatpush2.bf16.msra.mxu0 0
        %1611 = vmatprep.subr.bf16.mxu0 0
        %1612 = vmatpush2.bf16.msra.mxu0 0
        %1613 = vmatprep.subr.bf16.mxu0 0
        %1614 = vmatpush2.bf16.msra.mxu0 0
        %1615 = vmatprep.subr.bf16.mxu0 0
        %1616 = vmatpush2.bf16.msra.mxu0 0
        %1617 = vmatprep.subr.bf16.mxu0 0
        %1618 = vmatpush2.bf16.msra.mxu0 0
        %1619 = vmatprep.subr.bf16.mxu0 0
        %1620 = vmatpush2.bf16.msra.mxu0 0
        %1621 = vmatprep.subr.bf16.mxu0 0
        %1622 = vmatpush2.bf16.msra.mxu0 0
        %1623 = vmatprep.mubr.bf16.mxu0 0
        %1624 = vmatmul.mubr.bf16.gmra.mxu0 %v1399
        %v1625 = vpop.f32.mrf.mxu0
        %v1626 = vadd.f32 0.0, %v1625
        %v1627 = vpop.f32.mrf.mxu0
        %v1628 = vadd.f32 0.0, %v1627
        %v1629 = vpop.f32.mrf.mxu0
        %v1630 = vadd.f32 0.0, %v1629
        %v1631 = vpop.f32.mrf.mxu0
        %v1632 = vadd.f32 0.0, %v1631
        %1633 = vmatprep.mubr.bf16.mxu0 0
        %1634 = vmatmul.mubr.bf16.gmra.mxu0 %v1400
        %v1635 = vpop.f32.mrf.mxu0
        %v1636 = vadd.f32 0.0, %v1635
        %v1637 = vpop.f32.mrf.mxu0
        %v1638 = vadd.f32 0.0, %v1637
        %v1639 = vpop.f32.mrf.mxu0
        %v1640 = vadd.f32 0.0, %v1639
        %v1641 = vpop.f32.mrf.mxu0
        %v1642 = vadd.f32 0.0, %v1641
        %1643 = vmatprep.mubr.bf16.mxu0 0
        %1644 = vmatmul.mubr.bf16.gmra.mxu0 %v1401
        %v1645 = vpop.f32.mrf.mxu0
        %v1646 = vadd.f32 0.0, %v1645
        %v1647 = vpop.f32.mrf.mxu0
        %v1648 = vadd.f32 0.0, %v1647
        %v1649 = vpop.f32.mrf.mxu0
        %v1650 = vadd.f32 0.0, %v1649
        %v1651 = vpop.f32.mrf.mxu0
        %v1652 = vadd.f32 0.0, %v1651
        %1653 = vmatprep.mubr.bf16.mxu0 0
        %1654 = vmatmul.mubr.bf16.gmra.mxu0 %v1402
        %v1655 = vpop.f32.mrf.mxu0
        %v1656 = vadd.f32 0.0, %v1655
        %v1657 = vpop.f32.mrf.mxu0
        %v1658 = vadd.f32 0.0, %v1657
        %v1659 = vpop.f32.mrf.mxu0
        %v1660 = vadd.f32 0.0, %v1659
        %v1661 = vpop.f32.mrf.mxu0
        %v1662 = vadd.f32 0.0, %v1661
        %1663 = vmatprep.mubr.bf16.mxu0 0
        %1664 = vmatmul.mubr.bf16.gmra.mxu0 %v1403
        %v1665 = vpop.f32.mrf.mxu0
        %v1666 = vadd.f32 0.0, %v1665
        %v1667 = vpop.f32.mrf.mxu0
        %v1668 = vadd.f32 0.0, %v1667
        %v1669 = vpop.f32.mrf.mxu0
        %v1670 = vadd.f32 0.0, %v1669
        %v1671 = vpop.f32.mrf.mxu0
        %v1672 = vadd.f32 0.0, %v1671
        %1673 = vmatprep.mubr.bf16.mxu0 0
        %1674 = vmatmul.mubr.bf16.gmra.mxu0 %v1404
        %v1675 = vpop.f32.mrf.mxu0
        %v1676 = vadd.f32 0.0, %v1675
        %v1677 = vpop.f32.mrf.mxu0
        %v1678 = vadd.f32 0.0, %v1677
        %v1679 = vpop.f32.mrf.mxu0
        %v1680 = vadd.f32 0.0, %v1679
        %v1681 = vpop.f32.mrf.mxu0
        %v1682 = vadd.f32 0.0, %v1681
        %1683 = vmatprep.mubr.bf16.mxu0 0
        %1684 = vmatmul.mubr.bf16.gmra.mxu0 %v1405
        %v1685 = vpop.f32.mrf.mxu0
        %v1686 = vadd.f32 0.0, %v1685
        %v1687 = vpop.f32.mrf.mxu0
        %v1688 = vadd.f32 0.0, %v1687
        %v1689 = vpop.f32.mrf.mxu0
        %v1690 = vadd.f32 0.0, %v1689
        %v1691 = vpop.f32.mrf.mxu0
        %v1692 = vadd.f32 0.0, %v1691
        %1693 = vmatprep.mubr.bf16.mxu0 0
        %1694 = vmatmul.mubr.bf16.gmra.mxu0 %v1406
        %v1695 = vpop.f32.mrf.mxu0
        %v1696 = vadd.f32 0.0, %v1695
        %v1697 = vpop.f32.mrf.mxu0
        %v1698 = vadd.f32 0.0, %v1697
        %v1699 = vpop.f32.mrf.mxu0
        %v1700 = vadd.f32 0.0, %v1699
        %v1701 = vpop.f32.mrf.mxu0
        %v1702 = vadd.f32 0.0, %v1701
        %1703 = vmatprep.mubr.bf16.mxu0 0
        %1704 = vmatmul.mubr.bf16.gmra.mxu0 %v1407
        %v1705 = vpop.f32.mrf.mxu0
        %v1706 = vadd.f32 0.0, %v1705
        %v1707 = vpop.f32.mrf.mxu0
        %v1708 = vadd.f32 0.0, %v1707
        %v1709 = vpop.f32.mrf.mxu0
        %v1710 = vadd.f32 0.0, %v1709
        %v1711 = vpop.f32.mrf.mxu0
        %v1712 = vadd.f32 0.0, %v1711
        %1713 = vmatprep.mubr.bf16.mxu0 0
        %1714 = vmatmul.mubr.bf16.gmra.mxu0 %v1408
        %v1715 = vpop.f32.mrf.mxu0
        %v1716 = vadd.f32 0.0, %v1715
        %v1717 = vpop.f32.mrf.mxu0
        %v1718 = vadd.f32 0.0, %v1717
        %v1719 = vpop.f32.mrf.mxu0
        %v1720 = vadd.f32 0.0, %v1719
        %v1721 = vpop.f32.mrf.mxu0
        %v1722 = vadd.f32 0.0, %v1721
        %1723 = vmatprep.mubr.bf16.mxu0 0
        %1724 = vmatmul.mubr.bf16.gmra.mxu0 %v1409
        %v1725 = vpop.f32.mrf.mxu0
        %v1726 = vadd.f32 0.0, %v1725
        %v1727 = vpop.f32.mrf.mxu0
        %v1728 = vadd.f32 0.0, %v1727
        %v1729 = vpop.f32.mrf.mxu0
        %v1730 = vadd.f32 0.0, %v1729
        %v1731 = vpop.f32.mrf.mxu0
        %v1732 = vadd.f32 0.0, %v1731
        %1733 = vmatprep.mubr.bf16.mxu0 0
        %1734 = vmatmul.mubr.bf16.gmra.mxu0 %v1410
        %v1735 = vpop.f32.mrf.mxu0
        %v1736 = vadd.f32 0.0, %v1735
        %v1737 = vpop.f32.mrf.mxu0
        %v1738 = vadd.f32 0.0, %v1737
        %v1739 = vpop.f32.mrf.mxu0
        %v1740 = vadd.f32 0.0, %v1739
        %v1741 = vpop.f32.mrf.mxu0
        %v1742 = vadd.f32 0.0, %v1741
        %1743 = vmatprep.mubr.bf16.mxu0 0
        %1744 = vmatmul.mubr.bf16.gmra.mxu0 %v1411
        %v1745 = vpop.f32.mrf.mxu0
        %v1746 = vadd.f32 0.0, %v1745
        %v1747 = vpop.f32.mrf.mxu0
        %v1748 = vadd.f32 0.0, %v1747
        %v1749 = vpop.f32.mrf.mxu0
        %v1750 = vadd.f32 0.0, %v1749
        %v1751 = vpop.f32.mrf.mxu0
        %v1752 = vadd.f32 0.0, %v1751
        %1753 = vmatprep.mubr.bf16.mxu0 0
        %1754 = vmatmul.mubr.bf16.gmra.mxu0 %v1412
        %v1755 = vpop.f32.mrf.mxu0
        %v1756 = vadd.f32 0.0, %v1755
        %v1757 = vpop.f32.mrf.mxu0
        %v1758 = vadd.f32 0.0, %v1757
        %v1759 = vpop.f32.mrf.mxu0
        %v1760 = vadd.f32 0.0, %v1759
        %v1761 = vpop.f32.mrf.mxu0
        %v1762 = vadd.f32 0.0, %v1761
        %1763 = vmatprep.mubr.bf16.mxu0 0
        %1764 = vmatmul.mubr.bf16.gmra.mxu0 %v1413
        %v1765 = vpop.f32.mrf.mxu0
        %v1766 = vadd.f32 0.0, %v1765
        %v1767 = vpop.f32.mrf.mxu0
        %v1768 = vadd.f32 0.0, %v1767
        %v1769 = vpop.f32.mrf.mxu0
        %v1770 = vadd.f32 0.0, %v1769
        %v1771 = vpop.f32.mrf.mxu0
        %v1772 = vadd.f32 0.0, %v1771
        %1773 = vmatprep.mubr.bf16.mxu0 0
        %1774 = vmatmul.mubr.bf16.gmra.mxu0 %v1414
        %v1775 = vpop.f32.mrf.mxu0
        %v1776 = vadd.f32 0.0, %v1775
        %v1777 = vpop.f32.mrf.mxu0
        %v1778 = vadd.f32 0.0, %v1777
        %v1779 = vpop.f32.mrf.mxu0
        %v1780 = vadd.f32 0.0, %v1779
        %v1781 = vpop.f32.mrf.mxu0
        %v1782 = vadd.f32 0.0, %v1781
        %1783 = vdwg.mxu0
        %1784 = vmatprep.subr.bf16.mxu0 %v1558
        %1785 = vmatpush1.bf16.msra.mxu0 %v1557
        %1786 = vmatprep.subr.bf16.mxu0 %v1554
        %1787 = vmatpush1.bf16.msra.mxu0 %v1553
        %1788 = vmatprep.subr.bf16.mxu0 %v1550
        %1789 = vmatpush1.bf16.msra.mxu0 %v1549
        %1790 = vmatprep.subr.bf16.mxu0 %v1546
        %1791 = vmatpush1.bf16.msra.mxu0 %v1545
        %1792 = vmatprep.subr.bf16.mxu0 %v1542
        %1793 = vmatpush1.bf16.msra.mxu0 %v1541
        %1794 = vmatprep.subr.bf16.mxu0 %v1538
        %1795 = vmatpush1.bf16.msra.mxu0 %v1537
        %1796 = vmatprep.subr.bf16.mxu0 %v1534
        %1797 = vmatpush1.bf16.msra.mxu0 %v1533
        %1798 = vmatprep.subr.bf16.mxu0 %v1530
        %1799 = vmatpush1.bf16.msra.mxu0 %v1529
        %1800 = vmatprep.subr.bf16.mxu0 0
        %1801 = vmatpush2.bf16.msra.mxu0 0
        %1802 = vmatprep.subr.bf16.mxu0 0
        %1803 = vmatpush2.bf16.msra.mxu0 0
        %1804 = vmatprep.subr.bf16.mxu0 0
        %1805 = vmatpush2.bf16.msra.mxu0 0
        %1806 = vmatprep.subr.bf16.mxu0 0
        %1807 = vmatpush2.bf16.msra.mxu0 0
        %1808 = vmatprep.subr.bf16.mxu0 0
        %1809 = vmatpush2.bf16.msra.mxu0 0
        %1810 = vmatprep.subr.bf16.mxu0 0
        %1811 = vmatpush2.bf16.msra.mxu0 0
        %1812 = vmatprep.subr.bf16.mxu0 0
        %1813 = vmatpush2.bf16.msra.mxu0 0
        %1814 = vmatprep.subr.bf16.mxu0 0
        %1815 = vmatpush2.bf16.msra.mxu0 0
        %1816 = vmatprep.mubr.bf16.mxu0 0
        %1817 = vmatmul.mubr.bf16.gmra.mxu0 %v1399
        %v1818 = vpop.f32.mrf.mxu0
        %v1819 = vadd.f32 0.0, %v1818
        %v1820 = vpop.f32.mrf.mxu0
        %v1821 = vadd.f32 0.0, %v1820
        %v1822 = vpop.f32.mrf.mxu0
        %v1823 = vadd.f32 0.0, %v1822
        %v1824 = vpop.f32.mrf.mxu0
        %v1825 = vadd.f32 0.0, %v1824
        %1826 = vmatprep.mubr.bf16.mxu0 0
        %1827 = vmatmul.mubr.bf16.gmra.mxu0 %v1400
        %v1828 = vpop.f32.mrf.mxu0
        %v1829 = vadd.f32 0.0, %v1828
        %v1830 = vpop.f32.mrf.mxu0
        %v1831 = vadd.f32 0.0, %v1830
        %v1832 = vpop.f32.mrf.mxu0
        %v1833 = vadd.f32 0.0, %v1832
        %v1834 = vpop.f32.mrf.mxu0
        %v1835 = vadd.f32 0.0, %v1834
        %1836 = vmatprep.mubr.bf16.mxu0 0
        %1837 = vmatmul.mubr.bf16.gmra.mxu0 %v1401
        %v1838 = vpop.f32.mrf.mxu0
        %v1839 = vadd.f32 0.0, %v1838
        %v1840 = vpop.f32.mrf.mxu0
        %v1841 = vadd.f32 0.0, %v1840
        %v1842 = vpop.f32.mrf.mxu0
        %v1843 = vadd.f32 0.0, %v1842
        %v1844 = vpop.f32.mrf.mxu0
        %v1845 = vadd.f32 0.0, %v1844
        %1846 = vmatprep.mubr.bf16.mxu0 0
        %1847 = vmatmul.mubr.bf16.gmra.mxu0 %v1402
        %v1848 = vpop.f32.mrf.mxu0
        %v1849 = vadd.f32 0.0, %v1848
        %v1850 = vpop.f32.mrf.mxu0
        %v1851 = vadd.f32 0.0, %v1850
        %v1852 = vpop.f32.mrf.mxu0
        %v1853 = vadd.f32 0.0, %v1852
        %v1854 = vpop.f32.mrf.mxu0
        %v1855 = vadd.f32 0.0, %v1854
        %1856 = vmatprep.mubr.bf16.mxu0 0
        %1857 = vmatmul.mubr.bf16.gmra.mxu0 %v1403
        %v1858 = vpop.f32.mrf.mxu0
        %v1859 = vadd.f32 0.0, %v1858
        %v1860 = vpop.f32.mrf.mxu0
        %v1861 = vadd.f32 0.0, %v1860
        %v1862 = vpop.f32.mrf.mxu0
        %v1863 = vadd.f32 0.0, %v1862
        %v1864 = vpop.f32.mrf.mxu0
        %v1865 = vadd.f32 0.0, %v1864
        %1866 = vmatprep.mubr.bf16.mxu0 0
        %1867 = vmatmul.mubr.bf16.gmra.mxu0 %v1404
        %v1868 = vpop.f32.mrf.mxu0
        %v1869 = vadd.f32 0.0, %v1868
        %v1870 = vpop.f32.mrf.mxu0
        %v1871 = vadd.f32 0.0, %v1870
        %v1872 = vpop.f32.mrf.mxu0
        %v1873 = vadd.f32 0.0, %v1872
        %v1874 = vpop.f32.mrf.mxu0
        %v1875 = vadd.f32 0.0, %v1874
        %1876 = vmatprep.mubr.bf16.mxu0 0
        %1877 = vmatmul.mubr.bf16.gmra.mxu0 %v1405
        %v1878 = vpop.f32.mrf.mxu0
        %v1879 = vadd.f32 0.0, %v1878
        %v1880 = vpop.f32.mrf.mxu0
        %v1881 = vadd.f32 0.0, %v1880
        %v1882 = vpop.f32.mrf.mxu0
        %v1883 = vadd.f32 0.0, %v1882
        %v1884 = vpop.f32.mrf.mxu0
        %v1885 = vadd.f32 0.0, %v1884
        %1886 = vmatprep.mubr.bf16.mxu0 0
        %1887 = vmatmul.mubr.bf16.gmra.mxu0 %v1406
        %v1888 = vpop.f32.mrf.mxu0
        %v1889 = vadd.f32 0.0, %v1888
        %v1890 = vpop.f32.mrf.mxu0
        %v1891 = vadd.f32 0.0, %v1890
        %v1892 = vpop.f32.mrf.mxu0
        %v1893 = vadd.f32 0.0, %v1892
        %v1894 = vpop.f32.mrf.mxu0
        %v1895 = vadd.f32 0.0, %v1894
        %1896 = vmatprep.mubr.bf16.mxu0 0
        %1897 = vmatmul.mubr.bf16.gmra.mxu0 %v1407
        %v1898 = vpop.f32.mrf.mxu0
        %v1899 = vadd.f32 0.0, %v1898
        %v1900 = vpop.f32.mrf.mxu0
        %v1901 = vadd.f32 0.0, %v1900
        %v1902 = vpop.f32.mrf.mxu0
        %v1903 = vadd.f32 0.0, %v1902
        %v1904 = vpop.f32.mrf.mxu0
        %v1905 = vadd.f32 0.0, %v1904
        %1906 = vmatprep.mubr.bf16.mxu0 0
        %1907 = vmatmul.mubr.bf16.gmra.mxu0 %v1408
        %v1908 = vpop.f32.mrf.mxu0
        %v1909 = vadd.f32 0.0, %v1908
        %v1910 = vpop.f32.mrf.mxu0
        %v1911 = vadd.f32 0.0, %v1910
        %v1912 = vpop.f32.mrf.mxu0
        %v1913 = vadd.f32 0.0, %v1912
        %v1914 = vpop.f32.mrf.mxu0
        %v1915 = vadd.f32 0.0, %v1914
        %1916 = vmatprep.mubr.bf16.mxu0 0
        %1917 = vmatmul.mubr.bf16.gmra.mxu0 %v1409
        %v1918 = vpop.f32.mrf.mxu0
        %v1919 = vadd.f32 0.0, %v1918
        %v1920 = vpop.f32.mrf.mxu0
        %v1921 = vadd.f32 0.0, %v1920
        %v1922 = vpop.f32.mrf.mxu0
        %v1923 = vadd.f32 0.0, %v1922
        %v1924 = vpop.f32.mrf.mxu0
        %v1925 = vadd.f32 0.0, %v1924
        %1926 = vmatprep.mubr.bf16.mxu0 0
        %1927 = vmatmul.mubr.bf16.gmra.mxu0 %v1410
        %v1928 = vpop.f32.mrf.mxu0
        %v1929 = vadd.f32 0.0, %v1928
        %v1930 = vpop.f32.mrf.mxu0
        %v1931 = vadd.f32 0.0, %v1930
        %v1932 = vpop.f32.mrf.mxu0
        %v1933 = vadd.f32 0.0, %v1932
        %v1934 = vpop.f32.mrf.mxu0
        %v1935 = vadd.f32 0.0, %v1934
        %1936 = vmatprep.mubr.bf16.mxu0 0
        %1937 = vmatmul.mubr.bf16.gmra.mxu0 %v1411
        %v1938 = vpop.f32.mrf.mxu0
        %v1939 = vadd.f32 0.0, %v1938
        %v1940 = vpop.f32.mrf.mxu0
        %v1941 = vadd.f32 0.0, %v1940
        %v1942 = vpop.f32.mrf.mxu0
        %v1943 = vadd.f32 0.0, %v1942
        %v1944 = vpop.f32.mrf.mxu0
        %v1945 = vadd.f32 0.0, %v1944
        %1946 = vmatprep.mubr.bf16.mxu0 0
        %1947 = vmatmul.mubr.bf16.gmra.mxu0 %v1412
        %v1948 = vpop.f32.mrf.mxu0
        %v1949 = vadd.f32 0.0, %v1948
        %v1950 = vpop.f32.mrf.mxu0
        %v1951 = vadd.f32 0.0, %v1950
        %v1952 = vpop.f32.mrf.mxu0
        %v1953 = vadd.f32 0.0, %v1952
        %v1954 = vpop.f32.mrf.mxu0
        %v1955 = vadd.f32 0.0, %v1954
        %1956 = vmatprep.mubr.bf16.mxu0 0
        %1957 = vmatmul.mubr.bf16.gmra.mxu0 %v1413
        %v1958 = vpop.f32.mrf.mxu0
        %v1959 = vadd.f32 0.0, %v1958
        %v1960 = vpop.f32.mrf.mxu0
        %v1961 = vadd.f32 0.0, %v1960
        %v1962 = vpop.f32.mrf.mxu0
        %v1963 = vadd.f32 0.0, %v1962
        %v1964 = vpop.f32.mrf.mxu0
        %v1965 = vadd.f32 0.0, %v1964
        %1966 = vmatprep.mubr.bf16.mxu0 0
        %1967 = vmatmul.mubr.bf16.gmra.mxu0 %v1414
        %v1968 = vpop.f32.mrf.mxu0
        %v1969 = vadd.f32 0.0, %v1968
        %v1970 = vpop.f32.mrf.mxu0
        %v1971 = vadd.f32 0.0, %v1970
        %v1972 = vpop.f32.mrf.mxu0
        %v1973 = vadd.f32 0.0, %v1972
        %v1974 = vpop.f32.mrf.mxu0
        %v1975 = vadd.f32 0.0, %v1974
        %1976 = vdwg.mxu0
        %v1977 = vld [vmem:[#allocation10] sm:$0xf]
        %v1978 = vld [vmem:[#allocation10 + $0x4] sm:$0xf]
        %v1979 = vld [vmem:[#allocation10 + $0x8] sm:$0xf]
        %v1980 = vld [vmem:[#allocation10 + $0xc] sm:$0xf]
        %v1981 = vld [vmem:[#allocation10 + $0x10] sm:$0xf]
        %v1982 = vld [vmem:[#allocation10 + $0x14] sm:$0xf]
        %v1983 = vld [vmem:[#allocation10 + $0x18] sm:$0xf]
        %v1984 = vld [vmem:[#allocation10 + $0x1c] sm:$0xf]
        %v1985 = vld [vmem:[#allocation10 + $0x20] sm:$0xf]
        %v1986 = vld [vmem:[#allocation10 + $0x24] sm:$0xf]
        %v1987 = vld [vmem:[#allocation10 + $0x28] sm:$0xf]
        %v1988 = vld [vmem:[#allocation10 + $0x2c] sm:$0xf]
        %v1989 = vld [vmem:[#allocation10 + $0x30] sm:$0xf]
        %v1990 = vld [vmem:[#allocation10 + $0x34] sm:$0xf]
        %v1991 = vld [vmem:[#allocation10 + $0x38] sm:$0xf]
        %v1992 = vld [vmem:[#allocation10 + $0x3c] sm:$0xf]
        %v1993 = vld [vmem:[#allocation10 + $0x40] sm:$0xf]
        %v1994 = vld [vmem:[#allocation10 + $0x44] sm:$0xf]
        %v1995 = vld [vmem:[#allocation10 + $0x48] sm:$0xf]
        %v1996 = vld [vmem:[#allocation10 + $0x4c] sm:$0xf]
        %v1997 = vld [vmem:[#allocation10 + $0x50] sm:$0xf]
        %v1998 = vld [vmem:[#allocation10 + $0x54] sm:$0xf]
        %v1999 = vld [vmem:[#allocation10 + $0x58] sm:$0xf]
        %v2000 = vld [vmem:[#allocation10 + $0x5c] sm:$0xf]
        %v2001 = vld [vmem:[#allocation10 + $0x60] sm:$0xf]
        %v2002 = vld [vmem:[#allocation10 + $0x64] sm:$0xf]
        %v2003 = vld [vmem:[#allocation10 + $0x68] sm:$0xf]
        %v2004 = vld [vmem:[#allocation10 + $0x6c] sm:$0xf]
        %v2005 = vld [vmem:[#allocation10 + $0x70] sm:$0xf]
        %v2006 = vld [vmem:[#allocation10 + $0x74] sm:$0xf]
        %v2007 = vld [vmem:[#allocation10 + $0x78] sm:$0xf]
        %v2008 = vld [vmem:[#allocation10 + $0x7c] sm:$0xf]
        %v2009 = vld [vmem:[#allocation10 + $0x80] sm:$0xf]
        %v2010 = vld [vmem:[#allocation10 + $0x84] sm:$0xf]
        %v2011 = vld [vmem:[#allocation10 + $0x88] sm:$0xf]
        %v2012 = vld [vmem:[#allocation10 + $0x8c] sm:$0xf]
        %v2013 = vld [vmem:[#allocation10 + $0x90] sm:$0xf]
        %v2014 = vld [vmem:[#allocation10 + $0x94] sm:$0xf]
        %v2015 = vld [vmem:[#allocation10 + $0x98] sm:$0xf]
        %v2016 = vld [vmem:[#allocation10 + $0x9c] sm:$0xf]
        %v2017 = vld [vmem:[#allocation10 + $0xa0] sm:$0xf]
        %v2018 = vld [vmem:[#allocation10 + $0xa4] sm:$0xf]
        %v2019 = vld [vmem:[#allocation10 + $0xa8] sm:$0xf]
        %v2020 = vld [vmem:[#allocation10 + $0xac] sm:$0xf]
        %v2021 = vld [vmem:[#allocation10 + $0xb0] sm:$0xf]
        %v2022 = vld [vmem:[#allocation10 + $0xb4] sm:$0xf]
        %v2023 = vld [vmem:[#allocation10 + $0xb8] sm:$0xf]
        %v2024 = vld [vmem:[#allocation10 + $0xbc] sm:$0xf]
        %v2025 = vld [vmem:[#allocation10 + $0xc0] sm:$0xf]
        %v2026 = vld [vmem:[#allocation10 + $0xc4] sm:$0xf]
        %v2027 = vld [vmem:[#allocation10 + $0xc8] sm:$0xf]
        %v2028 = vld [vmem:[#allocation10 + $0xcc] sm:$0xf]
        %v2029 = vld [vmem:[#allocation10 + $0xd0] sm:$0xf]
        %v2030 = vld [vmem:[#allocation10 + $0xd4] sm:$0xf]
        %v2031 = vld [vmem:[#allocation10 + $0xd8] sm:$0xf]
        %v2032 = vld [vmem:[#allocation10 + $0xdc] sm:$0xf]
        %v2033 = vld [vmem:[#allocation10 + $0xe0] sm:$0xf]
        %v2034 = vld [vmem:[#allocation10 + $0xe4] sm:$0xf]
        %v2035 = vld [vmem:[#allocation10 + $0xe8] sm:$0xf]
        %v2036 = vld [vmem:[#allocation10 + $0xec] sm:$0xf]
        %v2037 = vld [vmem:[#allocation10 + $0xf0] sm:$0xf]
        %v2038 = vld [vmem:[#allocation10 + $0xf4] sm:$0xf]
        %v2039 = vld [vmem:[#allocation10 + $0xf8] sm:$0xf]
        %v2040 = vld [vmem:[#allocation10 + $0xfc] sm:$0xf]
        %v2041 = vld [vmem:[#allocation10 + $0x100] sm:$0xf]
        %v2042 = vld [vmem:[#allocation10 + $0x104] sm:$0xf]
        %v2043 = vld [vmem:[#allocation10 + $0x108] sm:$0xf]
        %v2044 = vld [vmem:[#allocation10 + $0x10c] sm:$0xf]
        %v2045 = vld [vmem:[#allocation10 + $0x110] sm:$0xf]
        %v2046 = vld [vmem:[#allocation10 + $0x114] sm:$0xf]
        %v2047 = vld [vmem:[#allocation10 + $0x118] sm:$0xf]
        %v2048 = vld [vmem:[#allocation10 + $0x11c] sm:$0xf]
        %v2049 = vld [vmem:[#allocation10 + $0x120] sm:$0xf]
        %v2050 = vld [vmem:[#allocation10 + $0x124] sm:$0xf]
        %v2051 = vld [vmem:[#allocation10 + $0x128] sm:$0xf]
        %v2052 = vld [vmem:[#allocation10 + $0x12c] sm:$0xf]
        %v2053 = vld [vmem:[#allocation10 + $0x130] sm:$0xf]
        %v2054 = vld [vmem:[#allocation10 + $0x134] sm:$0xf]
        %v2055 = vld [vmem:[#allocation10 + $0x138] sm:$0xf]
        %v2056 = vld [vmem:[#allocation10 + $0x13c] sm:$0xf]
        %v2057 = vld [vmem:[#allocation10 + $0x140] sm:$0xf]
        %v2058 = vld [vmem:[#allocation10 + $0x144] sm:$0xf]
        %v2059 = vld [vmem:[#allocation10 + $0x148] sm:$0xf]
        %v2060 = vld [vmem:[#allocation10 + $0x14c] sm:$0xf]
        %v2061 = vld [vmem:[#allocation10 + $0x150] sm:$0xf]
        %v2062 = vld [vmem:[#allocation10 + $0x154] sm:$0xf]
        %v2063 = vld [vmem:[#allocation10 + $0x158] sm:$0xf]
        %v2064 = vld [vmem:[#allocation10 + $0x15c] sm:$0xf]
        %v2065 = vld [vmem:[#allocation10 + $0x160] sm:$0xf]
        %v2066 = vld [vmem:[#allocation10 + $0x164] sm:$0xf]
        %v2067 = vld [vmem:[#allocation10 + $0x168] sm:$0xf]
        %v2068 = vld [vmem:[#allocation10 + $0x16c] sm:$0xf]
        %v2069 = vld [vmem:[#allocation10 + $0x170] sm:$0xf]
        %v2070 = vld [vmem:[#allocation10 + $0x174] sm:$0xf]
        %v2071 = vld [vmem:[#allocation10 + $0x178] sm:$0xf]
        %v2072 = vld [vmem:[#allocation10 + $0x17c] sm:$0xf]
        %v2073 = vld [vmem:[#allocation10 + $0x180] sm:$0xf]
        %v2074 = vld [vmem:[#allocation10 + $0x184] sm:$0xf]
        %v2075 = vld [vmem:[#allocation10 + $0x188] sm:$0xf]
        %v2076 = vld [vmem:[#allocation10 + $0x18c] sm:$0xf]
        %v2077 = vld [vmem:[#allocation10 + $0x190] sm:$0xf]
        %v2078 = vld [vmem:[#allocation10 + $0x194] sm:$0xf]
        %v2079 = vld [vmem:[#allocation10 + $0x198] sm:$0xf]
        %v2080 = vld [vmem:[#allocation10 + $0x19c] sm:$0xf]
        %v2081 = vld [vmem:[#allocation10 + $0x1a0] sm:$0xf]
        %v2082 = vld [vmem:[#allocation10 + $0x1a4] sm:$0xf]
        %v2083 = vld [vmem:[#allocation10 + $0x1a8] sm:$0xf]
        %v2084 = vld [vmem:[#allocation10 + $0x1ac] sm:$0xf]
        %v2085 = vld [vmem:[#allocation10 + $0x1b0] sm:$0xf]
        %v2086 = vld [vmem:[#allocation10 + $0x1b4] sm:$0xf]
        %v2087 = vld [vmem:[#allocation10 + $0x1b8] sm:$0xf]
        %v2088 = vld [vmem:[#allocation10 + $0x1bc] sm:$0xf]
        %v2089 = vld [vmem:[#allocation10 + $0x1c0] sm:$0xf]
        %v2090 = vld [vmem:[#allocation10 + $0x1c4] sm:$0xf]
        %v2091 = vld [vmem:[#allocation10 + $0x1c8] sm:$0xf]
        %v2092 = vld [vmem:[#allocation10 + $0x1cc] sm:$0xf]
        %v2093 = vld [vmem:[#allocation10 + $0x1d0] sm:$0xf]
        %v2094 = vld [vmem:[#allocation10 + $0x1d4] sm:$0xf]
        %v2095 = vld [vmem:[#allocation10 + $0x1d8] sm:$0xf]
        %v2096 = vld [vmem:[#allocation10 + $0x1dc] sm:$0xf]
        %v2097 = vld [vmem:[#allocation10 + $0x1e0] sm:$0xf]
        %v2098 = vld [vmem:[#allocation10 + $0x1e4] sm:$0xf]
        %v2099 = vld [vmem:[#allocation10 + $0x1e8] sm:$0xf]
        %v2100 = vld [vmem:[#allocation10 + $0x1ec] sm:$0xf]
        %v2101 = vld [vmem:[#allocation10 + $0x1f0] sm:$0xf]
        %v2102 = vld [vmem:[#allocation10 + $0x1f4] sm:$0xf]
        %v2103 = vld [vmem:[#allocation10 + $0x1f8] sm:$0xf]
        %v2104 = vld [vmem:[#allocation10 + $0x1fc] sm:$0xf]
        %v2113 = vunpack.c.l.b16 %v642
        %v2114 = vunpack.c.l.b16 %v643
        %v2115 = vunpack.c.l.b16 %v647
        %v2116 = vunpack.c.l.b16 %v648
        %v2117 = vunpack.c.l.b16 %v652
        %v2118 = vunpack.c.l.b16 %v653
        %v2119 = vunpack.c.l.b16 %v657
        %v2120 = vunpack.c.l.b16 %v658
        %v2121 = vunpack.c.l.b16 %v662
        %v2122 = vunpack.c.l.b16 %v663
        %v2123 = vunpack.c.l.b16 %v667
        %v2124 = vunpack.c.l.b16 %v668
        %v2125 = vunpack.c.l.b16 %v672
        %v2126 = vunpack.c.l.b16 %v673
        %v2127 = vunpack.c.l.b16 %v677
        %v2128 = vunpack.c.l.b16 %v678
        %v2129 = vunpack.c.l.b16 %v682
        %v2130 = vunpack.c.l.b16 %v683
        %v2131 = vunpack.c.l.b16 %v687
        %v2132 = vunpack.c.l.b16 %v688
        %v2133 = vunpack.c.l.b16 %v692
        %v2134 = vunpack.c.l.b16 %v693
        %v2135 = vunpack.c.l.b16 %v697
        %v2136 = vunpack.c.l.b16 %v698
        %v2137 = vunpack.c.l.b16 %v702
        %v2138 = vunpack.c.l.b16 %v703
        %v2139 = vunpack.c.l.b16 %v707
        %v2140 = vunpack.c.l.b16 %v708
        %v2141 = vunpack.c.l.b16 %v712
        %v2142 = vunpack.c.l.b16 %v713
        %v2143 = vunpack.c.l.b16 %v717
        %v2144 = vunpack.c.l.b16 %v718
        %v2145 = vpack.c.b16 %v2114, %v2113
        %v2146 = vpack.c.b16 %v2116, %v2115
        %v2147 = vpack.c.b16 %v2118, %v2117
        %v2148 = vpack.c.b16 %v2120, %v2119
        %v2149 = vpack.c.b16 %v2122, %v2121
        %v2150 = vpack.c.b16 %v2124, %v2123
        %v2151 = vpack.c.b16 %v2126, %v2125
        %v2152 = vpack.c.b16 %v2128, %v2127
        %v2153 = vpack.c.b16 %v2130, %v2129
        %v2154 = vpack.c.b16 %v2132, %v2131
        %v2155 = vpack.c.b16 %v2134, %v2133
        %v2156 = vpack.c.b16 %v2136, %v2135
        %v2157 = vpack.c.b16 %v2138, %v2137
        %v2158 = vpack.c.b16 %v2140, %v2139
        %v2159 = vpack.c.b16 %v2142, %v2141
        %v2160 = vpack.c.b16 %v2144, %v2143
        %v2181 = vunpack.c.l.b16 %v644
        %v2182 = vunpack.c.l.b16 %v649
        %v2183 = vunpack.c.l.b16 %v654
        %v2184 = vunpack.c.l.b16 %v659
        %v2185 = vunpack.c.l.b16 %v664
        %v2186 = vunpack.c.l.b16 %v669
        %v2187 = vunpack.c.l.b16 %v674
        %v2188 = vunpack.c.l.b16 %v679
        %v2189 = vunpack.c.l.b16 %v684
        %v2190 = vunpack.c.l.b16 %v689
        %v2191 = vunpack.c.l.b16 %v694
        %v2192 = vunpack.c.l.b16 %v699
        %v2193 = vunpack.c.l.b16 %v704
        %v2194 = vunpack.c.l.b16 %v709
        %v2195 = vunpack.c.l.b16 %v714
        %v2196 = vunpack.c.l.b16 %v719
        %v2197 = vpack.c.b16 %v2181, %v2181
        %v2198 = vpack.c.b16 %v2182, %v2182
        %v2199 = vpack.c.b16 %v2183, %v2183
        %v2200 = vpack.c.b16 %v2184, %v2184
        %v2201 = vpack.c.b16 %v2185, %v2185
        %v2202 = vpack.c.b16 %v2186, %v2186
        %v2203 = vpack.c.b16 %v2187, %v2187
        %v2204 = vpack.c.b16 %v2188, %v2188
        %v2205 = vpack.c.b16 %v2189, %v2189
        %v2206 = vpack.c.b16 %v2190, %v2190
        %v2207 = vpack.c.b16 %v2191, %v2191
        %v2208 = vpack.c.b16 %v2192, %v2192
        %v2209 = vpack.c.b16 %v2193, %v2193
        %v2210 = vpack.c.b16 %v2194, %v2194
        %v2211 = vpack.c.b16 %v2195, %v2195
        %v2212 = vpack.c.b16 %v2196, %v2196
        %v2213 = vrot.slane %v2145, 2
        %v2214 = vrot.slane %v2197, 2
        %v2215 = vsel %vm1115, %v2213, %v2214
        %v2216 = vrot.slane %v2146, 2
        %v2217 = vrot.slane %v2198, 2
        %v2218 = vsel %vm1115, %v2216, %v2217
        %v2219 = vrot.slane %v2147, 2
        %v2220 = vrot.slane %v2199, 2
        %v2221 = vsel %vm1115, %v2219, %v2220
        %v2222 = vrot.slane %v2148, 2
        %v2223 = vrot.slane %v2200, 2
        %v2224 = vsel %vm1115, %v2222, %v2223
        %v2225 = vrot.slane %v2149, 2
        %v2226 = vrot.slane %v2201, 2
        %v2227 = vsel %vm1115, %v2225, %v2226
        %v2228 = vrot.slane %v2150, 2
        %v2229 = vrot.slane %v2202, 2
        %v2230 = vsel %vm1115, %v2228, %v2229
        %v2231 = vrot.slane %v2151, 2
        %v2232 = vrot.slane %v2203, 2
        %v2233 = vsel %vm1115, %v2231, %v2232
        %v2234 = vrot.slane %v2152, 2
        %v2235 = vrot.slane %v2204, 2
        %v2236 = vsel %vm1115, %v2234, %v2235
        %v2237 = vrot.slane %v2153, 2
        %v2238 = vrot.slane %v2205, 2
        %v2239 = vsel %vm1115, %v2237, %v2238
        %v2240 = vrot.slane %v2154, 2
        %v2241 = vrot.slane %v2206, 2
        %v2242 = vsel %vm1115, %v2240, %v2241
        %v2243 = vrot.slane %v2155, 2
        %v2244 = vrot.slane %v2207, 2
        %v2245 = vsel %vm1115, %v2243, %v2244
        %v2246 = vrot.slane %v2156, 2
        %v2247 = vrot.slane %v2208, 2
        %v2248 = vsel %vm1115, %v2246, %v2247
        %v2249 = vrot.slane %v2157, 2
        %v2250 = vrot.slane %v2209, 2
        %v2251 = vsel %vm1115, %v2249, %v2250
        %v2252 = vrot.slane %v2158, 2
        %v2253 = vrot.slane %v2210, 2
        %v2254 = vsel %vm1115, %v2252, %v2253
        %v2255 = vrot.slane %v2159, 2
        %v2256 = vrot.slane %v2211, 2
        %v2257 = vsel %vm1115, %v2255, %v2256
        %v2258 = vrot.slane %v2160, 2
        %v2259 = vrot.slane %v2212, 2
        %v2260 = vsel %vm1115, %v2258, %v2259
        %v2277 = vpack.c.b16 %v2181, %v2114
        %v2278 = vpack.c.b16 %v2182, %v2116
        %v2279 = vpack.c.b16 %v2183, %v2118
        %v2280 = vpack.c.b16 %v2184, %v2120
        %v2281 = vpack.c.b16 %v2185, %v2122
        %v2282 = vpack.c.b16 %v2186, %v2124
        %v2283 = vpack.c.b16 %v2187, %v2126
        %v2284 = vpack.c.b16 %v2188, %v2128
        %v2285 = vpack.c.b16 %v2189, %v2130
        %v2286 = vpack.c.b16 %v2190, %v2132
        %v2287 = vpack.c.b16 %v2191, %v2134
        %v2288 = vpack.c.b16 %v2192, %v2136
        %v2289 = vpack.c.b16 %v2193, %v2138
        %v2290 = vpack.c.b16 %v2194, %v2140
        %v2291 = vpack.c.b16 %v2195, %v2142
        %v2292 = vpack.c.b16 %v2196, %v2144
        %v2357 = vunpack.c.l.b16 %v1977
        %v2358 = vunpack.c.l.b16 %v1978
        %v2359 = vunpack.c.l.b16 %v1979
        %v2360 = vunpack.c.l.b16 %v1980
        %v2361 = vunpack.c.l.b16 %v1981
        %v2362 = vunpack.c.l.b16 %v1982
        %v2363 = vunpack.c.l.b16 %v1983
        %v2364 = vunpack.c.l.b16 %v1984
        %v2365 = vunpack.c.l.b16 %v1985
        %v2366 = vunpack.c.l.b16 %v1986
        %v2367 = vunpack.c.l.b16 %v1987
        %v2368 = vunpack.c.l.b16 %v1988
        %v2369 = vunpack.c.l.b16 %v1989
        %v2370 = vunpack.c.l.b16 %v1990
        %v2371 = vunpack.c.l.b16 %v1991
        %v2372 = vunpack.c.l.b16 %v1992
        %v2373 = vunpack.c.l.b16 %v1993
        %v2374 = vunpack.c.l.b16 %v1994
        %v2375 = vunpack.c.l.b16 %v1995
        %v2376 = vunpack.c.l.b16 %v1996
        %v2377 = vunpack.c.l.b16 %v1997
        %v2378 = vunpack.c.l.b16 %v1998
        %v2379 = vunpack.c.l.b16 %v1999
        %v2380 = vunpack.c.l.b16 %v2000
        %v2381 = vunpack.c.l.b16 %v2001
        %v2382 = vunpack.c.l.b16 %v2002
        %v2383 = vunpack.c.l.b16 %v2003
        %v2384 = vunpack.c.l.b16 %v2004
        %v2385 = vunpack.c.l.b16 %v2005
        %v2386 = vunpack.c.l.b16 %v2006
        %v2387 = vunpack.c.l.b16 %v2007
        %v2388 = vunpack.c.l.b16 %v2008
        %v2389 = vunpack.c.l.b16 %v2009
        %v2390 = vunpack.c.l.b16 %v2010
        %v2391 = vunpack.c.l.b16 %v2011
        %v2392 = vunpack.c.l.b16 %v2012
        %v2393 = vunpack.c.l.b16 %v2013
        %v2394 = vunpack.c.l.b16 %v2014
        %v2395 = vunpack.c.l.b16 %v2015
        %v2396 = vunpack.c.l.b16 %v2016
        %v2397 = vunpack.c.l.b16 %v2017
        %v2398 = vunpack.c.l.b16 %v2018
        %v2399 = vunpack.c.l.b16 %v2019
        %v2400 = vunpack.c.l.b16 %v2020
        %v2401 = vunpack.c.l.b16 %v2021
        %v2402 = vunpack.c.l.b16 %v2022
        %v2403 = vunpack.c.l.b16 %v2023
        %v2404 = vunpack.c.l.b16 %v2024
        %v2405 = vpack.c.b16 %v2358, %v2357
        %v2406 = vpack.c.b16 %v2360, %v2359
        %v2407 = vpack.c.b16 %v2362, %v2361
        %v2408 = vpack.c.b16 %v2364, %v2363
        %v2409 = vpack.c.b16 %v2366, %v2365
        %v2410 = vpack.c.b16 %v2368, %v2367
        %v2411 = vpack.c.b16 %v2370, %v2369
        %v2412 = vpack.c.b16 %v2372, %v2371
        %v2413 = vpack.c.b16 %v2374, %v2373
        %v2414 = vpack.c.b16 %v2376, %v2375
        %v2415 = vpack.c.b16 %v2378, %v2377
        %v2416 = vpack.c.b16 %v2380, %v2379
        %v2417 = vpack.c.b16 %v2382, %v2381
        %v2418 = vpack.c.b16 %v2384, %v2383
        %v2419 = vpack.c.b16 %v2386, %v2385
        %v2420 = vpack.c.b16 %v2388, %v2387
        %v2421 = vpack.c.b16 %v2390, %v2389
        %v2422 = vpack.c.b16 %v2392, %v2391
        %v2423 = vpack.c.b16 %v2394, %v2393
        %v2424 = vpack.c.b16 %v2396, %v2395
        %v2425 = vpack.c.b16 %v2398, %v2397
        %v2426 = vpack.c.b16 %v2400, %v2399
        %v2427 = vpack.c.b16 %v2402, %v2401
        %v2428 = vpack.c.b16 %v2404, %v2403
        %2453 = vmatprep.subr.bf16.mxu0 0
        %2454 = vmatpush1.bf16.msra.mxu0 %v2412
        %2455 = vmatprep.subr.bf16.mxu0 0
        %2456 = vmatpush1.bf16.msra.mxu0 %v2411
        %2457 = vmatprep.subr.bf16.mxu0 0
        %2458 = vmatpush1.bf16.msra.mxu0 %v2410
        %2459 = vmatprep.subr.bf16.mxu0 0
        %2460 = vmatpush1.bf16.msra.mxu0 %v2409
        %2461 = vmatprep.subr.bf16.mxu0 0
        %2462 = vmatpush1.bf16.msra.mxu0 %v2408
        %2463 = vmatprep.subr.bf16.mxu0 0
        %2464 = vmatpush1.bf16.msra.mxu0 %v2407
        %2465 = vmatprep.subr.bf16.mxu0 0
        %2466 = vmatpush1.bf16.msra.mxu0 %v2406
        %2467 = vmatprep.subr.bf16.mxu0 0
        %2468 = vmatpush1.bf16.msra.mxu0 %v2405
        %2469 = vmatprep.subr.bf16.mxu0 0
        %2470 = vmatpush2.bf16.msra.mxu0 %v2420
        %2471 = vmatprep.subr.bf16.mxu0 0
        %2472 = vmatpush2.bf16.msra.mxu0 %v2419
        %2473 = vmatprep.subr.bf16.mxu0 0
        %2474 = vmatpush2.bf16.msra.mxu0 %v2418
        %2475 = vmatprep.subr.bf16.mxu0 0
        %2476 = vmatpush2.bf16.msra.mxu0 %v2417
        %2477 = vmatprep.subr.bf16.mxu0 0
        %2478 = vmatpush2.bf16.msra.mxu0 %v2416
        %2479 = vmatprep.subr.bf16.mxu0 0
        %2480 = vmatpush2.bf16.msra.mxu0 %v2415
        %2481 = vmatprep.subr.bf16.mxu0 0
        %2482 = vmatpush2.bf16.msra.mxu0 %v2414
        %2483 = vmatprep.subr.bf16.mxu0 0
        %2484 = vmatpush2.bf16.msra.mxu0 %v2413
        %2485 = vmatprep.mubr.bf16.mxu0 %v2215
        %2486 = vmatmul.mubr.bf16.gmra.mxu0 %v2145
        %v2487 = vpop.f32.mrf.mxu0
        %v2488 = vadd.f32 0.0, %v2487
        %v2489 = vpop.f32.mrf.mxu0
        %v2490 = vpop.f32.mrf.mxu0
        %v2491 = vadd.f32 0.0, %v2490
        %v2492 = vpop.f32.mrf.mxu0
        %2493 = vmatprep.mubr.bf16.mxu0 %v2218
        %2494 = vmatmul.mubr.bf16.gmra.mxu0 %v2146
        %v2495 = vpop.f32.mrf.mxu0
        %v2496 = vadd.f32 0.0, %v2495
        %v2497 = vpop.f32.mrf.mxu0
        %v2498 = vpop.f32.mrf.mxu0
        %v2499 = vadd.f32 0.0, %v2498
        %v2500 = vpop.f32.mrf.mxu0
        %2501 = vmatprep.mubr.bf16.mxu0 %v2221
        %2502 = vmatmul.mubr.bf16.gmra.mxu0 %v2147
        %v2503 = vpop.f32.mrf.mxu0
        %v2504 = vadd.f32 0.0, %v2503
        %v2505 = vpop.f32.mrf.mxu0
        %v2506 = vpop.f32.mrf.mxu0
        %v2507 = vadd.f32 0.0, %v2506
        %v2508 = vpop.f32.mrf.mxu0
        %2509 = vmatprep.mubr.bf16.mxu0 %v2224
        %2510 = vmatmul.mubr.bf16.gmra.mxu0 %v2148
        %v2511 = vpop.f32.mrf.mxu0
        %v2512 = vadd.f32 0.0, %v2511
        %v2513 = vpop.f32.mrf.mxu0
        %v2514 = vpop.f32.mrf.mxu0
        %v2515 = vadd.f32 0.0, %v2514
        %v2516 = vpop.f32.mrf.mxu0
        %2517 = vmatprep.mubr.bf16.mxu0 %v2227
        %2518 = vmatmul.mubr.bf16.gmra.mxu0 %v2149
        %v2519 = vpop.f32.mrf.mxu0
        %v2520 = vadd.f32 0.0, %v2519
        %v2521 = vpop.f32.mrf.mxu0
        %v2522 = vpop.f32.mrf.mxu0
        %v2523 = vadd.f32 0.0, %v2522
        %v2524 = vpop.f32.mrf.mxu0
        %2525 = vmatprep.mubr.bf16.mxu0 %v2230
        %2526 = vmatmul.mubr.bf16.gmra.mxu0 %v2150
        %v2527 = vpop.f32.mrf.mxu0
        %v2528 = vadd.f32 0.0, %v2527
        %v2529 = vpop.f32.mrf.mxu0
        %v2530 = vpop.f32.mrf.mxu0
        %v2531 = vadd.f32 0.0, %v2530
        %v2532 = vpop.f32.mrf.mxu0
        %2533 = vmatprep.mubr.bf16.mxu0 %v2233
        %2534 = vmatmul.mubr.bf16.gmra.mxu0 %v2151
        %v2535 = vpop.f32.mrf.mxu0
        %v2536 = vadd.f32 0.0, %v2535
        %v2537 = vpop.f32.mrf.mxu0
        %v2538 = vpop.f32.mrf.mxu0
        %v2539 = vadd.f32 0.0, %v2538
        %v2540 = vpop.f32.mrf.mxu0
        %2541 = vmatprep.mubr.bf16.mxu0 %v2236
        %2542 = vmatmul.mubr.bf16.gmra.mxu0 %v2152
        %v2543 = vpop.f32.mrf.mxu0
        %v2544 = vadd.f32 0.0, %v2543
        %v2545 = vpop.f32.mrf.mxu0
        %v2546 = vpop.f32.mrf.mxu0
        %v2547 = vadd.f32 0.0, %v2546
        %v2548 = vpop.f32.mrf.mxu0
        %2549 = vmatprep.mubr.bf16.mxu0 %v2239
        %2550 = vmatmul.mubr.bf16.gmra.mxu0 %v2153
        %v2551 = vpop.f32.mrf.mxu0
        %v2552 = vadd.f32 0.0, %v2551
        %v2553 = vpop.f32.mrf.mxu0
        %v2554 = vpop.f32.mrf.mxu0
        %v2555 = vadd.f32 0.0, %v2554
        %v2556 = vpop.f32.mrf.mxu0
        %2557 = vmatprep.mubr.bf16.mxu0 %v2242
        %2558 = vmatmul.mubr.bf16.gmra.mxu0 %v2154
        %v2559 = vpop.f32.mrf.mxu0
        %v2560 = vadd.f32 0.0, %v2559
        %v2561 = vpop.f32.mrf.mxu0
        %v2562 = vpop.f32.mrf.mxu0
        %v2563 = vadd.f32 0.0, %v2562
        %v2564 = vpop.f32.mrf.mxu0
        %2565 = vmatprep.mubr.bf16.mxu0 %v2245
        %2566 = vmatmul.mubr.bf16.gmra.mxu0 %v2155
        %v2567 = vpop.f32.mrf.mxu0
        %v2568 = vadd.f32 0.0, %v2567
        %v2569 = vpop.f32.mrf.mxu0
        %v2570 = vpop.f32.mrf.mxu0
        %v2571 = vadd.f32 0.0, %v2570
        %v2572 = vpop.f32.mrf.mxu0
        %2573 = vmatprep.mubr.bf16.mxu0 %v2248
        %2574 = vmatmul.mubr.bf16.gmra.mxu0 %v2156
        %v2575 = vpop.f32.mrf.mxu0
        %v2576 = vadd.f32 0.0, %v2575
        %v2577 = vpop.f32.mrf.mxu0
        %v2578 = vpop.f32.mrf.mxu0
        %v2579 = vadd.f32 0.0, %v2578
        %v2580 = vpop.f32.mrf.mxu0
        %2581 = vmatprep.mubr.bf16.mxu0 %v2251
        %2582 = vmatmul.mubr.bf16.gmra.mxu0 %v2157
        %v2583 = vpop.f32.mrf.mxu0
        %v2584 = vadd.f32 0.0, %v2583
        %v2585 = vpop.f32.mrf.mxu0
        %v2586 = vpop.f32.mrf.mxu0
        %v2587 = vadd.f32 0.0, %v2586
        %v2588 = vpop.f32.mrf.mxu0
        %2589 = vmatprep.mubr.bf16.mxu0 %v2254
        %2590 = vmatmul.mubr.bf16.gmra.mxu0 %v2158
        %v2591 = vpop.f32.mrf.mxu0
        %v2592 = vadd.f32 0.0, %v2591
        %v2593 = vpop.f32.mrf.mxu0
        %v2594 = vpop.f32.mrf.mxu0
        %v2595 = vadd.f32 0.0, %v2594
        %v2596 = vpop.f32.mrf.mxu0
        %2597 = vmatprep.mubr.bf16.mxu0 %v2257
        %2598 = vmatmul.mubr.bf16.gmra.mxu0 %v2159
        %v2599 = vpop.f32.mrf.mxu0
        %v2600 = vadd.f32 0.0, %v2599
        %v2601 = vpop.f32.mrf.mxu0
        %v2602 = vpop.f32.mrf.mxu0
        %v2603 = vadd.f32 0.0, %v2602
        %v2604 = vpop.f32.mrf.mxu0
        %2605 = vmatprep.mubr.bf16.mxu0 %v2260
        %2606 = vmatmul.mubr.bf16.gmra.mxu0 %v2160
        %v2607 = vpop.f32.mrf.mxu0
        %v2608 = vadd.f32 0.0, %v2607
        %v2609 = vpop.f32.mrf.mxu0
        %v2610 = vpop.f32.mrf.mxu0
        %v2611 = vadd.f32 0.0, %v2610
        %v2612 = vpop.f32.mrf.mxu0
        %2613 = vdwg.mxu0
        %2614 = vmatprep.subr.bf16.mxu0 0
        %2615 = vmatpush1.bf16.msra.mxu0 %v2428
        %2616 = vmatprep.subr.bf16.mxu0 0
        %2617 = vmatpush1.bf16.msra.mxu0 %v2427
        %2618 = vmatprep.subr.bf16.mxu0 0
        %2619 = vmatpush1.bf16.msra.mxu0 %v2426
        %2620 = vmatprep.subr.bf16.mxu0 0
        %2621 = vmatpush1.bf16.msra.mxu0 %v2425
        %2622 = vmatprep.subr.bf16.mxu0 0
        %2623 = vmatpush1.bf16.msra.mxu0 %v2424
        %2624 = vmatprep.subr.bf16.mxu0 0
        %2625 = vmatpush1.bf16.msra.mxu0 %v2423
        %2626 = vmatprep.subr.bf16.mxu0 0
        %2627 = vmatpush1.bf16.msra.mxu0 %v2422
        %2628 = vmatprep.subr.bf16.mxu0 0
        %2629 = vmatpush1.bf16.msra.mxu0 %v2421
        %2630 = vmatprep.subr.bf16.mxu0 0
        %2631 = vmatpush2.bf16.msra.mxu0 0
        %2632 = vmatprep.subr.bf16.mxu0 0
        %2633 = vmatpush2.bf16.msra.mxu0 0
        %2634 = vmatprep.subr.bf16.mxu0 0
        %2635 = vmatpush2.bf16.msra.mxu0 0
        %2636 = vmatprep.subr.bf16.mxu0 0
        %2637 = vmatpush2.bf16.msra.mxu0 0
        %2638 = vmatprep.subr.bf16.mxu0 0
        %2639 = vmatpush2.bf16.msra.mxu0 0
        %2640 = vmatprep.subr.bf16.mxu0 0
        %2641 = vmatpush2.bf16.msra.mxu0 0
        %2642 = vmatprep.subr.bf16.mxu0 0
        %2643 = vmatpush2.bf16.msra.mxu0 0
        %2644 = vmatprep.subr.bf16.mxu0 0
        %2645 = vmatpush2.bf16.msra.mxu0 0
        %2646 = vmatprep.mubr.bf16.mxu0 0
        %2647 = vmatmul.mubr.bf16.gmra.mxu0 %v2277
        %v2648 = vpop.f32.mrf.mxu0
        %v2649 = vadd.f32 %v2488, %v2648
        %v2650 = vpop.f32.mrf.mxu0
        %v2651 = vpop.f32.mrf.mxu0
        %v2652 = vadd.f32 %v2491, %v2651
        %v2653 = vpop.f32.mrf.mxu0
        %2654 = vmatprep.mubr.bf16.mxu0 0
        %2655 = vmatmul.mubr.bf16.gmra.mxu0 %v2278
        %v2656 = vpop.f32.mrf.mxu0
        %v2657 = vadd.f32 %v2496, %v2656
        %v2658 = vpop.f32.mrf.mxu0
        %v2659 = vpop.f32.mrf.mxu0
        %v2660 = vadd.f32 %v2499, %v2659
        %v2661 = vpop.f32.mrf.mxu0
        %2662 = vmatprep.mubr.bf16.mxu0 0
        %2663 = vmatmul.mubr.bf16.gmra.mxu0 %v2279
        %v2664 = vpop.f32.mrf.mxu0
        %v2665 = vadd.f32 %v2504, %v2664
        %v2666 = vpop.f32.mrf.mxu0
        %v2667 = vpop.f32.mrf.mxu0
        %v2668 = vadd.f32 %v2507, %v2667
        %v2669 = vpop.f32.mrf.mxu0
        %2670 = vmatprep.mubr.bf16.mxu0 0
        %2671 = vmatmul.mubr.bf16.gmra.mxu0 %v2280
        %v2672 = vpop.f32.mrf.mxu0
        %v2673 = vadd.f32 %v2512, %v2672
        %v2674 = vpop.f32.mrf.mxu0
        %v2675 = vpop.f32.mrf.mxu0
        %v2676 = vadd.f32 %v2515, %v2675
        %v2677 = vpop.f32.mrf.mxu0
        %2678 = vmatprep.mubr.bf16.mxu0 0
        %2679 = vmatmul.mubr.bf16.gmra.mxu0 %v2281
        %v2680 = vpop.f32.mrf.mxu0
        %v2681 = vadd.f32 %v2520, %v2680
        %v2682 = vpop.f32.mrf.mxu0
        %v2683 = vpop.f32.mrf.mxu0
        %v2684 = vadd.f32 %v2523, %v2683
        %v2685 = vpop.f32.mrf.mxu0
        %2686 = vmatprep.mubr.bf16.mxu0 0
        %2687 = vmatmul.mubr.bf16.gmra.mxu0 %v2282
        %v2688 = vpop.f32.mrf.mxu0
        %v2689 = vadd.f32 %v2528, %v2688
        %v2690 = vpop.f32.mrf.mxu0
        %v2691 = vpop.f32.mrf.mxu0
        %v2692 = vadd.f32 %v2531, %v2691
        %v2693 = vpop.f32.mrf.mxu0
        %2694 = vmatprep.mubr.bf16.mxu0 0
        %2695 = vmatmul.mubr.bf16.gmra.mxu0 %v2283
        %v2696 = vpop.f32.mrf.mxu0
        %v2697 = vadd.f32 %v2536, %v2696
        %v2698 = vpop.f32.mrf.mxu0
        %v2699 = vpop.f32.mrf.mxu0
        %v2700 = vadd.f32 %v2539, %v2699
        %v2701 = vpop.f32.mrf.mxu0
        %2702 = vmatprep.mubr.bf16.mxu0 0
        %2703 = vmatmul.mubr.bf16.gmra.mxu0 %v2284
        %v2704 = vpop.f32.mrf.mxu0
        %v2705 = vadd.f32 %v2544, %v2704
        %v2706 = vpop.f32.mrf.mxu0
        %v2707 = vpop.f32.mrf.mxu0
        %v2708 = vadd.f32 %v2547, %v2707
        %v2709 = vpop.f32.mrf.mxu0
        %2710 = vmatprep.mubr.bf16.mxu0 0
        %2711 = vmatmul.mubr.bf16.gmra.mxu0 %v2285
        %v2712 = vpop.f32.mrf.mxu0
        %v2713 = vadd.f32 %v2552, %v2712
        %v2714 = vpop.f32.mrf.mxu0
        %v2715 = vpop.f32.mrf.mxu0
        %v2716 = vadd.f32 %v2555, %v2715
        %v2717 = vpop.f32.mrf.mxu0
        %2718 = vmatprep.mubr.bf16.mxu0 0
        %2719 = vmatmul.mubr.bf16.gmra.mxu0 %v2286
        %v2720 = vpop.f32.mrf.mxu0
        %v2721 = vadd.f32 %v2560, %v2720
        %v2722 = vpop.f32.mrf.mxu0
        %v2723 = vpop.f32.mrf.mxu0
        %v2724 = vadd.f32 %v2563, %v2723
        %v2725 = vpop.f32.mrf.mxu0
        %2726 = vmatprep.mubr.bf16.mxu0 0
        %2727 = vmatmul.mubr.bf16.gmra.mxu0 %v2287
        %v2728 = vpop.f32.mrf.mxu0
        %v2729 = vadd.f32 %v2568, %v2728
        %v2730 = vpop.f32.mrf.mxu0
        %v2731 = vpop.f32.mrf.mxu0
        %v2732 = vadd.f32 %v2571, %v2731
        %v2733 = vpop.f32.mrf.mxu0
        %2734 = vmatprep.mubr.bf16.mxu0 0
        %2735 = vmatmul.mubr.bf16.gmra.mxu0 %v2288
        %v2736 = vpop.f32.mrf.mxu0
        %v2737 = vadd.f32 %v2576, %v2736
        %v2738 = vpop.f32.mrf.mxu0
        %v2739 = vpop.f32.mrf.mxu0
        %v2740 = vadd.f32 %v2579, %v2739
        %v2741 = vpop.f32.mrf.mxu0
        %2742 = vmatprep.mubr.bf16.mxu0 0
        %2743 = vmatmul.mubr.bf16.gmra.mxu0 %v2289
        %v2744 = vpop.f32.mrf.mxu0
        %v2745 = vadd.f32 %v2584, %v2744
        %v2746 = vpop.f32.mrf.mxu0
        %v2747 = vpop.f32.mrf.mxu0
        %v2748 = vadd.f32 %v2587, %v2747
        %v2749 = vpop.f32.mrf.mxu0
        %2750 = vmatprep.mubr.bf16.mxu0 0
        %2751 = vmatmul.mubr.bf16.gmra.mxu0 %v2290
        %v2752 = vpop.f32.mrf.mxu0
        %v2753 = vadd.f32 %v2592, %v2752
        %v2754 = vpop.f32.mrf.mxu0
        %v2755 = vpop.f32.mrf.mxu0
        %v2756 = vadd.f32 %v2595, %v2755
        %v2757 = vpop.f32.mrf.mxu0
        %2758 = vmatprep.mubr.bf16.mxu0 0
        %2759 = vmatmul.mubr.bf16.gmra.mxu0 %v2291
        %v2760 = vpop.f32.mrf.mxu0
        %v2761 = vadd.f32 %v2600, %v2760
        %v2762 = vpop.f32.mrf.mxu0
        %v2763 = vpop.f32.mrf.mxu0
        %v2764 = vadd.f32 %v2603, %v2763
        %v2765 = vpop.f32.mrf.mxu0
        %2766 = vmatprep.mubr.bf16.mxu0 0
        %2767 = vmatmul.mubr.bf16.gmra.mxu0 %v2292
        %v2768 = vpop.f32.mrf.mxu0
        %v2769 = vadd.f32 %v2608, %v2768
        %v2770 = vpop.f32.mrf.mxu0
        %v2771 = vpop.f32.mrf.mxu0
        %v2772 = vadd.f32 %v2611, %v2771
        %v2773 = vpop.f32.mrf.mxu0
        %2774 = vdwg.mxu0
        %v2775 = vadd.f32 %v1628, %v2649
        %v2776 = vadd.f32 %v1632, %v2652
        %v2777 = vadd.f32 %v1638, %v2657
        %v2778 = vadd.f32 %v1642, %v2660
        %v2779 = vadd.f32 %v1648, %v2665
        %v2780 = vadd.f32 %v1652, %v2668
        %v2781 = vadd.f32 %v1658, %v2673
        %v2782 = vadd.f32 %v1662, %v2676
        %v2783 = vadd.f32 %v1668, %v2681
        %v2784 = vadd.f32 %v1672, %v2684
        %v2785 = vadd.f32 %v1678, %v2689
        %v2786 = vadd.f32 %v1682, %v2692
        %v2787 = vadd.f32 %v1688, %v2697
        %v2788 = vadd.f32 %v1692, %v2700
        %v2789 = vadd.f32 %v1698, %v2705
        %v2790 = vadd.f32 %v1702, %v2708
        %v2791 = vadd.f32 %v1708, %v2713
        %v2792 = vadd.f32 %v1712, %v2716
        %v2793 = vadd.f32 %v1718, %v2721
        %v2794 = vadd.f32 %v1722, %v2724
        %v2795 = vadd.f32 %v1728, %v2729
        %v2796 = vadd.f32 %v1732, %v2732
        %v2797 = vadd.f32 %v1738, %v2737
        %v2798 = vadd.f32 %v1742, %v2740
        %v2799 = vadd.f32 %v1748, %v2745
        %v2800 = vadd.f32 %v1752, %v2748
        %v2801 = vadd.f32 %v1758, %v2753
        %v2802 = vadd.f32 %v1762, %v2756
        %v2803 = vadd.f32 %v1768, %v2761
        %v2804 = vadd.f32 %v1772, %v2764
        %v2805 = vadd.f32 %v1778, %v2769
        %v2806 = vadd.f32 %v1782, %v2772
        %v2807 = vunpack.c.l.b16 %v722
        %v2808 = vunpack.c.l.b16 %v723
        %v2809 = vunpack.c.l.b16 %v727
        %v2810 = vunpack.c.l.b16 %v728
        %v2811 = vunpack.c.l.b16 %v732
        %v2812 = vunpack.c.l.b16 %v733
        %v2813 = vunpack.c.l.b16 %v737
        %v2814 = vunpack.c.l.b16 %v738
        %v2815 = vpack.c.b16 %v2808, %v2807
        %v2816 = vpack.c.b16 %v2810, %v2809
        %v2817 = vpack.c.b16 %v2812, %v2811
        %v2818 = vpack.c.b16 %v2814, %v2813
        %v2823 = vunpack.c.l.b16 %v724
        %v2824 = vunpack.c.l.b16 %v729
        %v2825 = vunpack.c.l.b16 %v734
        %v2826 = vunpack.c.l.b16 %v739
        %v2827 = vpack.c.b16 %v2823, %v2808
        %v2828 = vpack.c.b16 %v2824, %v2810
        %v2829 = vpack.c.b16 %v2825, %v2812
        %v2830 = vpack.c.b16 %v2826, %v2814
        %v2867 = vunpack.c.l.b16 %v2025
        %v2868 = vunpack.c.l.b16 %v2026
        %v2869 = vunpack.c.l.b16 %v2027
        %v2870 = vunpack.c.l.b16 %v2028
        %v2871 = vunpack.c.l.b16 %v2029
        %v2872 = vunpack.c.l.b16 %v2030
        %v2873 = vunpack.c.l.b16 %v2031
        %v2874 = vunpack.c.l.b16 %v2032
        %v2875 = vunpack.c.l.b16 %v2033
        %v2876 = vunpack.c.l.b16 %v2034
        %v2877 = vunpack.c.l.b16 %v2035
        %v2878 = vunpack.c.l.b16 %v2036
        %v2879 = vunpack.c.l.b16 %v2037
        %v2880 = vunpack.c.l.b16 %v2038
        %v2881 = vunpack.c.l.b16 %v2039
        %v2882 = vunpack.c.l.b16 %v2040
        %v2883 = vunpack.c.l.b16 %v2041
        %v2884 = vunpack.c.l.b16 %v2042
        %v2885 = vunpack.c.l.b16 %v2043
        %v2886 = vunpack.c.l.b16 %v2044
        %v2887 = vunpack.c.l.b16 %v2045
        %v2888 = vunpack.c.l.b16 %v2046
        %v2889 = vunpack.c.l.b16 %v2047
        %v2890 = vunpack.c.l.b16 %v2048
        %v2891 = vunpack.c.l.b16 %v2049
        %v2892 = vunpack.c.l.b16 %v2050
        %v2893 = vunpack.c.l.b16 %v2051
        %v2894 = vunpack.c.l.b16 %v2052
        %v2895 = vunpack.c.l.b16 %v2053
        %v2896 = vunpack.c.l.b16 %v2054
        %v2897 = vunpack.c.l.b16 %v2055
        %v2898 = vunpack.c.l.b16 %v2056
        %v2899 = vpack.c.b16 %v2868, %v2867
        %v2900 = vpack.c.b16 %v2870, %v2869
        %v2901 = vpack.c.b16 %v2872, %v2871
        %v2902 = vpack.c.b16 %v2874, %v2873
        %v2903 = vpack.c.b16 %v2876, %v2875
        %v2904 = vpack.c.b16 %v2878, %v2877
        %v2905 = vpack.c.b16 %v2880, %v2879
        %v2906 = vpack.c.b16 %v2882, %v2881
        %v2907 = vpack.c.b16 %v2884, %v2883
        %v2908 = vpack.c.b16 %v2886, %v2885
        %v2909 = vpack.c.b16 %v2888, %v2887
        %v2910 = vpack.c.b16 %v2890, %v2889
        %v2911 = vpack.c.b16 %v2892, %v2891
        %v2912 = vpack.c.b16 %v2894, %v2893
        %v2913 = vpack.c.b16 %v2896, %v2895
        %v2914 = vpack.c.b16 %v2898, %v2897
        %2931 = vmatprep.subr.bf16.mxu0 0
        %2932 = vmatpush1.bf16.msra.mxu0 %v2906
        %2933 = vmatprep.subr.bf16.mxu0 0
        %2934 = vmatpush1.bf16.msra.mxu0 %v2905
        %2935 = vmatprep.subr.bf16.mxu0 0
        %2936 = vmatpush1.bf16.msra.mxu0 %v2904
        %2937 = vmatprep.subr.bf16.mxu0 0
        %2938 = vmatpush1.bf16.msra.mxu0 %v2903
        %2939 = vmatprep.subr.bf16.mxu0 0
        %2940 = vmatpush1.bf16.msra.mxu0 %v2902
        %2941 = vmatprep.subr.bf16.mxu0 0
        %2942 = vmatpush1.bf16.msra.mxu0 %v2901
        %2943 = vmatprep.subr.bf16.mxu0 0
        %2944 = vmatpush1.bf16.msra.mxu0 %v2900
        %2945 = vmatprep.subr.bf16.mxu0 0
        %2946 = vmatpush1.bf16.msra.mxu0 %v2899
        %2947 = vmatprep.subr.bf16.mxu0 0
        %2948 = vmatpush2.bf16.msra.mxu0 %v2914
        %2949 = vmatprep.subr.bf16.mxu0 0
        %2950 = vmatpush2.bf16.msra.mxu0 %v2913
        %2951 = vmatprep.subr.bf16.mxu0 0
        %2952 = vmatpush2.bf16.msra.mxu0 %v2912
        %2953 = vmatprep.subr.bf16.mxu0 0
        %2954 = vmatpush2.bf16.msra.mxu0 %v2911
        %2955 = vmatprep.subr.bf16.mxu0 0
        %2956 = vmatpush2.bf16.msra.mxu0 %v2910
        %2957 = vmatprep.subr.bf16.mxu0 0
        %2958 = vmatpush2.bf16.msra.mxu0 %v2909
        %2959 = vmatprep.subr.bf16.mxu0 0
        %2960 = vmatpush2.bf16.msra.mxu0 %v2908
        %2961 = vmatprep.subr.bf16.mxu0 0
        %2962 = vmatpush2.bf16.msra.mxu0 %v2907
        %2963 = vmatprep.mubr.bf16.mxu0 %v2281
        %2964 = vmatmul.mubr.bf16.gmra.mxu0 %v2149
        %v2965 = vpop.f32.mrf.mxu0
        %v2966 = vadd.f32 0.0, %v2965
        %v2967 = vpop.f32.mrf.mxu0
        %v2968 = vpop.f32.mrf.mxu0
        %v2969 = vadd.f32 0.0, %v2968
        %v2970 = vpop.f32.mrf.mxu0
        %2971 = vmatprep.mubr.bf16.mxu0 %v2282
        %2972 = vmatmul.mubr.bf16.gmra.mxu0 %v2150
        %v2973 = vpop.f32.mrf.mxu0
        %v2974 = vadd.f32 0.0, %v2973
        %v2975 = vpop.f32.mrf.mxu0
        %v2976 = vpop.f32.mrf.mxu0
        %v2977 = vadd.f32 0.0, %v2976
        %v2978 = vpop.f32.mrf.mxu0
        %2979 = vmatprep.mubr.bf16.mxu0 %v2283
        %2980 = vmatmul.mubr.bf16.gmra.mxu0 %v2151
        %v2981 = vpop.f32.mrf.mxu0
        %v2982 = vadd.f32 0.0, %v2981
        %v2983 = vpop.f32.mrf.mxu0
        %v2984 = vpop.f32.mrf.mxu0
        %v2985 = vadd.f32 0.0, %v2984
        %v2986 = vpop.f32.mrf.mxu0
        %2987 = vmatprep.mubr.bf16.mxu0 %v2284
        %2988 = vmatmul.mubr.bf16.gmra.mxu0 %v2152
        %v2989 = vpop.f32.mrf.mxu0
        %v2990 = vadd.f32 0.0, %v2989
        %v2991 = vpop.f32.mrf.mxu0
        %v2992 = vpop.f32.mrf.mxu0
        %v2993 = vadd.f32 0.0, %v2992
        %v2994 = vpop.f32.mrf.mxu0
        %2995 = vmatprep.mubr.bf16.mxu0 %v2285
        %2996 = vmatmul.mubr.bf16.gmra.mxu0 %v2153
        %v2997 = vpop.f32.mrf.mxu0
        %v2998 = vadd.f32 0.0, %v2997
        %v2999 = vpop.f32.mrf.mxu0
        %v3000 = vpop.f32.mrf.mxu0
        %v3001 = vadd.f32 0.0, %v3000
        %v3002 = vpop.f32.mrf.mxu0
        %3003 = vmatprep.mubr.bf16.mxu0 %v2286
        %3004 = vmatmul.mubr.bf16.gmra.mxu0 %v2154
        %v3005 = vpop.f32.mrf.mxu0
        %v3006 = vadd.f32 0.0, %v3005
        %v3007 = vpop.f32.mrf.mxu0
        %v3008 = vpop.f32.mrf.mxu0
        %v3009 = vadd.f32 0.0, %v3008
        %v3010 = vpop.f32.mrf.mxu0
        %3011 = vmatprep.mubr.bf16.mxu0 %v2287
        %3012 = vmatmul.mubr.bf16.gmra.mxu0 %v2155
        %v3013 = vpop.f32.mrf.mxu0
        %v3014 = vadd.f32 0.0, %v3013
        %v3015 = vpop.f32.mrf.mxu0
        %v3016 = vpop.f32.mrf.mxu0
        %v3017 = vadd.f32 0.0, %v3016
        %v3018 = vpop.f32.mrf.mxu0
        %3019 = vmatprep.mubr.bf16.mxu0 %v2288
        %3020 = vmatmul.mubr.bf16.gmra.mxu0 %v2156
        %v3021 = vpop.f32.mrf.mxu0
        %v3022 = vadd.f32 0.0, %v3021
        %v3023 = vpop.f32.mrf.mxu0
        %v3024 = vpop.f32.mrf.mxu0
        %v3025 = vadd.f32 0.0, %v3024
        %v3026 = vpop.f32.mrf.mxu0
        %3027 = vmatprep.mubr.bf16.mxu0 %v2289
        %3028 = vmatmul.mubr.bf16.gmra.mxu0 %v2157
        %v3029 = vpop.f32.mrf.mxu0
        %v3030 = vadd.f32 0.0, %v3029
        %v3031 = vpop.f32.mrf.mxu0
        %v3032 = vpop.f32.mrf.mxu0
        %v3033 = vadd.f32 0.0, %v3032
        %v3034 = vpop.f32.mrf.mxu0
        %3035 = vmatprep.mubr.bf16.mxu0 %v2290
        %3036 = vmatmul.mubr.bf16.gmra.mxu0 %v2158
        %v3037 = vpop.f32.mrf.mxu0
        %v3038 = vadd.f32 0.0, %v3037
        %v3039 = vpop.f32.mrf.mxu0
        %v3040 = vpop.f32.mrf.mxu0
        %v3041 = vadd.f32 0.0, %v3040
        %v3042 = vpop.f32.mrf.mxu0
        %3043 = vmatprep.mubr.bf16.mxu0 %v2291
        %3044 = vmatmul.mubr.bf16.gmra.mxu0 %v2159
        %v3045 = vpop.f32.mrf.mxu0
        %v3046 = vadd.f32 0.0, %v3045
        %v3047 = vpop.f32.mrf.mxu0
        %v3048 = vpop.f32.mrf.mxu0
        %v3049 = vadd.f32 0.0, %v3048
        %v3050 = vpop.f32.mrf.mxu0
        %3051 = vmatprep.mubr.bf16.mxu0 %v2292
        %3052 = vmatmul.mubr.bf16.gmra.mxu0 %v2160
        %v3053 = vpop.f32.mrf.mxu0
        %v3054 = vadd.f32 0.0, %v3053
        %v3055 = vpop.f32.mrf.mxu0
        %v3056 = vpop.f32.mrf.mxu0
        %v3057 = vadd.f32 0.0, %v3056
        %v3058 = vpop.f32.mrf.mxu0
        %3059 = vmatprep.mubr.bf16.mxu0 %v2827
        %3060 = vmatmul.mubr.bf16.gmra.mxu0 %v2815
        %v3061 = vpop.f32.mrf.mxu0
        %v3062 = vadd.f32 0.0, %v3061
        %v3063 = vpop.f32.mrf.mxu0
        %v3064 = vpop.f32.mrf.mxu0
        %v3065 = vadd.f32 0.0, %v3064
        %v3066 = vpop.f32.mrf.mxu0
        %3067 = vmatprep.mubr.bf16.mxu0 %v2828
        %3068 = vmatmul.mubr.bf16.gmra.mxu0 %v2816
        %v3069 = vpop.f32.mrf.mxu0
        %v3070 = vadd.f32 0.0, %v3069
        %v3071 = vpop.f32.mrf.mxu0
        %v3072 = vpop.f32.mrf.mxu0
        %v3073 = vadd.f32 0.0, %v3072
        %v3074 = vpop.f32.mrf.mxu0
        %3075 = vmatprep.mubr.bf16.mxu0 %v2829
        %3076 = vmatmul.mubr.bf16.gmra.mxu0 %v2817
        %v3077 = vpop.f32.mrf.mxu0
        %v3078 = vadd.f32 0.0, %v3077
        %v3079 = vpop.f32.mrf.mxu0
        %v3080 = vpop.f32.mrf.mxu0
        %v3081 = vadd.f32 0.0, %v3080
        %v3082 = vpop.f32.mrf.mxu0
        %3083 = vmatprep.mubr.bf16.mxu0 %v2830
        %3084 = vmatmul.mubr.bf16.gmra.mxu0 %v2818
        %v3085 = vpop.f32.mrf.mxu0
        %v3086 = vadd.f32 0.0, %v3085
        %v3087 = vpop.f32.mrf.mxu0
        %v3088 = vpop.f32.mrf.mxu0
        %v3089 = vadd.f32 0.0, %v3088
        %v3090 = vpop.f32.mrf.mxu0
        %3091 = vdwg.mxu0
        %v3092 = vadd.f32 %v2775, %v2966
        %v3093 = vadd.f32 %v2776, %v2969
        %v3094 = vadd.f32 %v2777, %v2974
        %v3095 = vadd.f32 %v2778, %v2977
        %v3096 = vadd.f32 %v2779, %v2982
        %v3097 = vadd.f32 %v2780, %v2985
        %v3098 = vadd.f32 %v2781, %v2990
        %v3099 = vadd.f32 %v2782, %v2993
        %v3100 = vadd.f32 %v2783, %v2998
        %v3101 = vadd.f32 %v2784, %v3001
        %v3102 = vadd.f32 %v2785, %v3006
        %v3103 = vadd.f32 %v2786, %v3009
        %v3104 = vadd.f32 %v2787, %v3014
        %v3105 = vadd.f32 %v2788, %v3017
        %v3106 = vadd.f32 %v2789, %v3022
        %v3107 = vadd.f32 %v2790, %v3025
        %v3108 = vadd.f32 %v2791, %v3030
        %v3109 = vadd.f32 %v2792, %v3033
        %v3110 = vadd.f32 %v2793, %v3038
        %v3111 = vadd.f32 %v2794, %v3041
        %v3112 = vadd.f32 %v2795, %v3046
        %v3113 = vadd.f32 %v2796, %v3049
        %v3114 = vadd.f32 %v2797, %v3054
        %v3115 = vadd.f32 %v2798, %v3057
        %v3116 = vadd.f32 %v2799, %v3062
        %v3117 = vadd.f32 %v2800, %v3065
        %v3118 = vadd.f32 %v2801, %v3070
        %v3119 = vadd.f32 %v2802, %v3073
        %v3120 = vadd.f32 %v2803, %v3078
        %v3121 = vadd.f32 %v2804, %v3081
        %v3122 = vadd.f32 %v2805, %v3086
        %v3123 = vadd.f32 %v2806, %v3089
        %v3132 = vunpack.c.l.b16 %v742
        %v3133 = vunpack.c.l.b16 %v743
        %v3134 = vunpack.c.l.b16 %v747
        %v3135 = vunpack.c.l.b16 %v748
        %v3136 = vunpack.c.l.b16 %v752
        %v3137 = vunpack.c.l.b16 %v753
        %v3138 = vunpack.c.l.b16 %v757
        %v3139 = vunpack.c.l.b16 %v758
        %v3140 = vpack.c.b16 %v3133, %v3132
        %v3141 = vpack.c.b16 %v3135, %v3134
        %v3142 = vpack.c.b16 %v3137, %v3136
        %v3143 = vpack.c.b16 %v3139, %v3138
        %v3152 = vunpack.c.l.b16 %v744
        %v3153 = vunpack.c.l.b16 %v749
        %v3154 = vunpack.c.l.b16 %v754
        %v3155 = vunpack.c.l.b16 %v759
        %v3156 = vpack.c.b16 %v2823, %v2823
        %v3157 = vpack.c.b16 %v2824, %v2824
        %v3158 = vpack.c.b16 %v2825, %v2825
        %v3159 = vpack.c.b16 %v2826, %v2826
        %v3160 = vpack.c.b16 %v3152, %v3152
        %v3161 = vpack.c.b16 %v3153, %v3153
        %v3162 = vpack.c.b16 %v3154, %v3154
        %v3163 = vpack.c.b16 %v3155, %v3155
        %v3164 = vrot.slane %v2815, 2
        %v3165 = vrot.slane %v3156, 2
        %v3166 = vsel %vm1115, %v3164, %v3165
        %v3167 = vrot.slane %v2816, 2
        %v3168 = vrot.slane %v3157, 2
        %v3169 = vsel %vm1115, %v3167, %v3168
        %v3170 = vrot.slane %v2817, 2
        %v3171 = vrot.slane %v3158, 2
        %v3172 = vsel %vm1115, %v3170, %v3171
        %v3173 = vrot.slane %v2818, 2
        %v3174 = vrot.slane %v3159, 2
        %v3175 = vsel %vm1115, %v3173, %v3174
        %v3176 = vrot.slane %v3140, 2
        %v3177 = vrot.slane %v3160, 2
        %v3178 = vsel %vm1115, %v3176, %v3177
        %v3179 = vrot.slane %v3141, 2
        %v3180 = vrot.slane %v3161, 2
        %v3181 = vsel %vm1115, %v3179, %v3180
        %v3182 = vrot.slane %v3142, 2
        %v3183 = vrot.slane %v3162, 2
        %v3184 = vsel %vm1115, %v3182, %v3183
        %v3185 = vrot.slane %v3143, 2
        %v3186 = vrot.slane %v3163, 2
        %v3187 = vsel %vm1115, %v3185, %v3186
        %v3196 = vpack.c.b16 %v3152, %v3133
        %v3197 = vpack.c.b16 %v3153, %v3135
        %v3198 = vpack.c.b16 %v3154, %v3137
        %v3199 = vpack.c.b16 %v3155, %v3139
        %v3252 = vunpack.c.l.b16 %v2057
        %v3253 = vunpack.c.l.b16 %v2058
        %v3254 = vunpack.c.l.b16 %v2059
        %v3255 = vunpack.c.l.b16 %v2060
        %v3256 = vunpack.c.l.b16 %v2061
        %v3257 = vunpack.c.l.b16 %v2062
        %v3258 = vunpack.c.l.b16 %v2063
        %v3259 = vunpack.c.l.b16 %v2064
        %v3260 = vunpack.c.l.b16 %v2065
        %v3261 = vunpack.c.l.b16 %v2066
        %v3262 = vunpack.c.l.b16 %v2067
        %v3263 = vunpack.c.l.b16 %v2068
        %v3264 = vunpack.c.l.b16 %v2069
        %v3265 = vunpack.c.l.b16 %v2070
        %v3266 = vunpack.c.l.b16 %v2071
        %v3267 = vunpack.c.l.b16 %v2072
        %v3268 = vunpack.c.l.b16 %v2073
        %v3269 = vunpack.c.l.b16 %v2074
        %v3270 = vunpack.c.l.b16 %v2075
        %v3271 = vunpack.c.l.b16 %v2076
        %v3272 = vunpack.c.l.b16 %v2077
        %v3273 = vunpack.c.l.b16 %v2078
        %v3274 = vunpack.c.l.b16 %v2079
        %v3275 = vunpack.c.l.b16 %v2080
        %v3276 = vunpack.c.l.b16 %v2081
        %v3277 = vunpack.c.l.b16 %v2082
        %v3278 = vunpack.c.l.b16 %v2083
        %v3279 = vunpack.c.l.b16 %v2084
        %v3280 = vunpack.c.l.b16 %v2085
        %v3281 = vunpack.c.l.b16 %v2086
        %v3282 = vunpack.c.l.b16 %v2087
        %v3283 = vunpack.c.l.b16 %v2088
        %v3284 = vunpack.c.l.b16 %v2089
        %v3285 = vunpack.c.l.b16 %v2090
        %v3286 = vunpack.c.l.b16 %v2091
        %v3287 = vunpack.c.l.b16 %v2092
        %v3288 = vunpack.c.l.b16 %v2093
        %v3289 = vunpack.c.l.b16 %v2094
        %v3290 = vunpack.c.l.b16 %v2095
        %v3291 = vunpack.c.l.b16 %v2096
        %v3292 = vunpack.c.l.b16 %v2097
        %v3293 = vunpack.c.l.b16 %v2098
        %v3294 = vunpack.c.l.b16 %v2099
        %v3295 = vunpack.c.l.b16 %v2100
        %v3296 = vunpack.c.l.b16 %v2101
        %v3297 = vunpack.c.l.b16 %v2102
        %v3298 = vunpack.c.l.b16 %v2103
        %v3299 = vunpack.c.l.b16 %v2104
        %v3300 = vpack.c.b16 %v3253, %v3252
        %v3301 = vpack.c.b16 %v3255, %v3254
        %v3302 = vpack.c.b16 %v3257, %v3256
        %v3303 = vpack.c.b16 %v3259, %v3258
        %v3304 = vpack.c.b16 %v3261, %v3260
        %v3305 = vpack.c.b16 %v3263, %v3262
        %v3306 = vpack.c.b16 %v3265, %v3264
        %v3307 = vpack.c.b16 %v3267, %v3266
        %v3308 = vpack.c.b16 %v3269, %v3268
        %v3309 = vpack.c.b16 %v3271, %v3270
        %v3310 = vpack.c.b16 %v3273, %v3272
        %v3311 = vpack.c.b16 %v3275, %v3274
        %v3312 = vpack.c.b16 %v3277, %v3276
        %v3313 = vpack.c.b16 %v3279, %v3278
        %v3314 = vpack.c.b16 %v3281, %v3280
        %v3315 = vpack.c.b16 %v3283, %v3282
        %v3316 = vpack.c.b16 %v3285, %v3284
        %v3317 = vpack.c.b16 %v3287, %v3286
        %v3318 = vpack.c.b16 %v3289, %v3288
        %v3319 = vpack.c.b16 %v3291, %v3290
        %v3320 = vpack.c.b16 %v3293, %v3292
        %v3321 = vpack.c.b16 %v3295, %v3294
        %v3322 = vpack.c.b16 %v3297, %v3296
        %v3323 = vpack.c.b16 %v3299, %v3298
        %3348 = vmatprep.subr.bf16.mxu0 0
        %3349 = vmatpush1.bf16.msra.mxu0 %v3307
        %3350 = vmatprep.subr.bf16.mxu0 0
        %3351 = vmatpush1.bf16.msra.mxu0 %v3306
        %3352 = vmatprep.subr.bf16.mxu0 0
        %3353 = vmatpush1.bf16.msra.mxu0 %v3305
        %3354 = vmatprep.subr.bf16.mxu0 0
        %3355 = vmatpush1.bf16.msra.mxu0 %v3304
        %3356 = vmatprep.subr.bf16.mxu0 0
        %3357 = vmatpush1.bf16.msra.mxu0 %v3303
        %3358 = vmatprep.subr.bf16.mxu0 0
        %3359 = vmatpush1.bf16.msra.mxu0 %v3302
        %3360 = vmatprep.subr.bf16.mxu0 0
        %3361 = vmatpush1.bf16.msra.mxu0 %v3301
        %3362 = vmatprep.subr.bf16.mxu0 0
        %3363 = vmatpush1.bf16.msra.mxu0 %v3300
        %3364 = vmatprep.subr.bf16.mxu0 0
        %3365 = vmatpush2.bf16.msra.mxu0 %v3315
        %3366 = vmatprep.subr.bf16.mxu0 0
        %3367 = vmatpush2.bf16.msra.mxu0 %v3314
        %3368 = vmatprep.subr.bf16.mxu0 0
        %3369 = vmatpush2.bf16.msra.mxu0 %v3313
        %3370 = vmatprep.subr.bf16.mxu0 0
        %3371 = vmatpush2.bf16.msra.mxu0 %v3312
        %3372 = vmatprep.subr.bf16.mxu0 0
        %3373 = vmatpush2.bf16.msra.mxu0 %v3311
        %3374 = vmatprep.subr.bf16.mxu0 0
        %3375 = vmatpush2.bf16.msra.mxu0 %v3310
        %3376 = vmatprep.subr.bf16.mxu0 0
        %3377 = vmatpush2.bf16.msra.mxu0 %v3309
        %3378 = vmatprep.subr.bf16.mxu0 0
        %3379 = vmatpush2.bf16.msra.mxu0 %v3308
        %3380 = vmatprep.mubr.bf16.mxu0 %v2239
        %3381 = vmatmul.mubr.bf16.gmra.mxu0 %v2153
        %v3382 = vpop.f32.mrf.mxu0
        %v3383 = vadd.f32 0.0, %v3382
        %v3384 = vpop.f32.mrf.mxu0
        %v3385 = vpop.f32.mrf.mxu0
        %v3386 = vadd.f32 0.0, %v3385
        %v3387 = vpop.f32.mrf.mxu0
        %3388 = vmatprep.mubr.bf16.mxu0 %v2242
        %3389 = vmatmul.mubr.bf16.gmra.mxu0 %v2154
        %v3390 = vpop.f32.mrf.mxu0
        %v3391 = vadd.f32 0.0, %v3390
        %v3392 = vpop.f32.mrf.mxu0
        %v3393 = vpop.f32.mrf.mxu0
        %v3394 = vadd.f32 0.0, %v3393
        %v3395 = vpop.f32.mrf.mxu0
        %3396 = vmatprep.mubr.bf16.mxu0 %v2245
        %3397 = vmatmul.mubr.bf16.gmra.mxu0 %v2155
        %v3398 = vpop.f32.mrf.mxu0
        %v3399 = vadd.f32 0.0, %v3398
        %v3400 = vpop.f32.mrf.mxu0
        %v3401 = vpop.f32.mrf.mxu0
        %v3402 = vadd.f32 0.0, %v3401
        %v3403 = vpop.f32.mrf.mxu0
        %3404 = vmatprep.mubr.bf16.mxu0 %v2248
        %3405 = vmatmul.mubr.bf16.gmra.mxu0 %v2156
        %v3406 = vpop.f32.mrf.mxu0
        %v3407 = vadd.f32 0.0, %v3406
        %v3408 = vpop.f32.mrf.mxu0
        %v3409 = vpop.f32.mrf.mxu0
        %v3410 = vadd.f32 0.0, %v3409
        %v3411 = vpop.f32.mrf.mxu0
        %3412 = vmatprep.mubr.bf16.mxu0 %v2251
        %3413 = vmatmul.mubr.bf16.gmra.mxu0 %v2157
        %v3414 = vpop.f32.mrf.mxu0
        %v3415 = vadd.f32 0.0, %v3414
        %v3416 = vpop.f32.mrf.mxu0
        %v3417 = vpop.f32.mrf.mxu0
        %v3418 = vadd.f32 0.0, %v3417
        %v3419 = vpop.f32.mrf.mxu0
        %3420 = vmatprep.mubr.bf16.mxu0 %v2254
        %3421 = vmatmul.mubr.bf16.gmra.mxu0 %v2158
        %v3422 = vpop.f32.mrf.mxu0
        %v3423 = vadd.f32 0.0, %v3422
        %v3424 = vpop.f32.mrf.mxu0
        %v3425 = vpop.f32.mrf.mxu0
        %v3426 = vadd.f32 0.0, %v3425
        %v3427 = vpop.f32.mrf.mxu0
        %3428 = vmatprep.mubr.bf16.mxu0 %v2257
        %3429 = vmatmul.mubr.bf16.gmra.mxu0 %v2159
        %v3430 = vpop.f32.mrf.mxu0
        %v3431 = vadd.f32 0.0, %v3430
        %v3432 = vpop.f32.mrf.mxu0
        %v3433 = vpop.f32.mrf.mxu0
        %v3434 = vadd.f32 0.0, %v3433
        %v3435 = vpop.f32.mrf.mxu0
        %3436 = vmatprep.mubr.bf16.mxu0 %v2260
        %3437 = vmatmul.mubr.bf16.gmra.mxu0 %v2160
        %v3438 = vpop.f32.mrf.mxu0
        %v3439 = vadd.f32 0.0, %v3438
        %v3440 = vpop.f32.mrf.mxu0
        %v3441 = vpop.f32.mrf.mxu0
        %v3442 = vadd.f32 0.0, %v3441
        %v3443 = vpop.f32.mrf.mxu0
        %3444 = vmatprep.mubr.bf16.mxu0 %v3166
        %3445 = vmatmul.mubr.bf16.gmra.mxu0 %v2815
        %v3446 = vpop.f32.mrf.mxu0
        %v3447 = vadd.f32 0.0, %v3446
        %v3448 = vpop.f32.mrf.mxu0
        %v3449 = vpop.f32.mrf.mxu0
        %v3450 = vadd.f32 0.0, %v3449
        %v3451 = vpop.f32.mrf.mxu0
        %3452 = vmatprep.mubr.bf16.mxu0 %v3169
        %3453 = vmatmul.mubr.bf16.gmra.mxu0 %v2816
        %v3454 = vpop.f32.mrf.mxu0
        %v3455 = vadd.f32 0.0, %v3454
        %v3456 = vpop.f32.mrf.mxu0
        %v3457 = vpop.f32.mrf.mxu0
        %v3458 = vadd.f32 0.0, %v3457
        %v3459 = vpop.f32.mrf.mxu0
        %3460 = vmatprep.mubr.bf16.mxu0 %v3172
        %3461 = vmatmul.mubr.bf16.gmra.mxu0 %v2817
        %v3462 = vpop.f32.mrf.mxu0
        %v3463 = vadd.f32 0.0, %v3462
        %v3464 = vpop.f32.mrf.mxu0
        %v3465 = vpop.f32.mrf.mxu0
        %v3466 = vadd.f32 0.0, %v3465
        %v3467 = vpop.f32.mrf.mxu0
        %3468 = vmatprep.mubr.bf16.mxu0 %v3175
        %3469 = vmatmul.mubr.bf16.gmra.mxu0 %v2818
        %v3470 = vpop.f32.mrf.mxu0
        %v3471 = vadd.f32 0.0, %v3470
        %v3472 = vpop.f32.mrf.mxu0
        %v3473 = vpop.f32.mrf.mxu0
        %v3474 = vadd.f32 0.0, %v3473
        %v3475 = vpop.f32.mrf.mxu0
        %3476 = vmatprep.mubr.bf16.mxu0 %v3178
        %3477 = vmatmul.mubr.bf16.gmra.mxu0 %v3140
        %v3478 = vpop.f32.mrf.mxu0
        %v3479 = vadd.f32 0.0, %v3478
        %v3480 = vpop.f32.mrf.mxu0
        %v3481 = vpop.f32.mrf.mxu0
        %v3482 = vadd.f32 0.0, %v3481
        %v3483 = vpop.f32.mrf.mxu0
        %3484 = vmatprep.mubr.bf16.mxu0 %v3181
        %3485 = vmatmul.mubr.bf16.gmra.mxu0 %v3141
        %v3486 = vpop.f32.mrf.mxu0
        %v3487 = vadd.f32 0.0, %v3486
        %v3488 = vpop.f32.mrf.mxu0
        %v3489 = vpop.f32.mrf.mxu0
        %v3490 = vadd.f32 0.0, %v3489
        %v3491 = vpop.f32.mrf.mxu0
        %3492 = vmatprep.mubr.bf16.mxu0 %v3184
        %3493 = vmatmul.mubr.bf16.gmra.mxu0 %v3142
        %v3494 = vpop.f32.mrf.mxu0
        %v3495 = vadd.f32 0.0, %v3494
        %v3496 = vpop.f32.mrf.mxu0
        %v3497 = vpop.f32.mrf.mxu0
        %v3498 = vadd.f32 0.0, %v3497
        %v3499 = vpop.f32.mrf.mxu0
        %3500 = vmatprep.mubr.bf16.mxu0 %v3187
        %3501 = vmatmul.mubr.bf16.gmra.mxu0 %v3143
        %v3502 = vpop.f32.mrf.mxu0
        %v3503 = vadd.f32 0.0, %v3502
        %v3504 = vpop.f32.mrf.mxu0
        %v3505 = vpop.f32.mrf.mxu0
        %v3506 = vadd.f32 0.0, %v3505
        %v3507 = vpop.f32.mrf.mxu0
        %3508 = vdwg.mxu0
        %3509 = vmatprep.subr.bf16.mxu0 0
        %3510 = vmatpush1.bf16.msra.mxu0 %v3323
        %3511 = vmatprep.subr.bf16.mxu0 0
        %3512 = vmatpush1.bf16.msra.mxu0 %v3322
        %3513 = vmatprep.subr.bf16.mxu0 0
        %3514 = vmatpush1.bf16.msra.mxu0 %v3321
        %3515 = vmatprep.subr.bf16.mxu0 0
        %3516 = vmatpush1.bf16.msra.mxu0 %v3320
        %3517 = vmatprep.subr.bf16.mxu0 0
        %3518 = vmatpush1.bf16.msra.mxu0 %v3319
        %3519 = vmatprep.subr.bf16.mxu0 0
        %3520 = vmatpush1.bf16.msra.mxu0 %v3318
        %3521 = vmatprep.subr.bf16.mxu0 0
        %3522 = vmatpush1.bf16.msra.mxu0 %v3317
        %3523 = vmatprep.subr.bf16.mxu0 0
        %3524 = vmatpush1.bf16.msra.mxu0 %v3316
        %3525 = vmatprep.subr.bf16.mxu0 0
        %3526 = vmatpush2.bf16.msra.mxu0 0
        %3527 = vmatprep.subr.bf16.mxu0 0
        %3528 = vmatpush2.bf16.msra.mxu0 0
        %3529 = vmatprep.subr.bf16.mxu0 0
        %3530 = vmatpush2.bf16.msra.mxu0 0
        %3531 = vmatprep.subr.bf16.mxu0 0
        %3532 = vmatpush2.bf16.msra.mxu0 0
        %3533 = vmatprep.subr.bf16.mxu0 0
        %3534 = vmatpush2.bf16.msra.mxu0 0
        %3535 = vmatprep.subr.bf16.mxu0 0
        %3536 = vmatpush2.bf16.msra.mxu0 0
        %3537 = vmatprep.subr.bf16.mxu0 0
        %3538 = vmatpush2.bf16.msra.mxu0 0
        %3539 = vmatprep.subr.bf16.mxu0 0
        %3540 = vmatpush2.bf16.msra.mxu0 0
        %3541 = vmatprep.mubr.bf16.mxu0 0
        %3542 = vmatmul.mubr.bf16.gmra.mxu0 %v2285
        %v3543 = vpop.f32.mrf.mxu0
        %v3544 = vadd.f32 %v3383, %v3543
        %v3545 = vpop.f32.mrf.mxu0
        %v3546 = vpop.f32.mrf.mxu0
        %v3547 = vadd.f32 %v3386, %v3546
        %v3548 = vpop.f32.mrf.mxu0
        %3549 = vmatprep.mubr.bf16.mxu0 0
        %3550 = vmatmul.mubr.bf16.gmra.mxu0 %v2286
        %v3551 = vpop.f32.mrf.mxu0
        %v3552 = vadd.f32 %v3391, %v3551
        %v3553 = vpop.f32.mrf.mxu0
        %v3554 = vpop.f32.mrf.mxu0
        %v3555 = vadd.f32 %v3394, %v3554
        %v3556 = vpop.f32.mrf.mxu0
        %3557 = vmatprep.mubr.bf16.mxu0 0
        %3558 = vmatmul.mubr.bf16.gmra.mxu0 %v2287
        %v3559 = vpop.f32.mrf.mxu0
        %v3560 = vadd.f32 %v3399, %v3559
        %v3561 = vpop.f32.mrf.mxu0
        %v3562 = vpop.f32.mrf.mxu0
        %v3563 = vadd.f32 %v3402, %v3562
        %v3564 = vpop.f32.mrf.mxu0
        %3565 = vmatprep.mubr.bf16.mxu0 0
        %3566 = vmatmul.mubr.bf16.gmra.mxu0 %v2288
        %v3567 = vpop.f32.mrf.mxu0
        %v3568 = vadd.f32 %v3407, %v3567
        %v3569 = vpop.f32.mrf.mxu0
        %v3570 = vpop.f32.mrf.mxu0
        %v3571 = vadd.f32 %v3410, %v3570
        %v3572 = vpop.f32.mrf.mxu0
        %3573 = vmatprep.mubr.bf16.mxu0 0
        %3574 = vmatmul.mubr.bf16.gmra.mxu0 %v2289
        %v3575 = vpop.f32.mrf.mxu0
        %v3576 = vadd.f32 %v3415, %v3575
        %v3577 = vpop.f32.mrf.mxu0
        %v3578 = vpop.f32.mrf.mxu0
        %v3579 = vadd.f32 %v3418, %v3578
        %v3580 = vpop.f32.mrf.mxu0
        %3581 = vmatprep.mubr.bf16.mxu0 0
        %3582 = vmatmul.mubr.bf16.gmra.mxu0 %v2290
        %v3583 = vpop.f32.mrf.mxu0
        %v3584 = vadd.f32 %v3423, %v3583
        %v3585 = vpop.f32.mrf.mxu0
        %v3586 = vpop.f32.mrf.mxu0
        %v3587 = vadd.f32 %v3426, %v3586
        %v3588 = vpop.f32.mrf.mxu0
        %3589 = vmatprep.mubr.bf16.mxu0 0
        %3590 = vmatmul.mubr.bf16.gmra.mxu0 %v2291
        %v3591 = vpop.f32.mrf.mxu0
        %v3592 = vadd.f32 %v3431, %v3591
        %v3593 = vpop.f32.mrf.mxu0
        %v3594 = vpop.f32.mrf.mxu0
        %v3595 = vadd.f32 %v3434, %v3594
        %v3596 = vpop.f32.mrf.mxu0
        %3597 = vmatprep.mubr.bf16.mxu0 0
        %3598 = vmatmul.mubr.bf16.gmra.mxu0 %v2292
        %v3599 = vpop.f32.mrf.mxu0
        %v3600 = vadd.f32 %v3439, %v3599
        %v3601 = vpop.f32.mrf.mxu0
        %v3602 = vpop.f32.mrf.mxu0
        %v3603 = vadd.f32 %v3442, %v3602
        %v3604 = vpop.f32.mrf.mxu0
        %3605 = vmatprep.mubr.bf16.mxu0 0
        %3606 = vmatmul.mubr.bf16.gmra.mxu0 %v2827
        %v3607 = vpop.f32.mrf.mxu0
        %v3608 = vadd.f32 %v3447, %v3607
        %v3609 = vpop.f32.mrf.mxu0
        %v3610 = vpop.f32.mrf.mxu0
        %v3611 = vadd.f32 %v3450, %v3610
        %v3612 = vpop.f32.mrf.mxu0
        %3613 = vmatprep.mubr.bf16.mxu0 0
        %3614 = vmatmul.mubr.bf16.gmra.mxu0 %v2828
        %v3615 = vpop.f32.mrf.mxu0
        %v3616 = vadd.f32 %v3455, %v3615
        %v3617 = vpop.f32.mrf.mxu0
        %v3618 = vpop.f32.mrf.mxu0
        %v3619 = vadd.f32 %v3458, %v3618
        %v3620 = vpop.f32.mrf.mxu0
        %3621 = vmatprep.mubr.bf16.mxu0 0
        %3622 = vmatmul.mubr.bf16.gmra.mxu0 %v2829
        %v3623 = vpop.f32.mrf.mxu0
        %v3624 = vadd.f32 %v3463, %v3623
        %v3625 = vpop.f32.mrf.mxu0
        %v3626 = vpop.f32.mrf.mxu0
        %v3627 = vadd.f32 %v3466, %v3626
        %v3628 = vpop.f32.mrf.mxu0
        %3629 = vmatprep.mubr.bf16.mxu0 0
        %3630 = vmatmul.mubr.bf16.gmra.mxu0 %v2830
        %v3631 = vpop.f32.mrf.mxu0
        %v3632 = vadd.f32 %v3471, %v3631
        %v3633 = vpop.f32.mrf.mxu0
        %v3634 = vpop.f32.mrf.mxu0
        %v3635 = vadd.f32 %v3474, %v3634
        %v3636 = vpop.f32.mrf.mxu0
        %3637 = vmatprep.mubr.bf16.mxu0 0
        %3638 = vmatmul.mubr.bf16.gmra.mxu0 %v3196
        %v3639 = vpop.f32.mrf.mxu0
        %v3640 = vadd.f32 %v3479, %v3639
        %v3641 = vpop.f32.mrf.mxu0
        %v3642 = vpop.f32.mrf.mxu0
        %v3643 = vadd.f32 %v3482, %v3642
        %v3644 = vpop.f32.mrf.mxu0
        %3645 = vmatprep.mubr.bf16.mxu0 0
        %3646 = vmatmul.mubr.bf16.gmra.mxu0 %v3197
        %v3647 = vpop.f32.mrf.mxu0
        %v3648 = vadd.f32 %v3487, %v3647
        %v3649 = vpop.f32.mrf.mxu0
        %v3650 = vpop.f32.mrf.mxu0
        %v3651 = vadd.f32 %v3490, %v3650
        %v3652 = vpop.f32.mrf.mxu0
        %3653 = vmatprep.mubr.bf16.mxu0 0
        %3654 = vmatmul.mubr.bf16.gmra.mxu0 %v3198
        %v3655 = vpop.f32.mrf.mxu0
        %v3656 = vadd.f32 %v3495, %v3655
        %v3657 = vpop.f32.mrf.mxu0
        %v3658 = vpop.f32.mrf.mxu0
        %v3659 = vadd.f32 %v3498, %v3658
        %v3660 = vpop.f32.mrf.mxu0
        %3661 = vmatprep.mubr.bf16.mxu0 0
        %3662 = vmatmul.mubr.bf16.gmra.mxu0 %v3199
        %v3663 = vpop.f32.mrf.mxu0
        %v3664 = vadd.f32 %v3503, %v3663
        %v3665 = vpop.f32.mrf.mxu0
        %v3666 = vpop.f32.mrf.mxu0
        %v3667 = vadd.f32 %v3506, %v3666
        %v3668 = vpop.f32.mrf.mxu0
        %3669 = vdwg.mxu0
        %v3670 = vadd.f32 %v3092, %v3544
        %v3671 = vadd.f32 %v3093, %v3547
        %v3672 = vadd.f32 %v3094, %v3552
        %v3673 = vadd.f32 %v3095, %v3555
        %v3674 = vadd.f32 %v3096, %v3560
        %v3675 = vadd.f32 %v3097, %v3563
        %v3676 = vadd.f32 %v3098, %v3568
        %v3677 = vadd.f32 %v3099, %v3571
        %v3678 = vadd.f32 %v3100, %v3576
        %v3679 = vadd.f32 %v3101, %v3579
        %v3680 = vadd.f32 %v3102, %v3584
        %v3681 = vadd.f32 %v3103, %v3587
        %v3682 = vadd.f32 %v3104, %v3592
        %v3683 = vadd.f32 %v3105, %v3595
        %v3684 = vadd.f32 %v3106, %v3600
        %v3685 = vadd.f32 %v3107, %v3603
        %v3686 = vadd.f32 %v3108, %v3608
        %v3687 = vadd.f32 %v3109, %v3611
        %v3688 = vadd.f32 %v3110, %v3616
        %v3689 = vadd.f32 %v3111, %v3619
        %v3690 = vadd.f32 %v3112, %v3624
        %v3691 = vadd.f32 %v3113, %v3627
        %v3692 = vadd.f32 %v3114, %v3632
        %v3693 = vadd.f32 %v3115, %v3635
        %v3694 = vadd.f32 %v3116, %v3640
        %v3695 = vadd.f32 %v3117, %v3643
        %v3696 = vadd.f32 %v3118, %v3648
        %v3697 = vadd.f32 %v3119, %v3651
        %v3698 = vadd.f32 %v3120, %v3656
        %v3699 = vadd.f32 %v3121, %v3659
        %v3700 = vadd.f32 %v3122, %v3664
        %v3701 = vadd.f32 %v3123, %v3667
        %v3702 = vld [vmem:[#allocation11] sm:$0xf]
        %v3703 = vld [vmem:[#allocation11 + $0x4] sm:$0xf]
        %v3704 = vld [vmem:[#allocation11 + $0x8] sm:$0xf]
        %v3705 = vld [vmem:[#allocation11 + $0xc] sm:$0xf]
        %v3706 = vld [vmem:[#allocation11 + $0x10] sm:$0xf]
        %v3707 = vld [vmem:[#allocation11 + $0x14] sm:$0xf]
        %v3708 = vld [vmem:[#allocation11 + $0x18] sm:$0xf]
        %v3709 = vld [vmem:[#allocation11 + $0x1c] sm:$0xf]
        %v3710 = vld [vmem:[#allocation11 + $0x20] sm:$0xf]
        %v3711 = vld [vmem:[#allocation11 + $0x24] sm:$0xf]
        %v3712 = vld [vmem:[#allocation11 + $0x28] sm:$0xf]
        %v3713 = vld [vmem:[#allocation11 + $0x2c] sm:$0xf]
        %v3714 = vld [vmem:[#allocation11 + $0x30] sm:$0xf]
        %v3715 = vld [vmem:[#allocation11 + $0x34] sm:$0xf]
        %v3716 = vld [vmem:[#allocation11 + $0x38] sm:$0xf]
        %v3717 = vld [vmem:[#allocation11 + $0x3c] sm:$0xf]
        %v3718 = vld [vmem:[#allocation11 + $0x40] sm:$0xf]
        %v3719 = vld [vmem:[#allocation11 + $0x44] sm:$0xf]
        %v3720 = vld [vmem:[#allocation11 + $0x48] sm:$0xf]
        %v3721 = vld [vmem:[#allocation11 + $0x4c] sm:$0xf]
        %v3722 = vld [vmem:[#allocation11 + $0x50] sm:$0xf]
        %v3723 = vld [vmem:[#allocation11 + $0x54] sm:$0xf]
        %v3724 = vld [vmem:[#allocation11 + $0x58] sm:$0xf]
        %v3725 = vld [vmem:[#allocation11 + $0x5c] sm:$0xf]
        %v3726 = vld [vmem:[#allocation11 + $0x60] sm:$0xf]
        %v3727 = vld [vmem:[#allocation11 + $0x64] sm:$0xf]
        %v3728 = vld [vmem:[#allocation11 + $0x68] sm:$0xf]
        %v3729 = vld [vmem:[#allocation11 + $0x6c] sm:$0xf]
        %v3730 = vld [vmem:[#allocation11 + $0x70] sm:$0xf]
        %v3731 = vld [vmem:[#allocation11 + $0x74] sm:$0xf]
        %v3732 = vld [vmem:[#allocation11 + $0x78] sm:$0xf]
        %v3733 = vld [vmem:[#allocation11 + $0x7c] sm:$0xf]
        %v3734 = vld [vmem:[#allocation11 + $0x80] sm:$0xf]
        %v3735 = vld [vmem:[#allocation11 + $0x84] sm:$0xf]
        %v3736 = vld [vmem:[#allocation11 + $0x88] sm:$0xf]
        %v3737 = vld [vmem:[#allocation11 + $0x8c] sm:$0xf]
        %v3738 = vld [vmem:[#allocation11 + $0x90] sm:$0xf]
        %v3739 = vld [vmem:[#allocation11 + $0x94] sm:$0xf]
        %v3740 = vld [vmem:[#allocation11 + $0x98] sm:$0xf]
        %v3741 = vld [vmem:[#allocation11 + $0x9c] sm:$0xf]
        %v3742 = vld [vmem:[#allocation11 + $0xa0] sm:$0xf]
        %v3743 = vld [vmem:[#allocation11 + $0xa4] sm:$0xf]
        %v3744 = vld [vmem:[#allocation11 + $0xa8] sm:$0xf]
        %v3745 = vld [vmem:[#allocation11 + $0xac] sm:$0xf]
        %v3746 = vld [vmem:[#allocation11 + $0xb0] sm:$0xf]
        %v3747 = vld [vmem:[#allocation11 + $0xb4] sm:$0xf]
        %v3748 = vld [vmem:[#allocation11 + $0xb8] sm:$0xf]
        %v3749 = vld [vmem:[#allocation11 + $0xbc] sm:$0xf]
        %v3750 = vld [vmem:[#allocation11 + $0xc0] sm:$0xf]
        %v3751 = vld [vmem:[#allocation11 + $0xc4] sm:$0xf]
        %v3752 = vld [vmem:[#allocation11 + $0xc8] sm:$0xf]
        %v3753 = vld [vmem:[#allocation11 + $0xcc] sm:$0xf]
        %v3754 = vld [vmem:[#allocation11 + $0xd0] sm:$0xf]
        %v3755 = vld [vmem:[#allocation11 + $0xd4] sm:$0xf]
        %v3756 = vld [vmem:[#allocation11 + $0xd8] sm:$0xf]
        %v3757 = vld [vmem:[#allocation11 + $0xdc] sm:$0xf]
        %v3758 = vld [vmem:[#allocation11 + $0xe0] sm:$0xf]
        %v3759 = vld [vmem:[#allocation11 + $0xe4] sm:$0xf]
        %v3760 = vld [vmem:[#allocation11 + $0xe8] sm:$0xf]
        %v3761 = vld [vmem:[#allocation11 + $0xec] sm:$0xf]
        %v3762 = vld [vmem:[#allocation11 + $0xf0] sm:$0xf]
        %v3763 = vld [vmem:[#allocation11 + $0xf4] sm:$0xf]
        %v3764 = vld [vmem:[#allocation11 + $0xf8] sm:$0xf]
        %v3765 = vld [vmem:[#allocation11 + $0xfc] sm:$0xf]
        %v3766 = vld [vmem:[#allocation11 + $0x100] sm:$0xf]
        %v3767 = vld [vmem:[#allocation11 + $0x104] sm:$0xf]
        %v3768 = vld [vmem:[#allocation11 + $0x108] sm:$0xf]
        %v3769 = vld [vmem:[#allocation11 + $0x10c] sm:$0xf]
        %v3770 = vld [vmem:[#allocation11 + $0x110] sm:$0xf]
        %v3771 = vld [vmem:[#allocation11 + $0x114] sm:$0xf]
        %v3772 = vld [vmem:[#allocation11 + $0x118] sm:$0xf]
        %v3773 = vld [vmem:[#allocation11 + $0x11c] sm:$0xf]
        %v3774 = vld [vmem:[#allocation11 + $0x120] sm:$0xf]
        %v3775 = vld [vmem:[#allocation11 + $0x124] sm:$0xf]
        %v3776 = vld [vmem:[#allocation11 + $0x128] sm:$0xf]
        %v3777 = vld [vmem:[#allocation11 + $0x12c] sm:$0xf]
        %v3778 = vld [vmem:[#allocation11 + $0x130] sm:$0xf]
        %v3779 = vld [vmem:[#allocation11 + $0x134] sm:$0xf]
        %v3780 = vld [vmem:[#allocation11 + $0x138] sm:$0xf]
        %v3781 = vld [vmem:[#allocation11 + $0x13c] sm:$0xf]
        %v3782 = vld [vmem:[#allocation11 + $0x140] sm:$0xf]
        %v3783 = vld [vmem:[#allocation11 + $0x144] sm:$0xf]
        %v3784 = vld [vmem:[#allocation11 + $0x148] sm:$0xf]
        %v3785 = vld [vmem:[#allocation11 + $0x14c] sm:$0xf]
        %v3786 = vld [vmem:[#allocation11 + $0x150] sm:$0xf]
        %v3787 = vld [vmem:[#allocation11 + $0x154] sm:$0xf]
        %v3788 = vld [vmem:[#allocation11 + $0x158] sm:$0xf]
        %v3789 = vld [vmem:[#allocation11 + $0x15c] sm:$0xf]
        %v3790 = vld [vmem:[#allocation11 + $0x160] sm:$0xf]
        %v3791 = vld [vmem:[#allocation11 + $0x164] sm:$0xf]
        %v3792 = vld [vmem:[#allocation11 + $0x168] sm:$0xf]
        %v3793 = vld [vmem:[#allocation11 + $0x16c] sm:$0xf]
        %v3794 = vld [vmem:[#allocation11 + $0x170] sm:$0xf]
        %v3795 = vld [vmem:[#allocation11 + $0x174] sm:$0xf]
        %v3796 = vld [vmem:[#allocation11 + $0x178] sm:$0xf]
        %v3797 = vld [vmem:[#allocation11 + $0x17c] sm:$0xf]
        %v3798 = vld [vmem:[#allocation11 + $0x180] sm:$0xf]
        %v3799 = vld [vmem:[#allocation11 + $0x184] sm:$0xf]
        %v3800 = vld [vmem:[#allocation11 + $0x188] sm:$0xf]
        %v3801 = vld [vmem:[#allocation11 + $0x18c] sm:$0xf]
        %v3802 = vld [vmem:[#allocation11 + $0x190] sm:$0xf]
        %v3803 = vld [vmem:[#allocation11 + $0x194] sm:$0xf]
        %v3804 = vld [vmem:[#allocation11 + $0x198] sm:$0xf]
        %v3805 = vld [vmem:[#allocation11 + $0x19c] sm:$0xf]
        %v3806 = vld [vmem:[#allocation11 + $0x1a0] sm:$0xf]
        %v3807 = vld [vmem:[#allocation11 + $0x1a4] sm:$0xf]
        %v3808 = vld [vmem:[#allocation11 + $0x1a8] sm:$0xf]
        %v3809 = vld [vmem:[#allocation11 + $0x1ac] sm:$0xf]
        %v3810 = vld [vmem:[#allocation11 + $0x1b0] sm:$0xf]
        %v3811 = vld [vmem:[#allocation11 + $0x1b4] sm:$0xf]
        %v3812 = vld [vmem:[#allocation11 + $0x1b8] sm:$0xf]
        %v3813 = vld [vmem:[#allocation11 + $0x1bc] sm:$0xf]
        %v3814 = vld [vmem:[#allocation11 + $0x1c0] sm:$0xf]
        %v3815 = vld [vmem:[#allocation11 + $0x1c4] sm:$0xf]
        %v3816 = vld [vmem:[#allocation11 + $0x1c8] sm:$0xf]
        %v3817 = vld [vmem:[#allocation11 + $0x1cc] sm:$0xf]
        %v3818 = vld [vmem:[#allocation11 + $0x1d0] sm:$0xf]
        %v3819 = vld [vmem:[#allocation11 + $0x1d4] sm:$0xf]
        %v3820 = vld [vmem:[#allocation11 + $0x1d8] sm:$0xf]
        %v3821 = vld [vmem:[#allocation11 + $0x1dc] sm:$0xf]
        %v3822 = vld [vmem:[#allocation11 + $0x1e0] sm:$0xf]
        %v3823 = vld [vmem:[#allocation11 + $0x1e4] sm:$0xf]
        %v3824 = vld [vmem:[#allocation11 + $0x1e8] sm:$0xf]
        %v3825 = vld [vmem:[#allocation11 + $0x1ec] sm:$0xf]
        %v3826 = vld [vmem:[#allocation11 + $0x1f0] sm:$0xf]
        %v3827 = vld [vmem:[#allocation11 + $0x1f4] sm:$0xf]
        %v3828 = vld [vmem:[#allocation11 + $0x1f8] sm:$0xf]
        %v3829 = vld [vmem:[#allocation11 + $0x1fc] sm:$0xf]
        %v3854 = vunpack.c.l.b16 %v621
        %v3855 = vunpack.c.l.b16 %v622
        %v3856 = vunpack.c.l.b16 %v623
        %v3857 = vunpack.c.l.b16 %v626
        %v3858 = vunpack.c.l.b16 %v627
        %v3859 = vunpack.c.l.b16 %v628
        %v3860 = vunpack.c.l.b16 %v631
        %v3861 = vunpack.c.l.b16 %v632
        %v3862 = vunpack.c.l.b16 %v633
        %v3863 = vunpack.c.l.b16 %v636
        %v3864 = vunpack.c.l.b16 %v637
        %v3865 = vunpack.c.l.b16 %v638
        %v3866 = vunpack.c.l.b16 %v641
        %v3867 = vunpack.c.l.b16 %v646
        %v3868 = vunpack.c.l.b16 %v651
        %v3869 = vunpack.c.l.b16 %v656
        %v3870 = vunpack.c.l.b16 %v661
        %v3871 = vunpack.c.l.b16 %v666
        %v3872 = vunpack.c.l.b16 %v671
        %v3873 = vunpack.c.l.b16 %v676
        %v3874 = vunpack.c.l.b16 %v681
        %v3875 = vunpack.c.l.b16 %v686
        %v3876 = vunpack.c.l.b16 %v691
        %v3877 = vunpack.c.l.b16 %v696
        %v3878 = vpack.c.b16 %v3855, %v3854
        %v3879 = vpack.c.b16 %v3856, %v3856
        %v3880 = vpack.c.b16 %v3858, %v3857
        %v3881 = vpack.c.b16 %v3859, %v3859
        %v3882 = vpack.c.b16 %v3861, %v3860
        %v3883 = vpack.c.b16 %v3862, %v3862
        %v3884 = vpack.c.b16 %v3864, %v3863
        %v3885 = vpack.c.b16 %v3865, %v3865
        %v3886 = vpack.c.b16 %v2113, %v3866
        %v3887 = vpack.c.b16 %v2114, %v2114
        %v3888 = vpack.c.b16 %v2115, %v3867
        %v3889 = vpack.c.b16 %v2116, %v2116
        %v3890 = vpack.c.b16 %v2117, %v3868
        %v3891 = vpack.c.b16 %v2118, %v2118
        %v3892 = vpack.c.b16 %v2119, %v3869
        %v3893 = vpack.c.b16 %v2120, %v2120
        %v3894 = vpack.c.b16 %v2121, %v3870
        %v3895 = vpack.c.b16 %v2122, %v2122
        %v3896 = vpack.c.b16 %v2123, %v3871
        %v3897 = vpack.c.b16 %v2124, %v2124
        %v3898 = vpack.c.b16 %v2125, %v3872
        %v3899 = vpack.c.b16 %v2126, %v2126
        %v3900 = vpack.c.b16 %v2127, %v3873
        %v3901 = vpack.c.b16 %v2128, %v2128
        %v3902 = vpack.c.b16 %v2129, %v3874
        %v3903 = vpack.c.b16 %v2130, %v2130
        %v3904 = vpack.c.b16 %v2131, %v3875
        %v3905 = vpack.c.b16 %v2132, %v2132
        %v3906 = vpack.c.b16 %v2133, %v3876
        %v3907 = vpack.c.b16 %v2134, %v2134
        %v3908 = vpack.c.b16 %v2135, %v3877
        %v3909 = vpack.c.b16 %v2136, %v2136
        %v3914 = vunpack.c.l.b16 %v624
        %v3915 = vunpack.c.l.b16 %v629
        %v3916 = vunpack.c.l.b16 %v634
        %v3917 = vunpack.c.l.b16 %v639
        %v3918 = vpack.c.b16 %v3856, %v3855
        %v3919 = vpack.c.b16 %v3914, %v3914
        %v3920 = vpack.c.b16 %v3859, %v3858
        %v3921 = vpack.c.b16 %v3915, %v3915
        %v3922 = vpack.c.b16 %v3862, %v3861
        %v3923 = vpack.c.b16 %v3916, %v3916
        %v3924 = vpack.c.b16 %v3865, %v3864
        %v3925 = vpack.c.b16 %v3917, %v3917
        %v3942 = vunpack.c.l.b16 %v625
        %v3943 = vunpack.c.l.b16 %v630
        %v3944 = vunpack.c.l.b16 %v635
        %v3945 = vunpack.c.l.b16 %v640
        %v3946 = vunpack.c.l.b16 %v645
        %v3947 = vunpack.c.l.b16 %v650
        %v3948 = vunpack.c.l.b16 %v655
        %v3949 = vunpack.c.l.b16 %v660
        %v3950 = vunpack.c.l.b16 %v665
        %v3951 = vunpack.c.l.b16 %v670
        %v3952 = vunpack.c.l.b16 %v675
        %v3953 = vunpack.c.l.b16 %v680
        %v3954 = vunpack.c.l.b16 %v685
        %v3955 = vunpack.c.l.b16 %v690
        %v3956 = vunpack.c.l.b16 %v695
        %v3957 = vunpack.c.l.b16 %v700
        %v3958 = vpack.c.b16 %v3914, %v3856
        %v3959 = vpack.c.b16 %v3942, %v3942
        %v3960 = vpack.c.b16 %v3915, %v3859
        %v3961 = vpack.c.b16 %v3943, %v3943
        %v3962 = vpack.c.b16 %v3916, %v3862
        %v3963 = vpack.c.b16 %v3944, %v3944
        %v3964 = vpack.c.b16 %v3917, %v3865
        %v3965 = vpack.c.b16 %v3945, %v3945
        %v3966 = vpack.c.b16 %v3946, %v3946
        %v3967 = vpack.c.b16 %v3947, %v3947
        %v3968 = vpack.c.b16 %v3948, %v3948
        %v3969 = vpack.c.b16 %v3949, %v3949
        %v3970 = vpack.c.b16 %v3950, %v3950
        %v3971 = vpack.c.b16 %v3951, %v3951
        %v3972 = vpack.c.b16 %v3952, %v3952
        %v3973 = vpack.c.b16 %v3953, %v3953
        %v3974 = vpack.c.b16 %v3954, %v3954
        %v3975 = vpack.c.b16 %v3955, %v3955
        %v3976 = vpack.c.b16 %v3956, %v3956
        %v3977 = vpack.c.b16 %v3957, %v3957
        %v3978 = vrot.slane %v3878, 2
        %v3979 = vrot.slane %v3879, 2
        %v3980 = vsel %vm1115, %v3978, %v3979
        %v3981 = vrot.slane %v3918, 2
        %v3982 = vrot.slane %v3919, 2
        %v3983 = vsel %vm1115, %v3981, %v3982
        %v3984 = vrot.slane %v3958, 2
        %v3985 = vrot.slane %v3959, 2
        %v3986 = vsel %vm1115, %v3984, %v3985
        %v3987 = vrot.slane %v3880, 2
        %v3988 = vrot.slane %v3881, 2
        %v3989 = vsel %vm1115, %v3987, %v3988
        %v3990 = vrot.slane %v3920, 2
        %v3991 = vrot.slane %v3921, 2
        %v3992 = vsel %vm1115, %v3990, %v3991
        %v3993 = vrot.slane %v3960, 2
        %v3994 = vrot.slane %v3961, 2
        %v3995 = vsel %vm1115, %v3993, %v3994
        %v3996 = vrot.slane %v3882, 2
        %v3997 = vrot.slane %v3883, 2
        %v3998 = vsel %vm1115, %v3996, %v3997
        %v3999 = vrot.slane %v3922, 2
        %v4000 = vrot.slane %v3923, 2
        %v4001 = vsel %vm1115, %v3999, %v4000
        %v4002 = vrot.slane %v3962, 2
        %v4003 = vrot.slane %v3963, 2
        %v4004 = vsel %vm1115, %v4002, %v4003
        %v4005 = vrot.slane %v3884, 2
        %v4006 = vrot.slane %v3885, 2
        %v4007 = vsel %vm1115, %v4005, %v4006
        %v4008 = vrot.slane %v3924, 2
        %v4009 = vrot.slane %v3925, 2
        %v4010 = vsel %vm1115, %v4008, %v4009
        %v4011 = vrot.slane %v3964, 2
        %v4012 = vrot.slane %v3965, 2
        %v4013 = vsel %vm1115, %v4011, %v4012
        %v4014 = vrot.slane %v3886, 2
        %v4015 = vrot.slane %v3887, 2
        %v4016 = vsel %vm1115, %v4014, %v4015
        %v4017 = vrot.slane %v2277, 2
        %v4018 = vrot.slane %v3966, 2
        %v4019 = vsel %vm1115, %v4017, %v4018
        %v4020 = vrot.slane %v3888, 2
        %v4021 = vrot.slane %v3889, 2
        %v4022 = vsel %vm1115, %v4020, %v4021
        %v4023 = vrot.slane %v2278, 2
        %v4024 = vrot.slane %v3967, 2
        %v4025 = vsel %vm1115, %v4023, %v4024
        %v4026 = vrot.slane %v3890, 2
        %v4027 = vrot.slane %v3891, 2
        %v4028 = vsel %vm1115, %v4026, %v4027
        %v4029 = vrot.slane %v2279, 2
        %v4030 = vrot.slane %v3968, 2
        %v4031 = vsel %vm1115, %v4029, %v4030
        %v4032 = vrot.slane %v3892, 2
        %v4033 = vrot.slane %v3893, 2
        %v4034 = vsel %vm1115, %v4032, %v4033
        %v4035 = vrot.slane %v2280, 2
        %v4036 = vrot.slane %v3969, 2
        %v4037 = vsel %vm1115, %v4035, %v4036
        %v4038 = vrot.slane %v3894, 2
        %v4039 = vrot.slane %v3895, 2
        %v4040 = vsel %vm1115, %v4038, %v4039
        %v4041 = vrot.slane %v2281, 2
        %v4042 = vrot.slane %v3970, 2
        %v4043 = vsel %vm1115, %v4041, %v4042
        %v4044 = vrot.slane %v3896, 2
        %v4045 = vrot.slane %v3897, 2
        %v4046 = vsel %vm1115, %v4044, %v4045
        %v4047 = vrot.slane %v2282, 2
        %v4048 = vrot.slane %v3971, 2
        %v4049 = vsel %vm1115, %v4047, %v4048
        %v4050 = vrot.slane %v3898, 2
        %v4051 = vrot.slane %v3899, 2
        %v4052 = vsel %vm1115, %v4050, %v4051
        %v4053 = vrot.slane %v2283, 2
        %v4054 = vrot.slane %v3972, 2
        %v4055 = vsel %vm1115, %v4053, %v4054
        %v4056 = vrot.slane %v3900, 2
        %v4057 = vrot.slane %v3901, 2
        %v4058 = vsel %vm1115, %v4056, %v4057
        %v4059 = vrot.slane %v2284, 2
        %v4060 = vrot.slane %v3973, 2
        %v4061 = vsel %vm1115, %v4059, %v4060
        %v4062 = vrot.slane %v3902, 2
        %v4063 = vrot.slane %v3903, 2
        %v4064 = vsel %vm1115, %v4062, %v4063
        %v4065 = vrot.slane %v2285, 2
        %v4066 = vrot.slane %v3974, 2
        %v4067 = vsel %vm1115, %v4065, %v4066
        %v4068 = vrot.slane %v3904, 2
        %v4069 = vrot.slane %v3905, 2
        %v4070 = vsel %vm1115, %v4068, %v4069
        %v4071 = vrot.slane %v2286, 2
        %v4072 = vrot.slane %v3975, 2
        %v4073 = vsel %vm1115, %v4071, %v4072
        %v4074 = vrot.slane %v3906, 2
        %v4075 = vrot.slane %v3907, 2
        %v4076 = vsel %vm1115, %v4074, %v4075
        %v4077 = vrot.slane %v2287, 2
        %v4078 = vrot.slane %v3976, 2
        %v4079 = vsel %vm1115, %v4077, %v4078
        %v4080 = vrot.slane %v3908, 2
        %v4081 = vrot.slane %v3909, 2
        %v4082 = vsel %vm1115, %v4080, %v4081
        %v4083 = vrot.slane %v2288, 2
        %v4084 = vrot.slane %v3977, 2
        %v4085 = vsel %vm1115, %v4083, %v4084
        %v4170 = vunpack.c.l.b16 %v3702
        %v4171 = vunpack.c.l.b16 %v3703
        %v4172 = vunpack.c.l.b16 %v3704
        %v4173 = vunpack.c.l.b16 %v3705
        %v4174 = vunpack.c.l.b16 %v3706
        %v4175 = vunpack.c.l.b16 %v3707
        %v4176 = vunpack.c.l.b16 %v3708
        %v4177 = vunpack.c.l.b16 %v3709
        %v4178 = vunpack.c.l.b16 %v3710
        %v4179 = vunpack.c.l.b16 %v3711
        %v4180 = vunpack.c.l.b16 %v3712
        %v4181 = vunpack.c.l.b16 %v3713
        %v4182 = vunpack.c.l.b16 %v3714
        %v4183 = vunpack.c.l.b16 %v3715
        %v4184 = vunpack.c.l.b16 %v3716
        %v4185 = vunpack.c.l.b16 %v3717
        %v4186 = vunpack.c.l.b16 %v3718
        %v4187 = vunpack.c.l.b16 %v3719
        %v4188 = vunpack.c.l.b16 %v3720
        %v4189 = vunpack.c.l.b16 %v3721
        %v4190 = vunpack.c.l.b16 %v3722
        %v4191 = vunpack.c.l.b16 %v3723
        %v4192 = vunpack.c.l.b16 %v3724
        %v4193 = vunpack.c.l.b16 %v3725
        %v4194 = vunpack.c.l.b16 %v3726
        %v4195 = vunpack.c.l.b16 %v3727
        %v4196 = vunpack.c.l.b16 %v3728
        %v4197 = vunpack.c.l.b16 %v3729
        %v4198 = vunpack.c.l.b16 %v3730
        %v4199 = vunpack.c.l.b16 %v3731
        %v4200 = vunpack.c.l.b16 %v3732
        %v4201 = vunpack.c.l.b16 %v3733
        %v4202 = vunpack.c.l.b16 %v3734
        %v4203 = vunpack.c.l.b16 %v3735
        %v4204 = vunpack.c.l.b16 %v3736
        %v4205 = vunpack.c.l.b16 %v3737
        %v4206 = vunpack.c.l.b16 %v3738
        %v4207 = vunpack.c.l.b16 %v3739
        %v4208 = vunpack.c.l.b16 %v3740
        %v4209 = vunpack.c.l.b16 %v3741
        %v4210 = vunpack.c.l.b16 %v3742
        %v4211 = vunpack.c.l.b16 %v3743
        %v4212 = vunpack.c.l.b16 %v3744
        %v4213 = vunpack.c.l.b16 %v3745
        %v4214 = vunpack.c.l.b16 %v3746
        %v4215 = vunpack.c.l.b16 %v3747
        %v4216 = vunpack.c.l.b16 %v3748
        %v4217 = vunpack.c.l.b16 %v3749
        %v4218 = vpack.c.b16 %v4171, %v4170
        %v4219 = vpack.c.b16 %v4173, %v4172
        %v4220 = vpack.c.b16 %v4175, %v4174
        %v4221 = vpack.c.b16 %v4177, %v4176
        %v4222 = vpack.c.b16 %v4179, %v4178
        %v4223 = vpack.c.b16 %v4181, %v4180
        %v4224 = vpack.c.b16 %v4183, %v4182
        %v4225 = vpack.c.b16 %v4185, %v4184
        %v4226 = vpack.c.b16 %v4187, %v4186
        %v4227 = vpack.c.b16 %v4189, %v4188
        %v4228 = vpack.c.b16 %v4191, %v4190
        %v4229 = vpack.c.b16 %v4193, %v4192
        %v4230 = vpack.c.b16 %v4195, %v4194
        %v4231 = vpack.c.b16 %v4197, %v4196
        %v4232 = vpack.c.b16 %v4199, %v4198
        %v4233 = vpack.c.b16 %v4201, %v4200
        %v4234 = vpack.c.b16 %v4203, %v4202
        %v4235 = vpack.c.b16 %v4205, %v4204
        %v4236 = vpack.c.b16 %v4207, %v4206
        %v4237 = vpack.c.b16 %v4209, %v4208
        %v4238 = vpack.c.b16 %v4211, %v4210
        %v4239 = vpack.c.b16 %v4213, %v4212
        %v4240 = vpack.c.b16 %v4215, %v4214
        %v4241 = vpack.c.b16 %v4217, %v4216
        %4266 = vmatprep.subr.bf16.mxu0 0
        %4267 = vmatpush1.bf16.msra.mxu0 %v4225
        %4268 = vmatprep.subr.bf16.mxu0 0
        %4269 = vmatpush1.bf16.msra.mxu0 %v4224
        %4270 = vmatprep.subr.bf16.mxu0 0
        %4271 = vmatpush1.bf16.msra.mxu0 %v4223
        %4272 = vmatprep.subr.bf16.mxu0 0
        %4273 = vmatpush1.bf16.msra.mxu0 %v4222
        %4274 = vmatprep.subr.bf16.mxu0 0
        %4275 = vmatpush1.bf16.msra.mxu0 %v4221
        %4276 = vmatprep.subr.bf16.mxu0 0
        %4277 = vmatpush1.bf16.msra.mxu0 %v4220
        %4278 = vmatprep.subr.bf16.mxu0 0
        %4279 = vmatpush1.bf16.msra.mxu0 %v4219
        %4280 = vmatprep.subr.bf16.mxu0 0
        %4281 = vmatpush1.bf16.msra.mxu0 %v4218
        %4282 = vmatprep.subr.bf16.mxu0 0
        %4283 = vmatpush2.bf16.msra.mxu0 %v4233
        %4284 = vmatprep.subr.bf16.mxu0 0
        %4285 = vmatpush2.bf16.msra.mxu0 %v4232
        %4286 = vmatprep.subr.bf16.mxu0 0
        %4287 = vmatpush2.bf16.msra.mxu0 %v4231
        %4288 = vmatprep.subr.bf16.mxu0 0
        %4289 = vmatpush2.bf16.msra.mxu0 %v4230
        %4290 = vmatprep.subr.bf16.mxu0 0
        %4291 = vmatpush2.bf16.msra.mxu0 %v4229
        %4292 = vmatprep.subr.bf16.mxu0 0
        %4293 = vmatpush2.bf16.msra.mxu0 %v4228
        %4294 = vmatprep.subr.bf16.mxu0 0
        %4295 = vmatpush2.bf16.msra.mxu0 %v4227
        %4296 = vmatprep.subr.bf16.mxu0 0
        %4297 = vmatpush2.bf16.msra.mxu0 %v4226
        %4298 = vmatprep.mubr.bf16.mxu0 %v3983
        %4299 = vmatmul.mubr.bf16.gmra.mxu0 %v3980
        %v4300 = vpop.f32.mrf.mxu0
        %v4301 = vadd.f32 0.0, %v4300
        %v4302 = vpop.f32.mrf.mxu0
        %v4303 = vpop.f32.mrf.mxu0
        %v4304 = vadd.f32 0.0, %v4303
        %v4305 = vpop.f32.mrf.mxu0
        %4306 = vmatprep.mubr.bf16.mxu0 %v3992
        %4307 = vmatmul.mubr.bf16.gmra.mxu0 %v3989
        %v4308 = vpop.f32.mrf.mxu0
        %v4309 = vadd.f32 0.0, %v4308
        %v4310 = vpop.f32.mrf.mxu0
        %v4311 = vpop.f32.mrf.mxu0
        %v4312 = vadd.f32 0.0, %v4311
        %v4313 = vpop.f32.mrf.mxu0
        %4314 = vmatprep.mubr.bf16.mxu0 %v4001
        %4315 = vmatmul.mubr.bf16.gmra.mxu0 %v3998
        %v4316 = vpop.f32.mrf.mxu0
        %v4317 = vadd.f32 0.0, %v4316
        %v4318 = vpop.f32.mrf.mxu0
        %v4319 = vpop.f32.mrf.mxu0
        %v4320 = vadd.f32 0.0, %v4319
        %v4321 = vpop.f32.mrf.mxu0
        %4322 = vmatprep.mubr.bf16.mxu0 %v4010
        %4323 = vmatmul.mubr.bf16.gmra.mxu0 %v4007
        %v4324 = vpop.f32.mrf.mxu0
        %v4325 = vadd.f32 0.0, %v4324
        %v4326 = vpop.f32.mrf.mxu0
        %v4327 = vpop.f32.mrf.mxu0
        %v4328 = vadd.f32 0.0, %v4327
        %v4329 = vpop.f32.mrf.mxu0
        %4330 = vmatprep.mubr.bf16.mxu0 %v2215
        %4331 = vmatmul.mubr.bf16.gmra.mxu0 %v4016
        %v4332 = vpop.f32.mrf.mxu0
        %v4333 = vadd.f32 0.0, %v4332
        %v4334 = vpop.f32.mrf.mxu0
        %v4335 = vpop.f32.mrf.mxu0
        %v4336 = vadd.f32 0.0, %v4335
        %v4337 = vpop.f32.mrf.mxu0
        %4338 = vmatprep.mubr.bf16.mxu0 %v2218
        %4339 = vmatmul.mubr.bf16.gmra.mxu0 %v4022
        %v4340 = vpop.f32.mrf.mxu0
        %v4341 = vadd.f32 0.0, %v4340
        %v4342 = vpop.f32.mrf.mxu0
        %v4343 = vpop.f32.mrf.mxu0
        %v4344 = vadd.f32 0.0, %v4343
        %v4345 = vpop.f32.mrf.mxu0
        %4346 = vmatprep.mubr.bf16.mxu0 %v2221
        %4347 = vmatmul.mubr.bf16.gmra.mxu0 %v4028
        %v4348 = vpop.f32.mrf.mxu0
        %v4349 = vadd.f32 0.0, %v4348
        %v4350 = vpop.f32.mrf.mxu0
        %v4351 = vpop.f32.mrf.mxu0
        %v4352 = vadd.f32 0.0, %v4351
        %v4353 = vpop.f32.mrf.mxu0
        %4354 = vmatprep.mubr.bf16.mxu0 %v2224
        %4355 = vmatmul.mubr.bf16.gmra.mxu0 %v4034
        %v4356 = vpop.f32.mrf.mxu0
        %v4357 = vadd.f32 0.0, %v4356
        %v4358 = vpop.f32.mrf.mxu0
        %v4359 = vpop.f32.mrf.mxu0
        %v4360 = vadd.f32 0.0, %v4359
        %v4361 = vpop.f32.mrf.mxu0
        %4362 = vmatprep.mubr.bf16.mxu0 %v2227
        %4363 = vmatmul.mubr.bf16.gmra.mxu0 %v4040
        %v4364 = vpop.f32.mrf.mxu0
        %v4365 = vadd.f32 0.0, %v4364
        %v4366 = vpop.f32.mrf.mxu0
        %v4367 = vpop.f32.mrf.mxu0
        %v4368 = vadd.f32 0.0, %v4367
        %v4369 = vpop.f32.mrf.mxu0
        %4370 = vmatprep.mubr.bf16.mxu0 %v2230
        %4371 = vmatmul.mubr.bf16.gmra.mxu0 %v4046
        %v4372 = vpop.f32.mrf.mxu0
        %v4373 = vadd.f32 0.0, %v4372
        %v4374 = vpop.f32.mrf.mxu0
        %v4375 = vpop.f32.mrf.mxu0
        %v4376 = vadd.f32 0.0, %v4375
        %v4377 = vpop.f32.mrf.mxu0
        %4378 = vmatprep.mubr.bf16.mxu0 %v2233
        %4379 = vmatmul.mubr.bf16.gmra.mxu0 %v4052
        %v4380 = vpop.f32.mrf.mxu0
        %v4381 = vadd.f32 0.0, %v4380
        %v4382 = vpop.f32.mrf.mxu0
        %v4383 = vpop.f32.mrf.mxu0
        %v4384 = vadd.f32 0.0, %v4383
        %v4385 = vpop.f32.mrf.mxu0
        %4386 = vmatprep.mubr.bf16.mxu0 %v2236
        %4387 = vmatmul.mubr.bf16.gmra.mxu0 %v4058
        %v4388 = vpop.f32.mrf.mxu0
        %v4389 = vadd.f32 0.0, %v4388
        %v4390 = vpop.f32.mrf.mxu0
        %v4391 = vpop.f32.mrf.mxu0
        %v4392 = vadd.f32 0.0, %v4391
        %v4393 = vpop.f32.mrf.mxu0
        %4394 = vmatprep.mubr.bf16.mxu0 %v2239
        %4395 = vmatmul.mubr.bf16.gmra.mxu0 %v4064
        %v4396 = vpop.f32.mrf.mxu0
        %v4397 = vadd.f32 0.0, %v4396
        %v4398 = vpop.f32.mrf.mxu0
        %v4399 = vpop.f32.mrf.mxu0
        %v4400 = vadd.f32 0.0, %v4399
        %v4401 = vpop.f32.mrf.mxu0
        %4402 = vmatprep.mubr.bf16.mxu0 %v2242
        %4403 = vmatmul.mubr.bf16.gmra.mxu0 %v4070
        %v4404 = vpop.f32.mrf.mxu0
        %v4405 = vadd.f32 0.0, %v4404
        %v4406 = vpop.f32.mrf.mxu0
        %v4407 = vpop.f32.mrf.mxu0
        %v4408 = vadd.f32 0.0, %v4407
        %v4409 = vpop.f32.mrf.mxu0
        %4410 = vmatprep.mubr.bf16.mxu0 %v2245
        %4411 = vmatmul.mubr.bf16.gmra.mxu0 %v4076
        %v4412 = vpop.f32.mrf.mxu0
        %v4413 = vadd.f32 0.0, %v4412
        %v4414 = vpop.f32.mrf.mxu0
        %v4415 = vpop.f32.mrf.mxu0
        %v4416 = vadd.f32 0.0, %v4415
        %v4417 = vpop.f32.mrf.mxu0
        %4418 = vmatprep.mubr.bf16.mxu0 %v2248
        %4419 = vmatmul.mubr.bf16.gmra.mxu0 %v4082
        %v4420 = vpop.f32.mrf.mxu0
        %v4421 = vadd.f32 0.0, %v4420
        %v4422 = vpop.f32.mrf.mxu0
        %v4423 = vpop.f32.mrf.mxu0
        %v4424 = vadd.f32 0.0, %v4423
        %v4425 = vpop.f32.mrf.mxu0
        %4426 = vdwg.mxu0
        %4427 = vmatprep.subr.bf16.mxu0 0
        %4428 = vmatpush1.bf16.msra.mxu0 %v4241
        %4429 = vmatprep.subr.bf16.mxu0 0
        %4430 = vmatpush1.bf16.msra.mxu0 %v4240
        %4431 = vmatprep.subr.bf16.mxu0 0
        %4432 = vmatpush1.bf16.msra.mxu0 %v4239
        %4433 = vmatprep.subr.bf16.mxu0 0
        %4434 = vmatpush1.bf16.msra.mxu0 %v4238
        %4435 = vmatprep.subr.bf16.mxu0 0
        %4436 = vmatpush1.bf16.msra.mxu0 %v4237
        %4437 = vmatprep.subr.bf16.mxu0 0
        %4438 = vmatpush1.bf16.msra.mxu0 %v4236
        %4439 = vmatprep.subr.bf16.mxu0 0
        %4440 = vmatpush1.bf16.msra.mxu0 %v4235
        %4441 = vmatprep.subr.bf16.mxu0 0
        %4442 = vmatpush1.bf16.msra.mxu0 %v4234
        %4443 = vmatprep.subr.bf16.mxu0 0
        %4444 = vmatpush2.bf16.msra.mxu0 0
        %4445 = vmatprep.subr.bf16.mxu0 0
        %4446 = vmatpush2.bf16.msra.mxu0 0
        %4447 = vmatprep.subr.bf16.mxu0 0
        %4448 = vmatpush2.bf16.msra.mxu0 0
        %4449 = vmatprep.subr.bf16.mxu0 0
        %4450 = vmatpush2.bf16.msra.mxu0 0
        %4451 = vmatprep.subr.bf16.mxu0 0
        %4452 = vmatpush2.bf16.msra.mxu0 0
        %4453 = vmatprep.subr.bf16.mxu0 0
        %4454 = vmatpush2.bf16.msra.mxu0 0
        %4455 = vmatprep.subr.bf16.mxu0 0
        %4456 = vmatpush2.bf16.msra.mxu0 0
        %4457 = vmatprep.subr.bf16.mxu0 0
        %4458 = vmatpush2.bf16.msra.mxu0 0
        %4459 = vmatprep.mubr.bf16.mxu0 0
        %4460 = vmatmul.mubr.bf16.gmra.mxu0 %v3986
        %v4461 = vpop.f32.mrf.mxu0
        %v4462 = vadd.f32 %v4301, %v4461
        %v4463 = vpop.f32.mrf.mxu0
        %v4464 = vpop.f32.mrf.mxu0
        %v4465 = vadd.f32 %v4304, %v4464
        %v4466 = vpop.f32.mrf.mxu0
        %4467 = vmatprep.mubr.bf16.mxu0 0
        %4468 = vmatmul.mubr.bf16.gmra.mxu0 %v3995
        %v4469 = vpop.f32.mrf.mxu0
        %v4470 = vadd.f32 %v4309, %v4469
        %v4471 = vpop.f32.mrf.mxu0
        %v4472 = vpop.f32.mrf.mxu0
        %v4473 = vadd.f32 %v4312, %v4472
        %v4474 = vpop.f32.mrf.mxu0
        %4475 = vmatprep.mubr.bf16.mxu0 0
        %4476 = vmatmul.mubr.bf16.gmra.mxu0 %v4004
        %v4477 = vpop.f32.mrf.mxu0
        %v4478 = vadd.f32 %v4317, %v4477
        %v4479 = vpop.f32.mrf.mxu0
        %v4480 = vpop.f32.mrf.mxu0
        %v4481 = vadd.f32 %v4320, %v4480
        %v4482 = vpop.f32.mrf.mxu0
        %4483 = vmatprep.mubr.bf16.mxu0 0
        %4484 = vmatmul.mubr.bf16.gmra.mxu0 %v4013
        %v4485 = vpop.f32.mrf.mxu0
        %v4486 = vadd.f32 %v4325, %v4485
        %v4487 = vpop.f32.mrf.mxu0
        %v4488 = vpop.f32.mrf.mxu0
        %v4489 = vadd.f32 %v4328, %v4488
        %v4490 = vpop.f32.mrf.mxu0
        %4491 = vmatprep.mubr.bf16.mxu0 0
        %4492 = vmatmul.mubr.bf16.gmra.mxu0 %v4019
        %v4493 = vpop.f32.mrf.mxu0
        %v4494 = vadd.f32 %v4333, %v4493
        %v4495 = vpop.f32.mrf.mxu0
        %v4496 = vpop.f32.mrf.mxu0
        %v4497 = vadd.f32 %v4336, %v4496
        %v4498 = vpop.f32.mrf.mxu0
        %4499 = vmatprep.mubr.bf16.mxu0 0
        %4500 = vmatmul.mubr.bf16.gmra.mxu0 %v4025
        %v4501 = vpop.f32.mrf.mxu0
        %v4502 = vadd.f32 %v4341, %v4501
        %v4503 = vpop.f32.mrf.mxu0
        %v4504 = vpop.f32.mrf.mxu0
        %v4505 = vadd.f32 %v4344, %v4504
        %v4506 = vpop.f32.mrf.mxu0
        %4507 = vmatprep.mubr.bf16.mxu0 0
        %4508 = vmatmul.mubr.bf16.gmra.mxu0 %v4031
        %v4509 = vpop.f32.mrf.mxu0
        %v4510 = vadd.f32 %v4349, %v4509
        %v4511 = vpop.f32.mrf.mxu0
        %v4512 = vpop.f32.mrf.mxu0
        %v4513 = vadd.f32 %v4352, %v4512
        %v4514 = vpop.f32.mrf.mxu0
        %4515 = vmatprep.mubr.bf16.mxu0 0
        %4516 = vmatmul.mubr.bf16.gmra.mxu0 %v4037
        %v4517 = vpop.f32.mrf.mxu0
        %v4518 = vadd.f32 %v4357, %v4517
        %v4519 = vpop.f32.mrf.mxu0
        %v4520 = vpop.f32.mrf.mxu0
        %v4521 = vadd.f32 %v4360, %v4520
        %v4522 = vpop.f32.mrf.mxu0
        %4523 = vmatprep.mubr.bf16.mxu0 0
        %4524 = vmatmul.mubr.bf16.gmra.mxu0 %v4043
        %v4525 = vpop.f32.mrf.mxu0
        %v4526 = vadd.f32 %v4365, %v4525
        %v4527 = vpop.f32.mrf.mxu0
        %v4528 = vpop.f32.mrf.mxu0
        %v4529 = vadd.f32 %v4368, %v4528
        %v4530 = vpop.f32.mrf.mxu0
        %4531 = vmatprep.mubr.bf16.mxu0 0
        %4532 = vmatmul.mubr.bf16.gmra.mxu0 %v4049
        %v4533 = vpop.f32.mrf.mxu0
        %v4534 = vadd.f32 %v4373, %v4533
        %v4535 = vpop.f32.mrf.mxu0
        %v4536 = vpop.f32.mrf.mxu0
        %v4537 = vadd.f32 %v4376, %v4536
        %v4538 = vpop.f32.mrf.mxu0
        %4539 = vmatprep.mubr.bf16.mxu0 0
        %4540 = vmatmul.mubr.bf16.gmra.mxu0 %v4055
        %v4541 = vpop.f32.mrf.mxu0
        %v4542 = vadd.f32 %v4381, %v4541
        %v4543 = vpop.f32.mrf.mxu0
        %v4544 = vpop.f32.mrf.mxu0
        %v4545 = vadd.f32 %v4384, %v4544
        %v4546 = vpop.f32.mrf.mxu0
        %4547 = vmatprep.mubr.bf16.mxu0 0
        %4548 = vmatmul.mubr.bf16.gmra.mxu0 %v4061
        %v4549 = vpop.f32.mrf.mxu0
        %v4550 = vadd.f32 %v4389, %v4549
        %v4551 = vpop.f32.mrf.mxu0
        %v4552 = vpop.f32.mrf.mxu0
        %v4553 = vadd.f32 %v4392, %v4552
        %v4554 = vpop.f32.mrf.mxu0
        %4555 = vmatprep.mubr.bf16.mxu0 0
        %4556 = vmatmul.mubr.bf16.gmra.mxu0 %v4067
        %v4557 = vpop.f32.mrf.mxu0
        %v4558 = vadd.f32 %v4397, %v4557
        %v4559 = vpop.f32.mrf.mxu0
        %v4560 = vpop.f32.mrf.mxu0
        %v4561 = vadd.f32 %v4400, %v4560
        %v4562 = vpop.f32.mrf.mxu0
        %4563 = vmatprep.mubr.bf16.mxu0 0
        %4564 = vmatmul.mubr.bf16.gmra.mxu0 %v4073
        %v4565 = vpop.f32.mrf.mxu0
        %v4566 = vadd.f32 %v4405, %v4565
        %v4567 = vpop.f32.mrf.mxu0
        %v4568 = vpop.f32.mrf.mxu0
        %v4569 = vadd.f32 %v4408, %v4568
        %v4570 = vpop.f32.mrf.mxu0
        %4571 = vmatprep.mubr.bf16.mxu0 0
        %4572 = vmatmul.mubr.bf16.gmra.mxu0 %v4079
        %v4573 = vpop.f32.mrf.mxu0
        %v4574 = vadd.f32 %v4413, %v4573
        %v4575 = vpop.f32.mrf.mxu0
        %v4576 = vpop.f32.mrf.mxu0
        %v4577 = vadd.f32 %v4416, %v4576
        %v4578 = vpop.f32.mrf.mxu0
        %4579 = vmatprep.mubr.bf16.mxu0 0
        %4580 = vmatmul.mubr.bf16.gmra.mxu0 %v4085
        %v4581 = vpop.f32.mrf.mxu0
        %v4582 = vadd.f32 %v4421, %v4581
        %v4583 = vpop.f32.mrf.mxu0
        %v4584 = vpop.f32.mrf.mxu0
        %v4585 = vadd.f32 %v4424, %v4584
        %v4586 = vpop.f32.mrf.mxu0
        %4587 = vdwg.mxu0
        %v4588 = vadd.f32 %v1819, %v4462
        %v4589 = vadd.f32 %v1823, %v4465
        %v4590 = vadd.f32 %v1829, %v4470
        %v4591 = vadd.f32 %v1833, %v4473
        %v4592 = vadd.f32 %v1839, %v4478
        %v4593 = vadd.f32 %v1843, %v4481
        %v4594 = vadd.f32 %v1849, %v4486
        %v4595 = vadd.f32 %v1853, %v4489
        %v4596 = vadd.f32 %v1859, %v4494
        %v4597 = vadd.f32 %v1863, %v4497
        %v4598 = vadd.f32 %v1869, %v4502
        %v4599 = vadd.f32 %v1873, %v4505
        %v4600 = vadd.f32 %v1879, %v4510
        %v4601 = vadd.f32 %v1883, %v4513
        %v4602 = vadd.f32 %v1889, %v4518
        %v4603 = vadd.f32 %v1893, %v4521
        %v4604 = vadd.f32 %v1899, %v4526
        %v4605 = vadd.f32 %v1903, %v4529
        %v4606 = vadd.f32 %v1909, %v4534
        %v4607 = vadd.f32 %v1913, %v4537
        %v4608 = vadd.f32 %v1919, %v4542
        %v4609 = vadd.f32 %v1923, %v4545
        %v4610 = vadd.f32 %v1929, %v4550
        %v4611 = vadd.f32 %v1933, %v4553
        %v4612 = vadd.f32 %v1939, %v4558
        %v4613 = vadd.f32 %v1943, %v4561
        %v4614 = vadd.f32 %v1949, %v4566
        %v4615 = vadd.f32 %v1953, %v4569
        %v4616 = vadd.f32 %v1959, %v4574
        %v4617 = vadd.f32 %v1963, %v4577
        %v4618 = vadd.f32 %v1969, %v4582
        %v4619 = vadd.f32 %v1973, %v4585
        %v4628 = vunpack.c.l.b16 %v701
        %v4629 = vunpack.c.l.b16 %v706
        %v4630 = vunpack.c.l.b16 %v711
        %v4631 = vunpack.c.l.b16 %v716
        %v4632 = vunpack.c.l.b16 %v721
        %v4633 = vunpack.c.l.b16 %v726
        %v4634 = vunpack.c.l.b16 %v731
        %v4635 = vunpack.c.l.b16 %v736
        %v4636 = vpack.c.b16 %v2137, %v4628
        %v4637 = vpack.c.b16 %v2138, %v2138
        %v4638 = vpack.c.b16 %v2139, %v4629
        %v4639 = vpack.c.b16 %v2140, %v2140
        %v4640 = vpack.c.b16 %v2141, %v4630
        %v4641 = vpack.c.b16 %v2142, %v2142
        %v4642 = vpack.c.b16 %v2143, %v4631
        %v4643 = vpack.c.b16 %v2144, %v2144
        %v4644 = vpack.c.b16 %v2807, %v4632
        %v4645 = vpack.c.b16 %v2808, %v2808
        %v4646 = vpack.c.b16 %v2809, %v4633
        %v4647 = vpack.c.b16 %v2810, %v2810
        %v4648 = vpack.c.b16 %v2811, %v4634
        %v4649 = vpack.c.b16 %v2812, %v2812
        %v4650 = vpack.c.b16 %v2813, %v4635
        %v4651 = vpack.c.b16 %v2814, %v2814
        %v4660 = vunpack.c.l.b16 %v705
        %v4661 = vunpack.c.l.b16 %v710
        %v4662 = vunpack.c.l.b16 %v715
        %v4663 = vunpack.c.l.b16 %v720
        %v4664 = vunpack.c.l.b16 %v725
        %v4665 = vunpack.c.l.b16 %v730
        %v4666 = vunpack.c.l.b16 %v735
        %v4667 = vunpack.c.l.b16 %v740
        %v4668 = vpack.c.b16 %v4660, %v4660
        %v4669 = vpack.c.b16 %v4661, %v4661
        %v4670 = vpack.c.b16 %v4662, %v4662
        %v4671 = vpack.c.b16 %v4663, %v4663
        %v4672 = vpack.c.b16 %v4664, %v4664
        %v4673 = vpack.c.b16 %v4665, %v4665
        %v4674 = vpack.c.b16 %v4666, %v4666
        %v4675 = vpack.c.b16 %v4667, %v4667
        %v4676 = vrot.slane %v4636, 2
        %v4677 = vrot.slane %v4637, 2
        %v4678 = vsel %vm1115, %v4676, %v4677
        %v4679 = vrot.slane %v2289, 2
        %v4680 = vrot.slane %v4668, 2
        %v4681 = vsel %vm1115, %v4679, %v4680
        %v4682 = vrot.slane %v4638, 2
        %v4683 = vrot.slane %v4639, 2
        %v4684 = vsel %vm1115, %v4682, %v4683
        %v4685 = vrot.slane %v2290, 2
        %v4686 = vrot.slane %v4669, 2
        %v4687 = vsel %vm1115, %v4685, %v4686
        %v4688 = vrot.slane %v4640, 2
        %v4689 = vrot.slane %v4641, 2
        %v4690 = vsel %vm1115, %v4688, %v4689
        %v4691 = vrot.slane %v2291, 2
        %v4692 = vrot.slane %v4670, 2
        %v4693 = vsel %vm1115, %v4691, %v4692
        %v4694 = vrot.slane %v4642, 2
        %v4695 = vrot.slane %v4643, 2
        %v4696 = vsel %vm1115, %v4694, %v4695
        %v4697 = vrot.slane %v2292, 2
        %v4698 = vrot.slane %v4671, 2
        %v4699 = vsel %vm1115, %v4697, %v4698
        %v4700 = vrot.slane %v4644, 2
        %v4701 = vrot.slane %v4645, 2
        %v4702 = vsel %vm1115, %v4700, %v4701
        %v4703 = vrot.slane %v2827, 2
        %v4704 = vrot.slane %v4672, 2
        %v4705 = vsel %vm1115, %v4703, %v4704
        %v4706 = vrot.slane %v4646, 2
        %v4707 = vrot.slane %v4647, 2
        %v4708 = vsel %vm1115, %v4706, %v4707
        %v4709 = vrot.slane %v2828, 2
        %v4710 = vrot.slane %v4673, 2
        %v4711 = vsel %vm1115, %v4709, %v4710
        %v4712 = vrot.slane %v4648, 2
        %v4713 = vrot.slane %v4649, 2
        %v4714 = vsel %vm1115, %v4712, %v4713
        %v4715 = vrot.slane %v2829, 2
        %v4716 = vrot.slane %v4674, 2
        %v4717 = vsel %vm1115, %v4715, %v4716
        %v4718 = vrot.slane %v4650, 2
        %v4719 = vrot.slane %v4651, 2
        %v4720 = vsel %vm1115, %v4718, %v4719
        %v4721 = vrot.slane %v2830, 2
        %v4722 = vrot.slane %v4675, 2
        %v4723 = vsel %vm1115, %v4721, %v4722
        %v4772 = vunpack.c.l.b16 %v3750
        %v4773 = vunpack.c.l.b16 %v3751
        %v4774 = vunpack.c.l.b16 %v3752
        %v4775 = vunpack.c.l.b16 %v3753
        %v4776 = vunpack.c.l.b16 %v3754
        %v4777 = vunpack.c.l.b16 %v3755
        %v4778 = vunpack.c.l.b16 %v3756
        %v4779 = vunpack.c.l.b16 %v3757
        %v4780 = vunpack.c.l.b16 %v3758
        %v4781 = vunpack.c.l.b16 %v3759
        %v4782 = vunpack.c.l.b16 %v3760
        %v4783 = vunpack.c.l.b16 %v3761
        %v4784 = vunpack.c.l.b16 %v3762
        %v4785 = vunpack.c.l.b16 %v3763
        %v4786 = vunpack.c.l.b16 %v3764
        %v4787 = vunpack.c.l.b16 %v3765
        %v4788 = vunpack.c.l.b16 %v3766
        %v4789 = vunpack.c.l.b16 %v3767
        %v4790 = vunpack.c.l.b16 %v3768
        %v4791 = vunpack.c.l.b16 %v3769
        %v4792 = vunpack.c.l.b16 %v3770
        %v4793 = vunpack.c.l.b16 %v3771
        %v4794 = vunpack.c.l.b16 %v3772
        %v4795 = vunpack.c.l.b16 %v3773
        %v4796 = vunpack.c.l.b16 %v3774
        %v4797 = vunpack.c.l.b16 %v3775
        %v4798 = vunpack.c.l.b16 %v3776
        %v4799 = vunpack.c.l.b16 %v3777
        %v4800 = vunpack.c.l.b16 %v3778
        %v4801 = vunpack.c.l.b16 %v3779
        %v4802 = vunpack.c.l.b16 %v3780
        %v4803 = vunpack.c.l.b16 %v3781
        %v4804 = vpack.c.b16 %v4773, %v4772
        %v4805 = vpack.c.b16 %v4775, %v4774
        %v4806 = vpack.c.b16 %v4777, %v4776
        %v4807 = vpack.c.b16 %v4779, %v4778
        %v4808 = vpack.c.b16 %v4781, %v4780
        %v4809 = vpack.c.b16 %v4783, %v4782
        %v4810 = vpack.c.b16 %v4785, %v4784
        %v4811 = vpack.c.b16 %v4787, %v4786
        %v4812 = vpack.c.b16 %v4789, %v4788
        %v4813 = vpack.c.b16 %v4791, %v4790
        %v4814 = vpack.c.b16 %v4793, %v4792
        %v4815 = vpack.c.b16 %v4795, %v4794
        %v4816 = vpack.c.b16 %v4797, %v4796
        %v4817 = vpack.c.b16 %v4799, %v4798
        %v4818 = vpack.c.b16 %v4801, %v4800
        %v4819 = vpack.c.b16 %v4803, %v4802
        %4836 = vmatprep.subr.bf16.mxu0 0
        %4837 = vmatpush1.bf16.msra.mxu0 %v4811
        %4838 = vmatprep.subr.bf16.mxu0 0
        %4839 = vmatpush1.bf16.msra.mxu0 %v4810
        %4840 = vmatprep.subr.bf16.mxu0 0
        %4841 = vmatpush1.bf16.msra.mxu0 %v4809
        %4842 = vmatprep.subr.bf16.mxu0 0
        %4843 = vmatpush1.bf16.msra.mxu0 %v4808
        %4844 = vmatprep.subr.bf16.mxu0 0
        %4845 = vmatpush1.bf16.msra.mxu0 %v4807
        %4846 = vmatprep.subr.bf16.mxu0 0
        %4847 = vmatpush1.bf16.msra.mxu0 %v4806
        %4848 = vmatprep.subr.bf16.mxu0 0
        %4849 = vmatpush1.bf16.msra.mxu0 %v4805
        %4850 = vmatprep.subr.bf16.mxu0 0
        %4851 = vmatpush1.bf16.msra.mxu0 %v4804
        %4852 = vmatprep.subr.bf16.mxu0 0
        %4853 = vmatpush2.bf16.msra.mxu0 %v4819
        %4854 = vmatprep.subr.bf16.mxu0 0
        %4855 = vmatpush2.bf16.msra.mxu0 %v4818
        %4856 = vmatprep.subr.bf16.mxu0 0
        %4857 = vmatpush2.bf16.msra.mxu0 %v4817
        %4858 = vmatprep.subr.bf16.mxu0 0
        %4859 = vmatpush2.bf16.msra.mxu0 %v4816
        %4860 = vmatprep.subr.bf16.mxu0 0
        %4861 = vmatpush2.bf16.msra.mxu0 %v4815
        %4862 = vmatprep.subr.bf16.mxu0 0
        %4863 = vmatpush2.bf16.msra.mxu0 %v4814
        %4864 = vmatprep.subr.bf16.mxu0 0
        %4865 = vmatpush2.bf16.msra.mxu0 %v4813
        %4866 = vmatprep.subr.bf16.mxu0 0
        %4867 = vmatpush2.bf16.msra.mxu0 %v4812
        %4868 = vmatprep.mubr.bf16.mxu0 %v4043
        %4869 = vmatmul.mubr.bf16.gmra.mxu0 %v4040
        %v4870 = vpop.f32.mrf.mxu0
        %v4871 = vadd.f32 0.0, %v4870
        %v4872 = vpop.f32.mrf.mxu0
        %v4873 = vpop.f32.mrf.mxu0
        %v4874 = vadd.f32 0.0, %v4873
        %v4875 = vpop.f32.mrf.mxu0
        %4876 = vmatprep.mubr.bf16.mxu0 %v4049
        %4877 = vmatmul.mubr.bf16.gmra.mxu0 %v4046
        %v4878 = vpop.f32.mrf.mxu0
        %v4879 = vadd.f32 0.0, %v4878
        %v4880 = vpop.f32.mrf.mxu0
        %v4881 = vpop.f32.mrf.mxu0
        %v4882 = vadd.f32 0.0, %v4881
        %v4883 = vpop.f32.mrf.mxu0
        %4884 = vmatprep.mubr.bf16.mxu0 %v4055
        %4885 = vmatmul.mubr.bf16.gmra.mxu0 %v4052
        %v4886 = vpop.f32.mrf.mxu0
        %v4887 = vadd.f32 0.0, %v4886
        %v4888 = vpop.f32.mrf.mxu0
        %v4889 = vpop.f32.mrf.mxu0
        %v4890 = vadd.f32 0.0, %v4889
        %v4891 = vpop.f32.mrf.mxu0
        %4892 = vmatprep.mubr.bf16.mxu0 %v4061
        %4893 = vmatmul.mubr.bf16.gmra.mxu0 %v4058
        %v4894 = vpop.f32.mrf.mxu0
        %v4895 = vadd.f32 0.0, %v4894
        %v4896 = vpop.f32.mrf.mxu0
        %v4897 = vpop.f32.mrf.mxu0
        %v4898 = vadd.f32 0.0, %v4897
        %v4899 = vpop.f32.mrf.mxu0
        %4900 = vmatprep.mubr.bf16.mxu0 %v4067
        %4901 = vmatmul.mubr.bf16.gmra.mxu0 %v4064
        %v4902 = vpop.f32.mrf.mxu0
        %v4903 = vadd.f32 0.0, %v4902
        %v4904 = vpop.f32.mrf.mxu0
        %v4905 = vpop.f32.mrf.mxu0
        %v4906 = vadd.f32 0.0, %v4905
        %v4907 = vpop.f32.mrf.mxu0
        %4908 = vmatprep.mubr.bf16.mxu0 %v4073
        %4909 = vmatmul.mubr.bf16.gmra.mxu0 %v4070
        %v4910 = vpop.f32.mrf.mxu0
        %v4911 = vadd.f32 0.0, %v4910
        %v4912 = vpop.f32.mrf.mxu0
        %v4913 = vpop.f32.mrf.mxu0
        %v4914 = vadd.f32 0.0, %v4913
        %v4915 = vpop.f32.mrf.mxu0
        %4916 = vmatprep.mubr.bf16.mxu0 %v4079
        %4917 = vmatmul.mubr.bf16.gmra.mxu0 %v4076
        %v4918 = vpop.f32.mrf.mxu0
        %v4919 = vadd.f32 0.0, %v4918
        %v4920 = vpop.f32.mrf.mxu0
        %v4921 = vpop.f32.mrf.mxu0
        %v4922 = vadd.f32 0.0, %v4921
        %v4923 = vpop.f32.mrf.mxu0
        %4924 = vmatprep.mubr.bf16.mxu0 %v4085
        %4925 = vmatmul.mubr.bf16.gmra.mxu0 %v4082
        %v4926 = vpop.f32.mrf.mxu0
        %v4927 = vadd.f32 0.0, %v4926
        %v4928 = vpop.f32.mrf.mxu0
        %v4929 = vpop.f32.mrf.mxu0
        %v4930 = vadd.f32 0.0, %v4929
        %v4931 = vpop.f32.mrf.mxu0
        %4932 = vmatprep.mubr.bf16.mxu0 %v4681
        %4933 = vmatmul.mubr.bf16.gmra.mxu0 %v4678
        %v4934 = vpop.f32.mrf.mxu0
        %v4935 = vadd.f32 0.0, %v4934
        %v4936 = vpop.f32.mrf.mxu0
        %v4937 = vpop.f32.mrf.mxu0
        %v4938 = vadd.f32 0.0, %v4937
        %v4939 = vpop.f32.mrf.mxu0
        %4940 = vmatprep.mubr.bf16.mxu0 %v4687
        %4941 = vmatmul.mubr.bf16.gmra.mxu0 %v4684
        %v4942 = vpop.f32.mrf.mxu0
        %v4943 = vadd.f32 0.0, %v4942
        %v4944 = vpop.f32.mrf.mxu0
        %v4945 = vpop.f32.mrf.mxu0
        %v4946 = vadd.f32 0.0, %v4945
        %v4947 = vpop.f32.mrf.mxu0
        %4948 = vmatprep.mubr.bf16.mxu0 %v4693
        %4949 = vmatmul.mubr.bf16.gmra.mxu0 %v4690
        %v4950 = vpop.f32.mrf.mxu0
        %v4951 = vadd.f32 0.0, %v4950
        %v4952 = vpop.f32.mrf.mxu0
        %v4953 = vpop.f32.mrf.mxu0
        %v4954 = vadd.f32 0.0, %v4953
        %v4955 = vpop.f32.mrf.mxu0
        %4956 = vmatprep.mubr.bf16.mxu0 %v4699
        %4957 = vmatmul.mubr.bf16.gmra.mxu0 %v4696
        %v4958 = vpop.f32.mrf.mxu0
        %v4959 = vadd.f32 0.0, %v4958
        %v4960 = vpop.f32.mrf.mxu0
        %v4961 = vpop.f32.mrf.mxu0
        %v4962 = vadd.f32 0.0, %v4961
        %v4963 = vpop.f32.mrf.mxu0
        %4964 = vmatprep.mubr.bf16.mxu0 %v4705
        %4965 = vmatmul.mubr.bf16.gmra.mxu0 %v4702
        %v4966 = vpop.f32.mrf.mxu0
        %v4967 = vadd.f32 0.0, %v4966
        %v4968 = vpop.f32.mrf.mxu0
        %v4969 = vpop.f32.mrf.mxu0
        %v4970 = vadd.f32 0.0, %v4969
        %v4971 = vpop.f32.mrf.mxu0
        %4972 = vmatprep.mubr.bf16.mxu0 %v4711
        %4973 = vmatmul.mubr.bf16.gmra.mxu0 %v4708
        %v4974 = vpop.f32.mrf.mxu0
        %v4975 = vadd.f32 0.0, %v4974
        %v4976 = vpop.f32.mrf.mxu0
        %v4977 = vpop.f32.mrf.mxu0
        %v4978 = vadd.f32 0.0, %v4977
        %v4979 = vpop.f32.mrf.mxu0
        %4980 = vmatprep.mubr.bf16.mxu0 %v4717
        %4981 = vmatmul.mubr.bf16.gmra.mxu0 %v4714
        %v4982 = vpop.f32.mrf.mxu0
        %v4983 = vadd.f32 0.0, %v4982
        %v4984 = vpop.f32.mrf.mxu0
        %v4985 = vpop.f32.mrf.mxu0
        %v4986 = vadd.f32 0.0, %v4985
        %v4987 = vpop.f32.mrf.mxu0
        %4988 = vmatprep.mubr.bf16.mxu0 %v4723
        %4989 = vmatmul.mubr.bf16.gmra.mxu0 %v4720
        %v4990 = vpop.f32.mrf.mxu0
        %v4991 = vadd.f32 0.0, %v4990
        %v4992 = vpop.f32.mrf.mxu0
        %v4993 = vpop.f32.mrf.mxu0
        %v4994 = vadd.f32 0.0, %v4993
        %v4995 = vpop.f32.mrf.mxu0
        %4996 = vdwg.mxu0
        %v4997 = vadd.f32 %v4588, %v4871
        %v4998 = vadd.f32 %v4589, %v4874
        %v4999 = vadd.f32 %v4590, %v4879
        %v5000 = vadd.f32 %v4591, %v4882
        %v5001 = vadd.f32 %v4592, %v4887
        %v5002 = vadd.f32 %v4593, %v4890
        %v5003 = vadd.f32 %v4594, %v4895
        %v5004 = vadd.f32 %v4595, %v4898
        %v5005 = vadd.f32 %v4596, %v4903
        %v5006 = vadd.f32 %v4597, %v4906
        %v5007 = vadd.f32 %v4598, %v4911
        %v5008 = vadd.f32 %v4599, %v4914
        %v5009 = vadd.f32 %v4600, %v4919
        %v5010 = vadd.f32 %v4601, %v4922
        %v5011 = vadd.f32 %v4602, %v4927
        %v5012 = vadd.f32 %v4603, %v4930
        %v5013 = vadd.f32 %v4604, %v4935
        %v5014 = vadd.f32 %v4605, %v4938
        %v5015 = vadd.f32 %v4606, %v4943
        %v5016 = vadd.f32 %v4607, %v4946
        %v5017 = vadd.f32 %v4608, %v4951
        %v5018 = vadd.f32 %v4609, %v4954
        %v5019 = vadd.f32 %v4610, %v4959
        %v5020 = vadd.f32 %v4611, %v4962
        %v5021 = vadd.f32 %v4612, %v4967
        %v5022 = vadd.f32 %v4613, %v4970
        %v5023 = vadd.f32 %v4614, %v4975
        %v5024 = vadd.f32 %v4615, %v4978
        %v5025 = vadd.f32 %v4616, %v4983
        %v5026 = vadd.f32 %v4617, %v4986
        %v5027 = vadd.f32 %v4618, %v4991
        %v5028 = vadd.f32 %v4619, %v4994
        %v5045 = vunpack.c.l.b16 %v741
        %v5046 = vunpack.c.l.b16 %v746
        %v5047 = vunpack.c.l.b16 %v751
        %v5048 = vunpack.c.l.b16 %v756
        %v5049 = vunpack.c.l.b16 %v761
        %v5050 = vunpack.c.l.b16 %v762
        %v5051 = vunpack.c.l.b16 %v763
        %v5052 = vunpack.c.l.b16 %v766
        %v5053 = vunpack.c.l.b16 %v767
        %v5054 = vunpack.c.l.b16 %v768
        %v5055 = vunpack.c.l.b16 %v771
        %v5056 = vunpack.c.l.b16 %v772
        %v5057 = vunpack.c.l.b16 %v773
        %v5058 = vunpack.c.l.b16 %v776
        %v5059 = vunpack.c.l.b16 %v777
        %v5060 = vunpack.c.l.b16 %v778
        %v5061 = vpack.c.b16 %v3132, %v5045
        %v5062 = vpack.c.b16 %v3133, %v3133
        %v5063 = vpack.c.b16 %v3134, %v5046
        %v5064 = vpack.c.b16 %v3135, %v3135
        %v5065 = vpack.c.b16 %v3136, %v5047
        %v5066 = vpack.c.b16 %v3137, %v3137
        %v5067 = vpack.c.b16 %v3138, %v5048
        %v5068 = vpack.c.b16 %v3139, %v3139
        %v5069 = vpack.c.b16 %v5050, %v5049
        %v5070 = vpack.c.b16 %v5051, %v5051
        %v5071 = vpack.c.b16 %v5053, %v5052
        %v5072 = vpack.c.b16 %v5054, %v5054
        %v5073 = vpack.c.b16 %v5056, %v5055
        %v5074 = vpack.c.b16 %v5057, %v5057
        %v5075 = vpack.c.b16 %v5059, %v5058
        %v5076 = vpack.c.b16 %v5060, %v5060
        %v5081 = vunpack.c.l.b16 %v764
        %v5082 = vunpack.c.l.b16 %v769
        %v5083 = vunpack.c.l.b16 %v774
        %v5084 = vunpack.c.l.b16 %v779
        %v5085 = vpack.c.b16 %v5051, %v5050
        %v5086 = vpack.c.b16 %v5081, %v5081
        %v5087 = vpack.c.b16 %v5054, %v5053
        %v5088 = vpack.c.b16 %v5082, %v5082
        %v5089 = vpack.c.b16 %v5057, %v5056
        %v5090 = vpack.c.b16 %v5083, %v5083
        %v5091 = vpack.c.b16 %v5060, %v5059
        %v5092 = vpack.c.b16 %v5084, %v5084
        %v5101 = vunpack.c.l.b16 %v745
        %v5102 = vunpack.c.l.b16 %v750
        %v5103 = vunpack.c.l.b16 %v755
        %v5104 = vunpack.c.l.b16 %v760
        %v5105 = vunpack.c.l.b16 %v765
        %v5106 = vunpack.c.l.b16 %v770
        %v5107 = vunpack.c.l.b16 %v775
        %v5108 = vunpack.c.l.b16 %v780
        %v5109 = vpack.c.b16 %v5101, %v5101
        %v5110 = vpack.c.b16 %v5102, %v5102
        %v5111 = vpack.c.b16 %v5103, %v5103
        %v5112 = vpack.c.b16 %v5104, %v5104
        %v5113 = vpack.c.b16 %v5081, %v5051
        %v5114 = vpack.c.b16 %v5105, %v5105
        %v5115 = vpack.c.b16 %v5082, %v5054
        %v5116 = vpack.c.b16 %v5106, %v5106
        %v5117 = vpack.c.b16 %v5083, %v5057
        %v5118 = vpack.c.b16 %v5107, %v5107
        %v5119 = vpack.c.b16 %v5084, %v5060
        %v5120 = vpack.c.b16 %v5108, %v5108
        %v5121 = vrot.slane %v5061, 2
        %v5122 = vrot.slane %v5062, 2
        %v5123 = vsel %vm1115, %v5121, %v5122
        %v5124 = vrot.slane %v3196, 2
        %v5125 = vrot.slane %v5109, 2
        %v5126 = vsel %vm1115, %v5124, %v5125
        %v5127 = vrot.slane %v5063, 2
        %v5128 = vrot.slane %v5064, 2
        %v5129 = vsel %vm1115, %v5127, %v5128
        %v5130 = vrot.slane %v3197, 2
        %v5131 = vrot.slane %v5110, 2
        %v5132 = vsel %vm1115, %v5130, %v5131
        %v5133 = vrot.slane %v5065, 2
        %v5134 = vrot.slane %v5066, 2
        %v5135 = vsel %vm1115, %v5133, %v5134
        %v5136 = vrot.slane %v3198, 2
        %v5137 = vrot.slane %v5111, 2
        %v5138 = vsel %vm1115, %v5136, %v5137
        %v5139 = vrot.slane %v5067, 2
        %v5140 = vrot.slane %v5068, 2
        %v5141 = vsel %vm1115, %v5139, %v5140
        %v5142 = vrot.slane %v3199, 2
        %v5143 = vrot.slane %v5112, 2
        %v5144 = vsel %vm1115, %v5142, %v5143
        %v5145 = vrot.slane %v5069, 2
        %v5146 = vrot.slane %v5070, 2
        %v5147 = vsel %vm1115, %v5145, %v5146
        %v5148 = vrot.slane %v5085, 2
        %v5149 = vrot.slane %v5086, 2
        %v5150 = vsel %vm1115, %v5148, %v5149
        %v5151 = vrot.slane %v5113, 2
        %v5152 = vrot.slane %v5114, 2
        %v5153 = vsel %vm1115, %v5151, %v5152
        %v5154 = vrot.slane %v5071, 2
        %v5155 = vrot.slane %v5072, 2
        %v5156 = vsel %vm1115, %v5154, %v5155
        %v5157 = vrot.slane %v5087, 2
        %v5158 = vrot.slane %v5088, 2
        %v5159 = vsel %vm1115, %v5157, %v5158
        %v5160 = vrot.slane %v5115, 2
        %v5161 = vrot.slane %v5116, 2
        %v5162 = vsel %vm1115, %v5160, %v5161
        %v5163 = vrot.slane %v5073, 2
        %v5164 = vrot.slane %v5074, 2
        %v5165 = vsel %vm1115, %v5163, %v5164
        %v5166 = vrot.slane %v5089, 2
        %v5167 = vrot.slane %v5090, 2
        %v5168 = vsel %vm1115, %v5166, %v5167
        %v5169 = vrot.slane %v5117, 2
        %v5170 = vrot.slane %v5118, 2
        %v5171 = vsel %vm1115, %v5169, %v5170
        %v5172 = vrot.slane %v5075, 2
        %v5173 = vrot.slane %v5076, 2
        %v5174 = vsel %vm1115, %v5172, %v5173
        %v5175 = vrot.slane %v5091, 2
        %v5176 = vrot.slane %v5092, 2
        %v5177 = vsel %vm1115, %v5175, %v5176
        %v5178 = vrot.slane %v5119, 2
        %v5179 = vrot.slane %v5120, 2
        %v5180 = vsel %vm1115, %v5178, %v5179
        %v5249 = vunpack.c.l.b16 %v3782
        %v5250 = vunpack.c.l.b16 %v3783
        %v5251 = vunpack.c.l.b16 %v3784
        %v5252 = vunpack.c.l.b16 %v3785
        %v5253 = vunpack.c.l.b16 %v3786
        %v5254 = vunpack.c.l.b16 %v3787
        %v5255 = vunpack.c.l.b16 %v3788
        %v5256 = vunpack.c.l.b16 %v3789
        %v5257 = vunpack.c.l.b16 %v3790
        %v5258 = vunpack.c.l.b16 %v3791
        %v5259 = vunpack.c.l.b16 %v3792
        %v5260 = vunpack.c.l.b16 %v3793
        %v5261 = vunpack.c.l.b16 %v3794
        %v5262 = vunpack.c.l.b16 %v3795
        %v5263 = vunpack.c.l.b16 %v3796
        %v5264 = vunpack.c.l.b16 %v3797
        %v5265 = vunpack.c.l.b16 %v3798
        %v5266 = vunpack.c.l.b16 %v3799
        %v5267 = vunpack.c.l.b16 %v3800
        %v5268 = vunpack.c.l.b16 %v3801
        %v5269 = vunpack.c.l.b16 %v3802
        %v5270 = vunpack.c.l.b16 %v3803
        %v5271 = vunpack.c.l.b16 %v3804
        %v5272 = vunpack.c.l.b16 %v3805
        %v5273 = vunpack.c.l.b16 %v3806
        %v5274 = vunpack.c.l.b16 %v3807
        %v5275 = vunpack.c.l.b16 %v3808
        %v5276 = vunpack.c.l.b16 %v3809
        %v5277 = vunpack.c.l.b16 %v3810
        %v5278 = vunpack.c.l.b16 %v3811
        %v5279 = vunpack.c.l.b16 %v3812
        %v5280 = vunpack.c.l.b16 %v3813
        %v5281 = vunpack.c.l.b16 %v3814
        %v5282 = vunpack.c.l.b16 %v3815
        %v5283 = vunpack.c.l.b16 %v3816
        %v5284 = vunpack.c.l.b16 %v3817
        %v5285 = vunpack.c.l.b16 %v3818
        %v5286 = vunpack.c.l.b16 %v3819
        %v5287 = vunpack.c.l.b16 %v3820
        %v5288 = vunpack.c.l.b16 %v3821
        %v5289 = vunpack.c.l.b16 %v3822
        %v5290 = vunpack.c.l.b16 %v3823
        %v5291 = vunpack.c.l.b16 %v3824
        %v5292 = vunpack.c.l.b16 %v3825
        %v5293 = vunpack.c.l.b16 %v3826
        %v5294 = vunpack.c.l.b16 %v3827
        %v5295 = vunpack.c.l.b16 %v3828
        %v5296 = vunpack.c.l.b16 %v3829
        %v5297 = vpack.c.b16 %v5250, %v5249
        %v5298 = vpack.c.b16 %v5252, %v5251
        %v5299 = vpack.c.b16 %v5254, %v5253
        %v5300 = vpack.c.b16 %v5256, %v5255
        %v5301 = vpack.c.b16 %v5258, %v5257
        %v5302 = vpack.c.b16 %v5260, %v5259
        %v5303 = vpack.c.b16 %v5262, %v5261
        %v5304 = vpack.c.b16 %v5264, %v5263
        %v5305 = vpack.c.b16 %v5266, %v5265
        %v5306 = vpack.c.b16 %v5268, %v5267
        %v5307 = vpack.c.b16 %v5270, %v5269
        %v5308 = vpack.c.b16 %v5272, %v5271
        %v5309 = vpack.c.b16 %v5274, %v5273
        %v5310 = vpack.c.b16 %v5276, %v5275
        %v5311 = vpack.c.b16 %v5278, %v5277
        %v5312 = vpack.c.b16 %v5280, %v5279
        %v5313 = vpack.c.b16 %v5282, %v5281
        %v5314 = vpack.c.b16 %v5284, %v5283
        %v5315 = vpack.c.b16 %v5286, %v5285
        %v5316 = vpack.c.b16 %v5288, %v5287
        %v5317 = vpack.c.b16 %v5290, %v5289
        %v5318 = vpack.c.b16 %v5292, %v5291
        %v5319 = vpack.c.b16 %v5294, %v5293
        %v5320 = vpack.c.b16 %v5296, %v5295
        %5345 = vmatprep.subr.bf16.mxu0 0
        %5346 = vmatpush1.bf16.msra.mxu0 %v5304
        %5347 = vmatprep.subr.bf16.mxu0 0
        %5348 = vmatpush1.bf16.msra.mxu0 %v5303
        %5349 = vmatprep.subr.bf16.mxu0 0
        %5350 = vmatpush1.bf16.msra.mxu0 %v5302
        %5351 = vmatprep.subr.bf16.mxu0 0
        %5352 = vmatpush1.bf16.msra.mxu0 %v5301
        %5353 = vmatprep.subr.bf16.mxu0 0
        %5354 = vmatpush1.bf16.msra.mxu0 %v5300
        %5355 = vmatprep.subr.bf16.mxu0 0
        %5356 = vmatpush1.bf16.msra.mxu0 %v5299
        %5357 = vmatprep.subr.bf16.mxu0 0
        %5358 = vmatpush1.bf16.msra.mxu0 %v5298
        %5359 = vmatprep.subr.bf16.mxu0 0
        %5360 = vmatpush1.bf16.msra.mxu0 %v5297
        %5361 = vmatprep.subr.bf16.mxu0 0
        %5362 = vmatpush2.bf16.msra.mxu0 %v5312
        %5363 = vmatprep.subr.bf16.mxu0 0
        %5364 = vmatpush2.bf16.msra.mxu0 %v5311
        %5365 = vmatprep.subr.bf16.mxu0 0
        %5366 = vmatpush2.bf16.msra.mxu0 %v5310
        %5367 = vmatprep.subr.bf16.mxu0 0
        %5368 = vmatpush2.bf16.msra.mxu0 %v5309
        %5369 = vmatprep.subr.bf16.mxu0 0
        %5370 = vmatpush2.bf16.msra.mxu0 %v5308
        %5371 = vmatprep.subr.bf16.mxu0 0
        %5372 = vmatpush2.bf16.msra.mxu0 %v5307
        %5373 = vmatprep.subr.bf16.mxu0 0
        %5374 = vmatpush2.bf16.msra.mxu0 %v5306
        %5375 = vmatprep.subr.bf16.mxu0 0
        %5376 = vmatpush2.bf16.msra.mxu0 %v5305
        %5377 = vmatprep.mubr.bf16.mxu0 %v2251
        %5378 = vmatmul.mubr.bf16.gmra.mxu0 %v4678
        %v5379 = vpop.f32.mrf.mxu0
        %v5380 = vadd.f32 0.0, %v5379
        %v5381 = vpop.f32.mrf.mxu0
        %v5382 = vpop.f32.mrf.mxu0
        %v5383 = vadd.f32 0.0, %v5382
        %v5384 = vpop.f32.mrf.mxu0
        %5385 = vmatprep.mubr.bf16.mxu0 %v2254
        %5386 = vmatmul.mubr.bf16.gmra.mxu0 %v4684
        %v5387 = vpop.f32.mrf.mxu0
        %v5388 = vadd.f32 0.0, %v5387
        %v5389 = vpop.f32.mrf.mxu0
        %v5390 = vpop.f32.mrf.mxu0
        %v5391 = vadd.f32 0.0, %v5390
        %v5392 = vpop.f32.mrf.mxu0
        %5393 = vmatprep.mubr.bf16.mxu0 %v2257
        %5394 = vmatmul.mubr.bf16.gmra.mxu0 %v4690
        %v5395 = vpop.f32.mrf.mxu0
        %v5396 = vadd.f32 0.0, %v5395
        %v5397 = vpop.f32.mrf.mxu0
        %v5398 = vpop.f32.mrf.mxu0
        %v5399 = vadd.f32 0.0, %v5398
        %v5400 = vpop.f32.mrf.mxu0
        %5401 = vmatprep.mubr.bf16.mxu0 %v2260
        %5402 = vmatmul.mubr.bf16.gmra.mxu0 %v4696
        %v5403 = vpop.f32.mrf.mxu0
        %v5404 = vadd.f32 0.0, %v5403
        %v5405 = vpop.f32.mrf.mxu0
        %v5406 = vpop.f32.mrf.mxu0
        %v5407 = vadd.f32 0.0, %v5406
        %v5408 = vpop.f32.mrf.mxu0
        %5409 = vmatprep.mubr.bf16.mxu0 %v3166
        %5410 = vmatmul.mubr.bf16.gmra.mxu0 %v4702
        %v5411 = vpop.f32.mrf.mxu0
        %v5412 = vadd.f32 0.0, %v5411
        %v5413 = vpop.f32.mrf.mxu0
        %v5414 = vpop.f32.mrf.mxu0
        %v5415 = vadd.f32 0.0, %v5414
        %v5416 = vpop.f32.mrf.mxu0
        %5417 = vmatprep.mubr.bf16.mxu0 %v3169
        %5418 = vmatmul.mubr.bf16.gmra.mxu0 %v4708
        %v5419 = vpop.f32.mrf.mxu0
        %v5420 = vadd.f32 0.0, %v5419
        %v5421 = vpop.f32.mrf.mxu0
        %v5422 = vpop.f32.mrf.mxu0
        %v5423 = vadd.f32 0.0, %v5422
        %v5424 = vpop.f32.mrf.mxu0
        %5425 = vmatprep.mubr.bf16.mxu0 %v3172
        %5426 = vmatmul.mubr.bf16.gmra.mxu0 %v4714
        %v5427 = vpop.f32.mrf.mxu0
        %v5428 = vadd.f32 0.0, %v5427
        %v5429 = vpop.f32.mrf.mxu0
        %v5430 = vpop.f32.mrf.mxu0
        %v5431 = vadd.f32 0.0, %v5430
        %v5432 = vpop.f32.mrf.mxu0
        %5433 = vmatprep.mubr.bf16.mxu0 %v3175
        %5434 = vmatmul.mubr.bf16.gmra.mxu0 %v4720
        %v5435 = vpop.f32.mrf.mxu0
        %v5436 = vadd.f32 0.0, %v5435
        %v5437 = vpop.f32.mrf.mxu0
        %v5438 = vpop.f32.mrf.mxu0
        %v5439 = vadd.f32 0.0, %v5438
        %v5440 = vpop.f32.mrf.mxu0
        %5441 = vmatprep.mubr.bf16.mxu0 %v3178
        %5442 = vmatmul.mubr.bf16.gmra.mxu0 %v5123
        %v5443 = vpop.f32.mrf.mxu0
        %v5444 = vadd.f32 0.0, %v5443
        %v5445 = vpop.f32.mrf.mxu0
        %v5446 = vpop.f32.mrf.mxu0
        %v5447 = vadd.f32 0.0, %v5446
        %v5448 = vpop.f32.mrf.mxu0
        %5449 = vmatprep.mubr.bf16.mxu0 %v3181
        %5450 = vmatmul.mubr.bf16.gmra.mxu0 %v5129
        %v5451 = vpop.f32.mrf.mxu0
        %v5452 = vadd.f32 0.0, %v5451
        %v5453 = vpop.f32.mrf.mxu0
        %v5454 = vpop.f32.mrf.mxu0
        %v5455 = vadd.f32 0.0, %v5454
        %v5456 = vpop.f32.mrf.mxu0
        %5457 = vmatprep.mubr.bf16.mxu0 %v3184
        %5458 = vmatmul.mubr.bf16.gmra.mxu0 %v5135
        %v5459 = vpop.f32.mrf.mxu0
        %v5460 = vadd.f32 0.0, %v5459
        %v5461 = vpop.f32.mrf.mxu0
        %v5462 = vpop.f32.mrf.mxu0
        %v5463 = vadd.f32 0.0, %v5462
        %v5464 = vpop.f32.mrf.mxu0
        %5465 = vmatprep.mubr.bf16.mxu0 %v3187
        %5466 = vmatmul.mubr.bf16.gmra.mxu0 %v5141
        %v5467 = vpop.f32.mrf.mxu0
        %v5468 = vadd.f32 0.0, %v5467
        %v5469 = vpop.f32.mrf.mxu0
        %v5470 = vpop.f32.mrf.mxu0
        %v5471 = vadd.f32 0.0, %v5470
        %v5472 = vpop.f32.mrf.mxu0
        %5473 = vmatprep.mubr.bf16.mxu0 %v5150
        %5474 = vmatmul.mubr.bf16.gmra.mxu0 %v5147
        %v5475 = vpop.f32.mrf.mxu0
        %v5476 = vadd.f32 0.0, %v5475
        %v5477 = vpop.f32.mrf.mxu0
        %v5478 = vpop.f32.mrf.mxu0
        %v5479 = vadd.f32 0.0, %v5478
        %v5480 = vpop.f32.mrf.mxu0
        %5481 = vmatprep.mubr.bf16.mxu0 %v5159
        %5482 = vmatmul.mubr.bf16.gmra.mxu0 %v5156
        %v5483 = vpop.f32.mrf.mxu0
        %v5484 = vadd.f32 0.0, %v5483
        %v5485 = vpop.f32.mrf.mxu0
        %v5486 = vpop.f32.mrf.mxu0
        %v5487 = vadd.f32 0.0, %v5486
        %v5488 = vpop.f32.mrf.mxu0
        %5489 = vmatprep.mubr.bf16.mxu0 %v5168
        %5490 = vmatmul.mubr.bf16.gmra.mxu0 %v5165
        %v5491 = vpop.f32.mrf.mxu0
        %v5492 = vadd.f32 0.0, %v5491
        %v5493 = vpop.f32.mrf.mxu0
        %v5494 = vpop.f32.mrf.mxu0
        %v5495 = vadd.f32 0.0, %v5494
        %v5496 = vpop.f32.mrf.mxu0
        %5497 = vmatprep.mubr.bf16.mxu0 %v5177
        %5498 = vmatmul.mubr.bf16.gmra.mxu0 %v5174
        %v5499 = vpop.f32.mrf.mxu0
        %v5500 = vadd.f32 0.0, %v5499
        %v5501 = vpop.f32.mrf.mxu0
        %v5502 = vpop.f32.mrf.mxu0
        %v5503 = vadd.f32 0.0, %v5502
        %v5504 = vpop.f32.mrf.mxu0
        %5505 = vdwg.mxu0
        %5506 = vmatprep.subr.bf16.mxu0 0
        %5507 = vmatpush1.bf16.msra.mxu0 %v5320
        %5508 = vmatprep.subr.bf16.mxu0 0
        %5509 = vmatpush1.bf16.msra.mxu0 %v5319
        %5510 = vmatprep.subr.bf16.mxu0 0
        %5511 = vmatpush1.bf16.msra.mxu0 %v5318
        %5512 = vmatprep.subr.bf16.mxu0 0
        %5513 = vmatpush1.bf16.msra.mxu0 %v5317
        %5514 = vmatprep.subr.bf16.mxu0 0
        %5515 = vmatpush1.bf16.msra.mxu0 %v5316
        %5516 = vmatprep.subr.bf16.mxu0 0
        %5517 = vmatpush1.bf16.msra.mxu0 %v5315
        %5518 = vmatprep.subr.bf16.mxu0 0
        %5519 = vmatpush1.bf16.msra.mxu0 %v5314
        %5520 = vmatprep.subr.bf16.mxu0 0
        %5521 = vmatpush1.bf16.msra.mxu0 %v5313
        %5522 = vmatprep.subr.bf16.mxu0 0
        %5523 = vmatpush2.bf16.msra.mxu0 0
        %5524 = vmatprep.subr.bf16.mxu0 0
        %5525 = vmatpush2.bf16.msra.mxu0 0
        %5526 = vmatprep.subr.bf16.mxu0 0
        %5527 = vmatpush2.bf16.msra.mxu0 0
        %5528 = vmatprep.subr.bf16.mxu0 0
        %5529 = vmatpush2.bf16.msra.mxu0 0
        %5530 = vmatprep.subr.bf16.mxu0 0
        %5531 = vmatpush2.bf16.msra.mxu0 0
        %5532 = vmatprep.subr.bf16.mxu0 0
        %5533 = vmatpush2.bf16.msra.mxu0 0
        %5534 = vmatprep.subr.bf16.mxu0 0
        %5535 = vmatpush2.bf16.msra.mxu0 0
        %5536 = vmatprep.subr.bf16.mxu0 0
        %5537 = vmatpush2.bf16.msra.mxu0 0
        %5538 = vmatprep.mubr.bf16.mxu0 0
        %5539 = vmatmul.mubr.bf16.gmra.mxu0 %v4681
        %v5540 = vpop.f32.mrf.mxu0
        %v5541 = vadd.f32 %v5380, %v5540
        %v5542 = vpop.f32.mrf.mxu0
        %v5543 = vpop.f32.mrf.mxu0
        %v5544 = vadd.f32 %v5383, %v5543
        %v5545 = vpop.f32.mrf.mxu0
        %5546 = vmatprep.mubr.bf16.mxu0 0
        %5547 = vmatmul.mubr.bf16.gmra.mxu0 %v4687
        %v5548 = vpop.f32.mrf.mxu0
        %v5549 = vadd.f32 %v5388, %v5548
        %v5550 = vpop.f32.mrf.mxu0
        %v5551 = vpop.f32.mrf.mxu0
        %v5552 = vadd.f32 %v5391, %v5551
        %v5553 = vpop.f32.mrf.mxu0
        %5554 = vmatprep.mubr.bf16.mxu0 0
        %5555 = vmatmul.mubr.bf16.gmra.mxu0 %v4693
        %v5556 = vpop.f32.mrf.mxu0
        %v5557 = vadd.f32 %v5396, %v5556
        %v5558 = vpop.f32.mrf.mxu0
        %v5559 = vpop.f32.mrf.mxu0
        %v5560 = vadd.f32 %v5399, %v5559
        %v5561 = vpop.f32.mrf.mxu0
        %5562 = vmatprep.mubr.bf16.mxu0 0
        %5563 = vmatmul.mubr.bf16.gmra.mxu0 %v4699
        %v5564 = vpop.f32.mrf.mxu0
        %v5565 = vadd.f32 %v5404, %v5564
        %v5566 = vpop.f32.mrf.mxu0
        %v5567 = vpop.f32.mrf.mxu0
        %v5568 = vadd.f32 %v5407, %v5567
        %v5569 = vpop.f32.mrf.mxu0
        %5570 = vmatprep.mubr.bf16.mxu0 0
        %5571 = vmatmul.mubr.bf16.gmra.mxu0 %v4705
        %v5572 = vpop.f32.mrf.mxu0
        %v5573 = vadd.f32 %v5412, %v5572
        %v5574 = vpop.f32.mrf.mxu0
        %v5575 = vpop.f32.mrf.mxu0
        %v5576 = vadd.f32 %v5415, %v5575
        %v5577 = vpop.f32.mrf.mxu0
        %5578 = vmatprep.mubr.bf16.mxu0 0
        %5579 = vmatmul.mubr.bf16.gmra.mxu0 %v4711
        %v5580 = vpop.f32.mrf.mxu0
        %v5581 = vadd.f32 %v5420, %v5580
        %v5582 = vpop.f32.mrf.mxu0
        %v5583 = vpop.f32.mrf.mxu0
        %v5584 = vadd.f32 %v5423, %v5583
        %v5585 = vpop.f32.mrf.mxu0
        %5586 = vmatprep.mubr.bf16.mxu0 0
        %5587 = vmatmul.mubr.bf16.gmra.mxu0 %v4717
        %v5588 = vpop.f32.mrf.mxu0
        %v5589 = vadd.f32 %v5428, %v5588
        %v5590 = vpop.f32.mrf.mxu0
        %v5591 = vpop.f32.mrf.mxu0
        %v5592 = vadd.f32 %v5431, %v5591
        %v5593 = vpop.f32.mrf.mxu0
        %5594 = vmatprep.mubr.bf16.mxu0 0
        %5595 = vmatmul.mubr.bf16.gmra.mxu0 %v4723
        %v5596 = vpop.f32.mrf.mxu0
        %v5597 = vadd.f32 %v5436, %v5596
        %v5598 = vpop.f32.mrf.mxu0
        %v5599 = vpop.f32.mrf.mxu0
        %v5600 = vadd.f32 %v5439, %v5599
        %v5601 = vpop.f32.mrf.mxu0
        %5602 = vmatprep.mubr.bf16.mxu0 0
        %5603 = vmatmul.mubr.bf16.gmra.mxu0 %v5126
        %v5604 = vpop.f32.mrf.mxu0
        %v5605 = vadd.f32 %v5444, %v5604
        %v5606 = vpop.f32.mrf.mxu0
        %v5607 = vpop.f32.mrf.mxu0
        %v5608 = vadd.f32 %v5447, %v5607
        %v5609 = vpop.f32.mrf.mxu0
        %5610 = vmatprep.mubr.bf16.mxu0 0
        %5611 = vmatmul.mubr.bf16.gmra.mxu0 %v5132
        %v5612 = vpop.f32.mrf.mxu0
        %v5613 = vadd.f32 %v5452, %v5612
        %v5614 = vpop.f32.mrf.mxu0
        %v5615 = vpop.f32.mrf.mxu0
        %v5616 = vadd.f32 %v5455, %v5615
        %v5617 = vpop.f32.mrf.mxu0
        %5618 = vmatprep.mubr.bf16.mxu0 0
        %5619 = vmatmul.mubr.bf16.gmra.mxu0 %v5138
        %v5620 = vpop.f32.mrf.mxu0
        %v5621 = vadd.f32 %v5460, %v5620
        %v5622 = vpop.f32.mrf.mxu0
        %v5623 = vpop.f32.mrf.mxu0
        %v5624 = vadd.f32 %v5463, %v5623
        %v5625 = vpop.f32.mrf.mxu0
        %5626 = vmatprep.mubr.bf16.mxu0 0
        %5627 = vmatmul.mubr.bf16.gmra.mxu0 %v5144
        %v5628 = vpop.f32.mrf.mxu0
        %v5629 = vadd.f32 %v5468, %v5628
        %v5630 = vpop.f32.mrf.mxu0
        %v5631 = vpop.f32.mrf.mxu0
        %v5632 = vadd.f32 %v5471, %v5631
        %v5633 = vpop.f32.mrf.mxu0
        %5634 = vmatprep.mubr.bf16.mxu0 0
        %5635 = vmatmul.mubr.bf16.gmra.mxu0 %v5153
        %v5636 = vpop.f32.mrf.mxu0
        %v5637 = vadd.f32 %v5476, %v5636
        %v5638 = vpop.f32.mrf.mxu0
        %v5639 = vpop.f32.mrf.mxu0
        %v5640 = vadd.f32 %v5479, %v5639
        %v5641 = vpop.f32.mrf.mxu0
        %5642 = vmatprep.mubr.bf16.mxu0 0
        %5643 = vmatmul.mubr.bf16.gmra.mxu0 %v5162
        %v5644 = vpop.f32.mrf.mxu0
        %v5645 = vadd.f32 %v5484, %v5644
        %v5646 = vpop.f32.mrf.mxu0
        %v5647 = vpop.f32.mrf.mxu0
        %v5648 = vadd.f32 %v5487, %v5647
        %v5649 = vpop.f32.mrf.mxu0
        %5650 = vmatprep.mubr.bf16.mxu0 0
        %5651 = vmatmul.mubr.bf16.gmra.mxu0 %v5171
        %v5652 = vpop.f32.mrf.mxu0
        %v5653 = vadd.f32 %v5492, %v5652
        %v5654 = vpop.f32.mrf.mxu0
        %v5655 = vpop.f32.mrf.mxu0
        %v5656 = vadd.f32 %v5495, %v5655
        %v5657 = vpop.f32.mrf.mxu0
        %5658 = vmatprep.mubr.bf16.mxu0 0
        %5659 = vmatmul.mubr.bf16.gmra.mxu0 %v5180
        %v5660 = vpop.f32.mrf.mxu0
        %v5661 = vadd.f32 %v5500, %v5660
        %v5662 = vpop.f32.mrf.mxu0
        %v5663 = vpop.f32.mrf.mxu0
        %v5664 = vadd.f32 %v5503, %v5663
        %v5665 = vpop.f32.mrf.mxu0
        %5666 = vdwg.mxu0
        %v5667 = vadd.f32 %v4997, %v5541
        %v5668 = vadd.f32 %v4998, %v5544
        %v5669 = vadd.f32 %v4999, %v5549
        %v5670 = vadd.f32 %v5000, %v5552
        %v5671 = vadd.f32 %v5001, %v5557
        %v5672 = vadd.f32 %v5002, %v5560
        %v5673 = vadd.f32 %v5003, %v5565
        %v5674 = vadd.f32 %v5004, %v5568
        %v5675 = vadd.f32 %v5005, %v5573
        %v5676 = vadd.f32 %v5006, %v5576
        %v5677 = vadd.f32 %v5007, %v5581
        %v5678 = vadd.f32 %v5008, %v5584
        %v5679 = vadd.f32 %v5009, %v5589
        %v5680 = vadd.f32 %v5010, %v5592
        %v5681 = vadd.f32 %v5011, %v5597
        %v5682 = vadd.f32 %v5012, %v5600
        %v5683 = vadd.f32 %v5013, %v5605
        %v5684 = vadd.f32 %v5014, %v5608
        %v5685 = vadd.f32 %v5015, %v5613
        %v5686 = vadd.f32 %v5016, %v5616
        %v5687 = vadd.f32 %v5017, %v5621
        %v5688 = vadd.f32 %v5018, %v5624
        %v5689 = vadd.f32 %v5019, %v5629
        %v5690 = vadd.f32 %v5020, %v5632
        %v5691 = vadd.f32 %v5021, %v5637
        %v5692 = vadd.f32 %v5022, %v5640
        %v5693 = vadd.f32 %v5023, %v5645
        %v5694 = vadd.f32 %v5024, %v5648
        %v5695 = vadd.f32 %v5025, %v5653
        %v5696 = vadd.f32 %v5026, %v5656
        %v5697 = vadd.f32 %v5027, %v5661
        %v5698 = vadd.f32 %v5028, %v5664
        %v5699 = vld [vmem:[#allocation13] sm:$0xf]
        %v5700 = vld [vmem:[#allocation13 + $0x4] sm:$0xf]
        %v5701 = vld [vmem:[#allocation13 + $0x8] sm:$0xf]
        %v5702 = vld [vmem:[#allocation13 + $0xc] sm:$0xf]
        %v5703 = vld [vmem:[#allocation13 + $0x10] sm:$0xf]
        %v5704 = vld [vmem:[#allocation13 + $0x14] sm:$0xf]
        %v5705 = vld [vmem:[#allocation13 + $0x18] sm:$0xf]
        %v5706 = vld [vmem:[#allocation13 + $0x1c] sm:$0xf]
        %v5707 = vld [vmem:[#allocation13 + $0x20] sm:$0xf]
        %v5708 = vld [vmem:[#allocation13 + $0x24] sm:$0xf]
        %v5709 = vld [vmem:[#allocation13 + $0x28] sm:$0xf]
        %v5710 = vld [vmem:[#allocation13 + $0x2c] sm:$0xf]
        %v5711 = vld [vmem:[#allocation13 + $0x30] sm:$0xf]
        %v5712 = vld [vmem:[#allocation13 + $0x34] sm:$0xf]
        %v5713 = vld [vmem:[#allocation13 + $0x38] sm:$0xf]
        %v5714 = vld [vmem:[#allocation13 + $0x3c] sm:$0xf]
        %v5715 = vld [vmem:[#allocation13 + $0x40] sm:$0xf]
        %v5716 = vld [vmem:[#allocation13 + $0x44] sm:$0xf]
        %v5717 = vld [vmem:[#allocation13 + $0x48] sm:$0xf]
        %v5718 = vld [vmem:[#allocation13 + $0x4c] sm:$0xf]
        %v5719 = vld [vmem:[#allocation13 + $0x50] sm:$0xf]
        %v5720 = vld [vmem:[#allocation13 + $0x54] sm:$0xf]
        %v5721 = vld [vmem:[#allocation13 + $0x58] sm:$0xf]
        %v5722 = vld [vmem:[#allocation13 + $0x5c] sm:$0xf]
        %v5723 = vld [vmem:[#allocation13 + $0x60] sm:$0xf]
        %v5724 = vld [vmem:[#allocation13 + $0x64] sm:$0xf]
        %v5725 = vld [vmem:[#allocation13 + $0x68] sm:$0xf]
        %v5726 = vld [vmem:[#allocation13 + $0x6c] sm:$0xf]
        %v5727 = vld [vmem:[#allocation13 + $0x70] sm:$0xf]
        %v5728 = vld [vmem:[#allocation13 + $0x74] sm:$0xf]
        %v5729 = vld [vmem:[#allocation13 + $0x78] sm:$0xf]
        %v5730 = vld [vmem:[#allocation13 + $0x7c] sm:$0xf]
        %v5731 = vld [vmem:[#allocation13 + $0x80] sm:$0xf]
        %v5732 = vld [vmem:[#allocation13 + $0x84] sm:$0xf]
        %v5733 = vld [vmem:[#allocation13 + $0x88] sm:$0xf]
        %v5734 = vld [vmem:[#allocation13 + $0x8c] sm:$0xf]
        %v5735 = vld [vmem:[#allocation13 + $0x90] sm:$0xf]
        %v5736 = vld [vmem:[#allocation13 + $0x94] sm:$0xf]
        %v5737 = vld [vmem:[#allocation13 + $0x98] sm:$0xf]
        %v5738 = vld [vmem:[#allocation13 + $0x9c] sm:$0xf]
        %v5739 = vld [vmem:[#allocation13 + $0xa0] sm:$0xf]
        %v5740 = vld [vmem:[#allocation13 + $0xa4] sm:$0xf]
        %v5741 = vld [vmem:[#allocation13 + $0xa8] sm:$0xf]
        %v5742 = vld [vmem:[#allocation13 + $0xac] sm:$0xf]
        %v5743 = vld [vmem:[#allocation13 + $0xb0] sm:$0xf]
        %v5744 = vld [vmem:[#allocation13 + $0xb4] sm:$0xf]
        %v5745 = vld [vmem:[#allocation13 + $0xb8] sm:$0xf]
        %v5746 = vld [vmem:[#allocation13 + $0xbc] sm:$0xf]
        %v5747 = vld [vmem:[#allocation13 + $0xc0] sm:$0xf]
        %v5748 = vld [vmem:[#allocation13 + $0xc4] sm:$0xf]
        %v5749 = vld [vmem:[#allocation13 + $0xc8] sm:$0xf]
        %v5750 = vld [vmem:[#allocation13 + $0xcc] sm:$0xf]
        %v5751 = vld [vmem:[#allocation13 + $0xd0] sm:$0xf]
        %v5752 = vld [vmem:[#allocation13 + $0xd4] sm:$0xf]
        %v5753 = vld [vmem:[#allocation13 + $0xd8] sm:$0xf]
        %v5754 = vld [vmem:[#allocation13 + $0xdc] sm:$0xf]
        %v5755 = vld [vmem:[#allocation13 + $0xe0] sm:$0xf]
        %v5756 = vld [vmem:[#allocation13 + $0xe4] sm:$0xf]
        %v5757 = vld [vmem:[#allocation13 + $0xe8] sm:$0xf]
        %v5758 = vld [vmem:[#allocation13 + $0xec] sm:$0xf]
        %v5759 = vld [vmem:[#allocation13 + $0xf0] sm:$0xf]
        %v5760 = vld [vmem:[#allocation13 + $0xf4] sm:$0xf]
        %v5761 = vld [vmem:[#allocation13 + $0xf8] sm:$0xf]
        %v5762 = vld [vmem:[#allocation13 + $0xfc] sm:$0xf]
        %v5763 = vld [vmem:[#allocation13 + $0x100] sm:$0xf]
        %v5764 = vld [vmem:[#allocation13 + $0x104] sm:$0xf]
        %v5765 = vld [vmem:[#allocation13 + $0x108] sm:$0xf]
        %v5766 = vld [vmem:[#allocation13 + $0x10c] sm:$0xf]
        %v5767 = vld [vmem:[#allocation13 + $0x110] sm:$0xf]
        %v5768 = vld [vmem:[#allocation13 + $0x114] sm:$0xf]
        %v5769 = vld [vmem:[#allocation13 + $0x118] sm:$0xf]
        %v5770 = vld [vmem:[#allocation13 + $0x11c] sm:$0xf]
        %v5771 = vld [vmem:[#allocation13 + $0x120] sm:$0xf]
        %v5772 = vld [vmem:[#allocation13 + $0x124] sm:$0xf]
        %v5773 = vld [vmem:[#allocation13 + $0x128] sm:$0xf]
        %v5774 = vld [vmem:[#allocation13 + $0x12c] sm:$0xf]
        %v5775 = vld [vmem:[#allocation13 + $0x130] sm:$0xf]
        %v5776 = vld [vmem:[#allocation13 + $0x134] sm:$0xf]
        %v5777 = vld [vmem:[#allocation13 + $0x138] sm:$0xf]
        %v5778 = vld [vmem:[#allocation13 + $0x13c] sm:$0xf]
        %v5779 = vld [vmem:[#allocation13 + $0x140] sm:$0xf]
        %v5780 = vld [vmem:[#allocation13 + $0x144] sm:$0xf]
        %v5781 = vld [vmem:[#allocation13 + $0x148] sm:$0xf]
        %v5782 = vld [vmem:[#allocation13 + $0x14c] sm:$0xf]
        %v5783 = vld [vmem:[#allocation13 + $0x150] sm:$0xf]
        %v5784 = vld [vmem:[#allocation13 + $0x154] sm:$0xf]
        %v5785 = vld [vmem:[#allocation13 + $0x158] sm:$0xf]
        %v5786 = vld [vmem:[#allocation13 + $0x15c] sm:$0xf]
        %v5787 = vld [vmem:[#allocation13 + $0x160] sm:$0xf]
        %v5788 = vld [vmem:[#allocation13 + $0x164] sm:$0xf]
        %v5789 = vld [vmem:[#allocation13 + $0x168] sm:$0xf]
        %v5790 = vld [vmem:[#allocation13 + $0x16c] sm:$0xf]
        %v5791 = vld [vmem:[#allocation13 + $0x170] sm:$0xf]
        %v5792 = vld [vmem:[#allocation13 + $0x174] sm:$0xf]
        %v5793 = vld [vmem:[#allocation13 + $0x178] sm:$0xf]
        %v5794 = vld [vmem:[#allocation13 + $0x17c] sm:$0xf]
        %v5795 = vld [vmem:[#allocation13 + $0x180] sm:$0xf]
        %v5796 = vld [vmem:[#allocation13 + $0x184] sm:$0xf]
        %v5797 = vld [vmem:[#allocation13 + $0x188] sm:$0xf]
        %v5798 = vld [vmem:[#allocation13 + $0x18c] sm:$0xf]
        %v5799 = vld [vmem:[#allocation13 + $0x190] sm:$0xf]
        %v5800 = vld [vmem:[#allocation13 + $0x194] sm:$0xf]
        %v5801 = vld [vmem:[#allocation13 + $0x198] sm:$0xf]
        %v5802 = vld [vmem:[#allocation13 + $0x19c] sm:$0xf]
        %v5803 = vld [vmem:[#allocation13 + $0x1a0] sm:$0xf]
        %v5804 = vld [vmem:[#allocation13 + $0x1a4] sm:$0xf]
        %v5805 = vld [vmem:[#allocation13 + $0x1a8] sm:$0xf]
        %v5806 = vld [vmem:[#allocation13 + $0x1ac] sm:$0xf]
        %v5807 = vld [vmem:[#allocation13 + $0x1b0] sm:$0xf]
        %v5808 = vld [vmem:[#allocation13 + $0x1b4] sm:$0xf]
        %v5809 = vld [vmem:[#allocation13 + $0x1b8] sm:$0xf]
        %v5810 = vld [vmem:[#allocation13 + $0x1bc] sm:$0xf]
        %v5811 = vld [vmem:[#allocation13 + $0x1c0] sm:$0xf]
        %v5812 = vld [vmem:[#allocation13 + $0x1c4] sm:$0xf]
        %v5813 = vld [vmem:[#allocation13 + $0x1c8] sm:$0xf]
        %v5814 = vld [vmem:[#allocation13 + $0x1cc] sm:$0xf]
        %v5815 = vld [vmem:[#allocation13 + $0x1d0] sm:$0xf]
        %v5816 = vld [vmem:[#allocation13 + $0x1d4] sm:$0xf]
        %v5817 = vld [vmem:[#allocation13 + $0x1d8] sm:$0xf]
        %v5818 = vld [vmem:[#allocation13 + $0x1dc] sm:$0xf]
        %v5819 = vld [vmem:[#allocation13 + $0x1e0] sm:$0xf]
        %v5820 = vld [vmem:[#allocation13 + $0x1e4] sm:$0xf]
        %v5821 = vld [vmem:[#allocation13 + $0x1e8] sm:$0xf]
        %v5822 = vld [vmem:[#allocation13 + $0x1ec] sm:$0xf]
        %v5823 = vld [vmem:[#allocation13 + $0x1f0] sm:$0xf]
        %v5824 = vld [vmem:[#allocation13 + $0x1f4] sm:$0xf]
        %v5825 = vld [vmem:[#allocation13 + $0x1f8] sm:$0xf]
        %v5826 = vld [vmem:[#allocation13 + $0x1fc] sm:$0xf]
        %v5835 = vunpack.c.l.b16 %v601
        %v5836 = vunpack.c.l.b16 %v602
        %v5837 = vunpack.c.l.b16 %v606
        %v5838 = vunpack.c.l.b16 %v607
        %v5839 = vunpack.c.l.b16 %v611
        %v5840 = vunpack.c.l.b16 %v612
        %v5841 = vunpack.c.l.b16 %v616
        %v5842 = vunpack.c.l.b16 %v617
        %v5843 = vpack.c.b16 %v5836, %v5835
        %v5844 = vpack.c.b16 %v5838, %v5837
        %v5845 = vpack.c.b16 %v5840, %v5839
        %v5846 = vpack.c.b16 %v5842, %v5841
        %v5871 = vunpack.c.l.b16 %v603
        %v5872 = vunpack.c.l.b16 %v604
        %v5873 = vunpack.c.l.b16 %v608
        %v5874 = vunpack.c.l.b16 %v609
        %v5875 = vunpack.c.l.b16 %v613
        %v5876 = vunpack.c.l.b16 %v614
        %v5877 = vunpack.c.l.b16 %v618
        %v5878 = vunpack.c.l.b16 %v619
        %v5879 = vpack.c.b16 %v5871, %v5836
        %v5880 = vpack.c.b16 %v5872, %v5872
        %v5881 = vpack.c.b16 %v5873, %v5838
        %v5882 = vpack.c.b16 %v5874, %v5874
        %v5883 = vpack.c.b16 %v5875, %v5840
        %v5884 = vpack.c.b16 %v5876, %v5876
        %v5885 = vpack.c.b16 %v5877, %v5842
        %v5886 = vpack.c.b16 %v5878, %v5878
        %v5887 = vrot.slane %v5879, 2
        %v5888 = vrot.slane %v5880, 2
        %v5889 = vsel %vm1115, %v5887, %v5888
        %v5890 = vrot.slane %v5881, 2
        %v5891 = vrot.slane %v5882, 2
        %v5892 = vsel %vm1115, %v5890, %v5891
        %v5893 = vrot.slane %v5883, 2
        %v5894 = vrot.slane %v5884, 2
        %v5895 = vsel %vm1115, %v5893, %v5894
        %v5896 = vrot.slane %v5885, 2
        %v5897 = vrot.slane %v5886, 2
        %v5898 = vsel %vm1115, %v5896, %v5897
        %v5907 = vunpack.c.l.b16 %v605
        %v5908 = vunpack.c.l.b16 %v610
        %v5909 = vunpack.c.l.b16 %v615
        %v5910 = vunpack.c.l.b16 %v620
        %v5911 = vpack.c.b16 %v5907, %v5872
        %v5912 = vpack.c.b16 %v5908, %v5874
        %v5913 = vpack.c.b16 %v5909, %v5876
        %v5914 = vpack.c.b16 %v5910, %v5878
        %v5915 = vpack.c.b16 %v3942, %v3914
        %v5916 = vpack.c.b16 %v3943, %v3915
        %v5917 = vpack.c.b16 %v3944, %v3916
        %v5918 = vpack.c.b16 %v3945, %v3917
        %v5919 = vpack.c.b16 %v3946, %v2181
        %v5920 = vpack.c.b16 %v3947, %v2182
        %v5921 = vpack.c.b16 %v3948, %v2183
        %v5922 = vpack.c.b16 %v3949, %v2184
        %v5923 = vpack.c.b16 %v3950, %v2185
        %v5924 = vpack.c.b16 %v3951, %v2186
        %v5925 = vpack.c.b16 %v3952, %v2187
        %v5926 = vpack.c.b16 %v3953, %v2188
        %v5991 = vunpack.c.l.b16 %v5699
        %v5992 = vunpack.c.l.b16 %v5700
        %v5993 = vunpack.c.l.b16 %v5701
        %v5994 = vunpack.c.l.b16 %v5702
        %v5995 = vunpack.c.l.b16 %v5703
        %v5996 = vunpack.c.l.b16 %v5704
        %v5997 = vunpack.c.l.b16 %v5705
        %v5998 = vunpack.c.l.b16 %v5706
        %v5999 = vunpack.c.l.b16 %v5707
        %v6000 = vunpack.c.l.b16 %v5708
        %v6001 = vunpack.c.l.b16 %v5709
        %v6002 = vunpack.c.l.b16 %v5710
        %v6003 = vunpack.c.l.b16 %v5711
        %v6004 = vunpack.c.l.b16 %v5712
        %v6005 = vunpack.c.l.b16 %v5713
        %v6006 = vunpack.c.l.b16 %v5714
        %v6007 = vunpack.c.l.b16 %v5715
        %v6008 = vunpack.c.l.b16 %v5716
        %v6009 = vunpack.c.l.b16 %v5717
        %v6010 = vunpack.c.l.b16 %v5718
        %v6011 = vunpack.c.l.b16 %v5719
        %v6012 = vunpack.c.l.b16 %v5720
        %v6013 = vunpack.c.l.b16 %v5721
        %v6014 = vunpack.c.l.b16 %v5722
        %v6015 = vunpack.c.l.b16 %v5723
        %v6016 = vunpack.c.l.b16 %v5724
        %v6017 = vunpack.c.l.b16 %v5725
        %v6018 = vunpack.c.l.b16 %v5726
        %v6019 = vunpack.c.l.b16 %v5727
        %v6020 = vunpack.c.l.b16 %v5728
        %v6021 = vunpack.c.l.b16 %v5729
        %v6022 = vunpack.c.l.b16 %v5730
        %v6023 = vunpack.c.l.b16 %v5731
        %v6024 = vunpack.c.l.b16 %v5732
        %v6025 = vunpack.c.l.b16 %v5733
        %v6026 = vunpack.c.l.b16 %v5734
        %v6027 = vunpack.c.l.b16 %v5735
        %v6028 = vunpack.c.l.b16 %v5736
        %v6029 = vunpack.c.l.b16 %v5737
        %v6030 = vunpack.c.l.b16 %v5738
        %v6031 = vunpack.c.l.b16 %v5739
        %v6032 = vunpack.c.l.b16 %v5740
        %v6033 = vunpack.c.l.b16 %v5741
        %v6034 = vunpack.c.l.b16 %v5742
        %v6035 = vunpack.c.l.b16 %v5743
        %v6036 = vunpack.c.l.b16 %v5744
        %v6037 = vunpack.c.l.b16 %v5745
        %v6038 = vunpack.c.l.b16 %v5746
        %v6039 = vpack.c.b16 %v5992, %v5991
        %v6040 = vpack.c.b16 %v5994, %v5993
        %v6041 = vpack.c.b16 %v5996, %v5995
        %v6042 = vpack.c.b16 %v5998, %v5997
        %v6043 = vpack.c.b16 %v6000, %v5999
        %v6044 = vpack.c.b16 %v6002, %v6001
        %v6045 = vpack.c.b16 %v6004, %v6003
        %v6046 = vpack.c.b16 %v6006, %v6005
        %v6047 = vpack.c.b16 %v6008, %v6007
        %v6048 = vpack.c.b16 %v6010, %v6009
        %v6049 = vpack.c.b16 %v6012, %v6011
        %v6050 = vpack.c.b16 %v6014, %v6013
        %v6051 = vpack.c.b16 %v6016, %v6015
        %v6052 = vpack.c.b16 %v6018, %v6017
        %v6053 = vpack.c.b16 %v6020, %v6019
        %v6054 = vpack.c.b16 %v6022, %v6021
        %v6055 = vpack.c.b16 %v6024, %v6023
        %v6056 = vpack.c.b16 %v6026, %v6025
        %v6057 = vpack.c.b16 %v6028, %v6027
        %v6058 = vpack.c.b16 %v6030, %v6029
        %v6059 = vpack.c.b16 %v6032, %v6031
        %v6060 = vpack.c.b16 %v6034, %v6033
        %v6061 = vpack.c.b16 %v6036, %v6035
        %v6062 = vpack.c.b16 %v6038, %v6037
        %6087 = vmatprep.subr.bf16.mxu0 0
        %6088 = vmatpush1.bf16.msra.mxu0 %v6046
        %6089 = vmatprep.subr.bf16.mxu0 0
        %6090 = vmatpush1.bf16.msra.mxu0 %v6045
        %6091 = vmatprep.subr.bf16.mxu0 0
        %6092 = vmatpush1.bf16.msra.mxu0 %v6044
        %6093 = vmatprep.subr.bf16.mxu0 0
        %6094 = vmatpush1.bf16.msra.mxu0 %v6043
        %6095 = vmatprep.subr.bf16.mxu0 0
        %6096 = vmatpush1.bf16.msra.mxu0 %v6042
        %6097 = vmatprep.subr.bf16.mxu0 0
        %6098 = vmatpush1.bf16.msra.mxu0 %v6041
        %6099 = vmatprep.subr.bf16.mxu0 0
        %6100 = vmatpush1.bf16.msra.mxu0 %v6040
        %6101 = vmatprep.subr.bf16.mxu0 0
        %6102 = vmatpush1.bf16.msra.mxu0 %v6039
        %6103 = vmatprep.subr.bf16.mxu0 0
        %6104 = vmatpush2.bf16.msra.mxu0 %v6054
        %6105 = vmatprep.subr.bf16.mxu0 0
        %6106 = vmatpush2.bf16.msra.mxu0 %v6053
        %6107 = vmatprep.subr.bf16.mxu0 0
        %6108 = vmatpush2.bf16.msra.mxu0 %v6052
        %6109 = vmatprep.subr.bf16.mxu0 0
        %6110 = vmatpush2.bf16.msra.mxu0 %v6051
        %6111 = vmatprep.subr.bf16.mxu0 0
        %6112 = vmatpush2.bf16.msra.mxu0 %v6050
        %6113 = vmatprep.subr.bf16.mxu0 0
        %6114 = vmatpush2.bf16.msra.mxu0 %v6049
        %6115 = vmatprep.subr.bf16.mxu0 0
        %6116 = vmatpush2.bf16.msra.mxu0 %v6048
        %6117 = vmatprep.subr.bf16.mxu0 0
        %6118 = vmatpush2.bf16.msra.mxu0 %v6047
        %6119 = vmatprep.mubr.bf16.mxu0 %v5889
        %6120 = vmatmul.mubr.bf16.gmra.mxu0 %v5843
        %v6121 = vpop.f32.mrf.mxu0
        %v6122 = vadd.f32 0.0, %v6121
        %v6123 = vpop.f32.mrf.mxu0
        %v6124 = vpop.f32.mrf.mxu0
        %v6125 = vadd.f32 0.0, %v6124
        %v6126 = vpop.f32.mrf.mxu0
        %6127 = vmatprep.mubr.bf16.mxu0 %v5892
        %6128 = vmatmul.mubr.bf16.gmra.mxu0 %v5844
        %v6129 = vpop.f32.mrf.mxu0
        %v6130 = vadd.f32 0.0, %v6129
        %v6131 = vpop.f32.mrf.mxu0
        %v6132 = vpop.f32.mrf.mxu0
        %v6133 = vadd.f32 0.0, %v6132
        %v6134 = vpop.f32.mrf.mxu0
        %6135 = vmatprep.mubr.bf16.mxu0 %v5895
        %6136 = vmatmul.mubr.bf16.gmra.mxu0 %v5845
        %v6137 = vpop.f32.mrf.mxu0
        %v6138 = vadd.f32 0.0, %v6137
        %v6139 = vpop.f32.mrf.mxu0
        %v6140 = vpop.f32.mrf.mxu0
        %v6141 = vadd.f32 0.0, %v6140
        %v6142 = vpop.f32.mrf.mxu0
        %6143 = vmatprep.mubr.bf16.mxu0 %v5898
        %6144 = vmatmul.mubr.bf16.gmra.mxu0 %v5846
        %v6145 = vpop.f32.mrf.mxu0
        %v6146 = vadd.f32 0.0, %v6145
        %v6147 = vpop.f32.mrf.mxu0
        %v6148 = vpop.f32.mrf.mxu0
        %v6149 = vadd.f32 0.0, %v6148
        %v6150 = vpop.f32.mrf.mxu0
        %6151 = vmatprep.mubr.bf16.mxu0 %v3983
        %6152 = vmatmul.mubr.bf16.gmra.mxu0 %v3878
        %v6153 = vpop.f32.mrf.mxu0
        %v6154 = vadd.f32 0.0, %v6153
        %v6155 = vpop.f32.mrf.mxu0
        %v6156 = vpop.f32.mrf.mxu0
        %v6157 = vadd.f32 0.0, %v6156
        %v6158 = vpop.f32.mrf.mxu0
        %6159 = vmatprep.mubr.bf16.mxu0 %v3992
        %6160 = vmatmul.mubr.bf16.gmra.mxu0 %v3880
        %v6161 = vpop.f32.mrf.mxu0
        %v6162 = vadd.f32 0.0, %v6161
        %v6163 = vpop.f32.mrf.mxu0
        %v6164 = vpop.f32.mrf.mxu0
        %v6165 = vadd.f32 0.0, %v6164
        %v6166 = vpop.f32.mrf.mxu0
        %6167 = vmatprep.mubr.bf16.mxu0 %v4001
        %6168 = vmatmul.mubr.bf16.gmra.mxu0 %v3882
        %v6169 = vpop.f32.mrf.mxu0
        %v6170 = vadd.f32 0.0, %v6169
        %v6171 = vpop.f32.mrf.mxu0
        %v6172 = vpop.f32.mrf.mxu0
        %v6173 = vadd.f32 0.0, %v6172
        %v6174 = vpop.f32.mrf.mxu0
        %6175 = vmatprep.mubr.bf16.mxu0 %v4010
        %6176 = vmatmul.mubr.bf16.gmra.mxu0 %v3884
        %v6177 = vpop.f32.mrf.mxu0
        %v6178 = vadd.f32 0.0, %v6177
        %v6179 = vpop.f32.mrf.mxu0
        %v6180 = vpop.f32.mrf.mxu0
        %v6181 = vadd.f32 0.0, %v6180
        %v6182 = vpop.f32.mrf.mxu0
        %6183 = vmatprep.mubr.bf16.mxu0 %v2215
        %6184 = vmatmul.mubr.bf16.gmra.mxu0 %v3886
        %v6185 = vpop.f32.mrf.mxu0
        %v6186 = vadd.f32 0.0, %v6185
        %v6187 = vpop.f32.mrf.mxu0
        %v6188 = vpop.f32.mrf.mxu0
        %v6189 = vadd.f32 0.0, %v6188
        %v6190 = vpop.f32.mrf.mxu0
        %6191 = vmatprep.mubr.bf16.mxu0 %v2218
        %6192 = vmatmul.mubr.bf16.gmra.mxu0 %v3888
        %v6193 = vpop.f32.mrf.mxu0
        %v6194 = vadd.f32 0.0, %v6193
        %v6195 = vpop.f32.mrf.mxu0
        %v6196 = vpop.f32.mrf.mxu0
        %v6197 = vadd.f32 0.0, %v6196
        %v6198 = vpop.f32.mrf.mxu0
        %6199 = vmatprep.mubr.bf16.mxu0 %v2221
        %6200 = vmatmul.mubr.bf16.gmra.mxu0 %v3890
        %v6201 = vpop.f32.mrf.mxu0
        %v6202 = vadd.f32 0.0, %v6201
        %v6203 = vpop.f32.mrf.mxu0
        %v6204 = vpop.f32.mrf.mxu0
        %v6205 = vadd.f32 0.0, %v6204
        %v6206 = vpop.f32.mrf.mxu0
        %6207 = vmatprep.mubr.bf16.mxu0 %v2224
        %6208 = vmatmul.mubr.bf16.gmra.mxu0 %v3892
        %v6209 = vpop.f32.mrf.mxu0
        %v6210 = vadd.f32 0.0, %v6209
        %v6211 = vpop.f32.mrf.mxu0
        %v6212 = vpop.f32.mrf.mxu0
        %v6213 = vadd.f32 0.0, %v6212
        %v6214 = vpop.f32.mrf.mxu0
        %6215 = vmatprep.mubr.bf16.mxu0 %v2227
        %6216 = vmatmul.mubr.bf16.gmra.mxu0 %v3894
        %v6217 = vpop.f32.mrf.mxu0
        %v6218 = vadd.f32 0.0, %v6217
        %v6219 = vpop.f32.mrf.mxu0
        %v6220 = vpop.f32.mrf.mxu0
        %v6221 = vadd.f32 0.0, %v6220
        %v6222 = vpop.f32.mrf.mxu0
        %6223 = vmatprep.mubr.bf16.mxu0 %v2230
        %6224 = vmatmul.mubr.bf16.gmra.mxu0 %v3896
        %v6225 = vpop.f32.mrf.mxu0
        %v6226 = vadd.f32 0.0, %v6225
        %v6227 = vpop.f32.mrf.mxu0
        %v6228 = vpop.f32.mrf.mxu0
        %v6229 = vadd.f32 0.0, %v6228
        %v6230 = vpop.f32.mrf.mxu0
        %6231 = vmatprep.mubr.bf16.mxu0 %v2233
        %6232 = vmatmul.mubr.bf16.gmra.mxu0 %v3898
        %v6233 = vpop.f32.mrf.mxu0
        %v6234 = vadd.f32 0.0, %v6233
        %v6235 = vpop.f32.mrf.mxu0
        %v6236 = vpop.f32.mrf.mxu0
        %v6237 = vadd.f32 0.0, %v6236
        %v6238 = vpop.f32.mrf.mxu0
        %6239 = vmatprep.mubr.bf16.mxu0 %v2236
        %6240 = vmatmul.mubr.bf16.gmra.mxu0 %v3900
        %v6241 = vpop.f32.mrf.mxu0
        %v6242 = vadd.f32 0.0, %v6241
        %v6243 = vpop.f32.mrf.mxu0
        %v6244 = vpop.f32.mrf.mxu0
        %v6245 = vadd.f32 0.0, %v6244
        %v6246 = vpop.f32.mrf.mxu0
        %6247 = vdwg.mxu0
        %6248 = vmatprep.subr.bf16.mxu0 0
        %6249 = vmatpush1.bf16.msra.mxu0 %v6062
        %6250 = vmatprep.subr.bf16.mxu0 0
        %6251 = vmatpush1.bf16.msra.mxu0 %v6061
        %6252 = vmatprep.subr.bf16.mxu0 0
        %6253 = vmatpush1.bf16.msra.mxu0 %v6060
        %6254 = vmatprep.subr.bf16.mxu0 0
        %6255 = vmatpush1.bf16.msra.mxu0 %v6059
        %6256 = vmatprep.subr.bf16.mxu0 0
        %6257 = vmatpush1.bf16.msra.mxu0 %v6058
        %6258 = vmatprep.subr.bf16.mxu0 0
        %6259 = vmatpush1.bf16.msra.mxu0 %v6057
        %6260 = vmatprep.subr.bf16.mxu0 0
        %6261 = vmatpush1.bf16.msra.mxu0 %v6056
        %6262 = vmatprep.subr.bf16.mxu0 0
        %6263 = vmatpush1.bf16.msra.mxu0 %v6055
        %6264 = vmatprep.subr.bf16.mxu0 0
        %6265 = vmatpush2.bf16.msra.mxu0 0
        %6266 = vmatprep.subr.bf16.mxu0 0
        %6267 = vmatpush2.bf16.msra.mxu0 0
        %6268 = vmatprep.subr.bf16.mxu0 0
        %6269 = vmatpush2.bf16.msra.mxu0 0
        %6270 = vmatprep.subr.bf16.mxu0 0
        %6271 = vmatpush2.bf16.msra.mxu0 0
        %6272 = vmatprep.subr.bf16.mxu0 0
        %6273 = vmatpush2.bf16.msra.mxu0 0
        %6274 = vmatprep.subr.bf16.mxu0 0
        %6275 = vmatpush2.bf16.msra.mxu0 0
        %6276 = vmatprep.subr.bf16.mxu0 0
        %6277 = vmatpush2.bf16.msra.mxu0 0
        %6278 = vmatprep.subr.bf16.mxu0 0
        %6279 = vmatpush2.bf16.msra.mxu0 0
        %6280 = vmatprep.mubr.bf16.mxu0 0
        %6281 = vmatmul.mubr.bf16.gmra.mxu0 %v5911
        %v6282 = vpop.f32.mrf.mxu0
        %v6283 = vadd.f32 %v6122, %v6282
        %v6284 = vpop.f32.mrf.mxu0
        %v6285 = vpop.f32.mrf.mxu0
        %v6286 = vadd.f32 %v6125, %v6285
        %v6287 = vpop.f32.mrf.mxu0
        %6288 = vmatprep.mubr.bf16.mxu0 0
        %6289 = vmatmul.mubr.bf16.gmra.mxu0 %v5912
        %v6290 = vpop.f32.mrf.mxu0
        %v6291 = vadd.f32 %v6130, %v6290
        %v6292 = vpop.f32.mrf.mxu0
        %v6293 = vpop.f32.mrf.mxu0
        %v6294 = vadd.f32 %v6133, %v6293
        %v6295 = vpop.f32.mrf.mxu0
        %6296 = vmatprep.mubr.bf16.mxu0 0
        %6297 = vmatmul.mubr.bf16.gmra.mxu0 %v5913
        %v6298 = vpop.f32.mrf.mxu0
        %v6299 = vadd.f32 %v6138, %v6298
        %v6300 = vpop.f32.mrf.mxu0
        %v6301 = vpop.f32.mrf.mxu0
        %v6302 = vadd.f32 %v6141, %v6301
        %v6303 = vpop.f32.mrf.mxu0
        %6304 = vmatprep.mubr.bf16.mxu0 0
        %6305 = vmatmul.mubr.bf16.gmra.mxu0 %v5914
        %v6306 = vpop.f32.mrf.mxu0
        %v6307 = vadd.f32 %v6146, %v6306
        %v6308 = vpop.f32.mrf.mxu0
        %v6309 = vpop.f32.mrf.mxu0
        %v6310 = vadd.f32 %v6149, %v6309
        %v6311 = vpop.f32.mrf.mxu0
        %6312 = vmatprep.mubr.bf16.mxu0 0
        %6313 = vmatmul.mubr.bf16.gmra.mxu0 %v5915
        %v6314 = vpop.f32.mrf.mxu0
        %v6315 = vadd.f32 %v6154, %v6314
        %v6316 = vpop.f32.mrf.mxu0
        %v6317 = vpop.f32.mrf.mxu0
        %v6318 = vadd.f32 %v6157, %v6317
        %v6319 = vpop.f32.mrf.mxu0
        %6320 = vmatprep.mubr.bf16.mxu0 0
        %6321 = vmatmul.mubr.bf16.gmra.mxu0 %v5916
        %v6322 = vpop.f32.mrf.mxu0
        %v6323 = vadd.f32 %v6162, %v6322
        %v6324 = vpop.f32.mrf.mxu0
        %v6325 = vpop.f32.mrf.mxu0
        %v6326 = vadd.f32 %v6165, %v6325
        %v6327 = vpop.f32.mrf.mxu0
        %6328 = vmatprep.mubr.bf16.mxu0 0
        %6329 = vmatmul.mubr.bf16.gmra.mxu0 %v5917
        %v6330 = vpop.f32.mrf.mxu0
        %v6331 = vadd.f32 %v6170, %v6330
        %v6332 = vpop.f32.mrf.mxu0
        %v6333 = vpop.f32.mrf.mxu0
        %v6334 = vadd.f32 %v6173, %v6333
        %v6335 = vpop.f32.mrf.mxu0
        %6336 = vmatprep.mubr.bf16.mxu0 0
        %6337 = vmatmul.mubr.bf16.gmra.mxu0 %v5918
        %v6338 = vpop.f32.mrf.mxu0
        %v6339 = vadd.f32 %v6178, %v6338
        %v6340 = vpop.f32.mrf.mxu0
        %v6341 = vpop.f32.mrf.mxu0
        %v6342 = vadd.f32 %v6181, %v6341
        %v6343 = vpop.f32.mrf.mxu0
        %6344 = vmatprep.mubr.bf16.mxu0 0
        %6345 = vmatmul.mubr.bf16.gmra.mxu0 %v5919
        %v6346 = vpop.f32.mrf.mxu0
        %v6347 = vadd.f32 %v6186, %v6346
        %v6348 = vpop.f32.mrf.mxu0
        %v6349 = vpop.f32.mrf.mxu0
        %v6350 = vadd.f32 %v6189, %v6349
        %v6351 = vpop.f32.mrf.mxu0
        %6352 = vmatprep.mubr.bf16.mxu0 0
        %6353 = vmatmul.mubr.bf16.gmra.mxu0 %v5920
        %v6354 = vpop.f32.mrf.mxu0
        %v6355 = vadd.f32 %v6194, %v6354
        %v6356 = vpop.f32.mrf.mxu0
        %v6357 = vpop.f32.mrf.mxu0
        %v6358 = vadd.f32 %v6197, %v6357
        %v6359 = vpop.f32.mrf.mxu0
        %6360 = vmatprep.mubr.bf16.mxu0 0
        %6361 = vmatmul.mubr.bf16.gmra.mxu0 %v5921
        %v6362 = vpop.f32.mrf.mxu0
        %v6363 = vadd.f32 %v6202, %v6362
        %v6364 = vpop.f32.mrf.mxu0
        %v6365 = vpop.f32.mrf.mxu0
        %v6366 = vadd.f32 %v6205, %v6365
        %v6367 = vpop.f32.mrf.mxu0
        %6368 = vmatprep.mubr.bf16.mxu0 0
        %6369 = vmatmul.mubr.bf16.gmra.mxu0 %v5922
        %v6370 = vpop.f32.mrf.mxu0
        %v6371 = vadd.f32 %v6210, %v6370
        %v6372 = vpop.f32.mrf.mxu0
        %v6373 = vpop.f32.mrf.mxu0
        %v6374 = vadd.f32 %v6213, %v6373
        %v6375 = vpop.f32.mrf.mxu0
        %6376 = vmatprep.mubr.bf16.mxu0 0
        %6377 = vmatmul.mubr.bf16.gmra.mxu0 %v5923
        %v6378 = vpop.f32.mrf.mxu0
        %v6379 = vadd.f32 %v6218, %v6378
        %v6380 = vpop.f32.mrf.mxu0
        %v6381 = vpop.f32.mrf.mxu0
        %v6382 = vadd.f32 %v6221, %v6381
        %v6383 = vpop.f32.mrf.mxu0
        %6384 = vmatprep.mubr.bf16.mxu0 0
        %6385 = vmatmul.mubr.bf16.gmra.mxu0 %v5924
        %v6386 = vpop.f32.mrf.mxu0
        %v6387 = vadd.f32 %v6226, %v6386
        %v6388 = vpop.f32.mrf.mxu0
        %v6389 = vpop.f32.mrf.mxu0
        %v6390 = vadd.f32 %v6229, %v6389
        %v6391 = vpop.f32.mrf.mxu0
        %6392 = vmatprep.mubr.bf16.mxu0 0
        %6393 = vmatmul.mubr.bf16.gmra.mxu0 %v5925
        %v6394 = vpop.f32.mrf.mxu0
        %v6395 = vadd.f32 %v6234, %v6394
        %v6396 = vpop.f32.mrf.mxu0
        %v6397 = vpop.f32.mrf.mxu0
        %v6398 = vadd.f32 %v6237, %v6397
        %v6399 = vpop.f32.mrf.mxu0
        %6400 = vmatprep.mubr.bf16.mxu0 0
        %6401 = vmatmul.mubr.bf16.gmra.mxu0 %v5926
        %v6402 = vpop.f32.mrf.mxu0
        %v6403 = vadd.f32 %v6242, %v6402
        %v6404 = vpop.f32.mrf.mxu0
        %v6405 = vpop.f32.mrf.mxu0
        %v6406 = vadd.f32 %v6245, %v6405
        %v6407 = vpop.f32.mrf.mxu0
        %6408 = vdwg.mxu0
        %v6409 = vadd.f32 %v1821, %v6283
        %v6410 = vadd.f32 %v1825, %v6286
        %v6411 = vadd.f32 %v1831, %v6291
        %v6412 = vadd.f32 %v1835, %v6294
        %v6413 = vadd.f32 %v1841, %v6299
        %v6414 = vadd.f32 %v1845, %v6302
        %v6415 = vadd.f32 %v1851, %v6307
        %v6416 = vadd.f32 %v1855, %v6310
        %v6417 = vadd.f32 %v1861, %v6315
        %v6418 = vadd.f32 %v1865, %v6318
        %v6419 = vadd.f32 %v1871, %v6323
        %v6420 = vadd.f32 %v1875, %v6326
        %v6421 = vadd.f32 %v1881, %v6331
        %v6422 = vadd.f32 %v1885, %v6334
        %v6423 = vadd.f32 %v1891, %v6339
        %v6424 = vadd.f32 %v1895, %v6342
        %v6425 = vadd.f32 %v1901, %v6347
        %v6426 = vadd.f32 %v1905, %v6350
        %v6427 = vadd.f32 %v1911, %v6355
        %v6428 = vadd.f32 %v1915, %v6358
        %v6429 = vadd.f32 %v1921, %v6363
        %v6430 = vadd.f32 %v1925, %v6366
        %v6431 = vadd.f32 %v1931, %v6371
        %v6432 = vadd.f32 %v1935, %v6374
        %v6433 = vadd.f32 %v1941, %v6379
        %v6434 = vadd.f32 %v1945, %v6382
        %v6435 = vadd.f32 %v1951, %v6387
        %v6436 = vadd.f32 %v1955, %v6390
        %v6437 = vadd.f32 %v1961, %v6395
        %v6438 = vadd.f32 %v1965, %v6398
        %v6439 = vadd.f32 %v1971, %v6403
        %v6440 = vadd.f32 %v1975, %v6406
        %v6453 = vpack.c.b16 %v3954, %v2189
        %v6454 = vpack.c.b16 %v3955, %v2190
        %v6455 = vpack.c.b16 %v3956, %v2191
        %v6456 = vpack.c.b16 %v3957, %v2192
        %v6457 = vpack.c.b16 %v4660, %v2193
        %v6458 = vpack.c.b16 %v4661, %v2194
        %v6459 = vpack.c.b16 %v4662, %v2195
        %v6460 = vpack.c.b16 %v4663, %v2196
        %v6461 = vpack.c.b16 %v4664, %v2823
        %v6462 = vpack.c.b16 %v4665, %v2824
        %v6463 = vpack.c.b16 %v4666, %v2825
        %v6464 = vpack.c.b16 %v4667, %v2826
        %v6509 = vunpack.c.l.b16 %v5747
        %v6510 = vunpack.c.l.b16 %v5748
        %v6511 = vunpack.c.l.b16 %v5749
        %v6512 = vunpack.c.l.b16 %v5750
        %v6513 = vunpack.c.l.b16 %v5751
        %v6514 = vunpack.c.l.b16 %v5752
        %v6515 = vunpack.c.l.b16 %v5753
        %v6516 = vunpack.c.l.b16 %v5754
        %v6517 = vunpack.c.l.b16 %v5755
        %v6518 = vunpack.c.l.b16 %v5756
        %v6519 = vunpack.c.l.b16 %v5757
        %v6520 = vunpack.c.l.b16 %v5758
        %v6521 = vunpack.c.l.b16 %v5759
        %v6522 = vunpack.c.l.b16 %v5760
        %v6523 = vunpack.c.l.b16 %v5761
        %v6524 = vunpack.c.l.b16 %v5762
        %v6525 = vunpack.c.l.b16 %v5763
        %v6526 = vunpack.c.l.b16 %v5764
        %v6527 = vunpack.c.l.b16 %v5765
        %v6528 = vunpack.c.l.b16 %v5766
        %v6529 = vunpack.c.l.b16 %v5767
        %v6530 = vunpack.c.l.b16 %v5768
        %v6531 = vunpack.c.l.b16 %v5769
        %v6532 = vunpack.c.l.b16 %v5770
        %v6533 = vunpack.c.l.b16 %v5771
        %v6534 = vunpack.c.l.b16 %v5772
        %v6535 = vunpack.c.l.b16 %v5773
        %v6536 = vunpack.c.l.b16 %v5774
        %v6537 = vunpack.c.l.b16 %v5775
        %v6538 = vunpack.c.l.b16 %v5776
        %v6539 = vunpack.c.l.b16 %v5777
        %v6540 = vunpack.c.l.b16 %v5778
        %v6541 = vpack.c.b16 %v6510, %v6509
        %v6542 = vpack.c.b16 %v6512, %v6511
        %v6543 = vpack.c.b16 %v6514, %v6513
        %v6544 = vpack.c.b16 %v6516, %v6515
        %v6545 = vpack.c.b16 %v6518, %v6517
        %v6546 = vpack.c.b16 %v6520, %v6519
        %v6547 = vpack.c.b16 %v6522, %v6521
        %v6548 = vpack.c.b16 %v6524, %v6523
        %v6549 = vpack.c.b16 %v6526, %v6525
        %v6550 = vpack.c.b16 %v6528, %v6527
        %v6551 = vpack.c.b16 %v6530, %v6529
        %v6552 = vpack.c.b16 %v6532, %v6531
        %v6553 = vpack.c.b16 %v6534, %v6533
        %v6554 = vpack.c.b16 %v6536, %v6535
        %v6555 = vpack.c.b16 %v6538, %v6537
        %v6556 = vpack.c.b16 %v6540, %v6539
        %6573 = vmatprep.subr.bf16.mxu0 0
        %6574 = vmatpush1.bf16.msra.mxu0 %v6548
        %6575 = vmatprep.subr.bf16.mxu0 0
        %6576 = vmatpush1.bf16.msra.mxu0 %v6547
        %6577 = vmatprep.subr.bf16.mxu0 0
        %6578 = vmatpush1.bf16.msra.mxu0 %v6546
        %6579 = vmatprep.subr.bf16.mxu0 0
        %6580 = vmatpush1.bf16.msra.mxu0 %v6545
        %6581 = vmatprep.subr.bf16.mxu0 0
        %6582 = vmatpush1.bf16.msra.mxu0 %v6544
        %6583 = vmatprep.subr.bf16.mxu0 0
        %6584 = vmatpush1.bf16.msra.mxu0 %v6543
        %6585 = vmatprep.subr.bf16.mxu0 0
        %6586 = vmatpush1.bf16.msra.mxu0 %v6542
        %6587 = vmatprep.subr.bf16.mxu0 0
        %6588 = vmatpush1.bf16.msra.mxu0 %v6541
        %6589 = vmatprep.subr.bf16.mxu0 0
        %6590 = vmatpush2.bf16.msra.mxu0 %v6556
        %6591 = vmatprep.subr.bf16.mxu0 0
        %6592 = vmatpush2.bf16.msra.mxu0 %v6555
        %6593 = vmatprep.subr.bf16.mxu0 0
        %6594 = vmatpush2.bf16.msra.mxu0 %v6554
        %6595 = vmatprep.subr.bf16.mxu0 0
        %6596 = vmatpush2.bf16.msra.mxu0 %v6553
        %6597 = vmatprep.subr.bf16.mxu0 0
        %6598 = vmatpush2.bf16.msra.mxu0 %v6552
        %6599 = vmatprep.subr.bf16.mxu0 0
        %6600 = vmatpush2.bf16.msra.mxu0 %v6551
        %6601 = vmatprep.subr.bf16.mxu0 0
        %6602 = vmatpush2.bf16.msra.mxu0 %v6550
        %6603 = vmatprep.subr.bf16.mxu0 0
        %6604 = vmatpush2.bf16.msra.mxu0 %v6549
        %6605 = vmatprep.mubr.bf16.mxu0 %v5923
        %6606 = vmatmul.mubr.bf16.gmra.mxu0 %v3894
        %v6607 = vpop.f32.mrf.mxu0
        %v6608 = vadd.f32 0.0, %v6607
        %v6609 = vpop.f32.mrf.mxu0
        %v6610 = vpop.f32.mrf.mxu0
        %v6611 = vadd.f32 0.0, %v6610
        %v6612 = vpop.f32.mrf.mxu0
        %6613 = vmatprep.mubr.bf16.mxu0 %v5924
        %6614 = vmatmul.mubr.bf16.gmra.mxu0 %v3896
        %v6615 = vpop.f32.mrf.mxu0
        %v6616 = vadd.f32 0.0, %v6615
        %v6617 = vpop.f32.mrf.mxu0
        %v6618 = vpop.f32.mrf.mxu0
        %v6619 = vadd.f32 0.0, %v6618
        %v6620 = vpop.f32.mrf.mxu0
        %6621 = vmatprep.mubr.bf16.mxu0 %v5925
        %6622 = vmatmul.mubr.bf16.gmra.mxu0 %v3898
        %v6623 = vpop.f32.mrf.mxu0
        %v6624 = vadd.f32 0.0, %v6623
        %v6625 = vpop.f32.mrf.mxu0
        %v6626 = vpop.f32.mrf.mxu0
        %v6627 = vadd.f32 0.0, %v6626
        %v6628 = vpop.f32.mrf.mxu0
        %6629 = vmatprep.mubr.bf16.mxu0 %v5926
        %6630 = vmatmul.mubr.bf16.gmra.mxu0 %v3900
        %v6631 = vpop.f32.mrf.mxu0
        %v6632 = vadd.f32 0.0, %v6631
        %v6633 = vpop.f32.mrf.mxu0
        %v6634 = vpop.f32.mrf.mxu0
        %v6635 = vadd.f32 0.0, %v6634
        %v6636 = vpop.f32.mrf.mxu0
        %6637 = vmatprep.mubr.bf16.mxu0 %v6453
        %6638 = vmatmul.mubr.bf16.gmra.mxu0 %v3902
        %v6639 = vpop.f32.mrf.mxu0
        %v6640 = vadd.f32 0.0, %v6639
        %v6641 = vpop.f32.mrf.mxu0
        %v6642 = vpop.f32.mrf.mxu0
        %v6643 = vadd.f32 0.0, %v6642
        %v6644 = vpop.f32.mrf.mxu0
        %6645 = vmatprep.mubr.bf16.mxu0 %v6454
        %6646 = vmatmul.mubr.bf16.gmra.mxu0 %v3904
        %v6647 = vpop.f32.mrf.mxu0
        %v6648 = vadd.f32 0.0, %v6647
        %v6649 = vpop.f32.mrf.mxu0
        %v6650 = vpop.f32.mrf.mxu0
        %v6651 = vadd.f32 0.0, %v6650
        %v6652 = vpop.f32.mrf.mxu0
        %6653 = vmatprep.mubr.bf16.mxu0 %v6455
        %6654 = vmatmul.mubr.bf16.gmra.mxu0 %v3906
        %v6655 = vpop.f32.mrf.mxu0
        %v6656 = vadd.f32 0.0, %v6655
        %v6657 = vpop.f32.mrf.mxu0
        %v6658 = vpop.f32.mrf.mxu0
        %v6659 = vadd.f32 0.0, %v6658
        %v6660 = vpop.f32.mrf.mxu0
        %6661 = vmatprep.mubr.bf16.mxu0 %v6456
        %6662 = vmatmul.mubr.bf16.gmra.mxu0 %v3908
        %v6663 = vpop.f32.mrf.mxu0
        %v6664 = vadd.f32 0.0, %v6663
        %v6665 = vpop.f32.mrf.mxu0
        %v6666 = vpop.f32.mrf.mxu0
        %v6667 = vadd.f32 0.0, %v6666
        %v6668 = vpop.f32.mrf.mxu0
        %6669 = vmatprep.mubr.bf16.mxu0 %v6457
        %6670 = vmatmul.mubr.bf16.gmra.mxu0 %v4636
        %v6671 = vpop.f32.mrf.mxu0
        %v6672 = vadd.f32 0.0, %v6671
        %v6673 = vpop.f32.mrf.mxu0
        %v6674 = vpop.f32.mrf.mxu0
        %v6675 = vadd.f32 0.0, %v6674
        %v6676 = vpop.f32.mrf.mxu0
        %6677 = vmatprep.mubr.bf16.mxu0 %v6458
        %6678 = vmatmul.mubr.bf16.gmra.mxu0 %v4638
        %v6679 = vpop.f32.mrf.mxu0
        %v6680 = vadd.f32 0.0, %v6679
        %v6681 = vpop.f32.mrf.mxu0
        %v6682 = vpop.f32.mrf.mxu0
        %v6683 = vadd.f32 0.0, %v6682
        %v6684 = vpop.f32.mrf.mxu0
        %6685 = vmatprep.mubr.bf16.mxu0 %v6459
        %6686 = vmatmul.mubr.bf16.gmra.mxu0 %v4640
        %v6687 = vpop.f32.mrf.mxu0
        %v6688 = vadd.f32 0.0, %v6687
        %v6689 = vpop.f32.mrf.mxu0
        %v6690 = vpop.f32.mrf.mxu0
        %v6691 = vadd.f32 0.0, %v6690
        %v6692 = vpop.f32.mrf.mxu0
        %6693 = vmatprep.mubr.bf16.mxu0 %v6460
        %6694 = vmatmul.mubr.bf16.gmra.mxu0 %v4642
        %v6695 = vpop.f32.mrf.mxu0
        %v6696 = vadd.f32 0.0, %v6695
        %v6697 = vpop.f32.mrf.mxu0
        %v6698 = vpop.f32.mrf.mxu0
        %v6699 = vadd.f32 0.0, %v6698
        %v6700 = vpop.f32.mrf.mxu0
        %6701 = vmatprep.mubr.bf16.mxu0 %v6461
        %6702 = vmatmul.mubr.bf16.gmra.mxu0 %v4644
        %v6703 = vpop.f32.mrf.mxu0
        %v6704 = vadd.f32 0.0, %v6703
        %v6705 = vpop.f32.mrf.mxu0
        %v6706 = vpop.f32.mrf.mxu0
        %v6707 = vadd.f32 0.0, %v6706
        %v6708 = vpop.f32.mrf.mxu0
        %6709 = vmatprep.mubr.bf16.mxu0 %v6462
        %6710 = vmatmul.mubr.bf16.gmra.mxu0 %v4646
        %v6711 = vpop.f32.mrf.mxu0
        %v6712 = vadd.f32 0.0, %v6711
        %v6713 = vpop.f32.mrf.mxu0
        %v6714 = vpop.f32.mrf.mxu0
        %v6715 = vadd.f32 0.0, %v6714
        %v6716 = vpop.f32.mrf.mxu0
        %6717 = vmatprep.mubr.bf16.mxu0 %v6463
        %6718 = vmatmul.mubr.bf16.gmra.mxu0 %v4648
        %v6719 = vpop.f32.mrf.mxu0
        %v6720 = vadd.f32 0.0, %v6719
        %v6721 = vpop.f32.mrf.mxu0
        %v6722 = vpop.f32.mrf.mxu0
        %v6723 = vadd.f32 0.0, %v6722
        %v6724 = vpop.f32.mrf.mxu0
        %6725 = vmatprep.mubr.bf16.mxu0 %v6464
        %6726 = vmatmul.mubr.bf16.gmra.mxu0 %v4650
        %v6727 = vpop.f32.mrf.mxu0
        %v6728 = vadd.f32 0.0, %v6727
        %v6729 = vpop.f32.mrf.mxu0
        %v6730 = vpop.f32.mrf.mxu0
        %v6731 = vadd.f32 0.0, %v6730
        %v6732 = vpop.f32.mrf.mxu0
        %6733 = vdwg.mxu0
        %v6734 = vadd.f32 %v6409, %v6608
        %v6735 = vadd.f32 %v6410, %v6611
        %v6736 = vadd.f32 %v6411, %v6616
        %v6737 = vadd.f32 %v6412, %v6619
        %v6738 = vadd.f32 %v6413, %v6624
        %v6739 = vadd.f32 %v6414, %v6627
        %v6740 = vadd.f32 %v6415, %v6632
        %v6741 = vadd.f32 %v6416, %v6635
        %v6742 = vadd.f32 %v6417, %v6640
        %v6743 = vadd.f32 %v6418, %v6643
        %v6744 = vadd.f32 %v6419, %v6648
        %v6745 = vadd.f32 %v6420, %v6651
        %v6746 = vadd.f32 %v6421, %v6656
        %v6747 = vadd.f32 %v6422, %v6659
        %v6748 = vadd.f32 %v6423, %v6664
        %v6749 = vadd.f32 %v6424, %v6667
        %v6750 = vadd.f32 %v6425, %v6672
        %v6751 = vadd.f32 %v6426, %v6675
        %v6752 = vadd.f32 %v6427, %v6680
        %v6753 = vadd.f32 %v6428, %v6683
        %v6754 = vadd.f32 %v6429, %v6688
        %v6755 = vadd.f32 %v6430, %v6691
        %v6756 = vadd.f32 %v6431, %v6696
        %v6757 = vadd.f32 %v6432, %v6699
        %v6758 = vadd.f32 %v6433, %v6704
        %v6759 = vadd.f32 %v6434, %v6707
        %v6760 = vadd.f32 %v6435, %v6712
        %v6761 = vadd.f32 %v6436, %v6715
        %v6762 = vadd.f32 %v6437, %v6720
        %v6763 = vadd.f32 %v6438, %v6723
        %v6764 = vadd.f32 %v6439, %v6728
        %v6765 = vadd.f32 %v6440, %v6731
        %v6774 = vunpack.c.l.b16 %v781
        %v6775 = vunpack.c.l.b16 %v782
        %v6776 = vunpack.c.l.b16 %v786
        %v6777 = vunpack.c.l.b16 %v787
        %v6778 = vunpack.c.l.b16 %v791
        %v6779 = vunpack.c.l.b16 %v792
        %v6780 = vunpack.c.l.b16 %v796
        %v6781 = vunpack.c.l.b16 %v797
        %v6782 = vpack.c.b16 %v6775, %v6774
        %v6783 = vpack.c.b16 %v6777, %v6776
        %v6784 = vpack.c.b16 %v6779, %v6778
        %v6785 = vpack.c.b16 %v6781, %v6780
        %v6806 = vunpack.c.l.b16 %v783
        %v6807 = vunpack.c.l.b16 %v784
        %v6808 = vunpack.c.l.b16 %v788
        %v6809 = vunpack.c.l.b16 %v789
        %v6810 = vunpack.c.l.b16 %v793
        %v6811 = vunpack.c.l.b16 %v794
        %v6812 = vunpack.c.l.b16 %v798
        %v6813 = vunpack.c.l.b16 %v799
        %v6814 = vpack.c.b16 %v6806, %v6775
        %v6815 = vpack.c.b16 %v6807, %v6807
        %v6816 = vpack.c.b16 %v6808, %v6777
        %v6817 = vpack.c.b16 %v6809, %v6809
        %v6818 = vpack.c.b16 %v6810, %v6779
        %v6819 = vpack.c.b16 %v6811, %v6811
        %v6820 = vpack.c.b16 %v6812, %v6781
        %v6821 = vpack.c.b16 %v6813, %v6813
        %v6822 = vrot.slane %v6814, 2
        %v6823 = vrot.slane %v6815, 2
        %v6824 = vsel %vm1115, %v6822, %v6823
        %v6825 = vrot.slane %v6816, 2
        %v6826 = vrot.slane %v6817, 2
        %v6827 = vsel %vm1115, %v6825, %v6826
        %v6828 = vrot.slane %v6818, 2
        %v6829 = vrot.slane %v6819, 2
        %v6830 = vsel %vm1115, %v6828, %v6829
        %v6831 = vrot.slane %v6820, 2
        %v6832 = vrot.slane %v6821, 2
        %v6833 = vsel %vm1115, %v6831, %v6832
        %v6842 = vunpack.c.l.b16 %v785
        %v6843 = vunpack.c.l.b16 %v790
        %v6844 = vunpack.c.l.b16 %v795
        %v6845 = vunpack.c.l.b16 %v800
        %v6846 = vpack.c.b16 %v5101, %v3152
        %v6847 = vpack.c.b16 %v5102, %v3153
        %v6848 = vpack.c.b16 %v5103, %v3154
        %v6849 = vpack.c.b16 %v5104, %v3155
        %v6850 = vpack.c.b16 %v5105, %v5081
        %v6851 = vpack.c.b16 %v5106, %v5082
        %v6852 = vpack.c.b16 %v5107, %v5083
        %v6853 = vpack.c.b16 %v5108, %v5084
        %v6854 = vpack.c.b16 %v6842, %v6807
        %v6855 = vpack.c.b16 %v6843, %v6809
        %v6856 = vpack.c.b16 %v6844, %v6811
        %v6857 = vpack.c.b16 %v6845, %v6813
        %v6918 = vunpack.c.l.b16 %v5779
        %v6919 = vunpack.c.l.b16 %v5780
        %v6920 = vunpack.c.l.b16 %v5781
        %v6921 = vunpack.c.l.b16 %v5782
        %v6922 = vunpack.c.l.b16 %v5783
        %v6923 = vunpack.c.l.b16 %v5784
        %v6924 = vunpack.c.l.b16 %v5785
        %v6925 = vunpack.c.l.b16 %v5786
        %v6926 = vunpack.c.l.b16 %v5787
        %v6927 = vunpack.c.l.b16 %v5788
        %v6928 = vunpack.c.l.b16 %v5789
        %v6929 = vunpack.c.l.b16 %v5790
        %v6930 = vunpack.c.l.b16 %v5791
        %v6931 = vunpack.c.l.b16 %v5792
        %v6932 = vunpack.c.l.b16 %v5793
        %v6933 = vunpack.c.l.b16 %v5794
        %v6934 = vunpack.c.l.b16 %v5795
        %v6935 = vunpack.c.l.b16 %v5796
        %v6936 = vunpack.c.l.b16 %v5797
        %v6937 = vunpack.c.l.b16 %v5798
        %v6938 = vunpack.c.l.b16 %v5799
        %v6939 = vunpack.c.l.b16 %v5800
        %v6940 = vunpack.c.l.b16 %v5801
        %v6941 = vunpack.c.l.b16 %v5802
        %v6942 = vunpack.c.l.b16 %v5803
        %v6943 = vunpack.c.l.b16 %v5804
        %v6944 = vunpack.c.l.b16 %v5805
        %v6945 = vunpack.c.l.b16 %v5806
        %v6946 = vunpack.c.l.b16 %v5807
        %v6947 = vunpack.c.l.b16 %v5808
        %v6948 = vunpack.c.l.b16 %v5809
        %v6949 = vunpack.c.l.b16 %v5810
        %v6950 = vunpack.c.l.b16 %v5811
        %v6951 = vunpack.c.l.b16 %v5812
        %v6952 = vunpack.c.l.b16 %v5813
        %v6953 = vunpack.c.l.b16 %v5814
        %v6954 = vunpack.c.l.b16 %v5815
        %v6955 = vunpack.c.l.b16 %v5816
        %v6956 = vunpack.c.l.b16 %v5817
        %v6957 = vunpack.c.l.b16 %v5818
        %v6958 = vunpack.c.l.b16 %v5819
        %v6959 = vunpack.c.l.b16 %v5820
        %v6960 = vunpack.c.l.b16 %v5821
        %v6961 = vunpack.c.l.b16 %v5822
        %v6962 = vunpack.c.l.b16 %v5823
        %v6963 = vunpack.c.l.b16 %v5824
        %v6964 = vunpack.c.l.b16 %v5825
        %v6965 = vunpack.c.l.b16 %v5826
        %v6966 = vpack.c.b16 %v6919, %v6918
        %v6967 = vpack.c.b16 %v6921, %v6920
        %v6968 = vpack.c.b16 %v6923, %v6922
        %v6969 = vpack.c.b16 %v6925, %v6924
        %v6970 = vpack.c.b16 %v6927, %v6926
        %v6971 = vpack.c.b16 %v6929, %v6928
        %v6972 = vpack.c.b16 %v6931, %v6930
        %v6973 = vpack.c.b16 %v6933, %v6932
        %v6974 = vpack.c.b16 %v6935, %v6934
        %v6975 = vpack.c.b16 %v6937, %v6936
        %v6976 = vpack.c.b16 %v6939, %v6938
        %v6977 = vpack.c.b16 %v6941, %v6940
        %v6978 = vpack.c.b16 %v6943, %v6942
        %v6979 = vpack.c.b16 %v6945, %v6944
        %v6980 = vpack.c.b16 %v6947, %v6946
        %v6981 = vpack.c.b16 %v6949, %v6948
        %v6982 = vpack.c.b16 %v6951, %v6950
        %v6983 = vpack.c.b16 %v6953, %v6952
        %v6984 = vpack.c.b16 %v6955, %v6954
        %v6985 = vpack.c.b16 %v6957, %v6956
        %v6986 = vpack.c.b16 %v6959, %v6958
        %v6987 = vpack.c.b16 %v6961, %v6960
        %v6988 = vpack.c.b16 %v6963, %v6962
        %v6989 = vpack.c.b16 %v6965, %v6964
        %7014 = vmatprep.subr.bf16.mxu0 0
        %7015 = vmatpush1.bf16.msra.mxu0 %v6973
        %7016 = vmatprep.subr.bf16.mxu0 0
        %7017 = vmatpush1.bf16.msra.mxu0 %v6972
        %7018 = vmatprep.subr.bf16.mxu0 0
        %7019 = vmatpush1.bf16.msra.mxu0 %v6971
        %7020 = vmatprep.subr.bf16.mxu0 0
        %7021 = vmatpush1.bf16.msra.mxu0 %v6970
        %7022 = vmatprep.subr.bf16.mxu0 0
        %7023 = vmatpush1.bf16.msra.mxu0 %v6969
        %7024 = vmatprep.subr.bf16.mxu0 0
        %7025 = vmatpush1.bf16.msra.mxu0 %v6968
        %7026 = vmatprep.subr.bf16.mxu0 0
        %7027 = vmatpush1.bf16.msra.mxu0 %v6967
        %7028 = vmatprep.subr.bf16.mxu0 0
        %7029 = vmatpush1.bf16.msra.mxu0 %v6966
        %7030 = vmatprep.subr.bf16.mxu0 0
        %7031 = vmatpush2.bf16.msra.mxu0 %v6981
        %7032 = vmatprep.subr.bf16.mxu0 0
        %7033 = vmatpush2.bf16.msra.mxu0 %v6980
        %7034 = vmatprep.subr.bf16.mxu0 0
        %7035 = vmatpush2.bf16.msra.mxu0 %v6979
        %7036 = vmatprep.subr.bf16.mxu0 0
        %7037 = vmatpush2.bf16.msra.mxu0 %v6978
        %7038 = vmatprep.subr.bf16.mxu0 0
        %7039 = vmatpush2.bf16.msra.mxu0 %v6977
        %7040 = vmatprep.subr.bf16.mxu0 0
        %7041 = vmatpush2.bf16.msra.mxu0 %v6976
        %7042 = vmatprep.subr.bf16.mxu0 0
        %7043 = vmatpush2.bf16.msra.mxu0 %v6975
        %7044 = vmatprep.subr.bf16.mxu0 0
        %7045 = vmatpush2.bf16.msra.mxu0 %v6974
        %7046 = vmatprep.mubr.bf16.mxu0 %v3166
        %7047 = vmatmul.mubr.bf16.gmra.mxu0 %v4644
        %v7048 = vpop.f32.mrf.mxu0
        %v7049 = vadd.f32 0.0, %v7048
        %v7050 = vpop.f32.mrf.mxu0
        %v7051 = vpop.f32.mrf.mxu0
        %v7052 = vadd.f32 0.0, %v7051
        %v7053 = vpop.f32.mrf.mxu0
        %7054 = vmatprep.mubr.bf16.mxu0 %v3169
        %7055 = vmatmul.mubr.bf16.gmra.mxu0 %v4646
        %v7056 = vpop.f32.mrf.mxu0
        %v7057 = vadd.f32 0.0, %v7056
        %v7058 = vpop.f32.mrf.mxu0
        %v7059 = vpop.f32.mrf.mxu0
        %v7060 = vadd.f32 0.0, %v7059
        %v7061 = vpop.f32.mrf.mxu0
        %7062 = vmatprep.mubr.bf16.mxu0 %v3172
        %7063 = vmatmul.mubr.bf16.gmra.mxu0 %v4648
        %v7064 = vpop.f32.mrf.mxu0
        %v7065 = vadd.f32 0.0, %v7064
        %v7066 = vpop.f32.mrf.mxu0
        %v7067 = vpop.f32.mrf.mxu0
        %v7068 = vadd.f32 0.0, %v7067
        %v7069 = vpop.f32.mrf.mxu0
        %7070 = vmatprep.mubr.bf16.mxu0 %v3175
        %7071 = vmatmul.mubr.bf16.gmra.mxu0 %v4650
        %v7072 = vpop.f32.mrf.mxu0
        %v7073 = vadd.f32 0.0, %v7072
        %v7074 = vpop.f32.mrf.mxu0
        %v7075 = vpop.f32.mrf.mxu0
        %v7076 = vadd.f32 0.0, %v7075
        %v7077 = vpop.f32.mrf.mxu0
        %7078 = vmatprep.mubr.bf16.mxu0 %v3178
        %7079 = vmatmul.mubr.bf16.gmra.mxu0 %v5061
        %v7080 = vpop.f32.mrf.mxu0
        %v7081 = vadd.f32 0.0, %v7080
        %v7082 = vpop.f32.mrf.mxu0
        %v7083 = vpop.f32.mrf.mxu0
        %v7084 = vadd.f32 0.0, %v7083
        %v7085 = vpop.f32.mrf.mxu0
        %7086 = vmatprep.mubr.bf16.mxu0 %v3181
        %7087 = vmatmul.mubr.bf16.gmra.mxu0 %v5063
        %v7088 = vpop.f32.mrf.mxu0
        %v7089 = vadd.f32 0.0, %v7088
        %v7090 = vpop.f32.mrf.mxu0
        %v7091 = vpop.f32.mrf.mxu0
        %v7092 = vadd.f32 0.0, %v7091
        %v7093 = vpop.f32.mrf.mxu0
        %7094 = vmatprep.mubr.bf16.mxu0 %v3184
        %7095 = vmatmul.mubr.bf16.gmra.mxu0 %v5065
        %v7096 = vpop.f32.mrf.mxu0
        %v7097 = vadd.f32 0.0, %v7096
        %v7098 = vpop.f32.mrf.mxu0
        %v7099 = vpop.f32.mrf.mxu0
        %v7100 = vadd.f32 0.0, %v7099
        %v7101 = vpop.f32.mrf.mxu0
        %7102 = vmatprep.mubr.bf16.mxu0 %v3187
        %7103 = vmatmul.mubr.bf16.gmra.mxu0 %v5067
        %v7104 = vpop.f32.mrf.mxu0
        %v7105 = vadd.f32 0.0, %v7104
        %v7106 = vpop.f32.mrf.mxu0
        %v7107 = vpop.f32.mrf.mxu0
        %v7108 = vadd.f32 0.0, %v7107
        %v7109 = vpop.f32.mrf.mxu0
        %7110 = vmatprep.mubr.bf16.mxu0 %v5150
        %7111 = vmatmul.mubr.bf16.gmra.mxu0 %v5069
        %v7112 = vpop.f32.mrf.mxu0
        %v7113 = vadd.f32 0.0, %v7112
        %v7114 = vpop.f32.mrf.mxu0
        %v7115 = vpop.f32.mrf.mxu0
        %v7116 = vadd.f32 0.0, %v7115
        %v7117 = vpop.f32.mrf.mxu0
        %7118 = vmatprep.mubr.bf16.mxu0 %v5159
        %7119 = vmatmul.mubr.bf16.gmra.mxu0 %v5071
        %v7120 = vpop.f32.mrf.mxu0
        %v7121 = vadd.f32 0.0, %v7120
        %v7122 = vpop.f32.mrf.mxu0
        %v7123 = vpop.f32.mrf.mxu0
        %v7124 = vadd.f32 0.0, %v7123
        %v7125 = vpop.f32.mrf.mxu0
        %7126 = vmatprep.mubr.bf16.mxu0 %v5168
        %7127 = vmatmul.mubr.bf16.gmra.mxu0 %v5073
        %v7128 = vpop.f32.mrf.mxu0
        %v7129 = vadd.f32 0.0, %v7128
        %v7130 = vpop.f32.mrf.mxu0
        %v7131 = vpop.f32.mrf.mxu0
        %v7132 = vadd.f32 0.0, %v7131
        %v7133 = vpop.f32.mrf.mxu0
        %7134 = vmatprep.mubr.bf16.mxu0 %v5177
        %7135 = vmatmul.mubr.bf16.gmra.mxu0 %v5075
        %v7136 = vpop.f32.mrf.mxu0
        %v7137 = vadd.f32 0.0, %v7136
        %v7138 = vpop.f32.mrf.mxu0
        %v7139 = vpop.f32.mrf.mxu0
        %v7140 = vadd.f32 0.0, %v7139
        %v7141 = vpop.f32.mrf.mxu0
        %7142 = vmatprep.mubr.bf16.mxu0 %v6824
        %7143 = vmatmul.mubr.bf16.gmra.mxu0 %v6782
        %v7144 = vpop.f32.mrf.mxu0
        %v7145 = vadd.f32 0.0, %v7144
        %v7146 = vpop.f32.mrf.mxu0
        %v7147 = vpop.f32.mrf.mxu0
        %v7148 = vadd.f32 0.0, %v7147
        %v7149 = vpop.f32.mrf.mxu0
        %7150 = vmatprep.mubr.bf16.mxu0 %v6827
        %7151 = vmatmul.mubr.bf16.gmra.mxu0 %v6783
        %v7152 = vpop.f32.mrf.mxu0
        %v7153 = vadd.f32 0.0, %v7152
        %v7154 = vpop.f32.mrf.mxu0
        %v7155 = vpop.f32.mrf.mxu0
        %v7156 = vadd.f32 0.0, %v7155
        %v7157 = vpop.f32.mrf.mxu0
        %7158 = vmatprep.mubr.bf16.mxu0 %v6830
        %7159 = vmatmul.mubr.bf16.gmra.mxu0 %v6784
        %v7160 = vpop.f32.mrf.mxu0
        %v7161 = vadd.f32 0.0, %v7160
        %v7162 = vpop.f32.mrf.mxu0
        %v7163 = vpop.f32.mrf.mxu0
        %v7164 = vadd.f32 0.0, %v7163
        %v7165 = vpop.f32.mrf.mxu0
        %7166 = vmatprep.mubr.bf16.mxu0 %v6833
        %7167 = vmatmul.mubr.bf16.gmra.mxu0 %v6785
        %v7168 = vpop.f32.mrf.mxu0
        %v7169 = vadd.f32 0.0, %v7168
        %v7170 = vpop.f32.mrf.mxu0
        %v7171 = vpop.f32.mrf.mxu0
        %v7172 = vadd.f32 0.0, %v7171
        %v7173 = vpop.f32.mrf.mxu0
        %7174 = vdwg.mxu0
        %7175 = vmatprep.subr.bf16.mxu0 0
        %7176 = vmatpush1.bf16.msra.mxu0 %v6989
        %7177 = vmatprep.subr.bf16.mxu0 0
        %7178 = vmatpush1.bf16.msra.mxu0 %v6988
        %7179 = vmatprep.subr.bf16.mxu0 0
        %7180 = vmatpush1.bf16.msra.mxu0 %v6987
        %7181 = vmatprep.subr.bf16.mxu0 0
        %7182 = vmatpush1.bf16.msra.mxu0 %v6986
        %7183 = vmatprep.subr.bf16.mxu0 0
        %7184 = vmatpush1.bf16.msra.mxu0 %v6985
        %7185 = vmatprep.subr.bf16.mxu0 0
        %7186 = vmatpush1.bf16.msra.mxu0 %v6984
        %7187 = vmatprep.subr.bf16.mxu0 0
        %7188 = vmatpush1.bf16.msra.mxu0 %v6983
        %7189 = vmatprep.subr.bf16.mxu0 0
        %7190 = vmatpush1.bf16.msra.mxu0 %v6982
        %7191 = vmatprep.subr.bf16.mxu0 0
        %7192 = vmatpush2.bf16.msra.mxu0 0
        %7193 = vmatprep.subr.bf16.mxu0 0
        %7194 = vmatpush2.bf16.msra.mxu0 0
        %7195 = vmatprep.subr.bf16.mxu0 0
        %7196 = vmatpush2.bf16.msra.mxu0 0
        %7197 = vmatprep.subr.bf16.mxu0 0
        %7198 = vmatpush2.bf16.msra.mxu0 0
        %7199 = vmatprep.subr.bf16.mxu0 0
        %7200 = vmatpush2.bf16.msra.mxu0 0
        %7201 = vmatprep.subr.bf16.mxu0 0
        %7202 = vmatpush2.bf16.msra.mxu0 0
        %7203 = vmatprep.subr.bf16.mxu0 0
        %7204 = vmatpush2.bf16.msra.mxu0 0
        %7205 = vmatprep.subr.bf16.mxu0 0
        %7206 = vmatpush2.bf16.msra.mxu0 0
        %7207 = vmatprep.mubr.bf16.mxu0 0
        %7208 = vmatmul.mubr.bf16.gmra.mxu0 %v6461
        %v7209 = vpop.f32.mrf.mxu0
        %v7210 = vadd.f32 %v7049, %v7209
        %v7211 = vpop.f32.mrf.mxu0
        %v7212 = vpop.f32.mrf.mxu0
        %v7213 = vadd.f32 %v7052, %v7212
        %v7214 = vpop.f32.mrf.mxu0
        %7215 = vmatprep.mubr.bf16.mxu0 0
        %7216 = vmatmul.mubr.bf16.gmra.mxu0 %v6462
        %v7217 = vpop.f32.mrf.mxu0
        %v7218 = vadd.f32 %v7057, %v7217
        %v7219 = vpop.f32.mrf.mxu0
        %v7220 = vpop.f32.mrf.mxu0
        %v7221 = vadd.f32 %v7060, %v7220
        %v7222 = vpop.f32.mrf.mxu0
        %7223 = vmatprep.mubr.bf16.mxu0 0
        %7224 = vmatmul.mubr.bf16.gmra.mxu0 %v6463
        %v7225 = vpop.f32.mrf.mxu0
        %v7226 = vadd.f32 %v7065, %v7225
        %v7227 = vpop.f32.mrf.mxu0
        %v7228 = vpop.f32.mrf.mxu0
        %v7229 = vadd.f32 %v7068, %v7228
        %v7230 = vpop.f32.mrf.mxu0
        %7231 = vmatprep.mubr.bf16.mxu0 0
        %7232 = vmatmul.mubr.bf16.gmra.mxu0 %v6464
        %v7233 = vpop.f32.mrf.mxu0
        %v7234 = vadd.f32 %v7073, %v7233
        %v7235 = vpop.f32.mrf.mxu0
        %v7236 = vpop.f32.mrf.mxu0
        %v7237 = vadd.f32 %v7076, %v7236
        %v7238 = vpop.f32.mrf.mxu0
        %7239 = vmatprep.mubr.bf16.mxu0 0
        %7240 = vmatmul.mubr.bf16.gmra.mxu0 %v6846
        %v7241 = vpop.f32.mrf.mxu0
        %v7242 = vadd.f32 %v7081, %v7241
        %v7243 = vpop.f32.mrf.mxu0
        %v7244 = vpop.f32.mrf.mxu0
        %v7245 = vadd.f32 %v7084, %v7244
        %v7246 = vpop.f32.mrf.mxu0
        %7247 = vmatprep.mubr.bf16.mxu0 0
        %7248 = vmatmul.mubr.bf16.gmra.mxu0 %v6847
        %v7249 = vpop.f32.mrf.mxu0
        %v7250 = vadd.f32 %v7089, %v7249
        %v7251 = vpop.f32.mrf.mxu0
        %v7252 = vpop.f32.mrf.mxu0
        %v7253 = vadd.f32 %v7092, %v7252
        %v7254 = vpop.f32.mrf.mxu0
        %7255 = vmatprep.mubr.bf16.mxu0 0
        %7256 = vmatmul.mubr.bf16.gmra.mxu0 %v6848
        %v7257 = vpop.f32.mrf.mxu0
        %v7258 = vadd.f32 %v7097, %v7257
        %v7259 = vpop.f32.mrf.mxu0
        %v7260 = vpop.f32.mrf.mxu0
        %v7261 = vadd.f32 %v7100, %v7260
        %v7262 = vpop.f32.mrf.mxu0
        %7263 = vmatprep.mubr.bf16.mxu0 0
        %7264 = vmatmul.mubr.bf16.gmra.mxu0 %v6849
        %v7265 = vpop.f32.mrf.mxu0
        %v7266 = vadd.f32 %v7105, %v7265
        %v7267 = vpop.f32.mrf.mxu0
        %v7268 = vpop.f32.mrf.mxu0
        %v7269 = vadd.f32 %v7108, %v7268
        %v7270 = vpop.f32.mrf.mxu0
        %7271 = vmatprep.mubr.bf16.mxu0 0
        %7272 = vmatmul.mubr.bf16.gmra.mxu0 %v6850
        %v7273 = vpop.f32.mrf.mxu0
        %v7274 = vadd.f32 %v7113, %v7273
        %v7275 = vpop.f32.mrf.mxu0
        %v7276 = vpop.f32.mrf.mxu0
        %v7277 = vadd.f32 %v7116, %v7276
        %v7278 = vpop.f32.mrf.mxu0
        %7279 = vmatprep.mubr.bf16.mxu0 0
        %7280 = vmatmul.mubr.bf16.gmra.mxu0 %v6851
        %v7281 = vpop.f32.mrf.mxu0
        %v7282 = vadd.f32 %v7121, %v7281
        %v7283 = vpop.f32.mrf.mxu0
        %v7284 = vpop.f32.mrf.mxu0
        %v7285 = vadd.f32 %v7124, %v7284
        %v7286 = vpop.f32.mrf.mxu0
        %7287 = vmatprep.mubr.bf16.mxu0 0
        %7288 = vmatmul.mubr.bf16.gmra.mxu0 %v6852
        %v7289 = vpop.f32.mrf.mxu0
        %v7290 = vadd.f32 %v7129, %v7289
        %v7291 = vpop.f32.mrf.mxu0
        %v7292 = vpop.f32.mrf.mxu0
        %v7293 = vadd.f32 %v7132, %v7292
        %v7294 = vpop.f32.mrf.mxu0
        %7295 = vmatprep.mubr.bf16.mxu0 0
        %7296 = vmatmul.mubr.bf16.gmra.mxu0 %v6853
        %v7297 = vpop.f32.mrf.mxu0
        %v7298 = vadd.f32 %v7137, %v7297
        %v7299 = vpop.f32.mrf.mxu0
        %v7300 = vpop.f32.mrf.mxu0
        %v7301 = vadd.f32 %v7140, %v7300
        %v7302 = vpop.f32.mrf.mxu0
        %7303 = vmatprep.mubr.bf16.mxu0 0
        %7304 = vmatmul.mubr.bf16.gmra.mxu0 %v6854
        %v7305 = vpop.f32.mrf.mxu0
        %v7306 = vadd.f32 %v7145, %v7305
        %v7307 = vpop.f32.mrf.mxu0
        %v7308 = vpop.f32.mrf.mxu0
        %v7309 = vadd.f32 %v7148, %v7308
        %v7310 = vpop.f32.mrf.mxu0
        %7311 = vmatprep.mubr.bf16.mxu0 0
        %7312 = vmatmul.mubr.bf16.gmra.mxu0 %v6855
        %v7313 = vpop.f32.mrf.mxu0
        %v7314 = vadd.f32 %v7153, %v7313
        %v7315 = vpop.f32.mrf.mxu0
        %v7316 = vpop.f32.mrf.mxu0
        %v7317 = vadd.f32 %v7156, %v7316
        %v7318 = vpop.f32.mrf.mxu0
        %7319 = vmatprep.mubr.bf16.mxu0 0
        %7320 = vmatmul.mubr.bf16.gmra.mxu0 %v6856
        %v7321 = vpop.f32.mrf.mxu0
        %v7322 = vadd.f32 %v7161, %v7321
        %v7323 = vpop.f32.mrf.mxu0
        %v7324 = vpop.f32.mrf.mxu0
        %v7325 = vadd.f32 %v7164, %v7324
        %v7326 = vpop.f32.mrf.mxu0
        %7327 = vmatprep.mubr.bf16.mxu0 0
        %7328 = vmatmul.mubr.bf16.gmra.mxu0 %v6857
        %v7329 = vpop.f32.mrf.mxu0
        %v7330 = vadd.f32 %v7169, %v7329
        %v7331 = vpop.f32.mrf.mxu0
        %v7332 = vpop.f32.mrf.mxu0
        %v7333 = vadd.f32 %v7172, %v7332
        %v7334 = vpop.f32.mrf.mxu0
        %7335 = vdwg.mxu0
        %v7336 = vadd.f32 %v6734, %v7210
        %v7337 = vadd.f32 %v6735, %v7213
        %v7338 = vadd.f32 %v6736, %v7218
        %v7339 = vadd.f32 %v6737, %v7221
        %v7340 = vadd.f32 %v6738, %v7226
        %v7341 = vadd.f32 %v6739, %v7229
        %v7342 = vadd.f32 %v6740, %v7234
        %v7343 = vadd.f32 %v6741, %v7237
        %v7344 = vadd.f32 %v6742, %v7242
        %v7345 = vadd.f32 %v6743, %v7245
        %v7346 = vadd.f32 %v6744, %v7250
        %v7347 = vadd.f32 %v6745, %v7253
        %v7348 = vadd.f32 %v6746, %v7258
        %v7349 = vadd.f32 %v6747, %v7261
        %v7350 = vadd.f32 %v6748, %v7266
        %v7351 = vadd.f32 %v6749, %v7269
        %v7352 = vadd.f32 %v6750, %v7274
        %v7353 = vadd.f32 %v6751, %v7277
        %v7354 = vadd.f32 %v6752, %v7282
        %v7355 = vadd.f32 %v6753, %v7285
        %v7356 = vadd.f32 %v6754, %v7290
        %v7357 = vadd.f32 %v6755, %v7293
        %v7358 = vadd.f32 %v6756, %v7298
        %v7359 = vadd.f32 %v6757, %v7301
        %v7360 = vadd.f32 %v6758, %v7306
        %v7361 = vadd.f32 %v6759, %v7309
        %v7362 = vadd.f32 %v6760, %v7314
        %v7363 = vadd.f32 %v6761, %v7317
        %v7364 = vadd.f32 %v6762, %v7322
        %v7365 = vadd.f32 %v6763, %v7325
        %v7366 = vadd.f32 %v6764, %v7330
        %v7367 = vadd.f32 %v6765, %v7333
        %v7368 = vld [vmem:[%s5] sm:$0xf]
        %v7370 = vlaneseq
        %v7371 = vshrl.u32 %v7370, 7
        %v7372 = vsub.s32 0, %v7371
        %v7373 = vrot.slane %v7368, %v7372
        %v7374 = vlaneseq
        %v7375 = vshrl.u32 %v7374, 7
        %v7376 = vsub.s32 1, %v7375
        %v7377 = vrot.slane %v7368, %v7376
        %v7378 = vlaneseq
        %v7379 = vshrl.u32 %v7378, 7
        %v7380 = vsub.s32 2, %v7379
        %v7381 = vrot.slane %v7368, %v7380
        %v7382 = vlaneseq
        %v7383 = vshrl.u32 %v7382, 7
        %v7384 = vsub.s32 3, %v7383
        %v7385 = vrot.slane %v7368, %v7384
        %v7390 = vmul.f32 %v1626, %v7373
        %v7391 = vmul.f32 %v3670, %v7377
        %v7392 = vmul.f32 %v5667, %v7381
        %v7393 = vmul.f32 %v7336, %v7385
        %v7394 = vmul.f32 %v1630, %v7373
        %v7395 = vmul.f32 %v3671, %v7377
        %v7396 = vmul.f32 %v5668, %v7381
        %v7397 = vmul.f32 %v7337, %v7385
        %v7398 = vmul.f32 %v1636, %v7373
        %v7399 = vmul.f32 %v3672, %v7377
        %v7400 = vmul.f32 %v5669, %v7381
        %v7401 = vmul.f32 %v7338, %v7385
        %v7402 = vmul.f32 %v1640, %v7373
        %v7403 = vmul.f32 %v3673, %v7377
        %v7404 = vmul.f32 %v5670, %v7381
        %v7405 = vmul.f32 %v7339, %v7385
        %v7406 = vmul.f32 %v1646, %v7373
        %v7407 = vmul.f32 %v3674, %v7377
        %v7408 = vmul.f32 %v5671, %v7381
        %v7409 = vmul.f32 %v7340, %v7385
        %v7410 = vmul.f32 %v1650, %v7373
        %v7411 = vmul.f32 %v3675, %v7377
        %v7412 = vmul.f32 %v5672, %v7381
        %v7413 = vmul.f32 %v7341, %v7385
        %v7414 = vmul.f32 %v1656, %v7373
        %v7415 = vmul.f32 %v3676, %v7377
        %v7416 = vmul.f32 %v5673, %v7381
        %v7417 = vmul.f32 %v7342, %v7385
        %v7418 = vmul.f32 %v1660, %v7373
        %v7419 = vmul.f32 %v3677, %v7377
        %v7420 = vmul.f32 %v5674, %v7381
        %v7421 = vmul.f32 %v7343, %v7385
        %v7422 = vmul.f32 %v1666, %v7373
        %v7423 = vmul.f32 %v3678, %v7377
        %v7424 = vmul.f32 %v5675, %v7381
        %v7425 = vmul.f32 %v7344, %v7385
        %v7426 = vmul.f32 %v1670, %v7373
        %v7427 = vmul.f32 %v3679, %v7377
        %v7428 = vmul.f32 %v5676, %v7381
        %v7429 = vmul.f32 %v7345, %v7385
        %v7430 = vmul.f32 %v1676, %v7373
        %v7431 = vmul.f32 %v3680, %v7377
        %v7432 = vmul.f32 %v5677, %v7381
        %v7433 = vmul.f32 %v7346, %v7385
        %v7434 = vmul.f32 %v1680, %v7373
        %v7435 = vmul.f32 %v3681, %v7377
        %v7436 = vmul.f32 %v5678, %v7381
        %v7437 = vmul.f32 %v7347, %v7385
        %v7438 = vmul.f32 %v1686, %v7373
        %v7439 = vmul.f32 %v3682, %v7377
        %v7440 = vmul.f32 %v5679, %v7381
        %v7441 = vmul.f32 %v7348, %v7385
        %v7442 = vmul.f32 %v1690, %v7373
        %v7443 = vmul.f32 %v3683, %v7377
        %v7444 = vmul.f32 %v5680, %v7381
        %v7445 = vmul.f32 %v7349, %v7385
        %v7446 = vmul.f32 %v1696, %v7373
        %v7447 = vmul.f32 %v3684, %v7377
        %v7448 = vmul.f32 %v5681, %v7381
        %v7449 = vmul.f32 %v7350, %v7385
        %v7450 = vmul.f32 %v1700, %v7373
        %v7451 = vmul.f32 %v3685, %v7377
        %v7452 = vmul.f32 %v5682, %v7381
        %v7453 = vmul.f32 %v7351, %v7385
        %v7454 = vmul.f32 %v1706, %v7373
        %v7455 = vmul.f32 %v3686, %v7377
        %v7456 = vmul.f32 %v5683, %v7381
        %v7457 = vmul.f32 %v7352, %v7385
        %v7458 = vmul.f32 %v1710, %v7373
        %v7459 = vmul.f32 %v3687, %v7377
        %v7460 = vmul.f32 %v5684, %v7381
        %v7461 = vmul.f32 %v7353, %v7385
        %v7462 = vmul.f32 %v1716, %v7373
        %v7463 = vmul.f32 %v3688, %v7377
        %v7464 = vmul.f32 %v5685, %v7381
        %v7465 = vmul.f32 %v7354, %v7385
        %v7466 = vmul.f32 %v1720, %v7373
        %v7467 = vmul.f32 %v3689, %v7377
        %v7468 = vmul.f32 %v5686, %v7381
        %v7469 = vmul.f32 %v7355, %v7385
        %v7470 = vmul.f32 %v1726, %v7373
        %v7471 = vmul.f32 %v3690, %v7377
        %v7472 = vmul.f32 %v5687, %v7381
        %v7473 = vmul.f32 %v7356, %v7385
        %v7474 = vmul.f32 %v1730, %v7373
        %v7475 = vmul.f32 %v3691, %v7377
        %v7476 = vmul.f32 %v5688, %v7381
        %v7477 = vmul.f32 %v7357, %v7385
        %v7478 = vmul.f32 %v1736, %v7373
        %v7479 = vmul.f32 %v3692, %v7377
        %v7480 = vmul.f32 %v5689, %v7381
        %v7481 = vmul.f32 %v7358, %v7385
        %v7482 = vmul.f32 %v1740, %v7373
        %v7483 = vmul.f32 %v3693, %v7377
        %v7484 = vmul.f32 %v5690, %v7381
        %v7485 = vmul.f32 %v7359, %v7385
        %v7486 = vmul.f32 %v1746, %v7373
        %v7487 = vmul.f32 %v3694, %v7377
        %v7488 = vmul.f32 %v5691, %v7381
        %v7489 = vmul.f32 %v7360, %v7385
        %v7490 = vmul.f32 %v1750, %v7373
        %v7491 = vmul.f32 %v3695, %v7377
        %v7492 = vmul.f32 %v5692, %v7381
        %v7493 = vmul.f32 %v7361, %v7385
        %v7494 = vmul.f32 %v1756, %v7373
        %v7495 = vmul.f32 %v3696, %v7377
        %v7496 = vmul.f32 %v5693, %v7381
        %v7497 = vmul.f32 %v7362, %v7385
        %v7498 = vmul.f32 %v1760, %v7373
        %v7499 = vmul.f32 %v3697, %v7377
        %v7500 = vmul.f32 %v5694, %v7381
        %v7501 = vmul.f32 %v7363, %v7385
        %v7502 = vmul.f32 %v1766, %v7373
        %v7503 = vmul.f32 %v3698, %v7377
        %v7504 = vmul.f32 %v5695, %v7381
        %v7505 = vmul.f32 %v7364, %v7385
        %v7506 = vmul.f32 %v1770, %v7373
        %v7507 = vmul.f32 %v3699, %v7377
        %v7508 = vmul.f32 %v5696, %v7381
        %v7509 = vmul.f32 %v7365, %v7385
        %v7510 = vmul.f32 %v1776, %v7373
        %v7511 = vmul.f32 %v3700, %v7377
        %v7512 = vmul.f32 %v5697, %v7381
        %v7513 = vmul.f32 %v7366, %v7385
        %v7514 = vmul.f32 %v1780, %v7373
        %v7515 = vmul.f32 %v3701, %v7377
        %v7516 = vmul.f32 %v5698, %v7381
        %v7517 = vmul.f32 %v7367, %v7385
        %v7518 = vld [vmem:[%s6] sm:$0xf]
        %v7520 = vlaneseq
        %v7521 = vshrl.u32 %v7520, 7
        %v7522 = vsub.s32 0, %v7521
        %v7523 = vrot.slane %v7518, %v7522
        %v7524 = vlaneseq
        %v7525 = vshrl.u32 %v7524, 7
        %v7526 = vsub.s32 1, %v7525
        %v7527 = vrot.slane %v7518, %v7526
        %v7528 = vlaneseq
        %v7529 = vshrl.u32 %v7528, 7
        %v7530 = vsub.s32 2, %v7529
        %v7531 = vrot.slane %v7518, %v7530
        %v7532 = vlaneseq
        %v7533 = vshrl.u32 %v7532, 7
        %v7534 = vsub.s32 3, %v7533
        %v7535 = vrot.slane %v7518, %v7534
        %v7540 = vadd.f32 %v7390, %v7523
        %v7541 = vadd.f32 %v7391, %v7527
        %v7542 = vadd.f32 %v7392, %v7531
        %v7543 = vadd.f32 %v7393, %v7535
        %v7544 = vadd.f32 %v7394, %v7523
        %v7545 = vadd.f32 %v7395, %v7527
        %v7546 = vadd.f32 %v7396, %v7531
        %v7547 = vadd.f32 %v7397, %v7535
        %v7548 = vadd.f32 %v7398, %v7523
        %v7549 = vadd.f32 %v7399, %v7527
        %v7550 = vadd.f32 %v7400, %v7531
        %v7551 = vadd.f32 %v7401, %v7535
        %v7552 = vadd.f32 %v7402, %v7523
        %v7553 = vadd.f32 %v7403, %v7527
        %v7554 = vadd.f32 %v7404, %v7531
        %v7555 = vadd.f32 %v7405, %v7535
        %v7556 = vadd.f32 %v7406, %v7523
        %v7557 = vadd.f32 %v7407, %v7527
        %v7558 = vadd.f32 %v7408, %v7531
        %v7559 = vadd.f32 %v7409, %v7535
        %v7560 = vadd.f32 %v7410, %v7523
        %v7561 = vadd.f32 %v7411, %v7527
        %v7562 = vadd.f32 %v7412, %v7531
        %v7563 = vadd.f32 %v7413, %v7535
        %v7564 = vadd.f32 %v7414, %v7523
        %v7565 = vadd.f32 %v7415, %v7527
        %v7566 = vadd.f32 %v7416, %v7531
        %v7567 = vadd.f32 %v7417, %v7535
        %v7568 = vadd.f32 %v7418, %v7523
        %v7569 = vadd.f32 %v7419, %v7527
        %v7570 = vadd.f32 %v7420, %v7531
        %v7571 = vadd.f32 %v7421, %v7535
        %v7572 = vadd.f32 %v7422, %v7523
        %v7573 = vadd.f32 %v7423, %v7527
        %v7574 = vadd.f32 %v7424, %v7531
        %v7575 = vadd.f32 %v7425, %v7535
        %v7576 = vadd.f32 %v7426, %v7523
        %v7577 = vadd.f32 %v7427, %v7527
        %v7578 = vadd.f32 %v7428, %v7531
        %v7579 = vadd.f32 %v7429, %v7535
        %v7580 = vadd.f32 %v7430, %v7523
        %v7581 = vadd.f32 %v7431, %v7527
        %v7582 = vadd.f32 %v7432, %v7531
        %v7583 = vadd.f32 %v7433, %v7535
        %v7584 = vadd.f32 %v7434, %v7523
        %v7585 = vadd.f32 %v7435, %v7527
        %v7586 = vadd.f32 %v7436, %v7531
        %v7587 = vadd.f32 %v7437, %v7535
        %v7588 = vadd.f32 %v7438, %v7523
        %v7589 = vadd.f32 %v7439, %v7527
        %v7590 = vadd.f32 %v7440, %v7531
        %v7591 = vadd.f32 %v7441, %v7535
        %v7592 = vadd.f32 %v7442, %v7523
        %v7593 = vadd.f32 %v7443, %v7527
        %v7594 = vadd.f32 %v7444, %v7531
        %v7595 = vadd.f32 %v7445, %v7535
        %v7596 = vadd.f32 %v7446, %v7523
        %v7597 = vadd.f32 %v7447, %v7527
        %v7598 = vadd.f32 %v7448, %v7531
        %v7599 = vadd.f32 %v7449, %v7535
        %v7600 = vadd.f32 %v7450, %v7523
        %v7601 = vadd.f32 %v7451, %v7527
        %v7602 = vadd.f32 %v7452, %v7531
        %v7603 = vadd.f32 %v7453, %v7535
        %v7604 = vadd.f32 %v7454, %v7523
        %v7605 = vadd.f32 %v7455, %v7527
        %v7606 = vadd.f32 %v7456, %v7531
        %v7607 = vadd.f32 %v7457, %v7535
        %v7608 = vadd.f32 %v7458, %v7523
        %v7609 = vadd.f32 %v7459, %v7527
        %v7610 = vadd.f32 %v7460, %v7531
        %v7611 = vadd.f32 %v7461, %v7535
        %v7612 = vadd.f32 %v7462, %v7523
        %v7613 = vadd.f32 %v7463, %v7527
        %v7614 = vadd.f32 %v7464, %v7531
        %v7615 = vadd.f32 %v7465, %v7535
        %v7616 = vadd.f32 %v7466, %v7523
        %v7617 = vadd.f32 %v7467, %v7527
        %v7618 = vadd.f32 %v7468, %v7531
        %v7619 = vadd.f32 %v7469, %v7535
        %v7620 = vadd.f32 %v7470, %v7523
        %v7621 = vadd.f32 %v7471, %v7527
        %v7622 = vadd.f32 %v7472, %v7531
        %v7623 = vadd.f32 %v7473, %v7535
        %v7624 = vadd.f32 %v7474, %v7523
        %v7625 = vadd.f32 %v7475, %v7527
        %v7626 = vadd.f32 %v7476, %v7531
        %v7627 = vadd.f32 %v7477, %v7535
        %v7628 = vadd.f32 %v7478, %v7523
        %v7629 = vadd.f32 %v7479, %v7527
        %v7630 = vadd.f32 %v7480, %v7531
        %v7631 = vadd.f32 %v7481, %v7535
        %v7632 = vadd.f32 %v7482, %v7523
        %v7633 = vadd.f32 %v7483, %v7527
        %v7634 = vadd.f32 %v7484, %v7531
        %v7635 = vadd.f32 %v7485, %v7535
        %v7636 = vadd.f32 %v7486, %v7523
        %v7637 = vadd.f32 %v7487, %v7527
        %v7638 = vadd.f32 %v7488, %v7531
        %v7639 = vadd.f32 %v7489, %v7535
        %v7640 = vadd.f32 %v7490, %v7523
        %v7641 = vadd.f32 %v7491, %v7527
        %v7642 = vadd.f32 %v7492, %v7531
        %v7643 = vadd.f32 %v7493, %v7535
        %v7644 = vadd.f32 %v7494, %v7523
        %v7645 = vadd.f32 %v7495, %v7527
        %v7646 = vadd.f32 %v7496, %v7531
        %v7647 = vadd.f32 %v7497, %v7535
        %v7648 = vadd.f32 %v7498, %v7523
        %v7649 = vadd.f32 %v7499, %v7527
        %v7650 = vadd.f32 %v7500, %v7531
        %v7651 = vadd.f32 %v7501, %v7535
        %v7652 = vadd.f32 %v7502, %v7523
        %v7653 = vadd.f32 %v7503, %v7527
        %v7654 = vadd.f32 %v7504, %v7531
        %v7655 = vadd.f32 %v7505, %v7535
        %v7656 = vadd.f32 %v7506, %v7523
        %v7657 = vadd.f32 %v7507, %v7527
        %v7658 = vadd.f32 %v7508, %v7531
        %v7659 = vadd.f32 %v7509, %v7535
        %v7660 = vadd.f32 %v7510, %v7523
        %v7661 = vadd.f32 %v7511, %v7527
        %v7662 = vadd.f32 %v7512, %v7531
        %v7663 = vadd.f32 %v7513, %v7535
        %v7664 = vadd.f32 %v7514, %v7523
        %v7665 = vadd.f32 %v7515, %v7527
        %v7666 = vadd.f32 %v7516, %v7531
        %v7667 = vadd.f32 %v7517, %v7535
        %v7668 = vmax.f32 %v7540, 0.0
        %v7669 = vmax.f32 %v7541, 0.0
        %v7670 = vmax.f32 %v7542, 0.0
        %v7671 = vmax.f32 %v7543, 0.0
        %v7672 = vmax.f32 %v7544, 0.0
        %v7673 = vmax.f32 %v7545, 0.0
        %v7674 = vmax.f32 %v7546, 0.0
        %v7675 = vmax.f32 %v7547, 0.0
        %v7676 = vmax.f32 %v7548, 0.0
        %v7677 = vmax.f32 %v7549, 0.0
        %v7678 = vmax.f32 %v7550, 0.0
        %v7679 = vmax.f32 %v7551, 0.0
        %v7680 = vmax.f32 %v7552, 0.0
        %v7681 = vmax.f32 %v7553, 0.0
        %v7682 = vmax.f32 %v7554, 0.0
        %v7683 = vmax.f32 %v7555, 0.0
        %v7684 = vmax.f32 %v7556, 0.0
        %v7685 = vmax.f32 %v7557, 0.0
        %v7686 = vmax.f32 %v7558, 0.0
        %v7687 = vmax.f32 %v7559, 0.0
        %v7688 = vmax.f32 %v7560, 0.0
        %v7689 = vmax.f32 %v7561, 0.0
        %v7690 = vmax.f32 %v7562, 0.0
        %v7691 = vmax.f32 %v7563, 0.0
        %v7692 = vmax.f32 %v7564, 0.0
        %v7693 = vmax.f32 %v7565, 0.0
        %v7694 = vmax.f32 %v7566, 0.0
        %v7695 = vmax.f32 %v7567, 0.0
        %v7696 = vmax.f32 %v7568, 0.0
        %v7697 = vmax.f32 %v7569, 0.0
        %v7698 = vmax.f32 %v7570, 0.0
        %v7699 = vmax.f32 %v7571, 0.0
        %v7700 = vmax.f32 %v7572, 0.0
        %v7701 = vmax.f32 %v7573, 0.0
        %v7702 = vmax.f32 %v7574, 0.0
        %v7703 = vmax.f32 %v7575, 0.0
        %v7704 = vmax.f32 %v7576, 0.0
        %v7705 = vmax.f32 %v7577, 0.0
        %v7706 = vmax.f32 %v7578, 0.0
        %v7707 = vmax.f32 %v7579, 0.0
        %v7708 = vmax.f32 %v7580, 0.0
        %v7709 = vmax.f32 %v7581, 0.0
        %v7710 = vmax.f32 %v7582, 0.0
        %v7711 = vmax.f32 %v7583, 0.0
        %v7712 = vmax.f32 %v7584, 0.0
        %v7713 = vmax.f32 %v7585, 0.0
        %v7714 = vmax.f32 %v7586, 0.0
        %v7715 = vmax.f32 %v7587, 0.0
        %v7716 = vmax.f32 %v7588, 0.0
        %v7717 = vmax.f32 %v7589, 0.0
        %v7718 = vmax.f32 %v7590, 0.0
        %v7719 = vmax.f32 %v7591, 0.0
        %v7720 = vmax.f32 %v7592, 0.0
        %v7721 = vmax.f32 %v7593, 0.0
        %v7722 = vmax.f32 %v7594, 0.0
        %v7723 = vmax.f32 %v7595, 0.0
        %v7724 = vmax.f32 %v7596, 0.0
        %v7725 = vmax.f32 %v7597, 0.0
        %v7726 = vmax.f32 %v7598, 0.0
        %v7727 = vmax.f32 %v7599, 0.0
        %v7728 = vmax.f32 %v7600, 0.0
        %v7729 = vmax.f32 %v7601, 0.0
        %v7730 = vmax.f32 %v7602, 0.0
        %v7731 = vmax.f32 %v7603, 0.0
        %v7732 = vmax.f32 %v7604, 0.0
        %v7733 = vmax.f32 %v7605, 0.0
        %v7734 = vmax.f32 %v7606, 0.0
        %v7735 = vmax.f32 %v7607, 0.0
        %v7736 = vmax.f32 %v7608, 0.0
        %v7737 = vmax.f32 %v7609, 0.0
        %v7738 = vmax.f32 %v7610, 0.0
        %v7739 = vmax.f32 %v7611, 0.0
        %v7740 = vmax.f32 %v7612, 0.0
        %v7741 = vmax.f32 %v7613, 0.0
        %v7742 = vmax.f32 %v7614, 0.0
        %v7743 = vmax.f32 %v7615, 0.0
        %v7744 = vmax.f32 %v7616, 0.0
        %v7745 = vmax.f32 %v7617, 0.0
        %v7746 = vmax.f32 %v7618, 0.0
        %v7747 = vmax.f32 %v7619, 0.0
        %v7748 = vmax.f32 %v7620, 0.0
        %v7749 = vmax.f32 %v7621, 0.0
        %v7750 = vmax.f32 %v7622, 0.0
        %v7751 = vmax.f32 %v7623, 0.0
        %v7752 = vmax.f32 %v7624, 0.0
        %v7753 = vmax.f32 %v7625, 0.0
        %v7754 = vmax.f32 %v7626, 0.0
        %v7755 = vmax.f32 %v7627, 0.0
        %v7756 = vmax.f32 %v7628, 0.0
        %v7757 = vmax.f32 %v7629, 0.0
        %v7758 = vmax.f32 %v7630, 0.0
        %v7759 = vmax.f32 %v7631, 0.0
        %v7760 = vmax.f32 %v7632, 0.0
        %v7761 = vmax.f32 %v7633, 0.0
        %v7762 = vmax.f32 %v7634, 0.0
        %v7763 = vmax.f32 %v7635, 0.0
        %v7764 = vmax.f32 %v7636, 0.0
        %v7765 = vmax.f32 %v7637, 0.0
        %v7766 = vmax.f32 %v7638, 0.0
        %v7767 = vmax.f32 %v7639, 0.0
        %v7768 = vmax.f32 %v7640, 0.0
        %v7769 = vmax.f32 %v7641, 0.0
        %v7770 = vmax.f32 %v7642, 0.0
        %v7771 = vmax.f32 %v7643, 0.0
        %v7772 = vmax.f32 %v7644, 0.0
        %v7773 = vmax.f32 %v7645, 0.0
        %v7774 = vmax.f32 %v7646, 0.0
        %v7775 = vmax.f32 %v7647, 0.0
        %v7776 = vmax.f32 %v7648, 0.0
        %v7777 = vmax.f32 %v7649, 0.0
        %v7778 = vmax.f32 %v7650, 0.0
        %v7779 = vmax.f32 %v7651, 0.0
        %v7780 = vmax.f32 %v7652, 0.0
        %v7781 = vmax.f32 %v7653, 0.0
        %v7782 = vmax.f32 %v7654, 0.0
        %v7783 = vmax.f32 %v7655, 0.0
        %v7784 = vmax.f32 %v7656, 0.0
        %v7785 = vmax.f32 %v7657, 0.0
        %v7786 = vmax.f32 %v7658, 0.0
        %v7787 = vmax.f32 %v7659, 0.0
        %v7788 = vmax.f32 %v7660, 0.0
        %v7789 = vmax.f32 %v7661, 0.0
        %v7790 = vmax.f32 %v7662, 0.0
        %v7791 = vmax.f32 %v7663, 0.0
        %v7792 = vmax.f32 %v7664, 0.0
        %v7793 = vmax.f32 %v7665, 0.0
        %v7794 = vmax.f32 %v7666, 0.0
        %v7795 = vmax.f32 %v7667, 0.0
        %v7796 = vpack.c.bf16 %v7672, %v7668
        %v7797 = vpack.c.bf16 %v7673, %v7669
        %v7798 = vpack.c.bf16 %v7674, %v7670
        %v7799 = vpack.c.bf16 %v7675, %v7671
        %v7800 = vpack.c.bf16 %v7680, %v7676
        %v7801 = vpack.c.bf16 %v7681, %v7677
        %v7802 = vpack.c.bf16 %v7682, %v7678
        %v7803 = vpack.c.bf16 %v7683, %v7679
        %v7804 = vpack.c.bf16 %v7688, %v7684
        %v7805 = vpack.c.bf16 %v7689, %v7685
        %v7806 = vpack.c.bf16 %v7690, %v7686
        %v7807 = vpack.c.bf16 %v7691, %v7687
        %v7808 = vpack.c.bf16 %v7696, %v7692
        %v7809 = vpack.c.bf16 %v7697, %v7693
        %v7810 = vpack.c.bf16 %v7698, %v7694
        %v7811 = vpack.c.bf16 %v7699, %v7695
        %v7812 = vpack.c.bf16 %v7704, %v7700
        %v7813 = vpack.c.bf16 %v7705, %v7701
        %v7814 = vpack.c.bf16 %v7706, %v7702
        %v7815 = vpack.c.bf16 %v7707, %v7703
        %v7816 = vpack.c.bf16 %v7712, %v7708
        %v7817 = vpack.c.bf16 %v7713, %v7709
        %v7818 = vpack.c.bf16 %v7714, %v7710
        %v7819 = vpack.c.bf16 %v7715, %v7711
        %v7820 = vpack.c.bf16 %v7720, %v7716
        %v7821 = vpack.c.bf16 %v7721, %v7717
        %v7822 = vpack.c.bf16 %v7722, %v7718
        %v7823 = vpack.c.bf16 %v7723, %v7719
        %v7824 = vpack.c.bf16 %v7728, %v7724
        %v7825 = vpack.c.bf16 %v7729, %v7725
        %v7826 = vpack.c.bf16 %v7730, %v7726
        %v7827 = vpack.c.bf16 %v7731, %v7727
        %v7828 = vpack.c.bf16 %v7736, %v7732
        %v7829 = vpack.c.bf16 %v7737, %v7733
        %v7830 = vpack.c.bf16 %v7738, %v7734
        %v7831 = vpack.c.bf16 %v7739, %v7735
        %v7832 = vpack.c.bf16 %v7744, %v7740
        %v7833 = vpack.c.bf16 %v7745, %v7741
        %v7834 = vpack.c.bf16 %v7746, %v7742
        %v7835 = vpack.c.bf16 %v7747, %v7743
        %v7836 = vpack.c.bf16 %v7752, %v7748
        %v7837 = vpack.c.bf16 %v7753, %v7749
        %v7838 = vpack.c.bf16 %v7754, %v7750
        %v7839 = vpack.c.bf16 %v7755, %v7751
        %v7840 = vpack.c.bf16 %v7760, %v7756
        %v7841 = vpack.c.bf16 %v7761, %v7757
        %v7842 = vpack.c.bf16 %v7762, %v7758
        %v7843 = vpack.c.bf16 %v7763, %v7759
        %v7844 = vpack.c.bf16 %v7768, %v7764
        %v7845 = vpack.c.bf16 %v7769, %v7765
        %v7846 = vpack.c.bf16 %v7770, %v7766
        %v7847 = vpack.c.bf16 %v7771, %v7767
        %v7848 = vpack.c.bf16 %v7776, %v7772
        %v7849 = vpack.c.bf16 %v7777, %v7773
        %v7850 = vpack.c.bf16 %v7778, %v7774
        %v7851 = vpack.c.bf16 %v7779, %v7775
        %v7852 = vpack.c.bf16 %v7784, %v7780
        %v7853 = vpack.c.bf16 %v7785, %v7781
        %v7854 = vpack.c.bf16 %v7786, %v7782
        %v7855 = vpack.c.bf16 %v7787, %v7783
        %v7856 = vpack.c.bf16 %v7792, %v7788
        %v7857 = vpack.c.bf16 %v7793, %v7789
        %v7858 = vpack.c.bf16 %v7794, %v7790
        %v7859 = vpack.c.bf16 %v7795, %v7791
        %v7860 = vld [vmem:[#allocation14] sm:$0xf]
        %v7861 = vld [vmem:[#allocation14 + $0x4] sm:$0xf]
        %v7862 = vld [vmem:[#allocation14 + $0x8] sm:$0xf]
        %v7863 = vld [vmem:[#allocation14 + $0xc] sm:$0xf]
        %v7864 = vld [vmem:[#allocation14 + $0x10] sm:$0xf]
        %v7865 = vld [vmem:[#allocation14 + $0x14] sm:$0xf]
        %v7866 = vld [vmem:[#allocation14 + $0x18] sm:$0xf]
        %v7867 = vld [vmem:[#allocation14 + $0x1c] sm:$0xf]
        %v7868 = vld [vmem:[#allocation14 + $0x20] sm:$0xf]
        %v7869 = vld [vmem:[#allocation14 + $0x24] sm:$0xf]
        %v7870 = vld [vmem:[#allocation14 + $0x28] sm:$0xf]
        %v7871 = vld [vmem:[#allocation14 + $0x2c] sm:$0xf]
        %v7872 = vld [vmem:[#allocation14 + $0x30] sm:$0xf]
        %v7873 = vld [vmem:[#allocation14 + $0x34] sm:$0xf]
        %v7874 = vld [vmem:[#allocation14 + $0x38] sm:$0xf]
        %v7875 = vld [vmem:[#allocation14 + $0x3c] sm:$0xf]
        %v7876 = vld [vmem:[#allocation14 + $0x40] sm:$0xf]
        %v7877 = vld [vmem:[#allocation14 + $0x44] sm:$0xf]
        %v7878 = vld [vmem:[#allocation14 + $0x48] sm:$0xf]
        %v7879 = vld [vmem:[#allocation14 + $0x4c] sm:$0xf]
        %v7880 = vld [vmem:[#allocation14 + $0x50] sm:$0xf]
        %v7881 = vld [vmem:[#allocation14 + $0x54] sm:$0xf]
        %v7882 = vld [vmem:[#allocation14 + $0x58] sm:$0xf]
        %v7883 = vld [vmem:[#allocation14 + $0x5c] sm:$0xf]
        %v7884 = vld [vmem:[#allocation14 + $0x60] sm:$0xf]
        %v7885 = vld [vmem:[#allocation14 + $0x64] sm:$0xf]
        %v7886 = vld [vmem:[#allocation14 + $0x68] sm:$0xf]
        %v7887 = vld [vmem:[#allocation14 + $0x6c] sm:$0xf]
        %v7888 = vld [vmem:[#allocation14 + $0x70] sm:$0xf]
        %v7889 = vld [vmem:[#allocation14 + $0x74] sm:$0xf]
        %v7890 = vld [vmem:[#allocation14 + $0x78] sm:$0xf]
        %v7891 = vld [vmem:[#allocation14 + $0x7c] sm:$0xf]
        %v7892 = vld [vmem:[#allocation14 + $0x80] sm:$0xf]
        %v7893 = vld [vmem:[#allocation14 + $0x84] sm:$0xf]
        %v7894 = vld [vmem:[#allocation14 + $0x88] sm:$0xf]
        %v7895 = vld [vmem:[#allocation14 + $0x8c] sm:$0xf]
        %v7896 = vld [vmem:[#allocation14 + $0x90] sm:$0xf]
        %v7897 = vld [vmem:[#allocation14 + $0x94] sm:$0xf]
        %v7898 = vld [vmem:[#allocation14 + $0x98] sm:$0xf]
        %v7899 = vld [vmem:[#allocation14 + $0x9c] sm:$0xf]
        %v7900 = vld [vmem:[#allocation14 + $0xa0] sm:$0xf]
        %v7901 = vld [vmem:[#allocation14 + $0xa4] sm:$0xf]
        %v7902 = vld [vmem:[#allocation14 + $0xa8] sm:$0xf]
        %v7903 = vld [vmem:[#allocation14 + $0xac] sm:$0xf]
        %v7904 = vld [vmem:[#allocation14 + $0xb0] sm:$0xf]
        %v7905 = vld [vmem:[#allocation14 + $0xb4] sm:$0xf]
        %v7906 = vld [vmem:[#allocation14 + $0xb8] sm:$0xf]
        %v7907 = vld [vmem:[#allocation14 + $0xbc] sm:$0xf]
        %v7908 = vld [vmem:[#allocation14 + $0xc0] sm:$0xf]
        %v7909 = vld [vmem:[#allocation14 + $0xc4] sm:$0xf]
        %v7910 = vld [vmem:[#allocation14 + $0xc8] sm:$0xf]
        %v7911 = vld [vmem:[#allocation14 + $0xcc] sm:$0xf]
        %v7912 = vld [vmem:[#allocation14 + $0xd0] sm:$0xf]
        %v7913 = vld [vmem:[#allocation14 + $0xd4] sm:$0xf]
        %v7914 = vld [vmem:[#allocation14 + $0xd8] sm:$0xf]
        %v7915 = vld [vmem:[#allocation14 + $0xdc] sm:$0xf]
        %v7916 = vld [vmem:[#allocation14 + $0xe0] sm:$0xf]
        %v7917 = vld [vmem:[#allocation14 + $0xe4] sm:$0xf]
        %v7918 = vld [vmem:[#allocation14 + $0xe8] sm:$0xf]
        %v7919 = vld [vmem:[#allocation14 + $0xec] sm:$0xf]
        %v7920 = vld [vmem:[#allocation14 + $0xf0] sm:$0xf]
        %v7921 = vld [vmem:[#allocation14 + $0xf4] sm:$0xf]
        %v7922 = vld [vmem:[#allocation14 + $0xf8] sm:$0xf]
        %v7923 = vld [vmem:[#allocation14 + $0xfc] sm:$0xf]
        %v7988 = vunpack.c.l.b16 %v7860
        %v7989 = vunpack.c.l.b16 %v7861
        %v7990 = vunpack.c.l.b16 %v7862
        %v7991 = vunpack.c.l.b16 %v7863
        %v7992 = vunpack.c.l.b16 %v7864
        %v7993 = vunpack.c.l.b16 %v7865
        %v7994 = vunpack.c.l.b16 %v7866
        %v7995 = vunpack.c.l.b16 %v7867
        %v7996 = vunpack.c.l.b16 %v7868
        %v7997 = vunpack.c.l.b16 %v7869
        %v7998 = vunpack.c.l.b16 %v7870
        %v7999 = vunpack.c.l.b16 %v7871
        %v8000 = vunpack.c.l.b16 %v7872
        %v8001 = vunpack.c.l.b16 %v7873
        %v8002 = vunpack.c.l.b16 %v7874
        %v8003 = vunpack.c.l.b16 %v7875
        %v8004 = vunpack.c.l.b16 %v7876
        %v8005 = vunpack.c.l.b16 %v7877
        %v8006 = vunpack.c.l.b16 %v7878
        %v8007 = vunpack.c.l.b16 %v7879
        %v8008 = vunpack.c.l.b16 %v7880
        %v8009 = vunpack.c.l.b16 %v7881
        %v8010 = vunpack.c.l.b16 %v7882
        %v8011 = vunpack.c.l.b16 %v7883
        %v8012 = vunpack.c.l.b16 %v7884
        %v8013 = vunpack.c.l.b16 %v7885
        %v8014 = vunpack.c.l.b16 %v7886
        %v8015 = vunpack.c.l.b16 %v7887
        %v8016 = vunpack.c.l.b16 %v7888
        %v8017 = vunpack.c.l.b16 %v7889
        %v8018 = vunpack.c.l.b16 %v7890
        %v8019 = vunpack.c.l.b16 %v7891
        %v8020 = vunpack.c.l.b16 %v7892
        %v8021 = vunpack.c.l.b16 %v7893
        %v8022 = vunpack.c.l.b16 %v7894
        %v8023 = vunpack.c.l.b16 %v7895
        %v8024 = vunpack.c.l.b16 %v7896
        %v8025 = vunpack.c.l.b16 %v7897
        %v8026 = vunpack.c.l.b16 %v7898
        %v8027 = vunpack.c.l.b16 %v7899
        %v8028 = vunpack.c.l.b16 %v7900
        %v8029 = vunpack.c.l.b16 %v7901
        %v8030 = vunpack.c.l.b16 %v7902
        %v8031 = vunpack.c.l.b16 %v7903
        %v8032 = vunpack.c.l.b16 %v7904
        %v8033 = vunpack.c.l.b16 %v7905
        %v8034 = vunpack.c.l.b16 %v7906
        %v8035 = vunpack.c.l.b16 %v7907
        %v8036 = vunpack.c.l.b16 %v7908
        %v8037 = vunpack.c.l.b16 %v7909
        %v8038 = vunpack.c.l.b16 %v7910
        %v8039 = vunpack.c.l.b16 %v7911
        %v8040 = vunpack.c.l.b16 %v7912
        %v8041 = vunpack.c.l.b16 %v7913
        %v8042 = vunpack.c.l.b16 %v7914
        %v8043 = vunpack.c.l.b16 %v7915
        %v8044 = vunpack.c.l.b16 %v7916
        %v8045 = vunpack.c.l.b16 %v7917
        %v8046 = vunpack.c.l.b16 %v7918
        %v8047 = vunpack.c.l.b16 %v7919
        %v8048 = vunpack.c.l.b16 %v7920
        %v8049 = vunpack.c.l.b16 %v7921
        %v8050 = vunpack.c.l.b16 %v7922
        %v8051 = vunpack.c.l.b16 %v7923
        %v8052 = vpack.c.b16 %v7989, %v7988
        %v8053 = vpack.c.b16 %v7991, %v7990
        %v8054 = vpack.c.b16 %v7993, %v7992
        %v8055 = vpack.c.b16 %v7995, %v7994
        %v8056 = vpack.c.b16 %v7997, %v7996
        %v8057 = vpack.c.b16 %v7999, %v7998
        %v8058 = vpack.c.b16 %v8001, %v8000
        %v8059 = vpack.c.b16 %v8003, %v8002
        %v8060 = vpack.c.b16 %v8005, %v8004
        %v8061 = vpack.c.b16 %v8007, %v8006
        %v8062 = vpack.c.b16 %v8009, %v8008
        %v8063 = vpack.c.b16 %v8011, %v8010
        %v8064 = vpack.c.b16 %v8013, %v8012
        %v8065 = vpack.c.b16 %v8015, %v8014
        %v8066 = vpack.c.b16 %v8017, %v8016
        %v8067 = vpack.c.b16 %v8019, %v8018
        %v8068 = vpack.c.b16 %v8021, %v8020
        %v8069 = vpack.c.b16 %v8023, %v8022
        %v8070 = vpack.c.b16 %v8025, %v8024
        %v8071 = vpack.c.b16 %v8027, %v8026
        %v8072 = vpack.c.b16 %v8029, %v8028
        %v8073 = vpack.c.b16 %v8031, %v8030
        %v8074 = vpack.c.b16 %v8033, %v8032
        %v8075 = vpack.c.b16 %v8035, %v8034
        %v8076 = vpack.c.b16 %v8037, %v8036
        %v8077 = vpack.c.b16 %v8039, %v8038
        %v8078 = vpack.c.b16 %v8041, %v8040
        %v8079 = vpack.c.b16 %v8043, %v8042
        %v8080 = vpack.c.b16 %v8045, %v8044
        %v8081 = vpack.c.b16 %v8047, %v8046
        %v8082 = vpack.c.b16 %v8049, %v8048
        %v8083 = vpack.c.b16 %v8051, %v8050
        %8116 = vmatprep.subr.bf16.mxu0 0
        %8117 = vmatpush1.bf16.msra.mxu0 %v8059
        %8118 = vmatprep.subr.bf16.mxu0 0
        %8119 = vmatpush1.bf16.msra.mxu0 %v8058
        %8120 = vmatprep.subr.bf16.mxu0 0
        %8121 = vmatpush1.bf16.msra.mxu0 %v8057
        %8122 = vmatprep.subr.bf16.mxu0 0
        %8123 = vmatpush1.bf16.msra.mxu0 %v8056
        %8124 = vmatprep.subr.bf16.mxu0 0
        %8125 = vmatpush1.bf16.msra.mxu0 %v8055
        %8126 = vmatprep.subr.bf16.mxu0 0
        %8127 = vmatpush1.bf16.msra.mxu0 %v8054
        %8128 = vmatprep.subr.bf16.mxu0 0
        %8129 = vmatpush1.bf16.msra.mxu0 %v8053
        %8130 = vmatprep.subr.bf16.mxu0 0
        %8131 = vmatpush1.bf16.msra.mxu0 %v8052
        %8132 = vmatprep.subr.bf16.mxu0 0
        %8133 = vmatpush2.bf16.msra.mxu0 %v8067
        %8134 = vmatprep.subr.bf16.mxu0 0
        %8135 = vmatpush2.bf16.msra.mxu0 %v8066
        %8136 = vmatprep.subr.bf16.mxu0 0
        %8137 = vmatpush2.bf16.msra.mxu0 %v8065
        %8138 = vmatprep.subr.bf16.mxu0 0
        %8139 = vmatpush2.bf16.msra.mxu0 %v8064
        %8140 = vmatprep.subr.bf16.mxu0 0
        %8141 = vmatpush2.bf16.msra.mxu0 %v8063
        %8142 = vmatprep.subr.bf16.mxu0 0
        %8143 = vmatpush2.bf16.msra.mxu0 %v8062
        %8144 = vmatprep.subr.bf16.mxu0 0
        %8145 = vmatpush2.bf16.msra.mxu0 %v8061
        %8146 = vmatprep.subr.bf16.mxu0 0
        %8147 = vmatpush2.bf16.msra.mxu0 %v8060
        %8148 = vmatprep.mubr.bf16.mxu0 %v7797
        %8149 = vmatmul.mubr.bf16.gmra.mxu0 %v7796
        %v8150 = vpop.f32.mrf.mxu0
        %v8151 = vadd.f32 0.0, %v8150
        %v8152 = vpop.f32.mrf.mxu0
        %v8153 = vpop.f32.mrf.mxu0
        %v8154 = vadd.f32 0.0, %v8153
        %v8155 = vpop.f32.mrf.mxu0
        %8156 = vmatprep.mubr.bf16.mxu0 %v7801
        %8157 = vmatmul.mubr.bf16.gmra.mxu0 %v7800
        %v8158 = vpop.f32.mrf.mxu0
        %v8159 = vadd.f32 0.0, %v8158
        %v8160 = vpop.f32.mrf.mxu0
        %v8161 = vpop.f32.mrf.mxu0
        %v8162 = vadd.f32 0.0, %v8161
        %v8163 = vpop.f32.mrf.mxu0
        %8164 = vmatprep.mubr.bf16.mxu0 %v7805
        %8165 = vmatmul.mubr.bf16.gmra.mxu0 %v7804
        %v8166 = vpop.f32.mrf.mxu0
        %v8167 = vadd.f32 0.0, %v8166
        %v8168 = vpop.f32.mrf.mxu0
        %v8169 = vpop.f32.mrf.mxu0
        %v8170 = vadd.f32 0.0, %v8169
        %v8171 = vpop.f32.mrf.mxu0
        %8172 = vmatprep.mubr.bf16.mxu0 %v7809
        %8173 = vmatmul.mubr.bf16.gmra.mxu0 %v7808
        %v8174 = vpop.f32.mrf.mxu0
        %v8175 = vadd.f32 0.0, %v8174
        %v8176 = vpop.f32.mrf.mxu0
        %v8177 = vpop.f32.mrf.mxu0
        %v8178 = vadd.f32 0.0, %v8177
        %v8179 = vpop.f32.mrf.mxu0
        %8180 = vmatprep.mubr.bf16.mxu0 %v7813
        %8181 = vmatmul.mubr.bf16.gmra.mxu0 %v7812
        %v8182 = vpop.f32.mrf.mxu0
        %v8183 = vadd.f32 0.0, %v8182
        %v8184 = vpop.f32.mrf.mxu0
        %v8185 = vpop.f32.mrf.mxu0
        %v8186 = vadd.f32 0.0, %v8185
        %v8187 = vpop.f32.mrf.mxu0
        %8188 = vmatprep.mubr.bf16.mxu0 %v7817
        %8189 = vmatmul.mubr.bf16.gmra.mxu0 %v7816
        %v8190 = vpop.f32.mrf.mxu0
        %v8191 = vadd.f32 0.0, %v8190
        %v8192 = vpop.f32.mrf.mxu0
        %v8193 = vpop.f32.mrf.mxu0
        %v8194 = vadd.f32 0.0, %v8193
        %v8195 = vpop.f32.mrf.mxu0
        %8196 = vmatprep.mubr.bf16.mxu0 %v7821
        %8197 = vmatmul.mubr.bf16.gmra.mxu0 %v7820
        %v8198 = vpop.f32.mrf.mxu0
        %v8199 = vadd.f32 0.0, %v8198
        %v8200 = vpop.f32.mrf.mxu0
        %v8201 = vpop.f32.mrf.mxu0
        %v8202 = vadd.f32 0.0, %v8201
        %v8203 = vpop.f32.mrf.mxu0
        %8204 = vmatprep.mubr.bf16.mxu0 %v7825
        %8205 = vmatmul.mubr.bf16.gmra.mxu0 %v7824
        %v8206 = vpop.f32.mrf.mxu0
        %v8207 = vadd.f32 0.0, %v8206
        %v8208 = vpop.f32.mrf.mxu0
        %v8209 = vpop.f32.mrf.mxu0
        %v8210 = vadd.f32 0.0, %v8209
        %v8211 = vpop.f32.mrf.mxu0
        %8212 = vmatprep.mubr.bf16.mxu0 %v7829
        %8213 = vmatmul.mubr.bf16.gmra.mxu0 %v7828
        %v8214 = vpop.f32.mrf.mxu0
        %v8215 = vadd.f32 0.0, %v8214
        %v8216 = vpop.f32.mrf.mxu0
        %v8217 = vpop.f32.mrf.mxu0
        %v8218 = vadd.f32 0.0, %v8217
        %v8219 = vpop.f32.mrf.mxu0
        %8220 = vmatprep.mubr.bf16.mxu0 %v7833
        %8221 = vmatmul.mubr.bf16.gmra.mxu0 %v7832
        %v8222 = vpop.f32.mrf.mxu0
        %v8223 = vadd.f32 0.0, %v8222
        %v8224 = vpop.f32.mrf.mxu0
        %v8225 = vpop.f32.mrf.mxu0
        %v8226 = vadd.f32 0.0, %v8225
        %v8227 = vpop.f32.mrf.mxu0
        %8228 = vmatprep.mubr.bf16.mxu0 %v7837
        %8229 = vmatmul.mubr.bf16.gmra.mxu0 %v7836
        %v8230 = vpop.f32.mrf.mxu0
        %v8231 = vadd.f32 0.0, %v8230
        %v8232 = vpop.f32.mrf.mxu0
        %v8233 = vpop.f32.mrf.mxu0
        %v8234 = vadd.f32 0.0, %v8233
        %v8235 = vpop.f32.mrf.mxu0
        %8236 = vmatprep.mubr.bf16.mxu0 %v7841
        %8237 = vmatmul.mubr.bf16.gmra.mxu0 %v7840
        %v8238 = vpop.f32.mrf.mxu0
        %v8239 = vadd.f32 0.0, %v8238
        %v8240 = vpop.f32.mrf.mxu0
        %v8241 = vpop.f32.mrf.mxu0
        %v8242 = vadd.f32 0.0, %v8241
        %v8243 = vpop.f32.mrf.mxu0
        %8244 = vmatprep.mubr.bf16.mxu0 %v7845
        %8245 = vmatmul.mubr.bf16.gmra.mxu0 %v7844
        %v8246 = vpop.f32.mrf.mxu0
        %v8247 = vadd.f32 0.0, %v8246
        %v8248 = vpop.f32.mrf.mxu0
        %v8249 = vpop.f32.mrf.mxu0
        %v8250 = vadd.f32 0.0, %v8249
        %v8251 = vpop.f32.mrf.mxu0
        %8252 = vmatprep.mubr.bf16.mxu0 %v7849
        %8253 = vmatmul.mubr.bf16.gmra.mxu0 %v7848
        %v8254 = vpop.f32.mrf.mxu0
        %v8255 = vadd.f32 0.0, %v8254
        %v8256 = vpop.f32.mrf.mxu0
        %v8257 = vpop.f32.mrf.mxu0
        %v8258 = vadd.f32 0.0, %v8257
        %v8259 = vpop.f32.mrf.mxu0
        %8260 = vmatprep.mubr.bf16.mxu0 %v7853
        %8261 = vmatmul.mubr.bf16.gmra.mxu0 %v7852
        %v8262 = vpop.f32.mrf.mxu0
        %v8263 = vadd.f32 0.0, %v8262
        %v8264 = vpop.f32.mrf.mxu0
        %v8265 = vpop.f32.mrf.mxu0
        %v8266 = vadd.f32 0.0, %v8265
        %v8267 = vpop.f32.mrf.mxu0
        %8268 = vmatprep.mubr.bf16.mxu0 %v7857
        %8269 = vmatmul.mubr.bf16.gmra.mxu0 %v7856
        %v8270 = vpop.f32.mrf.mxu0
        %v8271 = vadd.f32 0.0, %v8270
        %v8272 = vpop.f32.mrf.mxu0
        %v8273 = vpop.f32.mrf.mxu0
        %v8274 = vadd.f32 0.0, %v8273
        %v8275 = vpop.f32.mrf.mxu0
        %8276 = vdwg.mxu0
        %8277 = vmatprep.subr.bf16.mxu0 0
        %8278 = vmatpush1.bf16.msra.mxu0 %v8075
        %8279 = vmatprep.subr.bf16.mxu0 0
        %8280 = vmatpush1.bf16.msra.mxu0 %v8074
        %8281 = vmatprep.subr.bf16.mxu0 0
        %8282 = vmatpush1.bf16.msra.mxu0 %v8073
        %8283 = vmatprep.subr.bf16.mxu0 0
        %8284 = vmatpush1.bf16.msra.mxu0 %v8072
        %8285 = vmatprep.subr.bf16.mxu0 0
        %8286 = vmatpush1.bf16.msra.mxu0 %v8071
        %8287 = vmatprep.subr.bf16.mxu0 0
        %8288 = vmatpush1.bf16.msra.mxu0 %v8070
        %8289 = vmatprep.subr.bf16.mxu0 0
        %8290 = vmatpush1.bf16.msra.mxu0 %v8069
        %8291 = vmatprep.subr.bf16.mxu0 0
        %8292 = vmatpush1.bf16.msra.mxu0 %v8068
        %8293 = vmatprep.subr.bf16.mxu0 0
        %8294 = vmatpush2.bf16.msra.mxu0 %v8083
        %8295 = vmatprep.subr.bf16.mxu0 0
        %8296 = vmatpush2.bf16.msra.mxu0 %v8082
        %8297 = vmatprep.subr.bf16.mxu0 0
        %8298 = vmatpush2.bf16.msra.mxu0 %v8081
        %8299 = vmatprep.subr.bf16.mxu0 0
        %8300 = vmatpush2.bf16.msra.mxu0 %v8080
        %8301 = vmatprep.subr.bf16.mxu0 0
        %8302 = vmatpush2.bf16.msra.mxu0 %v8079
        %8303 = vmatprep.subr.bf16.mxu0 0
        %8304 = vmatpush2.bf16.msra.mxu0 %v8078
        %8305 = vmatprep.subr.bf16.mxu0 0
        %8306 = vmatpush2.bf16.msra.mxu0 %v8077
        %8307 = vmatprep.subr.bf16.mxu0 0
        %8308 = vmatpush2.bf16.msra.mxu0 %v8076
        %8309 = vmatprep.mubr.bf16.mxu0 %v7799
        %8310 = vmatmul.mubr.bf16.gmra.mxu0 %v7798
        %v8311 = vpop.f32.mrf.mxu0
        %v8312 = vadd.f32 %v8151, %v8311
        %v8313 = vpop.f32.mrf.mxu0
        %v8314 = vpop.f32.mrf.mxu0
        %v8315 = vadd.f32 %v8154, %v8314
        %v8316 = vpop.f32.mrf.mxu0
        %8317 = vmatprep.mubr.bf16.mxu0 %v7803
        %8318 = vmatmul.mubr.bf16.gmra.mxu0 %v7802
        %v8319 = vpop.f32.mrf.mxu0
        %v8320 = vadd.f32 %v8159, %v8319
        %v8321 = vpop.f32.mrf.mxu0
        %v8322 = vpop.f32.mrf.mxu0
        %v8323 = vadd.f32 %v8162, %v8322
        %v8324 = vpop.f32.mrf.mxu0
        %8325 = vmatprep.mubr.bf16.mxu0 %v7807
        %8326 = vmatmul.mubr.bf16.gmra.mxu0 %v7806
        %v8327 = vpop.f32.mrf.mxu0
        %v8328 = vadd.f32 %v8167, %v8327
        %v8329 = vpop.f32.mrf.mxu0
        %v8330 = vpop.f32.mrf.mxu0
        %v8331 = vadd.f32 %v8170, %v8330
        %v8332 = vpop.f32.mrf.mxu0
        %8333 = vmatprep.mubr.bf16.mxu0 %v7811
        %8334 = vmatmul.mubr.bf16.gmra.mxu0 %v7810
        %v8335 = vpop.f32.mrf.mxu0
        %v8336 = vadd.f32 %v8175, %v8335
        %v8337 = vpop.f32.mrf.mxu0
        %v8338 = vpop.f32.mrf.mxu0
        %v8339 = vadd.f32 %v8178, %v8338
        %v8340 = vpop.f32.mrf.mxu0
        %8341 = vmatprep.mubr.bf16.mxu0 %v7815
        %8342 = vmatmul.mubr.bf16.gmra.mxu0 %v7814
        %v8343 = vpop.f32.mrf.mxu0
        %v8344 = vadd.f32 %v8183, %v8343
        %v8345 = vpop.f32.mrf.mxu0
        %v8346 = vpop.f32.mrf.mxu0
        %v8347 = vadd.f32 %v8186, %v8346
        %v8348 = vpop.f32.mrf.mxu0
        %8349 = vmatprep.mubr.bf16.mxu0 %v7819
        %8350 = vmatmul.mubr.bf16.gmra.mxu0 %v7818
        %v8351 = vpop.f32.mrf.mxu0
        %v8352 = vadd.f32 %v8191, %v8351
        %v8353 = vpop.f32.mrf.mxu0
        %v8354 = vpop.f32.mrf.mxu0
        %v8355 = vadd.f32 %v8194, %v8354
        %v8356 = vpop.f32.mrf.mxu0
        %8357 = vmatprep.mubr.bf16.mxu0 %v7823
        %8358 = vmatmul.mubr.bf16.gmra.mxu0 %v7822
        %v8359 = vpop.f32.mrf.mxu0
        %v8360 = vadd.f32 %v8199, %v8359
        %v8361 = vpop.f32.mrf.mxu0
        %v8362 = vpop.f32.mrf.mxu0
        %v8363 = vadd.f32 %v8202, %v8362
        %v8364 = vpop.f32.mrf.mxu0
        %8365 = vmatprep.mubr.bf16.mxu0 %v7827
        %8366 = vmatmul.mubr.bf16.gmra.mxu0 %v7826
        %v8367 = vpop.f32.mrf.mxu0
        %v8368 = vadd.f32 %v8207, %v8367
        %v8369 = vpop.f32.mrf.mxu0
        %v8370 = vpop.f32.mrf.mxu0
        %v8371 = vadd.f32 %v8210, %v8370
        %v8372 = vpop.f32.mrf.mxu0
        %8373 = vmatprep.mubr.bf16.mxu0 %v7831
        %8374 = vmatmul.mubr.bf16.gmra.mxu0 %v7830
        %v8375 = vpop.f32.mrf.mxu0
        %v8376 = vadd.f32 %v8215, %v8375
        %v8377 = vpop.f32.mrf.mxu0
        %v8378 = vpop.f32.mrf.mxu0
        %v8379 = vadd.f32 %v8218, %v8378
        %v8380 = vpop.f32.mrf.mxu0
        %8381 = vmatprep.mubr.bf16.mxu0 %v7835
        %8382 = vmatmul.mubr.bf16.gmra.mxu0 %v7834
        %v8383 = vpop.f32.mrf.mxu0
        %v8384 = vadd.f32 %v8223, %v8383
        %v8385 = vpop.f32.mrf.mxu0
        %v8386 = vpop.f32.mrf.mxu0
        %v8387 = vadd.f32 %v8226, %v8386
        %v8388 = vpop.f32.mrf.mxu0
        %8389 = vmatprep.mubr.bf16.mxu0 %v7839
        %8390 = vmatmul.mubr.bf16.gmra.mxu0 %v7838
        %v8391 = vpop.f32.mrf.mxu0
        %v8392 = vadd.f32 %v8231, %v8391
        %v8393 = vpop.f32.mrf.mxu0
        %v8394 = vpop.f32.mrf.mxu0
        %v8395 = vadd.f32 %v8234, %v8394
        %v8396 = vpop.f32.mrf.mxu0
        %8397 = vmatprep.mubr.bf16.mxu0 %v7843
        %8398 = vmatmul.mubr.bf16.gmra.mxu0 %v7842
        %v8399 = vpop.f32.mrf.mxu0
        %v8400 = vadd.f32 %v8239, %v8399
        %v8401 = vpop.f32.mrf.mxu0
        %v8402 = vpop.f32.mrf.mxu0
        %v8403 = vadd.f32 %v8242, %v8402
        %v8404 = vpop.f32.mrf.mxu0
        %8405 = vmatprep.mubr.bf16.mxu0 %v7847
        %8406 = vmatmul.mubr.bf16.gmra.mxu0 %v7846
        %v8407 = vpop.f32.mrf.mxu0
        %v8408 = vadd.f32 %v8247, %v8407
        %v8409 = vpop.f32.mrf.mxu0
        %v8410 = vpop.f32.mrf.mxu0
        %v8411 = vadd.f32 %v8250, %v8410
        %v8412 = vpop.f32.mrf.mxu0
        %8413 = vmatprep.mubr.bf16.mxu0 %v7851
        %8414 = vmatmul.mubr.bf16.gmra.mxu0 %v7850
        %v8415 = vpop.f32.mrf.mxu0
        %v8416 = vadd.f32 %v8255, %v8415
        %v8417 = vpop.f32.mrf.mxu0
        %v8418 = vpop.f32.mrf.mxu0
        %v8419 = vadd.f32 %v8258, %v8418
        %v8420 = vpop.f32.mrf.mxu0
        %8421 = vmatprep.mubr.bf16.mxu0 %v7855
        %8422 = vmatmul.mubr.bf16.gmra.mxu0 %v7854
        %v8423 = vpop.f32.mrf.mxu0
        %v8424 = vadd.f32 %v8263, %v8423
        %v8425 = vpop.f32.mrf.mxu0
        %v8426 = vpop.f32.mrf.mxu0
        %v8427 = vadd.f32 %v8266, %v8426
        %v8428 = vpop.f32.mrf.mxu0
        %8429 = vmatprep.mubr.bf16.mxu0 %v7859
        %8430 = vmatmul.mubr.bf16.gmra.mxu0 %v7858
        %v8431 = vpop.f32.mrf.mxu0
        %v8432 = vadd.f32 %v8271, %v8431
        %v8433 = vpop.f32.mrf.mxu0
        %v8434 = vpop.f32.mrf.mxu0
        %v8435 = vadd.f32 %v8274, %v8434
        %v8436 = vpop.f32.mrf.mxu0
        %8437 = vdwg.mxu0
        %v8438 = vadd.f32 %v8312, %v1329
        %v8439 = vadd.f32 %v8315, %v1332
        %v8440 = vadd.f32 %v8320, %v1329
        %v8441 = vadd.f32 %v8323, %v1332
        %v8442 = vadd.f32 %v8328, %v1329
        %v8443 = vadd.f32 %v8331, %v1332
        %v8444 = vadd.f32 %v8336, %v1329
        %v8445 = vadd.f32 %v8339, %v1332
        %v8446 = vadd.f32 %v8344, %v1329
        %v8447 = vadd.f32 %v8347, %v1332
        %v8448 = vadd.f32 %v8352, %v1329
        %v8449 = vadd.f32 %v8355, %v1332
        %v8450 = vadd.f32 %v8360, %v1329
        %v8451 = vadd.f32 %v8363, %v1332
        %v8452 = vadd.f32 %v8368, %v1329
        %v8453 = vadd.f32 %v8371, %v1332
        %v8454 = vadd.f32 %v8376, %v1329
        %v8455 = vadd.f32 %v8379, %v1332
        %v8456 = vadd.f32 %v8384, %v1329
        %v8457 = vadd.f32 %v8387, %v1332
        %v8458 = vadd.f32 %v8392, %v1329
        %v8459 = vadd.f32 %v8395, %v1332
        %v8460 = vadd.f32 %v8400, %v1329
        %v8461 = vadd.f32 %v8403, %v1332
        %v8462 = vadd.f32 %v8408, %v1329
        %v8463 = vadd.f32 %v8411, %v1332
        %v8464 = vadd.f32 %v8416, %v1329
        %v8465 = vadd.f32 %v8419, %v1332
        %v8466 = vadd.f32 %v8424, %v1329
        %v8467 = vadd.f32 %v8427, %v1332
        %v8468 = vadd.f32 %v8432, %v1329
        %v8469 = vadd.f32 %v8435, %v1332
        %v8470 = vld [vmem:[%s12] sm:$0x1]
        %v8472 = vlaneseq
        %v8473 = vshrl.u32 %v8472, 7
        %v8474 = vsub.s32 0, %v8473
        %v8475 = vrot.slane %v8470, %v8474
        %v8477 = vmul.f32 %v8438, %v8475
        %v8478 = vmul.f32 %v8439, %v8475
        %v8479 = vmul.f32 %v8440, %v8475
        %v8480 = vmul.f32 %v8441, %v8475
        %v8481 = vmul.f32 %v8442, %v8475
        %v8482 = vmul.f32 %v8443, %v8475
        %v8483 = vmul.f32 %v8444, %v8475
        %v8484 = vmul.f32 %v8445, %v8475
        %v8485 = vmul.f32 %v8446, %v8475
        %v8486 = vmul.f32 %v8447, %v8475
        %v8487 = vmul.f32 %v8448, %v8475
        %v8488 = vmul.f32 %v8449, %v8475
        %v8489 = vmul.f32 %v8450, %v8475
        %v8490 = vmul.f32 %v8451, %v8475
        %v8491 = vmul.f32 %v8452, %v8475
        %v8492 = vmul.f32 %v8453, %v8475
        %v8493 = vmul.f32 %v8454, %v8475
        %v8494 = vmul.f32 %v8455, %v8475
        %v8495 = vmul.f32 %v8456, %v8475
        %v8496 = vmul.f32 %v8457, %v8475
        %v8497 = vmul.f32 %v8458, %v8475
        %v8498 = vmul.f32 %v8459, %v8475
        %v8499 = vmul.f32 %v8460, %v8475
        %v8500 = vmul.f32 %v8461, %v8475
        %v8501 = vmul.f32 %v8462, %v8475
        %v8502 = vmul.f32 %v8463, %v8475
        %v8503 = vmul.f32 %v8464, %v8475
        %v8504 = vmul.f32 %v8465, %v8475
        %v8505 = vmul.f32 %v8466, %v8475
        %v8506 = vmul.f32 %v8467, %v8475
        %v8507 = vmul.f32 %v8468, %v8475
        %v8508 = vmul.f32 %v8469, %v8475
        %v8509 = vld [vmem:[%s13] sm:$0x1]
        %v8511 = vlaneseq
        %v8512 = vshrl.u32 %v8511, 7
        %v8513 = vsub.s32 0, %v8512
        %v8514 = vrot.slane %v8509, %v8513
        %v8516 = vadd.f32 %v8477, %v8514
        %v8517 = vadd.f32 %v8478, %v8514
        %v8518 = vadd.f32 %v8479, %v8514
        %v8519 = vadd.f32 %v8480, %v8514
        %v8520 = vadd.f32 %v8481, %v8514
        %v8521 = vadd.f32 %v8482, %v8514
        %v8522 = vadd.f32 %v8483, %v8514
        %v8523 = vadd.f32 %v8484, %v8514
        %v8524 = vadd.f32 %v8485, %v8514
        %v8525 = vadd.f32 %v8486, %v8514
        %v8526 = vadd.f32 %v8487, %v8514
        %v8527 = vadd.f32 %v8488, %v8514
        %v8528 = vadd.f32 %v8489, %v8514
        %v8529 = vadd.f32 %v8490, %v8514
        %v8530 = vadd.f32 %v8491, %v8514
        %v8531 = vadd.f32 %v8492, %v8514
        %v8532 = vadd.f32 %v8493, %v8514
        %v8533 = vadd.f32 %v8494, %v8514
        %v8534 = vadd.f32 %v8495, %v8514
        %v8535 = vadd.f32 %v8496, %v8514
        %v8536 = vadd.f32 %v8497, %v8514
        %v8537 = vadd.f32 %v8498, %v8514
        %v8538 = vadd.f32 %v8499, %v8514
        %v8539 = vadd.f32 %v8500, %v8514
        %v8540 = vadd.f32 %v8501, %v8514
        %v8541 = vadd.f32 %v8502, %v8514
        %v8542 = vadd.f32 %v8503, %v8514
        %v8543 = vadd.f32 %v8504, %v8514
        %v8544 = vadd.f32 %v8505, %v8514
        %v8545 = vadd.f32 %v8506, %v8514
        %v8546 = vadd.f32 %v8507, %v8514
        %v8547 = vadd.f32 %v8508, %v8514
        %v8548 = vmax.f32 %v8516, 0.0
        %v8549 = vmax.f32 %v8517, 0.0
        %v8550 = vmax.f32 %v8518, 0.0
        %v8551 = vmax.f32 %v8519, 0.0
        %v8552 = vmax.f32 %v8520, 0.0
        %v8553 = vmax.f32 %v8521, 0.0
        %v8554 = vmax.f32 %v8522, 0.0
        %v8555 = vmax.f32 %v8523, 0.0
        %v8556 = vmax.f32 %v8524, 0.0
        %v8557 = vmax.f32 %v8525, 0.0
        %v8558 = vmax.f32 %v8526, 0.0
        %v8559 = vmax.f32 %v8527, 0.0
        %v8560 = vmax.f32 %v8528, 0.0
        %v8561 = vmax.f32 %v8529, 0.0
        %v8562 = vmax.f32 %v8530, 0.0
        %v8563 = vmax.f32 %v8531, 0.0
        %v8564 = vmax.f32 %v8532, 0.0
        %v8565 = vmax.f32 %v8533, 0.0
        %v8566 = vmax.f32 %v8534, 0.0
        %v8567 = vmax.f32 %v8535, 0.0
        %v8568 = vmax.f32 %v8536, 0.0
        %v8569 = vmax.f32 %v8537, 0.0
        %v8570 = vmax.f32 %v8538, 0.0
        %v8571 = vmax.f32 %v8539, 0.0
        %v8572 = vmax.f32 %v8540, 0.0
        %v8573 = vmax.f32 %v8541, 0.0
        %v8574 = vmax.f32 %v8542, 0.0
        %v8575 = vmax.f32 %v8543, 0.0
        %v8576 = vmax.f32 %v8544, 0.0
        %v8577 = vmax.f32 %v8545, 0.0
        %v8578 = vmax.f32 %v8546, 0.0
        %v8579 = vmax.f32 %v8547, 0.0
        %8580 = vst [vmem:[%s599] sm:$0xff] %v8548
        %8581 = vst [vmem:[%s599 + $0x8] sm:$0xff] %v8549
        %8582 = vst [vmem:[%s599 + $0x10] sm:$0xff] %v8550
        %8583 = vst [vmem:[%s599 + $0x18] sm:$0xff] %v8551
        %8584 = vst [vmem:[%s599 + $0x20] sm:$0xff] %v8552
        %8585 = vst [vmem:[%s599 + $0x28] sm:$0xff] %v8553
        %8586 = vst [vmem:[%s599 + $0x30] sm:$0xff] %v8554
        %8587 = vst [vmem:[%s599 + $0x38] sm:$0xff] %v8555
        %8588 = vst [vmem:[%s599 + $0x40] sm:$0xff] %v8556
        %8589 = vst [vmem:[%s599 + $0x48] sm:$0xff] %v8557
        %8590 = vst [vmem:[%s599 + $0x50] sm:$0xff] %v8558
        %8591 = vst [vmem:[%s599 + $0x58] sm:$0xff] %v8559
        %8592 = vst [vmem:[%s599 + $0x60] sm:$0xff] %v8560
        %8593 = vst [vmem:[%s599 + $0x68] sm:$0xff] %v8561
        %8594 = vst [vmem:[%s599 + $0x70] sm:$0xff] %v8562
        %8595 = vst [vmem:[%s599 + $0x78] sm:$0xff] %v8563
        %8596 = vst [vmem:[%s599 + $0x80] sm:$0xff] %v8564
        %8597 = vst [vmem:[%s599 + $0x88] sm:$0xff] %v8565
        %8598 = vst [vmem:[%s599 + $0x90] sm:$0xff] %v8566
        %8599 = vst [vmem:[%s599 + $0x98] sm:$0xff] %v8567
        %8600 = vst [vmem:[%s599 + $0xa0] sm:$0xff] %v8568
        %8601 = vst [vmem:[%s599 + $0xa8] sm:$0xff] %v8569
        %8602 = vst [vmem:[%s599 + $0xb0] sm:$0xff] %v8570
        %8603 = vst [vmem:[%s599 + $0xb8] sm:$0xff] %v8571
        %8604 = vst [vmem:[%s599 + $0xc0] sm:$0xff] %v8572
        %8605 = vst [vmem:[%s599 + $0xc8] sm:$0xff] %v8573
        %8606 = vst [vmem:[%s599 + $0xd0] sm:$0xff] %v8574
        %8607 = vst [vmem:[%s599 + $0xd8] sm:$0xff] %v8575
        %8608 = vst [vmem:[%s599 + $0xe0] sm:$0xff] %v8576
        %8609 = vst [vmem:[%s599 + $0xe8] sm:$0xff] %v8577
        %8610 = vst [vmem:[%s599 + $0xf0] sm:$0xff] %v8578
        %8611 = vst [vmem:[%s599 + $0xf8] sm:$0xff] %v8579
        %s8612 = sand.u32 %s342, 1
        %s8613 = scalar_lea.sflag [#allocation4], %s8612
        %s8614 = sand.u32 %s342, 1
        %s8615 = smul.addr %s8614, 256
        %s8616 = scalar_lea.vmem [#allocation17], %s8615
        // Predicated region
        $region113: #{tpu_custom_call.1} parent=75 // pred_check
          %p8617 = pneg %p352
        $region114: #{tpu_custom_call.1} parent=75 // pred_check_branch
          %8619 = sbr.rel (%p8617) target = $region116
        $region115: #{tpu_custom_call.1} parent=75 // pred_region
          %s8621 = ssub.s32 4096, 4096
          %8622 = vsyncadd %s8613, %s8621
          %s8623 = smul.addr %s35, 32
          %s8624 = smul.addr %s8623, 128
          %s8625 = scalar_lea.hbm %s14, %s8624
          %s8626 = sshll.u32 %s8616, 4
          %s8627 = int_to_ptr.vmem [resolvable:$true] %s8626
          %8632 = dma.vmem_to_hbm [thread:$0]  %s8627, 4096, %s8625, %s8613, 128, 128, 8
        $region116: #{tpu_custom_call.1} parent=75 // pred_fallthru
          _
      $region76: #{tpu_custom_call.1} parent=5 // pred_fallthru
        _
      %p8633 = scmp.le.s32.totalorder 2, %s30
      // Predicated region
      $region117: #{tpu_custom_call.1} parent=5 // pred_check
        %p8634 = pneg %p8633
      $region118: #{tpu_custom_call.1} parent=5 // pred_check_branch
        %8636 = sbr.rel (%p8634) target = $region120
      $region119: #{tpu_custom_call.1} parent=5 // pred_region
        %s8637 = ssub.s32 %s30, 2
        // Predicated region
        $region121: #{tpu_custom_call.1} parent=119 // pred_check
          %p8638 = pneg %p358
        $region122: #{tpu_custom_call.1} parent=119 // pred_check_branch
          %8640 = sbr.rel (%p8638) target = $region124
        $region123: #{tpu_custom_call.1} parent=119 // pred_region
          %s8641 = sand.u32 %s343, 1
          %s8642 = scalar_lea.sflag [#allocation4], %s8641
          %s8643 = sand.u32 %s343, 1
          %s8644 = smul.addr %s8643, 256
          %s8645 = scalar_lea.vmem [#allocation17], %s8644
          %8646 = dma.done %s8642, 4096
        $region124: #{tpu_custom_call.1} parent=119 // pred_fallthru
          _
      $region120: #{tpu_custom_call.1} parent=5 // pred_fallthru
        _
    $region6: #{tpu_custom_call.1} parent=1 // loop_footer
      %s34 = sadd.s32 1, %s30
    $region7: #{tpu_custom_call.1} parent=1 // loop_footer_branch
      %29 = sbr.rel target = $region3
    $region8: #{tpu_custom_call.1} parent=1 // loop_exit
      _
    %8647 = vsyncpa [#allocation3], 1
    %s8648 = scalar_lea.sflag [#allocation3], 1
    %8649 = vsyncpa %s8648, 1
    %8650 = vsyncpa [#allocation6], 1
    %8651 = vsyncpa [#allocation9], 1
    %8652 = vsyncpa [#allocation12], 1
    %8653 = vsyncpa [#allocation15], 1
    %8654 = vsyncpa [#allocation4], 1
    %s8655 = scalar_lea.sflag [#allocation4], 1
    %8656 = vsyncpa %s8655, 1

</llo_original>
